<compile_context>
chip_gen: v5e
topology: v5e:2x2
jax: 0.10.0
libtpu: 0.0.40
codegen_flags: <defaults>
</compile_context>

<pallas_src>
import functools

import jax
import jax.numpy as jnp
from jax.experimental import pallas as pl
from jax.experimental.pallas import tpu as pltpu


# ----------------------------- GELU variants ---------------------------------
def _gelu_exact(x):
    # PyTorch nn.GELU() default: exact erf form.
    return 0.5 * x * (1.0 + jax.lax.erf(x * 0.7071067811865476))


def _gelu_tanh(x):
    return jax.nn.gelu(x, approximate=True)


def _erf_supported():
    """Probe whether lax.erf lowers through Mosaic on this install."""
    def k(x_ref, o_ref):
        o_ref[...] = jax.lax.erf(x_ref[...])

    try:
        f = pl.pallas_call(k, out_shape=jax.ShapeDtypeStruct((8, 128), jnp.float32))
        jax.block_until_ready(f(jnp.ones((8, 128), jnp.float32)))
        return True
    except Exception:
        return False


# ------------------------------- kernel --------------------------------------
def _ta_kernel(x_ref,
               wp1_ref, bp1_ref,
               k0_ref, b0_ref, rm0_ref, cm0_ref,
               k1_ref, b1_ref, rm1_ref, cm1_ref,
               wc1_ref, bc1_ref,
               wfc1t_ref, wfc2_ref,
               wp2_ref, bp2_ref,
               o_ref, *, H, W, d_k, dd_k, dilation, gelu_fn, r_chunk):
    R, HW = x_ref.shape                       # R = bt*C (sublanes), HW = H*W (lanes)

    x = x_ref[...]                            # (R, HW) f32, lane-dense

    # ---- proj_1 (1x1 conv == channel matmul on the MXU) + GELU ---------------
    act = gelu_fn(
        jnp.dot(wp1_ref[...], x, preferred_element_type=jnp.float32)
        + bp1_ref[...])                       # (R, HW)

    # Depthwise weight tables, lane-dense: (R, kk*kk), tap t = i*kk + j.
    k0 = k0_ref[...]
    k1 = k1_ref[...]
    b0 = b0_ref[...]                          # (R, 1)
    b1 = b1_ref[...]

    # ---- separable depthwise conv on one channel chunk ------------------------
    # out = sum_i rowmask_i * roll_{di*W}( sum_j w[:, i*kk+j] * colmask_j * roll_{dj}(v) )
    # Exact: masks depend only on (lane % W) / (lane // W) and commute with the
    # row roll (multiple of W); per-channel weights are lane-constant.
    def dw_chunk(vc, kw_c, bias_c, rm_ref, cm_ref, kk, dil):
        pad = dil * (kk - 1) // 2
        # kk horizontally-rolled, column-masked copies (kk rolls + kk mask muls).
        hs = []
        for j in range(kk):
            dj = j * dil - pad
            sh = (-dj) % HW
            s = pltpu.roll(vc, sh, axis=1) if sh else vc
            hs.append(s * cm_ref[j])          # cm_ref[j]: (1, HW) column mask
        acc = None                            # single accumulator (no zeros init)
        for i in range(kk):
            di = i * dil - pad
            p = None
            for j in range(kk):
                t = i * kk + j
                term = hs[j] * kw_c[:, t:t + 1]        # per-channel tap weight
                p = term if p is None else p + term
            sh = (-(di * W)) % HW
            p = pltpu.roll(p, sh, axis=1) if sh else p  # one row roll per i
            p = p * rm_ref[i]                           # one row mask per i
            acc = p if acc is None else acc + p
        return acc + bias_c

    # ---- both depthwise convs, strip-mined over channel chunks ----------------
    # Depthwise convs are per-channel, so chunking the sublane (channel) axis is
    # exact and keeps the kk live shifted copies within the 64-vreg budget.
    chunks = []
    for r0 in range(0, R, r_chunk):
        r1 = r0 + r_chunk
        a_c = act[r0:r1, :]
        t_c = dw_chunk(a_c, k0[r0:r1, :], b0[r0:r1, :], rm0_ref, cm0_ref, d_k, 1)
        t_c = dw_chunk(t_c, k1[r0:r1, :], b1[r0:r1, :], rm1_ref, cm1_ref,
                       dd_k, dilation)
        chunks.append(t_c)
    attn = chunks[0] if len(chunks) == 1 else jnp.concatenate(chunks, axis=0)

    # ---- conv1 (1x1 conv) ------------------------------------------------------
    f_x = (jnp.dot(wc1_ref[...], attn, preferred_element_type=jnp.float32)
           + bc1_ref[...])                    # (R, HW)

    # ---- squeeze-excite on `act`, kept off the MXU (VPU mul + XLU reduce) -----
    pooled = jnp.sum(act, axis=1, keepdims=True) * (1.0 / HW)            # (R, 1)
    hid = jnp.maximum(
        jnp.sum(wfc1t_ref[...] * pooled, axis=0, keepdims=True), 0.0)    # (1, bt*hid)
    se = jax.nn.sigmoid(
        jnp.sum(wfc2_ref[...] * hid, axis=1, keepdims=True))             # (R, 1)

    gated = se * f_x * act                    # (R, HW) elementwise, lane-dense

    # ---- proj_2 (1x1 conv) + residual shortcut, dense store -------------------
    out = (jnp.dot(wp2_ref[...], gated, preferred_element_type=jnp.float32)
           + bp2_ref[...])
    o_ref[...] = (out + x).astype(o_ref.dtype)


# ------------------------------- wrapper --------------------------------------
def temporal_attention_pallas(x, p, *, dilation=3, gelu_fn=_gelu_exact,
                              batch_tile=None):
    """x: (B, C, H, W) float32 (NCHW, same layout as the PyTorch module)."""
    B, C, H, W = x.shape
    HW = H * W
    d_k = p["k0"].shape[-1]
    dd_k = p["k1"].shape[-1]

    if batch_tile is None:
        # Fold 2 images per grid step while keeping >=2 parallel grid blocks
        # (v7x has 2 TensorCores); otherwise 1 image per step.
        batch_tile = 2 if (B >= 4 and B % 2 == 0) else 1
    bt = batch_tile
    assert B % bt == 0, "batch must be divisible by batch_tile"
    R = bt * C
    f32 = jnp.float32

    # Sublane strip-mine width for the depthwise loops (live-vreg control).
    if R % 16 == 0:
        r_chunk = 16
    elif R % 8 == 0:
        r_chunk = 8
    else:
        r_chunk = R

    # ---- wrapper-side layout prep (static, plain XLA, negligible cost) -------
    x2d = x.reshape(B * C, HW)                # NCHW flatten: rows=(b,c), lanes=(h,w)

    eye = jnp.eye(bt, dtype=f32)

    def bdiag(w):                             # block-diag over the batch tile
        return jnp.kron(eye, w.astype(f32))

    def col(b):                               # (C,) -> (bt*C, 1) sublane column
        return jnp.tile(b.astype(f32), bt)[:, None]

    def dw_lanes(k):                          # (C, kk, kk) -> (bt*C, kk*kk) lane-dense
        kk = k.shape[-1]
        w = k.reshape(C, kk * kk).astype(f32)
        return jnp.tile(w, (bt, 1))

    def row_masks(kk, dil):                   # (kk, 1, HW): valid 0 <= h+di < H
        pad = dil * (kk - 1) // 2
        hh = jnp.arange(H)
        rows = []
        for i in range(kk):
            di = i * dil - pad
            m = ((hh + di >= 0) & (hh + di < H)).astype(f32)   # (H,)
            rows.append(jnp.repeat(m, W))                      # h = lane // W
        return jnp.stack(rows)[:, None, :]

    def col_masks(kk, dil):                   # (kk, 1, HW): valid 0 <= w+dj < W
        pad = dil * (kk - 1) // 2
        ww = jnp.arange(W)
        rows = []
        for j in range(kk):
            dj = j * dil - pad
            m = ((ww + dj >= 0) & (ww + dj < W)).astype(f32)   # (W,)
            rows.append(jnp.tile(m, H))                        # w = lane % W
        return jnp.stack(rows)[:, None, :]

    params = [
        bdiag(p["wp1"]), col(p["bp1"]),
        dw_lanes(p["k0"]), col(p["b0"]), row_masks(d_k, 1), col_masks(d_k, 1),
        dw_lanes(p["k1"]), col(p["b1"]), row_masks(dd_k, dilation),
        col_masks(dd_k, dilation),
        bdiag(p["wc1"]), col(p["bc1"]),
        bdiag(p["wfc1"].T), bdiag(p["wfc2"]),
        bdiag(p["wp2"]), col(p["bp2"]),
    ]

    def full_spec(a):
        nd = a.ndim
        return pl.BlockSpec(a.shape, lambda g, _nd=nd: (0,) * _nd)

    kern = functools.partial(_ta_kernel, H=H, W=W, d_k=d_k, dd_k=dd_k,
                             dilation=dilation, gelu_fn=gelu_fn, r_chunk=r_chunk)

    out2d = pl.pallas_call(
        kern,
        out_shape=jax.ShapeDtypeStruct((B * C, HW), x.dtype),
        grid_spec=pltpu.PrefetchScalarGridSpec(
            num_scalar_prefetch=0,
            grid=(B // bt,),
            in_specs=[pl.BlockSpec((R, HW), lambda g: (g, 0))]
                     + [full_spec(a) for a in params],
            out_specs=pl.BlockSpec((R, HW), lambda g: (g, 0)),
        ),
        compiler_params=pltpu.CompilerParams(
            dimension_semantics=("parallel",),
            vmem_limit_bytes=32 * 1024 * 1024,
        ),
    )(x2d, *params)

    return out2d.reshape(B, C, H, W)


# --------------------------- deterministic params -----------------------------
def init_params(key, dim, kernel_size=21, dilation=3, reduction=16):
    d_k = 2 * dilation - 1                                              # 5
    dd_k = kernel_size // dilation + (kernel_size // dilation % 2 - 1)  # 7
    red = max(dim // reduction, 4)
    hidden = dim // red
    ks = jax.random.split(key, 12)
    s = 0.1
    f32 = jnp.float32
    return dict(
        wp1=jax.random.normal(ks[0], (dim, dim), f32) * s,      # (C_out, C_in)
        bp1=jax.random.normal(ks[1], (dim,), f32) * s,
        k0=jax.random.normal(ks[2], (dim, d_k, d_k), f32) * s,  # depthwise (C, kh, kw)
        b0=jax.random.normal(ks[3], (dim,), f32) * s,
        k1=jax.random.normal(ks[4], (dim, dd_k, dd_k), f32) * s,
        b1=jax.random.normal(ks[5], (dim,), f32) * s,
        wc1=jax.random.normal(ks[6], (dim, dim), f32) * s,
        bc1=jax.random.normal(ks[7], (dim,), f32) * s,
        wfc1=jax.random.normal(ks[8], (hidden, dim), f32) * s,  # Linear (out, in)
        wfc2=jax.random.normal(ks[9], (dim, hidden), f32) * s,
        wp2=jax.random.normal(ks[10], (dim, dim), f32) * s,
        bp2=jax.random.normal(ks[11], (dim,), f32) * s,
    )


# ------------------------------ pure-JAX reference ----------------------------
def temporal_attention_ref(x, p, *, dilation=3, gelu_fn=_gelu_exact):
    hp = jax.lax.Precision.HIGHEST
    C = x.shape[1]

    def conv1x1(t, w, b):
        return jnp.einsum("oc,bchw->bohw", w, t, precision=hp) + b[None, :, None, None]

    def dwconv(t, k, b, dil, padn):
        w = k[:, None, :, :]                 # (C, 1, kh, kw) OIHW
        out = jax.lax.conv_general_dilated(
            t, w, window_strides=(1, 1),
            padding=[(padn, padn), (padn, padn)],
            rhs_dilation=(dil, dil),
            dimension_numbers=("NCHW", "OIHW", "NCHW"),
            feature_group_count=C,
            precision=hp)
        return out + b[None, :, None, None]

    d_k = p["k0"].shape[-1]
    d_p = (d_k - 1) // 2
    dd_k = p["k1"].shape[-1]
    dd_p = dilation * (dd_k - 1) // 2

    shortcut = x
    act = gelu_fn(conv1x1(x, p["wp1"], p["bp1"]))
    t = dwconv(act, p["k0"], p["b0"], 1, d_p)
    t = dwconv(t, p["k1"], p["b1"], dilation, dd_p)
    f_x = conv1x1(t, p["wc1"], p["bc1"])
    pooled = jnp.mean(act, axis=(2, 3))                              # (B, C)
    se = jax.nn.sigmoid(
        jnp.dot(jnp.maximum(jnp.dot(pooled, p["wfc1"].T, precision=hp), 0.0),
                p["wfc2"].T, precision=hp))
    gated = se[:, :, None, None] * f_x * act
    return conv1x1(gated, p["wp2"], p["bp2"]) + shortcut


# ----------------------------------- main --------------------------------------
if __name__ == "__main__":
    B, C, H, W = 4, 32, 16, 16                     # NCHW, like the PyTorch module
    key = jax.random.PRNGKey(0)
    kx, kp = jax.random.split(key)

    x = jax.random.normal(kx, (B, C, H, W), jnp.float32)
    params = init_params(kp, C, kernel_size=21, dilation=3, reduction=16)

    if _erf_supported():
        gelu_fn = _gelu_exact
    else:
        # TODO(synk): lax.erf did not lower on this Mosaic build; falling back to
        # tanh-approximate GELU (PyTorch nn.GELU() default is the exact erf form).
        gelu_fn = _gelu_tanh

    out = temporal_attention_pallas(x, params, dilation=3, gelu_fn=gelu_fn)
    out = jax.block_until_ready(out)

    ref = temporal_attention_ref(x, params, dilation=3, gelu_fn=gelu_fn)
    assert out.shape == (B, C, H, W)
    max_err = float(jnp.max(jnp.abs(out - ref)))
    assert bool(jnp.allclose(out, ref, atol=2e-3, rtol=2e-3)), f"max abs err={max_err}"

    print("KERNEL_OK")
</pallas_src>

<mosaic_0001>
module attributes {stable_mosaic.version = 11 : i64} {
  func.func @k(%arg0: memref<8x128xf32, #tpu.memory_space<vmem>>, %arg1: memref<8x128xf32, #tpu.memory_space<vmem>>) attributes {dimension_semantics = [], scalar_prefetch = 0 : i64, scratch_operands = 0 : i64, tpu.core_type = #tpu.core_type<tc>} {
    %c0 = arith.constant 0 : index
    %c0_0 = arith.constant 0 : index
    %0 = vector.load %arg0[%c0, %c0_0] : memref<8x128xf32, #tpu.memory_space<vmem>>, vector<8x128xf32>
    %1 = math.erf %0 : vector<8x128xf32>
    %c0_1 = arith.constant 0 : index
    %c0_2 = arith.constant 0 : index
    %2 = vector.load %arg1[%c0_1, %c0_2] : memref<8x128xf32, #tpu.memory_space<vmem>>, vector<8x128xf32>
    tpu.vector_store %arg1[%c0_1, %c0_2], %1 {strides = array<i32>} : memref<8x128xf32, #tpu.memory_space<vmem>>, vector<8x128xf32>,
    return
  }
}

module attributes {stable_mosaic.version = 11 : i64} {
  func.func @_ta_kernel(%arg0: i32, %arg1: memref<64x256xf32, #tpu.memory_space<vmem>>, %arg2: memref<64x64xf32, #tpu.memory_space<vmem>>, %arg3: memref<64x1xf32, #tpu.memory_space<vmem>>, %arg4: memref<64x25xf32, #tpu.memory_space<vmem>>, %arg5: memref<64x1xf32, #tpu.memory_space<vmem>>, %arg6: memref<5x1x256xf32, #tpu.memory_space<vmem>>, %arg7: memref<5x1x256xf32, #tpu.memory_space<vmem>>, %arg8: memref<64x49xf32, #tpu.memory_space<vmem>>, %arg9: memref<64x1xf32, #tpu.memory_space<vmem>>, %arg10: memref<7x1x256xf32, #tpu.memory_space<vmem>>, %arg11: memref<7x1x256xf32, #tpu.memory_space<vmem>>, %arg12: memref<64x64xf32, #tpu.memory_space<vmem>>, %arg13: memref<64x1xf32, #tpu.memory_space<vmem>>, %arg14: memref<64x16xf32, #tpu.memory_space<vmem>>, %arg15: memref<64x16xf32, #tpu.memory_space<vmem>>, %arg16: memref<64x64xf32, #tpu.memory_space<vmem>>, %arg17: memref<64x1xf32, #tpu.memory_space<vmem>>, %arg18: memref<64x256xf32, #tpu.memory_space<vmem>>) attributes {dimension_semantics = [#tpu.dimension_semantics<parallel>], iteration_bounds = array<i64: 2>, scalar_prefetch = 0 : i64, scratch_operands = 0 : i64, tpu.core_type = #tpu.core_type<tc>, window_params = [{transform_indices = @transform_0, window_bounds = array<i64: 64, 256>}, {pipeline_mode = #tpu.pipeline_mode<synchronous>, transform_indices = @transform_1, window_bounds = array<i64: 64, 64>}, {pipeline_mode = #tpu.pipeline_mode<synchronous>, transform_indices = @transform_2, window_bounds = array<i64: 64, 1>}, {pipeline_mode = #tpu.pipeline_mode<synchronous>, transform_indices = @transform_3, window_bounds = array<i64: 64, 25>}, {pipeline_mode = #tpu.pipeline_mode<synchronous>, transform_indices = @transform_4, window_bounds = array<i64: 64, 1>}, {pipeline_mode = #tpu.pipeline_mode<synchronous>, transform_indices = @transform_5, window_bounds = array<i64: 5, 1, 256>}, {pipeline_mode = #tpu.pipeline_mode<synchronous>, transform_indices = @transform_6, window_bounds = array<i64: 5, 1, 256>}, {pipeline_mode = #tpu.pipeline_mode<synchronous>, transform_indices = @transform_7, window_bounds = array<i64: 64, 49>}, {pipeline_mode = #tpu.pipeline_mode<synchronous>, transform_indices = @transform_8, window_bounds = array<i64: 64, 1>}, {pipeline_mode = #tpu.pipeline_mode<synchronous>, transform_indices = @transform_9, window_bounds = array<i64: 7, 1, 256>}, {pipeline_mode = #tpu.pipeline_mode<synchronous>, transform_indices = @transform_10, window_bounds = array<i64: 7, 1, 256>}, {pipeline_mode = #tpu.pipeline_mode<synchronous>, transform_indices = @transform_11, window_bounds = array<i64: 64, 64>}, {pipeline_mode = #tpu.pipeline_mode<synchronous>, transform_indices = @transform_12, window_bounds = array<i64: 64, 1>}, {pipeline_mode = #tpu.pipeline_mode<synchronous>, transform_indices = @transform_13, window_bounds = array<i64: 64, 16>}, {pipeline_mode = #tpu.pipeline_mode<synchronous>, transform_indices = @transform_14, window_bounds = array<i64: 64, 16>}, {pipeline_mode = #tpu.pipeline_mode<synchronous>, transform_indices = @transform_15, window_bounds = array<i64: 64, 64>}, {pipeline_mode = #tpu.pipeline_mode<synchronous>, transform_indices = @transform_16, window_bounds = array<i64: 64, 1>}, {transform_indices = @transform_17, window_bounds = array<i64: 64, 256>}]} {
    %c0 = arith.constant 0 : index
    %c0_0 = arith.constant 0 : index
    %0 = vector.load %arg1[%c0, %c0_0] : memref<64x256xf32, #tpu.memory_space<vmem>>, vector<64x256xf32>
    %c0_1 = arith.constant 0 : index
    %c0_2 = arith.constant 0 : index
    %1 = vector.load %arg2[%c0_1, %c0_2] : memref<64x64xf32, #tpu.memory_space<vmem>>, vector<64x64xf32>
    %cst = arith.constant dense<0.000000e+00> : vector<64x256xf32>
    %2 = tpu.matmul %1, %0, %cst {dimension_numbers = #tpu.dot_dimension_numbers<[1], [0], [0], [1], [0, 0, 1, 1], [], []>} : vector<64x64xf32>, vector<64x256xf32>, vector<64x256xf32> -> vector<64x256xf32>
    %c0_3 = arith.constant 0 : index
    %c0_4 = arith.constant 0 : index
    %3 = vector.load %arg3[%c0_3, %c0_4] : memref<64x1xf32, #tpu.memory_space<vmem>>, vector<64x1xf32>
    %4 = vector.broadcast %3 : vector<64x1xf32> to vector<64x256xf32>
    %5 = arith.addf %2, %4 : vector<64x256xf32>
    %6 = arith.mulf %5, %5 : vector<64x256xf32>
    %7 = arith.mulf %5, %6 : vector<64x256xf32>
    %cst_5 = arith.constant 4.471500e-02 : f32
    %8 = vector.broadcast %cst_5 : f32 to vector<64x256xf32>
    %9 = arith.mulf %8, %7 : vector<64x256xf32>
    %10 = arith.addf %5, %9 : vector<64x256xf32>
    %cst_6 = arith.constant 0.797884583 : f32
    %11 = vector.broadcast %cst_6 : f32 to vector<64x256xf32>
    %12 = arith.mulf %11, %10 : vector<64x256xf32>
    %13 = math.tanh %12 : vector<64x256xf32>
    %cst_7 = arith.constant 1.000000e+00 : f32
    %14 = vector.broadcast %cst_7 : f32 to vector<64x256xf32>
    %15 = arith.addf %14, %13 : vector<64x256xf32>
    %cst_8 = arith.constant 5.000000e-01 : f32
    %16 = vector.broadcast %cst_8 : f32 to vector<64x256xf32>
    %17 = arith.mulf %16, %15 : vector<64x256xf32>
    %18 = arith.mulf %5, %17 : vector<64x256xf32>
    %c0_9 = arith.constant 0 : index
    %c0_10 = arith.constant 0 : index
    %19 = vector.load %arg4[%c0_9, %c0_10] : memref<64x25xf32, #tpu.memory_space<vmem>>, vector<64x25xf32>
    %c0_11 = arith.constant 0 : index
    %c0_12 = arith.constant 0 : index
    %20 = vector.load %arg8[%c0_11, %c0_12] : memref<64x49xf32, #tpu.memory_space<vmem>>, vector<64x49xf32>
    %c0_13 = arith.constant 0 : index
    %c0_14 = arith.constant 0 : index
    %21 = vector.load %arg5[%c0_13, %c0_14] : memref<64x1xf32, #tpu.memory_space<vmem>>, vector<64x1xf32>
    %c0_15 = arith.constant 0 : index
    %c0_16 = arith.constant 0 : index
    %22 = vector.load %arg9[%c0_15, %c0_16] : memref<64x1xf32, #tpu.memory_space<vmem>>, vector<64x1xf32>
    %23 = vector.extract_strided_slice %18 {offsets = [0, 0], sizes = [16, 256], strides = [1, 1]} : vector<64x256xf32> to vector<16x256xf32>
    %24 = vector.extract_strided_slice %19 {offsets = [0, 0], sizes = [16, 25], strides = [1, 1]} : vector<64x25xf32> to vector<16x25xf32>
    %25 = vector.extract_strided_slice %21 {offsets = [0, 0], sizes = [16, 1], strides = [1, 1]} : vector<64x1xf32> to vector<16x1xf32>
    %c2_i32 = arith.constant 2 : i32
    %26 = tpu.dynamic_rotate %23 by %c2_i32 dim 1 : vector<16x256xf32>, i32 -> vector<16x256xf32>
    %c0_17 = arith.constant 0 : index
    %c0_18 = arith.constant 0 : index
    %c0_19 = arith.constant 0 : index
    %27 = vector.load %arg7[%c0_17, %c0_18, %c0_19] : memref<5x1x256xf32, #tpu.memory_space<vmem>>, vector<1x1x256xf32>
    %28 = vector.shape_cast %27 : vector<1x1x256xf32> to vector<1x256xf32>
    %29 = vector.broadcast %28 : vector<1x256xf32> to vector<16x256xf32>
    %30 = arith.mulf %26, %29 : vector<16x256xf32>
    %c1_i32 = arith.constant 1 : i32
    %31 = tpu.dynamic_rotate %23 by %c1_i32 dim 1 : vector<16x256xf32>, i32 -> vector<16x256xf32>
    %c1 = arith.constant 1 : index
    %c0_20 = arith.constant 0 : index
    %c0_21 = arith.constant 0 : index
    %32 = vector.load %arg7[%c1, %c0_20, %c0_21] : memref<5x1x256xf32, #tpu.memory_space<vmem>>, vector<1x1x256xf32>
    %33 = vector.shape_cast %32 : vector<1x1x256xf32> to vector<1x256xf32>
    %34 = vector.broadcast %33 : vector<1x256xf32> to vector<16x256xf32>
    %35 = arith.mulf %31, %34 : vector<16x256xf32>
    %c2 = arith.constant 2 : index
    %c0_22 = arith.constant 0 : index
    %c0_23 = arith.constant 0 : index
    %36 = vector.load %arg7[%c2, %c0_22, %c0_23] : memref<5x1x256xf32, #tpu.memory_space<vmem>>, vector<1x1x256xf32>
    %37 = vector.shape_cast %36 : vector<1x1x256xf32> to vector<1x256xf32>
    %38 = vector.broadcast %37 : vector<1x256xf32> to vector<16x256xf32>
    %39 = arith.mulf %23, %38 : vector<16x256xf32>
    %c255_i32 = arith.constant 255 : i32
    %40 = tpu.dynamic_rotate %23 by %c255_i32 dim 1 : vector<16x256xf32>, i32 -> vector<16x256xf32>
    %c3 = arith.constant 3 : index
    %c0_24 = arith.constant 0 : index
    %c0_25 = arith.constant 0 : index
    %41 = vector.load %arg7[%c3, %c0_24, %c0_25] : memref<5x1x256xf32, #tpu.memory_space<vmem>>, vector<1x1x256xf32>
    %42 = vector.shape_cast %41 : vector<1x1x256xf32> to vector<1x256xf32>
    %43 = vector.broadcast %42 : vector<1x256xf32> to vector<16x256xf32>
    %44 = arith.mulf %40, %43 : vector<16x256xf32>
    %c254_i32 = arith.constant 254 : i32
    %45 = tpu.dynamic_rotate %23 by %c254_i32 dim 1 : vector<16x256xf32>, i32 -> vector<16x256xf32>
    %c4 = arith.constant 4 : index
    %c0_26 = arith.constant 0 : index
    %c0_27 = arith.constant 0 : index
    %46 = vector.load %arg7[%c4, %c0_26, %c0_27] : memref<5x1x256xf32, #tpu.memory_space<vmem>>, vector<1x1x256xf32>
    %47 = vector.shape_cast %46 : vector<1x1x256xf32> to vector<1x256xf32>
    %48 = vector.broadcast %47 : vector<1x256xf32> to vector<16x256xf32>
    %49 = arith.mulf %45, %48 : vector<16x256xf32>
    %50 = vector.extract_strided_slice %24 {offsets = [0, 0], sizes = [16, 1], strides = [1, 1]} : vector<16x25xf32> to vector<16x1xf32>
    %51 = vector.broadcast %50 : vector<16x1xf32> to vector<16x256xf32>
    %52 = arith.mulf %30, %51 : vector<16x256xf32>
    %53 = vector.extract_strided_slice %24 {offsets = [0, 1], sizes = [16, 1], strides = [1, 1]} : vector<16x25xf32> to vector<16x1xf32>
    %54 = vector.broadcast %53 : vector<16x1xf32> to vector<16x256xf32>
    %55 = arith.mulf %35, %54 : vector<16x256xf32>
    %56 = arith.addf %52, %55 : vector<16x256xf32>
    %57 = vector.extract_strided_slice %24 {offsets = [0, 2], sizes = [16, 1], strides = [1, 1]} : vector<16x25xf32> to vector<16x1xf32>
    %58 = vector.broadcast %57 : vector<16x1xf32> to vector<16x256xf32>
    %59 = arith.mulf %39, %58 : vector<16x256xf32>
    %60 = arith.addf %56, %59 : vector<16x256xf32>
    %61 = vector.extract_strided_slice %24 {offsets = [0, 3], sizes = [16, 1], strides = [1, 1]} : vector<16x25xf32> to vector<16x1xf32>
    %62 = vector.broadcast %61 : vector<16x1xf32> to vector<16x256xf32>
    %63 = arith.mulf %44, %62 : vector<16x256xf32>
    %64 = arith.addf %60, %63 : vector<16x256xf32>
    %65 = vector.extract_strided_slice %24 {offsets = [0, 4], sizes = [16, 1], strides = [1, 1]} : vector<16x25xf32> to vector<16x1xf32>
    %66 = vector.broadcast %65 : vector<16x1xf32> to vector<16x256xf32>
    %67 = arith.mulf %49, %66 : vector<16x256xf32>
    %68 = arith.addf %64, %67 : vector<16x256xf32>
    %c32_i32 = arith.constant 32 : i32
    %69 = tpu.dynamic_rotate %68 by %c32_i32 dim 1 : vector<16x256xf32>, i32 -> vector<16x256xf32>
    %c0_28 = arith.constant 0 : index
    %c0_29 = arith.constant 0 : index
    %c0_30 = arith.constant 0 : index
    %70 = vector.load %arg6[%c0_28, %c0_29, %c0_30] : memref<5x1x256xf32, #tpu.memory_space<vmem>>, vector<1x1x256xf32>
    %71 = vector.shape_cast %70 : vector<1x1x256xf32> to vector<1x256xf32>
    %72 = vector.broadcast %71 : vector<1x256xf32> to vector<16x256xf32>
    %73 = arith.mulf %69, %72 : vector<16x256xf32>
    %74 = vector.extract_strided_slice %24 {offsets = [0, 5], sizes = [16, 1], strides = [1, 1]} : vector<16x25xf32> to vector<16x1xf32>
    %75 = vector.broadcast %74 : vector<16x1xf32> to vector<16x256xf32>
    %76 = arith.mulf %30, %75 : vector<16x256xf32>
    %77 = vector.extract_strided_slice %24 {offsets = [0, 6], sizes = [16, 1], strides = [1, 1]} : vector<16x25xf32> to vector<16x1xf32>
    %78 = vector.broadcast %77 : vector<16x1xf32> to vector<16x256xf32>
    %79 = arith.mulf %35, %78 : vector<16x256xf32>
    %80 = arith.addf %76, %79 : vector<16x256xf32>
    %81 = vector.extract_strided_slice %24 {offsets = [0, 7], sizes = [16, 1], strides = [1, 1]} : vector<16x25xf32> to vector<16x1xf32>
    %82 = vector.broadcast %81 : vector<16x1xf32> to vector<16x256xf32>
    %83 = arith.mulf %39, %82 : vector<16x256xf32>
    %84 = arith.addf %80, %83 : vector<16x256xf32>
    %85 = vector.extract_strided_slice %24 {offsets = [0, 8], sizes = [16, 1], strides = [1, 1]} : vector<16x25xf32> to vector<16x1xf32>
    %86 = vector.broadcast %85 : vector<16x1xf32> to vector<16x256xf32>
    %87 = arith.mulf %44, %86 : vector<16x256xf32>
    %88 = arith.addf %84, %87 : vector<16x256xf32>
    %89 = vector.extract_strided_slice %24 {offsets = [0, 9], sizes = [16, 1], strides = [1, 1]} : vector<16x25xf32> to vector<16x1xf32>
    %90 = vector.broadcast %89 : vector<16x1xf32> to vector<16x256xf32>
    %91 = arith.mulf %49, %90 : vector<16x256xf32>
    %92 = arith.addf %88, %91 : vector<16x256xf32>
    %c16_i32 = arith.constant 16 : i32
    %93 = tpu.dynamic_rotate %92 by %c16_i32 dim 1 : vector<16x256xf32>, i32 -> vector<16x256xf32>
    %c1_31 = arith.constant 1 : index
    %c0_32 = arith.constant 0 : index
    %c0_33 = arith.constant 0 : index
    %94 = vector.load %arg6[%c1_31, %c0_32, %c0_33] : memref<5x1x256xf32, #tpu.memory_space<vmem>>, vector<1x1x256xf32>
    %95 = vector.shape_cast %94 : vector<1x1x256xf32> to vector<1x256xf32>
    %96 = vector.broadcast %95 : vector<1x256xf32> to vector<16x256xf32>
    %97 = arith.mulf %93, %96 : vector<16x256xf32>
    %98 = arith.addf %73, %97 : vector<16x256xf32>
    %99 = vector.extract_strided_slice %24 {offsets = [0, 10], sizes = [16, 1], strides = [1, 1]} : vector<16x25xf32> to vector<16x1xf32>
    %100 = vector.broadcast %99 : vector<16x1xf32> to vector<16x256xf32>
    %101 = arith.mulf %30, %100 : vector<16x256xf32>
    %102 = vector.extract_strided_slice %24 {offsets = [0, 11], sizes = [16, 1], strides = [1, 1]} : vector<16x25xf32> to vector<16x1xf32>
    %103 = vector.broadcast %102 : vector<16x1xf32> to vector<16x256xf32>
    %104 = arith.mulf %35, %103 : vector<16x256xf32>
    %105 = arith.addf %101, %104 : vector<16x256xf32>
    %106 = vector.extract_strided_slice %24 {offsets = [0, 12], sizes = [16, 1], strides = [1, 1]} : vector<16x25xf32> to vector<16x1xf32>
    %107 = vector.broadcast %106 : vector<16x1xf32> to vector<16x256xf32>
    %108 = arith.mulf %39, %107 : vector<16x256xf32>
    %109 = arith.addf %105, %108 : vector<16x256xf32>
    %110 = vector.extract_strided_slice %24 {offsets = [0, 13], sizes = [16, 1], strides = [1, 1]} : vector<16x25xf32> to vector<16x1xf32>
    %111 = vector.broadcast %110 : vector<16x1xf32> to vector<16x256xf32>
    %112 = arith.mulf %44, %111 : vector<16x256xf32>
    %113 = arith.addf %109, %112 : vector<16x256xf32>
    %114 = vector.extract_strided_slice %24 {offsets = [0, 14], sizes = [16, 1], strides = [1, 1]} : vector<16x25xf32> to vector<16x1xf32>
    %115 = vector.broadcast %114 : vector<16x1xf32> to vector<16x256xf32>
    %116 = arith.mulf %49, %115 : vector<16x256xf32>
    %117 = arith.addf %113, %116 : vector<16x256xf32>
    %c2_34 = arith.constant 2 : index
    %c0_35 = arith.constant 0 : index
    %c0_36 = arith.constant 0 : index
    %118 = vector.load %arg6[%c2_34, %c0_35, %c0_36] : memref<5x1x256xf32, #tpu.memory_space<vmem>>, vector<1x1x256xf32>
    %119 = vector.shape_cast %118 : vector<1x1x256xf32> to vector<1x256xf32>
    %120 = vector.broadcast %119 : vector<1x256xf32> to vector<16x256xf32>
    %121 = arith.mulf %117, %120 : vector<16x256xf32>
    %122 = arith.addf %98, %121 : vector<16x256xf32>
    %123 = vector.extract_strided_slice %24 {offsets = [0, 15], sizes = [16, 1], strides = [1, 1]} : vector<16x25xf32> to vector<16x1xf32>
    %124 = vector.broadcast %123 : vector<16x1xf32> to vector<16x256xf32>
    %125 = arith.mulf %30, %124 : vector<16x256xf32>
    %126 = vector.extract_strided_slice %24 {offsets = [0, 16], sizes = [16, 1], strides = [1, 1]} : vector<16x25xf32> to vector<16x1xf32>
    %127 = vector.broadcast %126 : vector<16x1xf32> to vector<16x256xf32>
    %128 = arith.mulf %35, %127 : vector<16x256xf32>
    %129 = arith.addf %125, %128 : vector<16x256xf32>
    %130 = vector.extract_strided_slice %24 {offsets = [0, 17], sizes = [16, 1], strides = [1, 1]} : vector<16x25xf32> to vector<16x1xf32>
    %131 = vector.broadcast %130 : vector<16x1xf32> to vector<16x256xf32>
    %132 = arith.mulf %39, %131 : vector<16x256xf32>
    %133 = arith.addf %129, %132 : vector<16x256xf32>
    %134 = vector.extract_strided_slice %24 {offsets = [0, 18], sizes = [16, 1], strides = [1, 1]} : vector<16x25xf32> to vector<16x1xf32>
    %135 = vector.broadcast %134 : vector<16x1xf32> to vector<16x256xf32>
    %136 = arith.mulf %44, %135 : vector<16x256xf32>
    %137 = arith.addf %133, %136 : vector<16x256xf32>
    %138 = vector.extract_strided_slice %24 {offsets = [0, 19], sizes = [16, 1], strides = [1, 1]} : vector<16x25xf32> to vector<16x1xf32>
    %139 = vector.broadcast %138 : vector<16x1xf32> to vector<16x256xf32>
    %140 = arith.mulf %49, %139 : vector<16x256xf32>
    %141 = arith.addf %137, %140 : vector<16x256xf32>
    %c240_i32 = arith.constant 240 : i32
    %142 = tpu.dynamic_rotate %141 by %c240_i32 dim 1 : vector<16x256xf32>, i32 -> vector<16x256xf32>
    %c3_37 = arith.constant 3 : index
    %c0_38 = arith.constant 0 : index
    %c0_39 = arith.constant 0 : index
    %143 = vector.load %arg6[%c3_37, %c0_38, %c0_39] : memref<5x1x256xf32, #tpu.memory_space<vmem>>, vector<1x1x256xf32>
    %144 = vector.shape_cast %143 : vector<1x1x256xf32> to vector<1x256xf32>
    %145 = vector.broadcast %144 : vector<1x256xf32> to vector<16x256xf32>
    %146 = arith.mulf %142, %145 : vector<16x256xf32>
    %147 = arith.addf %122, %146 : vector<16x256xf32>
    %148 = vector.extract_strided_slice %24 {offsets = [0, 20], sizes = [16, 1], strides = [1, 1]} : vector<16x25xf32> to vector<16x1xf32>
    %149 = vector.broadcast %148 : vector<16x1xf32> to vector<16x256xf32>
    %150 = arith.mulf %30, %149 : vector<16x256xf32>
    %151 = vector.extract_strided_slice %24 {offsets = [0, 21], sizes = [16, 1], strides = [1, 1]} : vector<16x25xf32> to vector<16x1xf32>
    %152 = vector.broadcast %151 : vector<16x1xf32> to vector<16x256xf32>
    %153 = arith.mulf %35, %152 : vector<16x256xf32>
    %154 = arith.addf %150, %153 : vector<16x256xf32>
    %155 = vector.extract_strided_slice %24 {offsets = [0, 22], sizes = [16, 1], strides = [1, 1]} : vector<16x25xf32> to vector<16x1xf32>
    %156 = vector.broadcast %155 : vector<16x1xf32> to vector<16x256xf32>
    %157 = arith.mulf %39, %156 : vector<16x256xf32>
    %158 = arith.addf %154, %157 : vector<16x256xf32>
    %159 = vector.extract_strided_slice %24 {offsets = [0, 23], sizes = [16, 1], strides = [1, 1]} : vector<16x25xf32> to vector<16x1xf32>
    %160 = vector.broadcast %159 : vector<16x1xf32> to vector<16x256xf32>
    %161 = arith.mulf %44, %160 : vector<16x256xf32>
    %162 = arith.addf %158, %161 : vector<16x256xf32>
    %163 = vector.extract_strided_slice %24 {offsets = [0, 24], sizes = [16, 1], strides = [1, 1]} : vector<16x25xf32> to vector<16x1xf32>
    %164 = vector.broadcast %163 : vector<16x1xf32> to vector<16x256xf32>
    %165 = arith.mulf %49, %164 : vector<16x256xf32>
    %166 = arith.addf %162, %165 : vector<16x256xf32>
    %c224_i32 = arith.constant 224 : i32
    %167 = tpu.dynamic_rotate %166 by %c224_i32 dim 1 : vector<16x256xf32>, i32 -> vector<16x256xf32>
    %c4_40 = arith.constant 4 : index
    %c0_41 = arith.constant 0 : index
    %c0_42 = arith.constant 0 : index
    %168 = vector.load %arg6[%c4_40, %c0_41, %c0_42] : memref<5x1x256xf32, #tpu.memory_space<vmem>>, vector<1x1x256xf32>
    %169 = vector.shape_cast %168 : vector<1x1x256xf32> to vector<1x256xf32>
    %170 = vector.broadcast %169 : vector<1x256xf32> to vector<16x256xf32>
    %171 = arith.mulf %167, %170 : vector<16x256xf32>
    %172 = arith.addf %147, %171 : vector<16x256xf32>
    %173 = vector.broadcast %25 : vector<16x1xf32> to vector<16x256xf32>
    %174 = arith.addf %172, %173 : vector<16x256xf32>
    %175 = vector.extract_strided_slice %20 {offsets = [0, 0], sizes = [16, 49], strides = [1, 1]} : vector<64x49xf32> to vector<16x49xf32>
    %176 = vector.extract_strided_slice %22 {offsets = [0, 0], sizes = [16, 1], strides = [1, 1]} : vector<64x1xf32> to vector<16x1xf32>
    %c9_i32 = arith.constant 9 : i32
    %177 = tpu.dynamic_rotate %174 by %c9_i32 dim 1 : vector<16x256xf32>, i32 -> vector<16x256xf32>
    %c0_43 = arith.constant 0 : index
    %c0_44 = arith.constant 0 : index
    %c0_45 = arith.constant 0 : index
    %178 = vector.load %arg11[%c0_43, %c0_44, %c0_45] : memref<7x1x256xf32, #tpu.memory_space<vmem>>, vector<1x1x256xf32>
    %179 = vector.shape_cast %178 : vector<1x1x256xf32> to vector<1x256xf32>
    %180 = vector.broadcast %179 : vector<1x256xf32> to vector<16x256xf32>
    %181 = arith.mulf %177, %180 : vector<16x256xf32>
    %c6_i32 = arith.constant 6 : i32
    %182 = tpu.dynamic_rotate %174 by %c6_i32 dim 1 : vector<16x256xf32>, i32 -> vector<16x256xf32>
    %c1_46 = arith.constant 1 : index
    %c0_47 = arith.constant 0 : index
    %c0_48 = arith.constant 0 : index
    %183 = vector.load %arg11[%c1_46, %c0_47, %c0_48] : memref<7x1x256xf32, #tpu.memory_space<vmem>>, vector<1x1x256xf32>
    %184 = vector.shape_cast %183 : vector<1x1x256xf32> to vector<1x256xf32>
    %185 = vector.broadcast %184 : vector<1x256xf32> to vector<16x256xf32>
    %186 = arith.mulf %182, %185 : vector<16x256xf32>
    %c3_i32 = arith.constant 3 : i32
    %187 = tpu.dynamic_rotate %174 by %c3_i32 dim 1 : vector<16x256xf32>, i32 -> vector<16x256xf32>
    %c2_49 = arith.constant 2 : index
    %c0_50 = arith.constant 0 : index
    %c0_51 = arith.constant 0 : index
    %188 = vector.load %arg11[%c2_49, %c0_50, %c0_51] : memref<7x1x256xf32, #tpu.memory_space<vmem>>, vector<1x1x256xf32>
    %189 = vector.shape_cast %188 : vector<1x1x256xf32> to vector<1x256xf32>
    %190 = vector.broadcast %189 : vector<1x256xf32> to vector<16x256xf32>
    %191 = arith.mulf %187, %190 : vector<16x256xf32>
    %c3_52 = arith.constant 3 : index
    %c0_53 = arith.constant 0 : index
    %c0_54 = arith.constant 0 : index
    %192 = vector.load %arg11[%c3_52, %c0_53, %c0_54] : memref<7x1x256xf32, #tpu.memory_space<vmem>>, vector<1x1x256xf32>
    %193 = vector.shape_cast %192 : vector<1x1x256xf32> to vector<1x256xf32>
    %194 = vector.broadcast %193 : vector<1x256xf32> to vector<16x256xf32>
    %195 = arith.mulf %174, %194 : vector<16x256xf32>
    %c253_i32 = arith.constant 253 : i32
    %196 = tpu.dynamic_rotate %174 by %c253_i32 dim 1 : vector<16x256xf32>, i32 -> vector<16x256xf32>
    %c4_55 = arith.constant 4 : index
    %c0_56 = arith.constant 0 : index
    %c0_57 = arith.constant 0 : index
    %197 = vector.load %arg11[%c4_55, %c0_56, %c0_57] : memref<7x1x256xf32, #tpu.memory_space<vmem>>, vector<1x1x256xf32>
    %198 = vector.shape_cast %197 : vector<1x1x256xf32> to vector<1x256xf32>
    %199 = vector.broadcast %198 : vector<1x256xf32> to vector<16x256xf32>
    %200 = arith.mulf %196, %199 : vector<16x256xf32>
    %c250_i32 = arith.constant 250 : i32
    %201 = tpu.dynamic_rotate %174 by %c250_i32 dim 1 : vector<16x256xf32>, i32 -> vector<16x256xf32>
    %c5 = arith.constant 5 : index
    %c0_58 = arith.constant 0 : index
    %c0_59 = arith.constant 0 : index
    %202 = vector.load %arg11[%c5, %c0_58, %c0_59] : memref<7x1x256xf32, #tpu.memory_space<vmem>>, vector<1x1x256xf32>
    %203 = vector.shape_cast %202 : vector<1x1x256xf32> to vector<1x256xf32>
    %204 = vector.broadcast %203 : vector<1x256xf32> to vector<16x256xf32>
    %205 = arith.mulf %201, %204 : vector<16x256xf32>
    %c247_i32 = arith.constant 247 : i32
    %206 = tpu.dynamic_rotate %174 by %c247_i32 dim 1 : vector<16x256xf32>, i32 -> vector<16x256xf32>
    %c6 = arith.constant 6 : index
    %c0_60 = arith.constant 0 : index
    %c0_61 = arith.constant 0 : index
    %207 = vector.load %arg11[%c6, %c0_60, %c0_61] : memref<7x1x256xf32, #tpu.memory_space<vmem>>, vector<1x1x256xf32>
    %208 = vector.shape_cast %207 : vector<1x1x256xf32> to vector<1x256xf32>
    %209 = vector.broadcast %208 : vector<1x256xf32> to vector<16x256xf32>
    %210 = arith.mulf %206, %209 : vector<16x256xf32>
    %211 = vector.extract_strided_slice %175 {offsets = [0, 0], sizes = [16, 1], strides = [1, 1]} : vector<16x49xf32> to vector<16x1xf32>
    %212 = vector.broadcast %211 : vector<16x1xf32> to vector<16x256xf32>
    %213 = arith.mulf %181, %212 : vector<16x256xf32>
    %214 = vector.extract_strided_slice %175 {offsets = [0, 1], sizes = [16, 1], strides = [1, 1]} : vector<16x49xf32> to vector<16x1xf32>
    %215 = vector.broadcast %214 : vector<16x1xf32> to vector<16x256xf32>
    %216 = arith.mulf %186, %215 : vector<16x256xf32>
    %217 = arith.addf %213, %216 : vector<16x256xf32>
    %218 = vector.extract_strided_slice %175 {offsets = [0, 2], sizes = [16, 1], strides = [1, 1]} : vector<16x49xf32> to vector<16x1xf32>
    %219 = vector.broadcast %218 : vector<16x1xf32> to vector<16x256xf32>
    %220 = arith.mulf %191, %219 : vector<16x256xf32>
    %221 = arith.addf %217, %220 : vector<16x256xf32>
    %222 = vector.extract_strided_slice %175 {offsets = [0, 3], sizes = [16, 1], strides = [1, 1]} : vector<16x49xf32> to vector<16x1xf32>
    %223 = vector.broadcast %222 : vector<16x1xf32> to vector<16x256xf32>
    %224 = arith.mulf %195, %223 : vector<16x256xf32>
    %225 = arith.addf %221, %224 : vector<16x256xf32>
    %226 = vector.extract_strided_slice %175 {offsets = [0, 4], sizes = [16, 1], strides = [1, 1]} : vector<16x49xf32> to vector<16x1xf32>
    %227 = vector.broadcast %226 : vector<16x1xf32> to vector<16x256xf32>
    %228 = arith.mulf %200, %227 : vector<16x256xf32>
    %229 = arith.addf %225, %228 : vector<16x256xf32>
    %230 = vector.extract_strided_slice %175 {offsets = [0, 5], sizes = [16, 1], strides = [1, 1]} : vector<16x49xf32> to vector<16x1xf32>
    %231 = vector.broadcast %230 : vector<16x1xf32> to vector<16x256xf32>
    %232 = arith.mulf %205, %231 : vector<16x256xf32>
    %233 = arith.addf %229, %232 : vector<16x256xf32>
    %234 = vector.extract_strided_slice %175 {offsets = [0, 6], sizes = [16, 1], strides = [1, 1]} : vector<16x49xf32> to vector<16x1xf32>
    %235 = vector.broadcast %234 : vector<16x1xf32> to vector<16x256xf32>
    %236 = arith.mulf %210, %235 : vector<16x256xf32>
    %237 = arith.addf %233, %236 : vector<16x256xf32>
    %c144_i32 = arith.constant 144 : i32
    %238 = tpu.dynamic_rotate %237 by %c144_i32 dim 1 : vector<16x256xf32>, i32 -> vector<16x256xf32>
    %c0_62 = arith.constant 0 : index
    %c0_63 = arith.constant 0 : index
    %c0_64 = arith.constant 0 : index
    %239 = vector.load %arg10[%c0_62, %c0_63, %c0_64] : memref<7x1x256xf32, #tpu.memory_space<vmem>>, vector<1x1x256xf32>
    %240 = vector.shape_cast %239 : vector<1x1x256xf32> to vector<1x256xf32>
    %241 = vector.broadcast %240 : vector<1x256xf32> to vector<16x256xf32>
    %242 = arith.mulf %238, %241 : vector<16x256xf32>
    %243 = vector.extract_strided_slice %175 {offsets = [0, 7], sizes = [16, 1], strides = [1, 1]} : vector<16x49xf32> to vector<16x1xf32>
    %244 = vector.broadcast %243 : vector<16x1xf32> to vector<16x256xf32>
    %245 = arith.mulf %181, %244 : vector<16x256xf32>
    %246 = vector.extract_strided_slice %175 {offsets = [0, 8], sizes = [16, 1], strides = [1, 1]} : vector<16x49xf32> to vector<16x1xf32>
    %247 = vector.broadcast %246 : vector<16x1xf32> to vector<16x256xf32>
    %248 = arith.mulf %186, %247 : vector<16x256xf32>
    %249 = arith.addf %245, %248 : vector<16x256xf32>
    %250 = vector.extract_strided_slice %175 {offsets = [0, 9], sizes = [16, 1], strides = [1, 1]} : vector<16x49xf32> to vector<16x1xf32>
    %251 = vector.broadcast %250 : vector<16x1xf32> to vector<16x256xf32>
    %252 = arith.mulf %191, %251 : vector<16x256xf32>
    %253 = arith.addf %249, %252 : vector<16x256xf32>
    %254 = vector.extract_strided_slice %175 {offsets = [0, 10], sizes = [16, 1], strides = [1, 1]} : vector<16x49xf32> to vector<16x1xf32>
    %255 = vector.broadcast %254 : vector<16x1xf32> to vector<16x256xf32>
    %256 = arith.mulf %195, %255 : vector<16x256xf32>
    %257 = arith.addf %253, %256 : vector<16x256xf32>
    %258 = vector.extract_strided_slice %175 {offsets = [0, 11], sizes = [16, 1], strides = [1, 1]} : vector<16x49xf32> to vector<16x1xf32>
    %259 = vector.broadcast %258 : vector<16x1xf32> to vector<16x256xf32>
    %260 = arith.mulf %200, %259 : vector<16x256xf32>
    %261 = arith.addf %257, %260 : vector<16x256xf32>
    %262 = vector.extract_strided_slice %175 {offsets = [0, 12], sizes = [16, 1], strides = [1, 1]} : vector<16x49xf32> to vector<16x1xf32>
    %263 = vector.broadcast %262 : vector<16x1xf32> to vector<16x256xf32>
    %264 = arith.mulf %205, %263 : vector<16x256xf32>
    %265 = arith.addf %261, %264 : vector<16x256xf32>
    %266 = vector.extract_strided_slice %175 {offsets = [0, 13], sizes = [16, 1], strides = [1, 1]} : vector<16x49xf32> to vector<16x1xf32>
    %267 = vector.broadcast %266 : vector<16x1xf32> to vector<16x256xf32>
    %268 = arith.mulf %210, %267 : vector<16x256xf32>
    %269 = arith.addf %265, %268 : vector<16x256xf32>
    %c96_i32 = arith.constant 96 : i32
    %270 = tpu.dynamic_rotate %269 by %c96_i32 dim 1 : vector<16x256xf32>, i32 -> vector<16x256xf32>
    %c1_65 = arith.constant 1 : index
    %c0_66 = arith.constant 0 : index
    %c0_67 = arith.constant 0 : index
    %271 = vector.load %arg10[%c1_65, %c0_66, %c0_67] : memref<7x1x256xf32, #tpu.memory_space<vmem>>, vector<1x1x256xf32>
    %272 = vector.shape_cast %271 : vector<1x1x256xf32> to vector<1x256xf32>
    %273 = vector.broadcast %272 : vector<1x256xf32> to vector<16x256xf32>
    %274 = arith.mulf %270, %273 : vector<16x256xf32>
    %275 = arith.addf %242, %274 : vector<16x256xf32>
    %276 = vector.extract_strided_slice %175 {offsets = [0, 14], sizes = [16, 1], strides = [1, 1]} : vector<16x49xf32> to vector<16x1xf32>
    %277 = vector.broadcast %276 : vector<16x1xf32> to vector<16x256xf32>
    %278 = arith.mulf %181, %277 : vector<16x256xf32>
    %279 = vector.extract_strided_slice %175 {offsets = [0, 15], sizes = [16, 1], strides = [1, 1]} : vector<16x49xf32> to vector<16x1xf32>
    %280 = vector.broadcast %279 : vector<16x1xf32> to vector<16x256xf32>
    %281 = arith.mulf %186, %280 : vector<16x256xf32>
    %282 = arith.addf %278, %281 : vector<16x256xf32>
    %283 = vector.extract_strided_slice %175 {offsets = [0, 16], sizes = [16, 1], strides = [1, 1]} : vector<16x49xf32> to vector<16x1xf32>
    %284 = vector.broadcast %283 : vector<16x1xf32> to vector<16x256xf32>
    %285 = arith.mulf %191, %284 : vector<16x256xf32>
    %286 = arith.addf %282, %285 : vector<16x256xf32>
    %287 = vector.extract_strided_slice %175 {offsets = [0, 17], sizes = [16, 1], strides = [1, 1]} : vector<16x49xf32> to vector<16x1xf32>
    %288 = vector.broadcast %287 : vector<16x1xf32> to vector<16x256xf32>
    %289 = arith.mulf %195, %288 : vector<16x256xf32>
    %290 = arith.addf %286, %289 : vector<16x256xf32>
    %291 = vector.extract_strided_slice %175 {offsets = [0, 18], sizes = [16, 1], strides = [1, 1]} : vector<16x49xf32> to vector<16x1xf32>
    %292 = vector.broadcast %291 : vector<16x1xf32> to vector<16x256xf32>
    %293 = arith.mulf %200, %292 : vector<16x256xf32>
    %294 = arith.addf %290, %293 : vector<16x256xf32>
    %295 = vector.extract_strided_slice %175 {offsets = [0, 19], sizes = [16, 1], strides = [1, 1]} : vector<16x49xf32> to vector<16x1xf32>
    %296 = vector.broadcast %295 : vector<16x1xf32> to vector<16x256xf32>
    %297 = arith.mulf %205, %296 : vector<16x256xf32>
    %298 = arith.addf %294, %297 : vector<16x256xf32>
    %299 = vector.extract_strided_slice %175 {offsets = [0, 20], sizes = [16, 1], strides = [1, 1]} : vector<16x49xf32> to vector<16x1xf32>
    %300 = vector.broadcast %299 : vector<16x1xf32> to vector<16x256xf32>
    %301 = arith.mulf %210, %300 : vector<16x256xf32>
    %302 = arith.addf %298, %301 : vector<16x256xf32>
    %c48_i32 = arith.constant 48 : i32
    %303 = tpu.dynamic_rotate %302 by %c48_i32 dim 1 : vector<16x256xf32>, i32 -> vector<16x256xf32>
    %c2_68 = arith.constant 2 : index
    %c0_69 = arith.constant 0 : index
    %c0_70 = arith.constant 0 : index
    %304 = vector.load %arg10[%c2_68, %c0_69, %c0_70] : memref<7x1x256xf32, #tpu.memory_space<vmem>>, vector<1x1x256xf32>
    %305 = vector.shape_cast %304 : vector<1x1x256xf32> to vector<1x256xf32>
    %306 = vector.broadcast %305 : vector<1x256xf32> to vector<16x256xf32>
    %307 = arith.mulf %303, %306 : vector<16x256xf32>
    %308 = arith.addf %275, %307 : vector<16x256xf32>
    %309 = vector.extract_strided_slice %175 {offsets = [0, 21], sizes = [16, 1], strides = [1, 1]} : vector<16x49xf32> to vector<16x1xf32>
    %310 = vector.broadcast %309 : vector<16x1xf32> to vector<16x256xf32>
    %311 = arith.mulf %181, %310 : vector<16x256xf32>
    %312 = vector.extract_strided_slice %175 {offsets = [0, 22], sizes = [16, 1], strides = [1, 1]} : vector<16x49xf32> to vector<16x1xf32>
    %313 = vector.broadcast %312 : vector<16x1xf32> to vector<16x256xf32>
    %314 = arith.mulf %186, %313 : vector<16x256xf32>
    %315 = arith.addf %311, %314 : vector<16x256xf32>
    %316 = vector.extract_strided_slice %175 {offsets = [0, 23], sizes = [16, 1], strides = [1, 1]} : vector<16x49xf32> to vector<16x1xf32>
    %317 = vector.broadcast %316 : vector<16x1xf32> to vector<16x256xf32>
    %318 = arith.mulf %191, %317 : vector<16x256xf32>
    %319 = arith.addf %315, %318 : vector<16x256xf32>
    %320 = vector.extract_strided_slice %175 {offsets = [0, 24], sizes = [16, 1], strides = [1, 1]} : vector<16x49xf32> to vector<16x1xf32>
    %321 = vector.broadcast %320 : vector<16x1xf32> to vector<16x256xf32>
    %322 = arith.mulf %195, %321 : vector<16x256xf32>
    %323 = arith.addf %319, %322 : vector<16x256xf32>
    %324 = vector.extract_strided_slice %175 {offsets = [0, 25], sizes = [16, 1], strides = [1, 1]} : vector<16x49xf32> to vector<16x1xf32>
    %325 = vector.broadcast %324 : vector<16x1xf32> to vector<16x256xf32>
    %326 = arith.mulf %200, %325 : vector<16x256xf32>
    %327 = arith.addf %323, %326 : vector<16x256xf32>
    %328 = vector.extract_strided_slice %175 {offsets = [0, 26], sizes = [16, 1], strides = [1, 1]} : vector<16x49xf32> to vector<16x1xf32>
    %329 = vector.broadcast %328 : vector<16x1xf32> to vector<16x256xf32>
    %330 = arith.mulf %205, %329 : vector<16x256xf32>
    %331 = arith.addf %327, %330 : vector<16x256xf32>
    %332 = vector.extract_strided_slice %175 {offsets = [0, 27], sizes = [16, 1], strides = [1, 1]} : vector<16x49xf32> to vector<16x1xf32>
    %333 = vector.broadcast %332 : vector<16x1xf32> to vector<16x256xf32>
    %334 = arith.mulf %210, %333 : vector<16x256xf32>
    %335 = arith.addf %331, %334 : vector<16x256xf32>
    %c3_71 = arith.constant 3 : index
    %c0_72 = arith.constant 0 : index
    %c0_73 = arith.constant 0 : index
    %336 = vector.load %arg10[%c3_71, %c0_72, %c0_73] : memref<7x1x256xf32, #tpu.memory_space<vmem>>, vector<1x1x256xf32>
    %337 = vector.shape_cast %336 : vector<1x1x256xf32> to vector<1x256xf32>
    %338 = vector.broadcast %337 : vector<1x256xf32> to vector<16x256xf32>
    %339 = arith.mulf %335, %338 : vector<16x256xf32>
    %340 = arith.addf %308, %339 : vector<16x256xf32>
    %341 = vector.extract_strided_slice %175 {offsets = [0, 28], sizes = [16, 1], strides = [1, 1]} : vector<16x49xf32> to vector<16x1xf32>
    %342 = vector.broadcast %341 : vector<16x1xf32> to vector<16x256xf32>
    %343 = arith.mulf %181, %342 : vector<16x256xf32>
    %344 = vector.extract_strided_slice %175 {offsets = [0, 29], sizes = [16, 1], strides = [1, 1]} : vector<16x49xf32> to vector<16x1xf32>
    %345 = vector.broadcast %344 : vector<16x1xf32> to vector<16x256xf32>
    %346 = arith.mulf %186, %345 : vector<16x256xf32>
    %347 = arith.addf %343, %346 : vector<16x256xf32>
    %348 = vector.extract_strided_slice %175 {offsets = [0, 30], sizes = [16, 1], strides = [1, 1]} : vector<16x49xf32> to vector<16x1xf32>
    %349 = vector.broadcast %348 : vector<16x1xf32> to vector<16x256xf32>
    %350 = arith.mulf %191, %349 : vector<16x256xf32>
    %351 = arith.addf %347, %350 : vector<16x256xf32>
    %352 = vector.extract_strided_slice %175 {offsets = [0, 31], sizes = [16, 1], strides = [1, 1]} : vector<16x49xf32> to vector<16x1xf32>
    %353 = vector.broadcast %352 : vector<16x1xf32> to vector<16x256xf32>
    %354 = arith.mulf %195, %353 : vector<16x256xf32>
    %355 = arith.addf %351, %354 : vector<16x256xf32>
    %356 = vector.extract_strided_slice %175 {offsets = [0, 32], sizes = [16, 1], strides = [1, 1]} : vector<16x49xf32> to vector<16x1xf32>
    %357 = vector.broadcast %356 : vector<16x1xf32> to vector<16x256xf32>
    %358 = arith.mulf %200, %357 : vector<16x256xf32>
    %359 = arith.addf %355, %358 : vector<16x256xf32>
    %360 = vector.extract_strided_slice %175 {offsets = [0, 33], sizes = [16, 1], strides = [1, 1]} : vector<16x49xf32> to vector<16x1xf32>
    %361 = vector.broadcast %360 : vector<16x1xf32> to vector<16x256xf32>
    %362 = arith.mulf %205, %361 : vector<16x256xf32>
    %363 = arith.addf %359, %362 : vector<16x256xf32>
    %364 = vector.extract_strided_slice %175 {offsets = [0, 34], sizes = [16, 1], strides = [1, 1]} : vector<16x49xf32> to vector<16x1xf32>
    %365 = vector.broadcast %364 : vector<16x1xf32> to vector<16x256xf32>
    %366 = arith.mulf %210, %365 : vector<16x256xf32>
    %367 = arith.addf %363, %366 : vector<16x256xf32>
    %c208_i32 = arith.constant 208 : i32
    %368 = tpu.dynamic_rotate %367 by %c208_i32 dim 1 : vector<16x256xf32>, i32 -> vector<16x256xf32>
    %c4_74 = arith.constant 4 : index
    %c0_75 = arith.constant 0 : index
    %c0_76 = arith.constant 0 : index
    %369 = vector.load %arg10[%c4_74, %c0_75, %c0_76] : memref<7x1x256xf32, #tpu.memory_space<vmem>>, vector<1x1x256xf32>
    %370 = vector.shape_cast %369 : vector<1x1x256xf32> to vector<1x256xf32>
    %371 = vector.broadcast %370 : vector<1x256xf32> to vector<16x256xf32>
    %372 = arith.mulf %368, %371 : vector<16x256xf32>
    %373 = arith.addf %340, %372 : vector<16x256xf32>
    %374 = vector.extract_strided_slice %175 {offsets = [0, 35], sizes = [16, 1], strides = [1, 1]} : vector<16x49xf32> to vector<16x1xf32>
    %375 = vector.broadcast %374 : vector<16x1xf32> to vector<16x256xf32>
    %376 = arith.mulf %181, %375 : vector<16x256xf32>
    %377 = vector.extract_strided_slice %175 {offsets = [0, 36], sizes = [16, 1], strides = [1, 1]} : vector<16x49xf32> to vector<16x1xf32>
    %378 = vector.broadcast %377 : vector<16x1xf32> to vector<16x256xf32>
    %379 = arith.mulf %186, %378 : vector<16x256xf32>
    %380 = arith.addf %376, %379 : vector<16x256xf32>
    %381 = vector.extract_strided_slice %175 {offsets = [0, 37], sizes = [16, 1], strides = [1, 1]} : vector<16x49xf32> to vector<16x1xf32>
    %382 = vector.broadcast %381 : vector<16x1xf32> to vector<16x256xf32>
    %383 = arith.mulf %191, %382 : vector<16x256xf32>
    %384 = arith.addf %380, %383 : vector<16x256xf32>
    %385 = vector.extract_strided_slice %175 {offsets = [0, 38], sizes = [16, 1], strides = [1, 1]} : vector<16x49xf32> to vector<16x1xf32>
    %386 = vector.broadcast %385 : vector<16x1xf32> to vector<16x256xf32>
    %387 = arith.mulf %195, %386 : vector<16x256xf32>
    %388 = arith.addf %384, %387 : vector<16x256xf32>
    %389 = vector.extract_strided_slice %175 {offsets = [0, 39], sizes = [16, 1], strides = [1, 1]} : vector<16x49xf32> to vector<16x1xf32>
    %390 = vector.broadcast %389 : vector<16x1xf32> to vector<16x256xf32>
    %391 = arith.mulf %200, %390 : vector<16x256xf32>
    %392 = arith.addf %388, %391 : vector<16x256xf32>
    %393 = vector.extract_strided_slice %175 {offsets = [0, 40], sizes = [16, 1], strides = [1, 1]} : vector<16x49xf32> to vector<16x1xf32>
    %394 = vector.broadcast %393 : vector<16x1xf32> to vector<16x256xf32>
    %395 = arith.mulf %205, %394 : vector<16x256xf32>
    %396 = arith.addf %392, %395 : vector<16x256xf32>
    %397 = vector.extract_strided_slice %175 {offsets = [0, 41], sizes = [16, 1], strides = [1, 1]} : vector<16x49xf32> to vector<16x1xf32>
    %398 = vector.broadcast %397 : vector<16x1xf32> to vector<16x256xf32>
    %399 = arith.mulf %210, %398 : vector<16x256xf32>
    %400 = arith.addf %396, %399 : vector<16x256xf32>
    %c160_i32 = arith.constant 160 : i32
    %401 = tpu.dynamic_rotate %400 by %c160_i32 dim 1 : vector<16x256xf32>, i32 -> vector<16x256xf32>
    %c5_77 = arith.constant 5 : index
    %c0_78 = arith.constant 0 : index
    %c0_79 = arith.constant 0 : index
    %402 = vector.load %arg10[%c5_77, %c0_78, %c0_79] : memref<7x1x256xf32, #tpu.memory_space<vmem>>, vector<1x1x256xf32>
    %403 = vector.shape_cast %402 : vector<1x1x256xf32> to vector<1x256xf32>
    %404 = vector.broadcast %403 : vector<1x256xf32> to vector<16x256xf32>
    %405 = arith.mulf %401, %404 : vector<16x256xf32>
    %406 = arith.addf %373, %405 : vector<16x256xf32>
    %407 = vector.extract_strided_slice %175 {offsets = [0, 42], sizes = [16, 1], strides = [1, 1]} : vector<16x49xf32> to vector<16x1xf32>
    %408 = vector.broadcast %407 : vector<16x1xf32> to vector<16x256xf32>
    %409 = arith.mulf %181, %408 : vector<16x256xf32>
    %410 = vector.extract_strided_slice %175 {offsets = [0, 43], sizes = [16, 1], strides = [1, 1]} : vector<16x49xf32> to vector<16x1xf32>
    %411 = vector.broadcast %410 : vector<16x1xf32> to vector<16x256xf32>
    %412 = arith.mulf %186, %411 : vector<16x256xf32>
    %413 = arith.addf %409, %412 : vector<16x256xf32>
    %414 = vector.extract_strided_slice %175 {offsets = [0, 44], sizes = [16, 1], strides = [1, 1]} : vector<16x49xf32> to vector<16x1xf32>
    %415 = vector.broadcast %414 : vector<16x1xf32> to vector<16x256xf32>
    %416 = arith.mulf %191, %415 : vector<16x256xf32>
    %417 = arith.addf %413, %416 : vector<16x256xf32>
    %418 = vector.extract_strided_slice %175 {offsets = [0, 45], sizes = [16, 1], strides = [1, 1]} : vector<16x49xf32> to vector<16x1xf32>
    %419 = vector.broadcast %418 : vector<16x1xf32> to vector<16x256xf32>
    %420 = arith.mulf %195, %419 : vector<16x256xf32>
    %421 = arith.addf %417, %420 : vector<16x256xf32>
    %422 = vector.extract_strided_slice %175 {offsets = [0, 46], sizes = [16, 1], strides = [1, 1]} : vector<16x49xf32> to vector<16x1xf32>
    %423 = vector.broadcast %422 : vector<16x1xf32> to vector<16x256xf32>
    %424 = arith.mulf %200, %423 : vector<16x256xf32>
    %425 = arith.addf %421, %424 : vector<16x256xf32>
    %426 = vector.extract_strided_slice %175 {offsets = [0, 47], sizes = [16, 1], strides = [1, 1]} : vector<16x49xf32> to vector<16x1xf32>
    %427 = vector.broadcast %426 : vector<16x1xf32> to vector<16x256xf32>
    %428 = arith.mulf %205, %427 : vector<16x256xf32>
    %429 = arith.addf %425, %428 : vector<16x256xf32>
    %430 = vector.extract_strided_slice %175 {offsets = [0, 48], sizes = [16, 1], strides = [1, 1]} : vector<16x49xf32> to vector<16x1xf32>
    %431 = vector.broadcast %430 : vector<16x1xf32> to vector<16x256xf32>
    %432 = arith.mulf %210, %431 : vector<16x256xf32>
    %433 = arith.addf %429, %432 : vector<16x256xf32>
    %c112_i32 = arith.constant 112 : i32
    %434 = tpu.dynamic_rotate %433 by %c112_i32 dim 1 : vector<16x256xf32>, i32 -> vector<16x256xf32>
    %c6_80 = arith.constant 6 : index
    %c0_81 = arith.constant 0 : index
    %c0_82 = arith.constant 0 : index
    %435 = vector.load %arg10[%c6_80, %c0_81, %c0_82] : memref<7x1x256xf32, #tpu.memory_space<vmem>>, vector<1x1x256xf32>
    %436 = vector.shape_cast %435 : vector<1x1x256xf32> to vector<1x256xf32>
    %437 = vector.broadcast %436 : vector<1x256xf32> to vector<16x256xf32>
    %438 = arith.mulf %434, %437 : vector<16x256xf32>
    %439 = arith.addf %406, %438 : vector<16x256xf32>
    %440 = vector.broadcast %176 : vector<16x1xf32> to vector<16x256xf32>
    %441 = arith.addf %439, %440 : vector<16x256xf32>
    %442 = vector.extract_strided_slice %18 {offsets = [16, 0], sizes = [16, 256], strides = [1, 1]} : vector<64x256xf32> to vector<16x256xf32>
    %443 = vector.extract_strided_slice %19 {offsets = [16, 0], sizes = [16, 25], strides = [1, 1]} : vector<64x25xf32> to vector<16x25xf32>
    %444 = vector.extract_strided_slice %21 {offsets = [16, 0], sizes = [16, 1], strides = [1, 1]} : vector<64x1xf32> to vector<16x1xf32>
    %c2_i32_83 = arith.constant 2 : i32
    %445 = tpu.dynamic_rotate %442 by %c2_i32_83 dim 1 : vector<16x256xf32>, i32 -> vector<16x256xf32>
    %c0_84 = arith.constant 0 : index
    %c0_85 = arith.constant 0 : index
    %c0_86 = arith.constant 0 : index
    %446 = vector.load %arg7[%c0_84, %c0_85, %c0_86] : memref<5x1x256xf32, #tpu.memory_space<vmem>>, vector<1x1x256xf32>
    %447 = vector.shape_cast %446 : vector<1x1x256xf32> to vector<1x256xf32>
    %448 = vector.broadcast %447 : vector<1x256xf32> to vector<16x256xf32>
    %449 = arith.mulf %445, %448 : vector<16x256xf32>
    %c1_i32_87 = arith.constant 1 : i32
    %450 = tpu.dynamic_rotate %442 by %c1_i32_87 dim 1 : vector<16x256xf32>, i32 -> vector<16x256xf32>
    %c1_88 = arith.constant 1 : index
    %c0_89 = arith.constant 0 : index
    %c0_90 = arith.constant 0 : index
    %451 = vector.load %arg7[%c1_88, %c0_89, %c0_90] : memref<5x1x256xf32, #tpu.memory_space<vmem>>, vector<1x1x256xf32>
    %452 = vector.shape_cast %451 : vector<1x1x256xf32> to vector<1x256xf32>
    %453 = vector.broadcast %452 : vector<1x256xf32> to vector<16x256xf32>
    %454 = arith.mulf %450, %453 : vector<16x256xf32>
    %c2_91 = arith.constant 2 : index
    %c0_92 = arith.constant 0 : index
    %c0_93 = arith.constant 0 : index
    %455 = vector.load %arg7[%c2_91, %c0_92, %c0_93] : memref<5x1x256xf32, #tpu.memory_space<vmem>>, vector<1x1x256xf32>
    %456 = vector.shape_cast %455 : vector<1x1x256xf32> to vector<1x256xf32>
    %457 = vector.broadcast %456 : vector<1x256xf32> to vector<16x256xf32>
    %458 = arith.mulf %442, %457 : vector<16x256xf32>
    %c255_i32_94 = arith.constant 255 : i32
    %459 = tpu.dynamic_rotate %442 by %c255_i32_94 dim 1 : vector<16x256xf32>, i32 -> vector<16x256xf32>
    %c3_95 = arith.constant 3 : index
    %c0_96 = arith.constant 0 : index
    %c0_97 = arith.constant 0 : index
    %460 = vector.load %arg7[%c3_95, %c0_96, %c0_97] : memref<5x1x256xf32, #tpu.memory_space<vmem>>, vector<1x1x256xf32>
    %461 = vector.shape_cast %460 : vector<1x1x256xf32> to vector<1x256xf32>
    %462 = vector.broadcast %461 : vector<1x256xf32> to vector<16x256xf32>
    %463 = arith.mulf %459, %462 : vector<16x256xf32>
    %c254_i32_98 = arith.constant 254 : i32
    %464 = tpu.dynamic_rotate %442 by %c254_i32_98 dim 1 : vector<16x256xf32>, i32 -> vector<16x256xf32>
    %c4_99 = arith.constant 4 : index
    %c0_100 = arith.constant 0 : index
    %c0_101 = arith.constant 0 : index
    %465 = vector.load %arg7[%c4_99, %c0_100, %c0_101] : memref<5x1x256xf32, #tpu.memory_space<vmem>>, vector<1x1x256xf32>
    %466 = vector.shape_cast %465 : vector<1x1x256xf32> to vector<1x256xf32>
    %467 = vector.broadcast %466 : vector<1x256xf32> to vector<16x256xf32>
    %468 = arith.mulf %464, %467 : vector<16x256xf32>
    %469 = vector.extract_strided_slice %443 {offsets = [0, 0], sizes = [16, 1], strides = [1, 1]} : vector<16x25xf32> to vector<16x1xf32>
    %470 = vector.broadcast %469 : vector<16x1xf32> to vector<16x256xf32>
    %471 = arith.mulf %449, %470 : vector<16x256xf32>
    %472 = vector.extract_strided_slice %443 {offsets = [0, 1], sizes = [16, 1], strides = [1, 1]} : vector<16x25xf32> to vector<16x1xf32>
    %473 = vector.broadcast %472 : vector<16x1xf32> to vector<16x256xf32>
    %474 = arith.mulf %454, %473 : vector<16x256xf32>
    %475 = arith.addf %471, %474 : vector<16x256xf32>
    %476 = vector.extract_strided_slice %443 {offsets = [0, 2], sizes = [16, 1], strides = [1, 1]} : vector<16x25xf32> to vector<16x1xf32>
    %477 = vector.broadcast %476 : vector<16x1xf32> to vector<16x256xf32>
    %478 = arith.mulf %458, %477 : vector<16x256xf32>
    %479 = arith.addf %475, %478 : vector<16x256xf32>
    %480 = vector.extract_strided_slice %443 {offsets = [0, 3], sizes = [16, 1], strides = [1, 1]} : vector<16x25xf32> to vector<16x1xf32>
    %481 = vector.broadcast %480 : vector<16x1xf32> to vector<16x256xf32>
    %482 = arith.mulf %463, %481 : vector<16x256xf32>
    %483 = arith.addf %479, %482 : vector<16x256xf32>
    %484 = vector.extract_strided_slice %443 {offsets = [0, 4], sizes = [16, 1], strides = [1, 1]} : vector<16x25xf32> to vector<16x1xf32>
    %485 = vector.broadcast %484 : vector<16x1xf32> to vector<16x256xf32>
    %486 = arith.mulf %468, %485 : vector<16x256xf32>
    %487 = arith.addf %483, %486 : vector<16x256xf32>
    %c32_i32_102 = arith.constant 32 : i32
    %488 = tpu.dynamic_rotate %487 by %c32_i32_102 dim 1 : vector<16x256xf32>, i32 -> vector<16x256xf32>
    %c0_103 = arith.constant 0 : index
    %c0_104 = arith.constant 0 : index
    %c0_105 = arith.constant 0 : index
    %489 = vector.load %arg6[%c0_103, %c0_104, %c0_105] : memref<5x1x256xf32, #tpu.memory_space<vmem>>, vector<1x1x256xf32>
    %490 = vector.shape_cast %489 : vector<1x1x256xf32> to vector<1x256xf32>
    %491 = vector.broadcast %490 : vector<1x256xf32> to vector<16x256xf32>
    %492 = arith.mulf %488, %491 : vector<16x256xf32>
    %493 = vector.extract_strided_slice %443 {offsets = [0, 5], sizes = [16, 1], strides = [1, 1]} : vector<16x25xf32> to vector<16x1xf32>
    %494 = vector.broadcast %493 : vector<16x1xf32> to vector<16x256xf32>
    %495 = arith.mulf %449, %494 : vector<16x256xf32>
    %496 = vector.extract_strided_slice %443 {offsets = [0, 6], sizes = [16, 1], strides = [1, 1]} : vector<16x25xf32> to vector<16x1xf32>
    %497 = vector.broadcast %496 : vector<16x1xf32> to vector<16x256xf32>
    %498 = arith.mulf %454, %497 : vector<16x256xf32>
    %499 = arith.addf %495, %498 : vector<16x256xf32>
    %500 = vector.extract_strided_slice %443 {offsets = [0, 7], sizes = [16, 1], strides = [1, 1]} : vector<16x25xf32> to vector<16x1xf32>
    %501 = vector.broadcast %500 : vector<16x1xf32> to vector<16x256xf32>
    %502 = arith.mulf %458, %501 : vector<16x256xf32>
    %503 = arith.addf %499, %502 : vector<16x256xf32>
    %504 = vector.extract_strided_slice %443 {offsets = [0, 8], sizes = [16, 1], strides = [1, 1]} : vector<16x25xf32> to vector<16x1xf32>
    %505 = vector.broadcast %504 : vector<16x1xf32> to vector<16x256xf32>
    %506 = arith.mulf %463, %505 : vector<16x256xf32>
    %507 = arith.addf %503, %506 : vector<16x256xf32>
    %508 = vector.extract_strided_slice %443 {offsets = [0, 9], sizes = [16, 1], strides = [1, 1]} : vector<16x25xf32> to vector<16x1xf32>
    %509 = vector.broadcast %508 : vector<16x1xf32> to vector<16x256xf32>
    %510 = arith.mulf %468, %509 : vector<16x256xf32>
    %511 = arith.addf %507, %510 : vector<16x256xf32>
    %c16_i32_106 = arith.constant 16 : i32
    %512 = tpu.dynamic_rotate %511 by %c16_i32_106 dim 1 : vector<16x256xf32>, i32 -> vector<16x256xf32>
    %c1_107 = arith.constant 1 : index
    %c0_108 = arith.constant 0 : index
    %c0_109 = arith.constant 0 : index
    %513 = vector.load %arg6[%c1_107, %c0_108, %c0_109] : memref<5x1x256xf32, #tpu.memory_space<vmem>>, vector<1x1x256xf32>
    %514 = vector.shape_cast %513 : vector<1x1x256xf32> to vector<1x256xf32>
    %515 = vector.broadcast %514 : vector<1x256xf32> to vector<16x256xf32>
    %516 = arith.mulf %512, %515 : vector<16x256xf32>
    %517 = arith.addf %492, %516 : vector<16x256xf32>
    %518 = vector.extract_strided_slice %443 {offsets = [0, 10], sizes = [16, 1], strides = [1, 1]} : vector<16x25xf32> to vector<16x1xf32>
    %519 = vector.broadcast %518 : vector<16x1xf32> to vector<16x256xf32>
    %520 = arith.mulf %449, %519 : vector<16x256xf32>
    %521 = vector.extract_strided_slice %443 {offsets = [0, 11], sizes = [16, 1], strides = [1, 1]} : vector<16x25xf32> to vector<16x1xf32>
    %522 = vector.broadcast %521 : vector<16x1xf32> to vector<16x256xf32>
    %523 = arith.mulf %454, %522 : vector<16x256xf32>
    %524 = arith.addf %520, %523 : vector<16x256xf32>
    %525 = vector.extract_strided_slice %443 {offsets = [0, 12], sizes = [16, 1], strides = [1, 1]} : vector<16x25xf32> to vector<16x1xf32>
    %526 = vector.broadcast %525 : vector<16x1xf32> to vector<16x256xf32>
    %527 = arith.mulf %458, %526 : vector<16x256xf32>
    %528 = arith.addf %524, %527 : vector<16x256xf32>
    %529 = vector.extract_strided_slice %443 {offsets = [0, 13], sizes = [16, 1], strides = [1, 1]} : vector<16x25xf32> to vector<16x1xf32>
    %530 = vector.broadcast %529 : vector<16x1xf32> to vector<16x256xf32>
    %531 = arith.mulf %463, %530 : vector<16x256xf32>
    %532 = arith.addf %528, %531 : vector<16x256xf32>
    %533 = vector.extract_strided_slice %443 {offsets = [0, 14], sizes = [16, 1], strides = [1, 1]} : vector<16x25xf32> to vector<16x1xf32>
    %534 = vector.broadcast %533 : vector<16x1xf32> to vector<16x256xf32>
    %535 = arith.mulf %468, %534 : vector<16x256xf32>
    %536 = arith.addf %532, %535 : vector<16x256xf32>
    %c2_110 = arith.constant 2 : index
    %c0_111 = arith.constant 0 : index
    %c0_112 = arith.constant 0 : index
    %537 = vector.load %arg6[%c2_110, %c0_111, %c0_112] : memref<5x1x256xf32, #tpu.memory_space<vmem>>, vector<1x1x256xf32>
    %538 = vector.shape_cast %537 : vector<1x1x256xf32> to vector<1x256xf32>
    %539 = vector.broadcast %538 : vector<1x256xf32> to vector<16x256xf32>
    %540 = arith.mulf %536, %539 : vector<16x256xf32>
    %541 = arith.addf %517, %540 : vector<16x256xf32>
    %542 = vector.extract_strided_slice %443 {offsets = [0, 15], sizes = [16, 1], strides = [1, 1]} : vector<16x25xf32> to vector<16x1xf32>
    %543 = vector.broadcast %542 : vector<16x1xf32> to vector<16x256xf32>
    %544 = arith.mulf %449, %543 : vector<16x256xf32>
    %545 = vector.extract_strided_slice %443 {offsets = [0, 16], sizes = [16, 1], strides = [1, 1]} : vector<16x25xf32> to vector<16x1xf32>
    %546 = vector.broadcast %545 : vector<16x1xf32> to vector<16x256xf32>
    %547 = arith.mulf %454, %546 : vector<16x256xf32>
    %548 = arith.addf %544, %547 : vector<16x256xf32>
    %549 = vector.extract_strided_slice %443 {offsets = [0, 17], sizes = [16, 1], strides = [1, 1]} : vector<16x25xf32> to vector<16x1xf32>
    %550 = vector.broadcast %549 : vector<16x1xf32> to vector<16x256xf32>
    %551 = arith.mulf %458, %550 : vector<16x256xf32>
    %552 = arith.addf %548, %551 : vector<16x256xf32>
    %553 = vector.extract_strided_slice %443 {offsets = [0, 18], sizes = [16, 1], strides = [1, 1]} : vector<16x25xf32> to vector<16x1xf32>
    %554 = vector.broadcast %553 : vector<16x1xf32> to vector<16x256xf32>
    %555 = arith.mulf %463, %554 : vector<16x256xf32>
    %556 = arith.addf %552, %555 : vector<16x256xf32>
    %557 = vector.extract_strided_slice %443 {offsets = [0, 19], sizes = [16, 1], strides = [1, 1]} : vector<16x25xf32> to vector<16x1xf32>
    %558 = vector.broadcast %557 : vector<16x1xf32> to vector<16x256xf32>
    %559 = arith.mulf %468, %558 : vector<16x256xf32>
    %560 = arith.addf %556, %559 : vector<16x256xf32>
    %c240_i32_113 = arith.constant 240 : i32
    %561 = tpu.dynamic_rotate %560 by %c240_i32_113 dim 1 : vector<16x256xf32>, i32 -> vector<16x256xf32>
    %c3_114 = arith.constant 3 : index
    %c0_115 = arith.constant 0 : index
    %c0_116 = arith.constant 0 : index
    %562 = vector.load %arg6[%c3_114, %c0_115, %c0_116] : memref<5x1x256xf32, #tpu.memory_space<vmem>>, vector<1x1x256xf32>
    %563 = vector.shape_cast %562 : vector<1x1x256xf32> to vector<1x256xf32>
    %564 = vector.broadcast %563 : vector<1x256xf32> to vector<16x256xf32>
    %565 = arith.mulf %561, %564 : vector<16x256xf32>
    %566 = arith.addf %541, %565 : vector<16x256xf32>
    %567 = vector.extract_strided_slice %443 {offsets = [0, 20], sizes = [16, 1], strides = [1, 1]} : vector<16x25xf32> to vector<16x1xf32>
    %568 = vector.broadcast %567 : vector<16x1xf32> to vector<16x256xf32>
    %569 = arith.mulf %449, %568 : vector<16x256xf32>
    %570 = vector.extract_strided_slice %443 {offsets = [0, 21], sizes = [16, 1], strides = [1, 1]} : vector<16x25xf32> to vector<16x1xf32>
    %571 = vector.broadcast %570 : vector<16x1xf32> to vector<16x256xf32>
    %572 = arith.mulf %454, %571 : vector<16x256xf32>
    %573 = arith.addf %569, %572 : vector<16x256xf32>
    %574 = vector.extract_strided_slice %443 {offsets = [0, 22], sizes = [16, 1], strides = [1, 1]} : vector<16x25xf32> to vector<16x1xf32>
    %575 = vector.broadcast %574 : vector<16x1xf32> to vector<16x256xf32>
    %576 = arith.mulf %458, %575 : vector<16x256xf32>
    %577 = arith.addf %573, %576 : vector<16x256xf32>
    %578 = vector.extract_strided_slice %443 {offsets = [0, 23], sizes = [16, 1], strides = [1, 1]} : vector<16x25xf32> to vector<16x1xf32>
    %579 = vector.broadcast %578 : vector<16x1xf32> to vector<16x256xf32>
    %580 = arith.mulf %463, %579 : vector<16x256xf32>
    %581 = arith.addf %577, %580 : vector<16x256xf32>
    %582 = vector.extract_strided_slice %443 {offsets = [0, 24], sizes = [16, 1], strides = [1, 1]} : vector<16x25xf32> to vector<16x1xf32>
    %583 = vector.broadcast %582 : vector<16x1xf32> to vector<16x256xf32>
    %584 = arith.mulf %468, %583 : vector<16x256xf32>
    %585 = arith.addf %581, %584 : vector<16x256xf32>
    %c224_i32_117 = arith.constant 224 : i32
    %586 = tpu.dynamic_rotate %585 by %c224_i32_117 dim 1 : vector<16x256xf32>, i32 -> vector<16x256xf32>
    %c4_118 = arith.constant 4 : index
    %c0_119 = arith.constant 0 : index
    %c0_120 = arith.constant 0 : index
    %587 = vector.load %arg6[%c4_118, %c0_119, %c0_120] : memref<5x1x256xf32, #tpu.memory_space<vmem>>, vector<1x1x256xf32>
    %588 = vector.shape_cast %587 : vector<1x1x256xf32> to vector<1x256xf32>
    %589 = vector.broadcast %588 : vector<1x256xf32> to vector<16x256xf32>
    %590 = arith.mulf %586, %589 : vector<16x256xf32>
    %591 = arith.addf %566, %590 : vector<16x256xf32>
    %592 = vector.broadcast %444 : vector<16x1xf32> to vector<16x256xf32>
    %593 = arith.addf %591, %592 : vector<16x256xf32>
    %594 = vector.extract_strided_slice %20 {offsets = [16, 0], sizes = [16, 49], strides = [1, 1]} : vector<64x49xf32> to vector<16x49xf32>
    %595 = vector.extract_strided_slice %22 {offsets = [16, 0], sizes = [16, 1], strides = [1, 1]} : vector<64x1xf32> to vector<16x1xf32>
    %c9_i32_121 = arith.constant 9 : i32
    %596 = tpu.dynamic_rotate %593 by %c9_i32_121 dim 1 : vector<16x256xf32>, i32 -> vector<16x256xf32>
    %c0_122 = arith.constant 0 : index
    %c0_123 = arith.constant 0 : index
    %c0_124 = arith.constant 0 : index
    %597 = vector.load %arg11[%c0_122, %c0_123, %c0_124] : memref<7x1x256xf32, #tpu.memory_space<vmem>>, vector<1x1x256xf32>
    %598 = vector.shape_cast %597 : vector<1x1x256xf32> to vector<1x256xf32>
    %599 = vector.broadcast %598 : vector<1x256xf32> to vector<16x256xf32>
    %600 = arith.mulf %596, %599 : vector<16x256xf32>
    %c6_i32_125 = arith.constant 6 : i32
    %601 = tpu.dynamic_rotate %593 by %c6_i32_125 dim 1 : vector<16x256xf32>, i32 -> vector<16x256xf32>
    %c1_126 = arith.constant 1 : index
    %c0_127 = arith.constant 0 : index
    %c0_128 = arith.constant 0 : index
    %602 = vector.load %arg11[%c1_126, %c0_127, %c0_128] : memref<7x1x256xf32, #tpu.memory_space<vmem>>, vector<1x1x256xf32>
    %603 = vector.shape_cast %602 : vector<1x1x256xf32> to vector<1x256xf32>
    %604 = vector.broadcast %603 : vector<1x256xf32> to vector<16x256xf32>
    %605 = arith.mulf %601, %604 : vector<16x256xf32>
    %c3_i32_129 = arith.constant 3 : i32
    %606 = tpu.dynamic_rotate %593 by %c3_i32_129 dim 1 : vector<16x256xf32>, i32 -> vector<16x256xf32>
    %c2_130 = arith.constant 2 : index
    %c0_131 = arith.constant 0 : index
    %c0_132 = arith.constant 0 : index
    %607 = vector.load %arg11[%c2_130, %c0_131, %c0_132] : memref<7x1x256xf32, #tpu.memory_space<vmem>>, vector<1x1x256xf32>
    %608 = vector.shape_cast %607 : vector<1x1x256xf32> to vector<1x256xf32>
    %609 = vector.broadcast %608 : vector<1x256xf32> to vector<16x256xf32>
    %610 = arith.mulf %606, %609 : vector<16x256xf32>
    %c3_133 = arith.constant 3 : index
    %c0_134 = arith.constant 0 : index
    %c0_135 = arith.constant 0 : index
    %611 = vector.load %arg11[%c3_133, %c0_134, %c0_135] : memref<7x1x256xf32, #tpu.memory_space<vmem>>, vector<1x1x256xf32>
    %612 = vector.shape_cast %611 : vector<1x1x256xf32> to vector<1x256xf32>
    %613 = vector.broadcast %612 : vector<1x256xf32> to vector<16x256xf32>
    %614 = arith.mulf %593, %613 : vector<16x256xf32>
    %c253_i32_136 = arith.constant 253 : i32
    %615 = tpu.dynamic_rotate %593 by %c253_i32_136 dim 1 : vector<16x256xf32>, i32 -> vector<16x256xf32>
    %c4_137 = arith.constant 4 : index
    %c0_138 = arith.constant 0 : index
    %c0_139 = arith.constant 0 : index
    %616 = vector.load %arg11[%c4_137, %c0_138, %c0_139] : memref<7x1x256xf32, #tpu.memory_space<vmem>>, vector<1x1x256xf32>
    %617 = vector.shape_cast %616 : vector<1x1x256xf32> to vector<1x256xf32>
    %618 = vector.broadcast %617 : vector<1x256xf32> to vector<16x256xf32>
    %619 = arith.mulf %615, %618 : vector<16x256xf32>
    %c250_i32_140 = arith.constant 250 : i32
    %620 = tpu.dynamic_rotate %593 by %c250_i32_140 dim 1 : vector<16x256xf32>, i32 -> vector<16x256xf32>
    %c5_141 = arith.constant 5 : index
    %c0_142 = arith.constant 0 : index
    %c0_143 = arith.constant 0 : index
    %621 = vector.load %arg11[%c5_141, %c0_142, %c0_143] : memref<7x1x256xf32, #tpu.memory_space<vmem>>, vector<1x1x256xf32>
    %622 = vector.shape_cast %621 : vector<1x1x256xf32> to vector<1x256xf32>
    %623 = vector.broadcast %622 : vector<1x256xf32> to vector<16x256xf32>
    %624 = arith.mulf %620, %623 : vector<16x256xf32>
    %c247_i32_144 = arith.constant 247 : i32
    %625 = tpu.dynamic_rotate %593 by %c247_i32_144 dim 1 : vector<16x256xf32>, i32 -> vector<16x256xf32>
    %c6_145 = arith.constant 6 : index
    %c0_146 = arith.constant 0 : index
    %c0_147 = arith.constant 0 : index
    %626 = vector.load %arg11[%c6_145, %c0_146, %c0_147] : memref<7x1x256xf32, #tpu.memory_space<vmem>>, vector<1x1x256xf32>
    %627 = vector.shape_cast %626 : vector<1x1x256xf32> to vector<1x256xf32>
    %628 = vector.broadcast %627 : vector<1x256xf32> to vector<16x256xf32>
    %629 = arith.mulf %625, %628 : vector<16x256xf32>
    %630 = vector.extract_strided_slice %594 {offsets = [0, 0], sizes = [16, 1], strides = [1, 1]} : vector<16x49xf32> to vector<16x1xf32>
    %631 = vector.broadcast %630 : vector<16x1xf32> to vector<16x256xf32>
    %632 = arith.mulf %600, %631 : vector<16x256xf32>
    %633 = vector.extract_strided_slice %594 {offsets = [0, 1], sizes = [16, 1], strides = [1, 1]} : vector<16x49xf32> to vector<16x1xf32>
    %634 = vector.broadcast %633 : vector<16x1xf32> to vector<16x256xf32>
    %635 = arith.mulf %605, %634 : vector<16x256xf32>
    %636 = arith.addf %632, %635 : vector<16x256xf32>
    %637 = vector.extract_strided_slice %594 {offsets = [0, 2], sizes = [16, 1], strides = [1, 1]} : vector<16x49xf32> to vector<16x1xf32>
    %638 = vector.broadcast %637 : vector<16x1xf32> to vector<16x256xf32>
    %639 = arith.mulf %610, %638 : vector<16x256xf32>
    %640 = arith.addf %636, %639 : vector<16x256xf32>
    %641 = vector.extract_strided_slice %594 {offsets = [0, 3], sizes = [16, 1], strides = [1, 1]} : vector<16x49xf32> to vector<16x1xf32>
    %642 = vector.broadcast %641 : vector<16x1xf32> to vector<16x256xf32>
    %643 = arith.mulf %614, %642 : vector<16x256xf32>
    %644 = arith.addf %640, %643 : vector<16x256xf32>
    %645 = vector.extract_strided_slice %594 {offsets = [0, 4], sizes = [16, 1], strides = [1, 1]} : vector<16x49xf32> to vector<16x1xf32>
    %646 = vector.broadcast %645 : vector<16x1xf32> to vector<16x256xf32>
    %647 = arith.mulf %619, %646 : vector<16x256xf32>
    %648 = arith.addf %644, %647 : vector<16x256xf32>
    %649 = vector.extract_strided_slice %594 {offsets = [0, 5], sizes = [16, 1], strides = [1, 1]} : vector<16x49xf32> to vector<16x1xf32>
    %650 = vector.broadcast %649 : vector<16x1xf32> to vector<16x256xf32>
    %651 = arith.mulf %624, %650 : vector<16x256xf32>
    %652 = arith.addf %648, %651 : vector<16x256xf32>
    %653 = vector.extract_strided_slice %594 {offsets = [0, 6], sizes = [16, 1], strides = [1, 1]} : vector<16x49xf32> to vector<16x1xf32>
    %654 = vector.broadcast %653 : vector<16x1xf32> to vector<16x256xf32>
    %655 = arith.mulf %629, %654 : vector<16x256xf32>
    %656 = arith.addf %652, %655 : vector<16x256xf32>
    %c144_i32_148 = arith.constant 144 : i32
    %657 = tpu.dynamic_rotate %656 by %c144_i32_148 dim 1 : vector<16x256xf32>, i32 -> vector<16x256xf32>
    %c0_149 = arith.constant 0 : index
    %c0_150 = arith.constant 0 : index
    %c0_151 = arith.constant 0 : index
    %658 = vector.load %arg10[%c0_149, %c0_150, %c0_151] : memref<7x1x256xf32, #tpu.memory_space<vmem>>, vector<1x1x256xf32>
    %659 = vector.shape_cast %658 : vector<1x1x256xf32> to vector<1x256xf32>
    %660 = vector.broadcast %659 : vector<1x256xf32> to vector<16x256xf32>
    %661 = arith.mulf %657, %660 : vector<16x256xf32>
    %662 = vector.extract_strided_slice %594 {offsets = [0, 7], sizes = [16, 1], strides = [1, 1]} : vector<16x49xf32> to vector<16x1xf32>
    %663 = vector.broadcast %662 : vector<16x1xf32> to vector<16x256xf32>
    %664 = arith.mulf %600, %663 : vector<16x256xf32>
    %665 = vector.extract_strided_slice %594 {offsets = [0, 8], sizes = [16, 1], strides = [1, 1]} : vector<16x49xf32> to vector<16x1xf32>
    %666 = vector.broadcast %665 : vector<16x1xf32> to vector<16x256xf32>
    %667 = arith.mulf %605, %666 : vector<16x256xf32>
    %668 = arith.addf %664, %667 : vector<16x256xf32>
    %669 = vector.extract_strided_slice %594 {offsets = [0, 9], sizes = [16, 1], strides = [1, 1]} : vector<16x49xf32> to vector<16x1xf32>
    %670 = vector.broadcast %669 : vector<16x1xf32> to vector<16x256xf32>
    %671 = arith.mulf %610, %670 : vector<16x256xf32>
    %672 = arith.addf %668, %671 : vector<16x256xf32>
    %673 = vector.extract_strided_slice %594 {offsets = [0, 10], sizes = [16, 1], strides = [1, 1]} : vector<16x49xf32> to vector<16x1xf32>
    %674 = vector.broadcast %673 : vector<16x1xf32> to vector<16x256xf32>
    %675 = arith.mulf %614, %674 : vector<16x256xf32>
    %676 = arith.addf %672, %675 : vector<16x256xf32>
    %677 = vector.extract_strided_slice %594 {offsets = [0, 11], sizes = [16, 1], strides = [1, 1]} : vector<16x49xf32> to vector<16x1xf32>
    %678 = vector.broadcast %677 : vector<16x1xf32> to vector<16x256xf32>
    %679 = arith.mulf %619, %678 : vector<16x256xf32>
    %680 = arith.addf %676, %679 : vector<16x256xf32>
    %681 = vector.extract_strided_slice %594 {offsets = [0, 12], sizes = [16, 1], strides = [1, 1]} : vector<16x49xf32> to vector<16x1xf32>
    %682 = vector.broadcast %681 : vector<16x1xf32> to vector<16x256xf32>
    %683 = arith.mulf %624, %682 : vector<16x256xf32>
    %684 = arith.addf %680, %683 : vector<16x256xf32>
    %685 = vector.extract_strided_slice %594 {offsets = [0, 13], sizes = [16, 1], strides = [1, 1]} : vector<16x49xf32> to vector<16x1xf32>
    %686 = vector.broadcast %685 : vector<16x1xf32> to vector<16x256xf32>
    %687 = arith.mulf %629, %686 : vector<16x256xf32>
    %688 = arith.addf %684, %687 : vector<16x256xf32>
    %c96_i32_152 = arith.constant 96 : i32
    %689 = tpu.dynamic_rotate %688 by %c96_i32_152 dim 1 : vector<16x256xf32>, i32 -> vector<16x256xf32>
    %c1_153 = arith.constant 1 : index
    %c0_154 = arith.constant 0 : index
    %c0_155 = arith.constant 0 : index
    %690 = vector.load %arg10[%c1_153, %c0_154, %c0_155] : memref<7x1x256xf32, #tpu.memory_space<vmem>>, vector<1x1x256xf32>
    %691 = vector.shape_cast %690 : vector<1x1x256xf32> to vector<1x256xf32>
    %692 = vector.broadcast %691 : vector<1x256xf32> to vector<16x256xf32>
    %693 = arith.mulf %689, %692 : vector<16x256xf32>
    %694 = arith.addf %661, %693 : vector<16x256xf32>
    %695 = vector.extract_strided_slice %594 {offsets = [0, 14], sizes = [16, 1], strides = [1, 1]} : vector<16x49xf32> to vector<16x1xf32>
    %696 = vector.broadcast %695 : vector<16x1xf32> to vector<16x256xf32>
    %697 = arith.mulf %600, %696 : vector<16x256xf32>
    %698 = vector.extract_strided_slice %594 {offsets = [0, 15], sizes = [16, 1], strides = [1, 1]} : vector<16x49xf32> to vector<16x1xf32>
    %699 = vector.broadcast %698 : vector<16x1xf32> to vector<16x256xf32>
    %700 = arith.mulf %605, %699 : vector<16x256xf32>
    %701 = arith.addf %697, %700 : vector<16x256xf32>
    %702 = vector.extract_strided_slice %594 {offsets = [0, 16], sizes = [16, 1], strides = [1, 1]} : vector<16x49xf32> to vector<16x1xf32>
    %703 = vector.broadcast %702 : vector<16x1xf32> to vector<16x256xf32>
    %704 = arith.mulf %610, %703 : vector<16x256xf32>
    %705 = arith.addf %701, %704 : vector<16x256xf32>
    %706 = vector.extract_strided_slice %594 {offsets = [0, 17], sizes = [16, 1], strides = [1, 1]} : vector<16x49xf32> to vector<16x1xf32>
    %707 = vector.broadcast %706 : vector<16x1xf32> to vector<16x256xf32>
    %708 = arith.mulf %614, %707 : vector<16x256xf32>
    %709 = arith.addf %705, %708 : vector<16x256xf32>
    %710 = vector.extract_strided_slice %594 {offsets = [0, 18], sizes = [16, 1], strides = [1, 1]} : vector<16x49xf32> to vector<16x1xf32>
    %711 = vector.broadcast %710 : vector<16x1xf32> to vector<16x256xf32>
    %712 = arith.mulf %619, %711 : vector<16x256xf32>
    %713 = arith.addf %709, %712 : vector<16x256xf32>
    %714 = vector.extract_strided_slice %594 {offsets = [0, 19], sizes = [16, 1], strides = [1, 1]} : vector<16x49xf32> to vector<16x1xf32>
    %715 = vector.broadcast %714 : vector<16x1xf32> to vector<16x256xf32>
    %716 = arith.mulf %624, %715 : vector<16x256xf32>
    %717 = arith.addf %713, %716 : vector<16x256xf32>
    %718 = vector.extract_strided_slice %594 {offsets = [0, 20], sizes = [16, 1], strides = [1, 1]} : vector<16x49xf32> to vector<16x1xf32>
    %719 = vector.broadcast %718 : vector<16x1xf32> to vector<16x256xf32>
    %720 = arith.mulf %629, %719 : vector<16x256xf32>
    %721 = arith.addf %717, %720 : vector<16x256xf32>
    %c48_i32_156 = arith.constant 48 : i32
    %722 = tpu.dynamic_rotate %721 by %c48_i32_156 dim 1 : vector<16x256xf32>, i32 -> vector<16x256xf32>
    %c2_157 = arith.constant 2 : index
    %c0_158 = arith.constant 0 : index
    %c0_159 = arith.constant 0 : index
    %723 = vector.load %arg10[%c2_157, %c0_158, %c0_159] : memref<7x1x256xf32, #tpu.memory_space<vmem>>, vector<1x1x256xf32>
    %724 = vector.shape_cast %723 : vector<1x1x256xf32> to vector<1x256xf32>
    %725 = vector.broadcast %724 : vector<1x256xf32> to vector<16x256xf32>
    %726 = arith.mulf %722, %725 : vector<16x256xf32>
    %727 = arith.addf %694, %726 : vector<16x256xf32>
    %728 = vector.extract_strided_slice %594 {offsets = [0, 21], sizes = [16, 1], strides = [1, 1]} : vector<16x49xf32> to vector<16x1xf32>
    %729 = vector.broadcast %728 : vector<16x1xf32> to vector<16x256xf32>
    %730 = arith.mulf %600, %729 : vector<16x256xf32>
    %731 = vector.extract_strided_slice %594 {offsets = [0, 22], sizes = [16, 1], strides = [1, 1]} : vector<16x49xf32> to vector<16x1xf32>
    %732 = vector.broadcast %731 : vector<16x1xf32> to vector<16x256xf32>
    %733 = arith.mulf %605, %732 : vector<16x256xf32>
    %734 = arith.addf %730, %733 : vector<16x256xf32>
    %735 = vector.extract_strided_slice %594 {offsets = [0, 23], sizes = [16, 1], strides = [1, 1]} : vector<16x49xf32> to vector<16x1xf32>
    %736 = vector.broadcast %735 : vector<16x1xf32> to vector<16x256xf32>
    %737 = arith.mulf %610, %736 : vector<16x256xf32>
    %738 = arith.addf %734, %737 : vector<16x256xf32>
    %739 = vector.extract_strided_slice %594 {offsets = [0, 24], sizes = [16, 1], strides = [1, 1]} : vector<16x49xf32> to vector<16x1xf32>
    %740 = vector.broadcast %739 : vector<16x1xf32> to vector<16x256xf32>
    %741 = arith.mulf %614, %740 : vector<16x256xf32>
    %742 = arith.addf %738, %741 : vector<16x256xf32>
    %743 = vector.extract_strided_slice %594 {offsets = [0, 25], sizes = [16, 1], strides = [1, 1]} : vector<16x49xf32> to vector<16x1xf32>
    %744 = vector.broadcast %743 : vector<16x1xf32> to vector<16x256xf32>
    %745 = arith.mulf %619, %744 : vector<16x256xf32>
    %746 = arith.addf %742, %745 : vector<16x256xf32>
    %747 = vector.extract_strided_slice %594 {offsets = [0, 26], sizes = [16, 1], strides = [1, 1]} : vector<16x49xf32> to vector<16x1xf32>
    %748 = vector.broadcast %747 : vector<16x1xf32> to vector<16x256xf32>
    %749 = arith.mulf %624, %748 : vector<16x256xf32>
    %750 = arith.addf %746, %749 : vector<16x256xf32>
    %751 = vector.extract_strided_slice %594 {offsets = [0, 27], sizes = [16, 1], strides = [1, 1]} : vector<16x49xf32> to vector<16x1xf32>
    %752 = vector.broadcast %751 : vector<16x1xf32> to vector<16x256xf32>
    %753 = arith.mulf %629, %752 : vector<16x256xf32>
    %754 = arith.addf %750, %753 : vector<16x256xf32>
    %c3_160 = arith.constant 3 : index
    %c0_161 = arith.constant 0 : index
    %c0_162 = arith.constant 0 : index
    %755 = vector.load %arg10[%c3_160, %c0_161, %c0_162] : memref<7x1x256xf32, #tpu.memory_space<vmem>>, vector<1x1x256xf32>
    %756 = vector.shape_cast %755 : vector<1x1x256xf32> to vector<1x256xf32>
    %757 = vector.broadcast %756 : vector<1x256xf32> to vector<16x256xf32>
    %758 = arith.mulf %754, %757 : vector<16x256xf32>
    %759 = arith.addf %727, %758 : vector<16x256xf32>
    %760 = vector.extract_strided_slice %594 {offsets = [0, 28], sizes = [16, 1], strides = [1, 1]} : vector<16x49xf32> to vector<16x1xf32>
    %761 = vector.broadcast %760 : vector<16x1xf32> to vector<16x256xf32>
    %762 = arith.mulf %600, %761 : vector<16x256xf32>
    %763 = vector.extract_strided_slice %594 {offsets = [0, 29], sizes = [16, 1], strides = [1, 1]} : vector<16x49xf32> to vector<16x1xf32>
    %764 = vector.broadcast %763 : vector<16x1xf32> to vector<16x256xf32>
    %765 = arith.mulf %605, %764 : vector<16x256xf32>
    %766 = arith.addf %762, %765 : vector<16x256xf32>
    %767 = vector.extract_strided_slice %594 {offsets = [0, 30], sizes = [16, 1], strides = [1, 1]} : vector<16x49xf32> to vector<16x1xf32>
    %768 = vector.broadcast %767 : vector<16x1xf32> to vector<16x256xf32>
    %769 = arith.mulf %610, %768 : vector<16x256xf32>
    %770 = arith.addf %766, %769 : vector<16x256xf32>
    %771 = vector.extract_strided_slice %594 {offsets = [0, 31], sizes = [16, 1], strides = [1, 1]} : vector<16x49xf32> to vector<16x1xf32>
    %772 = vector.broadcast %771 : vector<16x1xf32> to vector<16x256xf32>
    %773 = arith.mulf %614, %772 : vector<16x256xf32>
    %774 = arith.addf %770, %773 : vector<16x256xf32>
    %775 = vector.extract_strided_slice %594 {offsets = [0, 32], sizes = [16, 1], strides = [1, 1]} : vector<16x49xf32> to vector<16x1xf32>
    %776 = vector.broadcast %775 : vector<16x1xf32> to vector<16x256xf32>
    %777 = arith.mulf %619, %776 : vector<16x256xf32>
    %778 = arith.addf %774, %777 : vector<16x256xf32>
    %779 = vector.extract_strided_slice %594 {offsets = [0, 33], sizes = [16, 1], strides = [1, 1]} : vector<16x49xf32> to vector<16x1xf32>
    %780 = vector.broadcast %779 : vector<16x1xf32> to vector<16x256xf32>
    %781 = arith.mulf %624, %780 : vector<16x256xf32>
    %782 = arith.addf %778, %781 : vector<16x256xf32>
    %783 = vector.extract_strided_slice %594 {offsets = [0, 34], sizes = [16, 1], strides = [1, 1]} : vector<16x49xf32> to vector<16x1xf32>
    %784 = vector.broadcast %783 : vector<16x1xf32> to vector<16x256xf32>
    %785 = arith.mulf %629, %784 : vector<16x256xf32>
    %786 = arith.addf %782, %785 : vector<16x256xf32>
    %c208_i32_163 = arith.constant 208 : i32
    %787 = tpu.dynamic_rotate %786 by %c208_i32_163 dim 1 : vector<16x256xf32>, i32 -> vector<16x256xf32>
    %c4_164 = arith.constant 4 : index
    %c0_165 = arith.constant 0 : index
    %c0_166 = arith.constant 0 : index
    %788 = vector.load %arg10[%c4_164, %c0_165, %c0_166] : memref<7x1x256xf32, #tpu.memory_space<vmem>>, vector<1x1x256xf32>
    %789 = vector.shape_cast %788 : vector<1x1x256xf32> to vector<1x256xf32>
    %790 = vector.broadcast %789 : vector<1x256xf32> to vector<16x256xf32>
    %791 = arith.mulf %787, %790 : vector<16x256xf32>
    %792 = arith.addf %759, %791 : vector<16x256xf32>
    %793 = vector.extract_strided_slice %594 {offsets = [0, 35], sizes = [16, 1], strides = [1, 1]} : vector<16x49xf32> to vector<16x1xf32>
    %794 = vector.broadcast %793 : vector<16x1xf32> to vector<16x256xf32>
    %795 = arith.mulf %600, %794 : vector<16x256xf32>
    %796 = vector.extract_strided_slice %594 {offsets = [0, 36], sizes = [16, 1], strides = [1, 1]} : vector<16x49xf32> to vector<16x1xf32>
    %797 = vector.broadcast %796 : vector<16x1xf32> to vector<16x256xf32>
    %798 = arith.mulf %605, %797 : vector<16x256xf32>
    %799 = arith.addf %795, %798 : vector<16x256xf32>
    %800 = vector.extract_strided_slice %594 {offsets = [0, 37], sizes = [16, 1], strides = [1, 1]} : vector<16x49xf32> to vector<16x1xf32>
    %801 = vector.broadcast %800 : vector<16x1xf32> to vector<16x256xf32>
    %802 = arith.mulf %610, %801 : vector<16x256xf32>
    %803 = arith.addf %799, %802 : vector<16x256xf32>
    %804 = vector.extract_strided_slice %594 {offsets = [0, 38], sizes = [16, 1], strides = [1, 1]} : vector<16x49xf32> to vector<16x1xf32>
    %805 = vector.broadcast %804 : vector<16x1xf32> to vector<16x256xf32>
    %806 = arith.mulf %614, %805 : vector<16x256xf32>
    %807 = arith.addf %803, %806 : vector<16x256xf32>
    %808 = vector.extract_strided_slice %594 {offsets = [0, 39], sizes = [16, 1], strides = [1, 1]} : vector<16x49xf32> to vector<16x1xf32>
    %809 = vector.broadcast %808 : vector<16x1xf32> to vector<16x256xf32>
    %810 = arith.mulf %619, %809 : vector<16x256xf32>
    %811 = arith.addf %807, %810 : vector<16x256xf32>
    %812 = vector.extract_strided_slice %594 {offsets = [0, 40], sizes = [16, 1], strides = [1, 1]} : vector<16x49xf32> to vector<16x1xf32>
    %813 = vector.broadcast %812 : vector<16x1xf32> to vector<16x256xf32>
    %814 = arith.mulf %624, %813 : vector<16x256xf32>
    %815 = arith.addf %811, %814 : vector<16x256xf32>
    %816 = vector.extract_strided_slice %594 {offsets = [0, 41], sizes = [16, 1], strides = [1, 1]} : vector<16x49xf32> to vector<16x1xf32>
    %817 = vector.broadcast %816 : vector<16x1xf32> to vector<16x256xf32>
    %818 = arith.mulf %629, %817 : vector<16x256xf32>
    %819 = arith.addf %815, %818 : vector<16x256xf32>
    %c160_i32_167 = arith.constant 160 : i32
    %820 = tpu.dynamic_rotate %819 by %c160_i32_167 dim 1 : vector<16x256xf32>, i32 -> vector<16x256xf32>
    %c5_168 = arith.constant 5 : index
    %c0_169 = arith.constant 0 : index
    %c0_170 = arith.constant 0 : index
    %821 = vector.load %arg10[%c5_168, %c0_169, %c0_170] : memref<7x1x256xf32, #tpu.memory_space<vmem>>, vector<1x1x256xf32>
    %822 = vector.shape_cast %821 : vector<1x1x256xf32> to vector<1x256xf32>
    %823 = vector.broadcast %822 : vector<1x256xf32> to vector<16x256xf32>
    %824 = arith.mulf %820, %823 : vector<16x256xf32>
    %825 = arith.addf %792, %824 : vector<16x256xf32>
    %826 = vector.extract_strided_slice %594 {offsets = [0, 42], sizes = [16, 1], strides = [1, 1]} : vector<16x49xf32> to vector<16x1xf32>
    %827 = vector.broadcast %826 : vector<16x1xf32> to vector<16x256xf32>
    %828 = arith.mulf %600, %827 : vector<16x256xf32>
    %829 = vector.extract_strided_slice %594 {offsets = [0, 43], sizes = [16, 1], strides = [1, 1]} : vector<16x49xf32> to vector<16x1xf32>
    %830 = vector.broadcast %829 : vector<16x1xf32> to vector<16x256xf32>
    %831 = arith.mulf %605, %830 : vector<16x256xf32>
    %832 = arith.addf %828, %831 : vector<16x256xf32>
    %833 = vector.extract_strided_slice %594 {offsets = [0, 44], sizes = [16, 1], strides = [1, 1]} : vector<16x49xf32> to vector<16x1xf32>
    %834 = vector.broadcast %833 : vector<16x1xf32> to vector<16x256xf32>
    %835 = arith.mulf %610, %834 : vector<16x256xf32>
    %836 = arith.addf %832, %835 : vector<16x256xf32>
    %837 = vector.extract_strided_slice %594 {offsets = [0, 45], sizes = [16, 1], strides = [1, 1]} : vector<16x49xf32> to vector<16x1xf32>
    %838 = vector.broadcast %837 : vector<16x1xf32> to vector<16x256xf32>
    %839 = arith.mulf %614, %838 : vector<16x256xf32>
    %840 = arith.addf %836, %839 : vector<16x256xf32>
    %841 = vector.extract_strided_slice %594 {offsets = [0, 46], sizes = [16, 1], strides = [1, 1]} : vector<16x49xf32> to vector<16x1xf32>
    %842 = vector.broadcast %841 : vector<16x1xf32> to vector<16x256xf32>
    %843 = arith.mulf %619, %842 : vector<16x256xf32>
    %844 = arith.addf %840, %843 : vector<16x256xf32>
    %845 = vector.extract_strided_slice %594 {offsets = [0, 47], sizes = [16, 1], strides = [1, 1]} : vector<16x49xf32> to vector<16x1xf32>
    %846 = vector.broadcast %845 : vector<16x1xf32> to vector<16x256xf32>
    %847 = arith.mulf %624, %846 : vector<16x256xf32>
    %848 = arith.addf %844, %847 : vector<16x256xf32>
    %849 = vector.extract_strided_slice %594 {offsets = [0, 48], sizes = [16, 1], strides = [1, 1]} : vector<16x49xf32> to vector<16x1xf32>
    %850 = vector.broadcast %849 : vector<16x1xf32> to vector<16x256xf32>
    %851 = arith.mulf %629, %850 : vector<16x256xf32>
    %852 = arith.addf %848, %851 : vector<16x256xf32>
    %c112_i32_171 = arith.constant 112 : i32
    %853 = tpu.dynamic_rotate %852 by %c112_i32_171 dim 1 : vector<16x256xf32>, i32 -> vector<16x256xf32>
    %c6_172 = arith.constant 6 : index
    %c0_173 = arith.constant 0 : index
    %c0_174 = arith.constant 0 : index
    %854 = vector.load %arg10[%c6_172, %c0_173, %c0_174] : memref<7x1x256xf32, #tpu.memory_space<vmem>>, vector<1x1x256xf32>
    %855 = vector.shape_cast %854 : vector<1x1x256xf32> to vector<1x256xf32>
    %856 = vector.broadcast %855 : vector<1x256xf32> to vector<16x256xf32>
    %857 = arith.mulf %853, %856 : vector<16x256xf32>
    %858 = arith.addf %825, %857 : vector<16x256xf32>
    %859 = vector.broadcast %595 : vector<16x1xf32> to vector<16x256xf32>
    %860 = arith.addf %858, %859 : vector<16x256xf32>
    %861 = vector.extract_strided_slice %18 {offsets = [32, 0], sizes = [16, 256], strides = [1, 1]} : vector<64x256xf32> to vector<16x256xf32>
    %862 = vector.extract_strided_slice %19 {offsets = [32, 0], sizes = [16, 25], strides = [1, 1]} : vector<64x25xf32> to vector<16x25xf32>
    %863 = vector.extract_strided_slice %21 {offsets = [32, 0], sizes = [16, 1], strides = [1, 1]} : vector<64x1xf32> to vector<16x1xf32>
    %c2_i32_175 = arith.constant 2 : i32
    %864 = tpu.dynamic_rotate %861 by %c2_i32_175 dim 1 : vector<16x256xf32>, i32 -> vector<16x256xf32>
    %c0_176 = arith.constant 0 : index
    %c0_177 = arith.constant 0 : index
    %c0_178 = arith.constant 0 : index
    %865 = vector.load %arg7[%c0_176, %c0_177, %c0_178] : memref<5x1x256xf32, #tpu.memory_space<vmem>>, vector<1x1x256xf32>
    %866 = vector.shape_cast %865 : vector<1x1x256xf32> to vector<1x256xf32>
    %867 = vector.broadcast %866 : vector<1x256xf32> to vector<16x256xf32>
    %868 = arith.mulf %864, %867 : vector<16x256xf32>
    %c1_i32_179 = arith.constant 1 : i32
    %869 = tpu.dynamic_rotate %861 by %c1_i32_179 dim 1 : vector<16x256xf32>, i32 -> vector<16x256xf32>
    %c1_180 = arith.constant 1 : index
    %c0_181 = arith.constant 0 : index
    %c0_182 = arith.constant 0 : index
    %870 = vector.load %arg7[%c1_180, %c0_181, %c0_182] : memref<5x1x256xf32, #tpu.memory_space<vmem>>, vector<1x1x256xf32>
    %871 = vector.shape_cast %870 : vector<1x1x256xf32> to vector<1x256xf32>
    %872 = vector.broadcast %871 : vector<1x256xf32> to vector<16x256xf32>
    %873 = arith.mulf %869, %872 : vector<16x256xf32>
    %c2_183 = arith.constant 2 : index
    %c0_184 = arith.constant 0 : index
    %c0_185 = arith.constant 0 : index
    %874 = vector.load %arg7[%c2_183, %c0_184, %c0_185] : memref<5x1x256xf32, #tpu.memory_space<vmem>>, vector<1x1x256xf32>
    %875 = vector.shape_cast %874 : vector<1x1x256xf32> to vector<1x256xf32>
    %876 = vector.broadcast %875 : vector<1x256xf32> to vector<16x256xf32>
    %877 = arith.mulf %861, %876 : vector<16x256xf32>
    %c255_i32_186 = arith.constant 255 : i32
    %878 = tpu.dynamic_rotate %861 by %c255_i32_186 dim 1 : vector<16x256xf32>, i32 -> vector<16x256xf32>
    %c3_187 = arith.constant 3 : index
    %c0_188 = arith.constant 0 : index
    %c0_189 = arith.constant 0 : index
    %879 = vector.load %arg7[%c3_187, %c0_188, %c0_189] : memref<5x1x256xf32, #tpu.memory_space<vmem>>, vector<1x1x256xf32>
    %880 = vector.shape_cast %879 : vector<1x1x256xf32> to vector<1x256xf32>
    %881 = vector.broadcast %880 : vector<1x256xf32> to vector<16x256xf32>
    %882 = arith.mulf %878, %881 : vector<16x256xf32>
    %c254_i32_190 = arith.constant 254 : i32
    %883 = tpu.dynamic_rotate %861 by %c254_i32_190 dim 1 : vector<16x256xf32>, i32 -> vector<16x256xf32>
    %c4_191 = arith.constant 4 : index
    %c0_192 = arith.constant 0 : index
    %c0_193 = arith.constant 0 : index
    %884 = vector.load %arg7[%c4_191, %c0_192, %c0_193] : memref<5x1x256xf32, #tpu.memory_space<vmem>>, vector<1x1x256xf32>
    %885 = vector.shape_cast %884 : vector<1x1x256xf32> to vector<1x256xf32>
    %886 = vector.broadcast %885 : vector<1x256xf32> to vector<16x256xf32>
    %887 = arith.mulf %883, %886 : vector<16x256xf32>
    %888 = vector.extract_strided_slice %862 {offsets = [0, 0], sizes = [16, 1], strides = [1, 1]} : vector<16x25xf32> to vector<16x1xf32>
    %889 = vector.broadcast %888 : vector<16x1xf32> to vector<16x256xf32>
    %890 = arith.mulf %868, %889 : vector<16x256xf32>
    %891 = vector.extract_strided_slice %862 {offsets = [0, 1], sizes = [16, 1], strides = [1, 1]} : vector<16x25xf32> to vector<16x1xf32>
    %892 = vector.broadcast %891 : vector<16x1xf32> to vector<16x256xf32>
    %893 = arith.mulf %873, %892 : vector<16x256xf32>
    %894 = arith.addf %890, %893 : vector<16x256xf32>
    %895 = vector.extract_strided_slice %862 {offsets = [0, 2], sizes = [16, 1], strides = [1, 1]} : vector<16x25xf32> to vector<16x1xf32>
    %896 = vector.broadcast %895 : vector<16x1xf32> to vector<16x256xf32>
    %897 = arith.mulf %877, %896 : vector<16x256xf32>
    %898 = arith.addf %894, %897 : vector<16x256xf32>
    %899 = vector.extract_strided_slice %862 {offsets = [0, 3], sizes = [16, 1], strides = [1, 1]} : vector<16x25xf32> to vector<16x1xf32>
    %900 = vector.broadcast %899 : vector<16x1xf32> to vector<16x256xf32>
    %901 = arith.mulf %882, %900 : vector<16x256xf32>
    %902 = arith.addf %898, %901 : vector<16x256xf32>
    %903 = vector.extract_strided_slice %862 {offsets = [0, 4], sizes = [16, 1], strides = [1, 1]} : vector<16x25xf32> to vector<16x1xf32>
    %904 = vector.broadcast %903 : vector<16x1xf32> to vector<16x256xf32>
    %905 = arith.mulf %887, %904 : vector<16x256xf32>
    %906 = arith.addf %902, %905 : vector<16x256xf32>
    %c32_i32_194 = arith.constant 32 : i32
    %907 = tpu.dynamic_rotate %906 by %c32_i32_194 dim 1 : vector<16x256xf32>, i32 -> vector<16x256xf32>
    %c0_195 = arith.constant 0 : index
    %c0_196 = arith.constant 0 : index
    %c0_197 = arith.constant 0 : index
    %908 = vector.load %arg6[%c0_195, %c0_196, %c0_197] : memref<5x1x256xf32, #tpu.memory_space<vmem>>, vector<1x1x256xf32>
    %909 = vector.shape_cast %908 : vector<1x1x256xf32> to vector<1x256xf32>
    %910 = vector.broadcast %909 : vector<1x256xf32> to vector<16x256xf32>
    %911 = arith.mulf %907, %910 : vector<16x256xf32>
    %912 = vector.extract_strided_slice %862 {offsets = [0, 5], sizes = [16, 1], strides = [1, 1]} : vector<16x25xf32> to vector<16x1xf32>
    %913 = vector.broadcast %912 : vector<16x1xf32> to vector<16x256xf32>
    %914 = arith.mulf %868, %913 : vector<16x256xf32>
    %915 = vector.extract_strided_slice %862 {offsets = [0, 6], sizes = [16, 1], strides = [1, 1]} : vector<16x25xf32> to vector<16x1xf32>
    %916 = vector.broadcast %915 : vector<16x1xf32> to vector<16x256xf32>
    %917 = arith.mulf %873, %916 : vector<16x256xf32>
    %918 = arith.addf %914, %917 : vector<16x256xf32>
    %919 = vector.extract_strided_slice %862 {offsets = [0, 7], sizes = [16, 1], strides = [1, 1]} : vector<16x25xf32> to vector<16x1xf32>
    %920 = vector.broadcast %919 : vector<16x1xf32> to vector<16x256xf32>
    %921 = arith.mulf %877, %920 : vector<16x256xf32>
    %922 = arith.addf %918, %921 : vector<16x256xf32>
    %923 = vector.extract_strided_slice %862 {offsets = [0, 8], sizes = [16, 1], strides = [1, 1]} : vector<16x25xf32> to vector<16x1xf32>
    %924 = vector.broadcast %923 : vector<16x1xf32> to vector<16x256xf32>
    %925 = arith.mulf %882, %924 : vector<16x256xf32>
    %926 = arith.addf %922, %925 : vector<16x256xf32>
    %927 = vector.extract_strided_slice %862 {offsets = [0, 9], sizes = [16, 1], strides = [1, 1]} : vector<16x25xf32> to vector<16x1xf32>
    %928 = vector.broadcast %927 : vector<16x1xf32> to vector<16x256xf32>
    %929 = arith.mulf %887, %928 : vector<16x256xf32>
    %930 = arith.addf %926, %929 : vector<16x256xf32>
    %c16_i32_198 = arith.constant 16 : i32
    %931 = tpu.dynamic_rotate %930 by %c16_i32_198 dim 1 : vector<16x256xf32>, i32 -> vector<16x256xf32>
    %c1_199 = arith.constant 1 : index
    %c0_200 = arith.constant 0 : index
    %c0_201 = arith.constant 0 : index
    %932 = vector.load %arg6[%c1_199, %c0_200, %c0_201] : memref<5x1x256xf32, #tpu.memory_space<vmem>>, vector<1x1x256xf32>
    %933 = vector.shape_cast %932 : vector<1x1x256xf32> to vector<1x256xf32>
    %934 = vector.broadcast %933 : vector<1x256xf32> to vector<16x256xf32>
    %935 = arith.mulf %931, %934 : vector<16x256xf32>
    %936 = arith.addf %911, %935 : vector<16x256xf32>
    %937 = vector.extract_strided_slice %862 {offsets = [0, 10], sizes = [16, 1], strides = [1, 1]} : vector<16x25xf32> to vector<16x1xf32>
    %938 = vector.broadcast %937 : vector<16x1xf32> to vector<16x256xf32>
    %939 = arith.mulf %868, %938 : vector<16x256xf32>
    %940 = vector.extract_strided_slice %862 {offsets = [0, 11], sizes = [16, 1], strides = [1, 1]} : vector<16x25xf32> to vector<16x1xf32>
    %941 = vector.broadcast %940 : vector<16x1xf32> to vector<16x256xf32>
    %942 = arith.mulf %873, %941 : vector<16x256xf32>
    %943 = arith.addf %939, %942 : vector<16x256xf32>
    %944 = vector.extract_strided_slice %862 {offsets = [0, 12], sizes = [16, 1], strides = [1, 1]} : vector<16x25xf32> to vector<16x1xf32>
    %945 = vector.broadcast %944 : vector<16x1xf32> to vector<16x256xf32>
    %946 = arith.mulf %877, %945 : vector<16x256xf32>
    %947 = arith.addf %943, %946 : vector<16x256xf32>
    %948 = vector.extract_strided_slice %862 {offsets = [0, 13], sizes = [16, 1], strides = [1, 1]} : vector<16x25xf32> to vector<16x1xf32>
    %949 = vector.broadcast %948 : vector<16x1xf32> to vector<16x256xf32>
    %950 = arith.mulf %882, %949 : vector<16x256xf32>
    %951 = arith.addf %947, %950 : vector<16x256xf32>
    %952 = vector.extract_strided_slice %862 {offsets = [0, 14], sizes = [16, 1], strides = [1, 1]} : vector<16x25xf32> to vector<16x1xf32>
    %953 = vector.broadcast %952 : vector<16x1xf32> to vector<16x256xf32>
    %954 = arith.mulf %887, %953 : vector<16x256xf32>
    %955 = arith.addf %951, %954 : vector<16x256xf32>
    %c2_202 = arith.constant 2 : index
    %c0_203 = arith.constant 0 : index
    %c0_204 = arith.constant 0 : index
    %956 = vector.load %arg6[%c2_202, %c0_203, %c0_204] : memref<5x1x256xf32, #tpu.memory_space<vmem>>, vector<1x1x256xf32>
    %957 = vector.shape_cast %956 : vector<1x1x256xf32> to vector<1x256xf32>
    %958 = vector.broadcast %957 : vector<1x256xf32> to vector<16x256xf32>
    %959 = arith.mulf %955, %958 : vector<16x256xf32>
    %960 = arith.addf %936, %959 : vector<16x256xf32>
    %961 = vector.extract_strided_slice %862 {offsets = [0, 15], sizes = [16, 1], strides = [1, 1]} : vector<16x25xf32> to vector<16x1xf32>
    %962 = vector.broadcast %961 : vector<16x1xf32> to vector<16x256xf32>
    %963 = arith.mulf %868, %962 : vector<16x256xf32>
    %964 = vector.extract_strided_slice %862 {offsets = [0, 16], sizes = [16, 1], strides = [1, 1]} : vector<16x25xf32> to vector<16x1xf32>
    %965 = vector.broadcast %964 : vector<16x1xf32> to vector<16x256xf32>
    %966 = arith.mulf %873, %965 : vector<16x256xf32>
    %967 = arith.addf %963, %966 : vector<16x256xf32>
    %968 = vector.extract_strided_slice %862 {offsets = [0, 17], sizes = [16, 1], strides = [1, 1]} : vector<16x25xf32> to vector<16x1xf32>
    %969 = vector.broadcast %968 : vector<16x1xf32> to vector<16x256xf32>
    %970 = arith.mulf %877, %969 : vector<16x256xf32>
    %971 = arith.addf %967, %970 : vector<16x256xf32>
    %972 = vector.extract_strided_slice %862 {offsets = [0, 18], sizes = [16, 1], strides = [1, 1]} : vector<16x25xf32> to vector<16x1xf32>
    %973 = vector.broadcast %972 : vector<16x1xf32> to vector<16x256xf32>
    %974 = arith.mulf %882, %973 : vector<16x256xf32>
    %975 = arith.addf %971, %974 : vector<16x256xf32>
    %976 = vector.extract_strided_slice %862 {offsets = [0, 19], sizes = [16, 1], strides = [1, 1]} : vector<16x25xf32> to vector<16x1xf32>
    %977 = vector.broadcast %976 : vector<16x1xf32> to vector<16x256xf32>
    %978 = arith.mulf %887, %977 : vector<16x256xf32>
    %979 = arith.addf %975, %978 : vector<16x256xf32>
    %c240_i32_205 = arith.constant 240 : i32
    %980 = tpu.dynamic_rotate %979 by %c240_i32_205 dim 1 : vector<16x256xf32>, i32 -> vector<16x256xf32>
    %c3_206 = arith.constant 3 : index
    %c0_207 = arith.constant 0 : index
    %c0_208 = arith.constant 0 : index
    %981 = vector.load %arg6[%c3_206, %c0_207, %c0_208] : memref<5x1x256xf32, #tpu.memory_space<vmem>>, vector<1x1x256xf32>
    %982 = vector.shape_cast %981 : vector<1x1x256xf32> to vector<1x256xf32>
    %983 = vector.broadcast %982 : vector<1x256xf32> to vector<16x256xf32>
    %984 = arith.mulf %980, %983 : vector<16x256xf32>
    %985 = arith.addf %960, %984 : vector<16x256xf32>
    %986 = vector.extract_strided_slice %862 {offsets = [0, 20], sizes = [16, 1], strides = [1, 1]} : vector<16x25xf32> to vector<16x1xf32>
    %987 = vector.broadcast %986 : vector<16x1xf32> to vector<16x256xf32>
    %988 = arith.mulf %868, %987 : vector<16x256xf32>
    %989 = vector.extract_strided_slice %862 {offsets = [0, 21], sizes = [16, 1], strides = [1, 1]} : vector<16x25xf32> to vector<16x1xf32>
    %990 = vector.broadcast %989 : vector<16x1xf32> to vector<16x256xf32>
    %991 = arith.mulf %873, %990 : vector<16x256xf32>
    %992 = arith.addf %988, %991 : vector<16x256xf32>
    %993 = vector.extract_strided_slice %862 {offsets = [0, 22], sizes = [16, 1], strides = [1, 1]} : vector<16x25xf32> to vector<16x1xf32>
    %994 = vector.broadcast %993 : vector<16x1xf32> to vector<16x256xf32>
    %995 = arith.mulf %877, %994 : vector<16x256xf32>
    %996 = arith.addf %992, %995 : vector<16x256xf32>
    %997 = vector.extract_strided_slice %862 {offsets = [0, 23], sizes = [16, 1], strides = [1, 1]} : vector<16x25xf32> to vector<16x1xf32>
    %998 = vector.broadcast %997 : vector<16x1xf32> to vector<16x256xf32>
    %999 = arith.mulf %882, %998 : vector<16x256xf32>
    %1000 = arith.addf %996, %999 : vector<16x256xf32>
    %1001 = vector.extract_strided_slice %862 {offsets = [0, 24], sizes = [16, 1], strides = [1, 1]} : vector<16x25xf32> to vector<16x1xf32>
    %1002 = vector.broadcast %1001 : vector<16x1xf32> to vector<16x256xf32>
    %1003 = arith.mulf %887, %1002 : vector<16x256xf32>
    %1004 = arith.addf %1000, %1003 : vector<16x256xf32>
    %c224_i32_209 = arith.constant 224 : i32
    %1005 = tpu.dynamic_rotate %1004 by %c224_i32_209 dim 1 : vector<16x256xf32>, i32 -> vector<16x256xf32>
    %c4_210 = arith.constant 4 : index
    %c0_211 = arith.constant 0 : index
    %c0_212 = arith.constant 0 : index
    %1006 = vector.load %arg6[%c4_210, %c0_211, %c0_212] : memref<5x1x256xf32, #tpu.memory_space<vmem>>, vector<1x1x256xf32>
    %1007 = vector.shape_cast %1006 : vector<1x1x256xf32> to vector<1x256xf32>
    %1008 = vector.broadcast %1007 : vector<1x256xf32> to vector<16x256xf32>
    %1009 = arith.mulf %1005, %1008 : vector<16x256xf32>
    %1010 = arith.addf %985, %1009 : vector<16x256xf32>
    %1011 = vector.broadcast %863 : vector<16x1xf32> to vector<16x256xf32>
    %1012 = arith.addf %1010, %1011 : vector<16x256xf32>
    %1013 = vector.extract_strided_slice %20 {offsets = [32, 0], sizes = [16, 49], strides = [1, 1]} : vector<64x49xf32> to vector<16x49xf32>
    %1014 = vector.extract_strided_slice %22 {offsets = [32, 0], sizes = [16, 1], strides = [1, 1]} : vector<64x1xf32> to vector<16x1xf32>
    %c9_i32_213 = arith.constant 9 : i32
    %1015 = tpu.dynamic_rotate %1012 by %c9_i32_213 dim 1 : vector<16x256xf32>, i32 -> vector<16x256xf32>
    %c0_214 = arith.constant 0 : index
    %c0_215 = arith.constant 0 : index
    %c0_216 = arith.constant 0 : index
    %1016 = vector.load %arg11[%c0_214, %c0_215, %c0_216] : memref<7x1x256xf32, #tpu.memory_space<vmem>>, vector<1x1x256xf32>
    %1017 = vector.shape_cast %1016 : vector<1x1x256xf32> to vector<1x256xf32>
    %1018 = vector.broadcast %1017 : vector<1x256xf32> to vector<16x256xf32>
    %1019 = arith.mulf %1015, %1018 : vector<16x256xf32>
    %c6_i32_217 = arith.constant 6 : i32
    %1020 = tpu.dynamic_rotate %1012 by %c6_i32_217 dim 1 : vector<16x256xf32>, i32 -> vector<16x256xf32>
    %c1_218 = arith.constant 1 : index
    %c0_219 = arith.constant 0 : index
    %c0_220 = arith.constant 0 : index
    %1021 = vector.load %arg11[%c1_218, %c0_219, %c0_220] : memref<7x1x256xf32, #tpu.memory_space<vmem>>, vector<1x1x256xf32>
    %1022 = vector.shape_cast %1021 : vector<1x1x256xf32> to vector<1x256xf32>
    %1023 = vector.broadcast %1022 : vector<1x256xf32> to vector<16x256xf32>
    %1024 = arith.mulf %1020, %1023 : vector<16x256xf32>
    %c3_i32_221 = arith.constant 3 : i32
    %1025 = tpu.dynamic_rotate %1012 by %c3_i32_221 dim 1 : vector<16x256xf32>, i32 -> vector<16x256xf32>
    %c2_222 = arith.constant 2 : index
    %c0_223 = arith.constant 0 : index
    %c0_224 = arith.constant 0 : index
    %1026 = vector.load %arg11[%c2_222, %c0_223, %c0_224] : memref<7x1x256xf32, #tpu.memory_space<vmem>>, vector<1x1x256xf32>
    %1027 = vector.shape_cast %1026 : vector<1x1x256xf32> to vector<1x256xf32>
    %1028 = vector.broadcast %1027 : vector<1x256xf32> to vector<16x256xf32>
    %1029 = arith.mulf %1025, %1028 : vector<16x256xf32>
    %c3_225 = arith.constant 3 : index
    %c0_226 = arith.constant 0 : index
    %c0_227 = arith.constant 0 : index
    %1030 = vector.load %arg11[%c3_225, %c0_226, %c0_227] : memref<7x1x256xf32, #tpu.memory_space<vmem>>, vector<1x1x256xf32>
    %1031 = vector.shape_cast %1030 : vector<1x1x256xf32> to vector<1x256xf32>
    %1032 = vector.broadcast %1031 : vector<1x256xf32> to vector<16x256xf32>
    %1033 = arith.mulf %1012, %1032 : vector<16x256xf32>
    %c253_i32_228 = arith.constant 253 : i32
    %1034 = tpu.dynamic_rotate %1012 by %c253_i32_228 dim 1 : vector<16x256xf32>, i32 -> vector<16x256xf32>
    %c4_229 = arith.constant 4 : index
    %c0_230 = arith.constant 0 : index
    %c0_231 = arith.constant 0 : index
    %1035 = vector.load %arg11[%c4_229, %c0_230, %c0_231] : memref<7x1x256xf32, #tpu.memory_space<vmem>>, vector<1x1x256xf32>
    %1036 = vector.shape_cast %1035 : vector<1x1x256xf32> to vector<1x256xf32>
    %1037 = vector.broadcast %1036 : vector<1x256xf32> to vector<16x256xf32>
    %1038 = arith.mulf %1034, %1037 : vector<16x256xf32>
    %c250_i32_232 = arith.constant 250 : i32
    %1039 = tpu.dynamic_rotate %1012 by %c250_i32_232 dim 1 : vector<16x256xf32>, i32 -> vector<16x256xf32>
    %c5_233 = arith.constant 5 : index
    %c0_234 = arith.constant 0 : index
    %c0_235 = arith.constant 0 : index
    %1040 = vector.load %arg11[%c5_233, %c0_234, %c0_235] : memref<7x1x256xf32, #tpu.memory_space<vmem>>, vector<1x1x256xf32>
    %1041 = vector.shape_cast %1040 : vector<1x1x256xf32> to vector<1x256xf32>
    %1042 = vector.broadcast %1041 : vector<1x256xf32> to vector<16x256xf32>
    %1043 = arith.mulf %1039, %1042 : vector<16x256xf32>
    %c247_i32_236 = arith.constant 247 : i32
    %1044 = tpu.dynamic_rotate %1012 by %c247_i32_236 dim 1 : vector<16x256xf32>, i32 -> vector<16x256xf32>
    %c6_237 = arith.constant 6 : index
    %c0_238 = arith.constant 0 : index
    %c0_239 = arith.constant 0 : index
    %1045 = vector.load %arg11[%c6_237, %c0_238, %c0_239] : memref<7x1x256xf32, #tpu.memory_space<vmem>>, vector<1x1x256xf32>
    %1046 = vector.shape_cast %1045 : vector<1x1x256xf32> to vector<1x256xf32>
    %1047 = vector.broadcast %1046 : vector<1x256xf32> to vector<16x256xf32>
    %1048 = arith.mulf %1044, %1047 : vector<16x256xf32>
    %1049 = vector.extract_strided_slice %1013 {offsets = [0, 0], sizes = [16, 1], strides = [1, 1]} : vector<16x49xf32> to vector<16x1xf32>
    %1050 = vector.broadcast %1049 : vector<16x1xf32> to vector<16x256xf32>
    %1051 = arith.mulf %1019, %1050 : vector<16x256xf32>
    %1052 = vector.extract_strided_slice %1013 {offsets = [0, 1], sizes = [16, 1], strides = [1, 1]} : vector<16x49xf32> to vector<16x1xf32>
    %1053 = vector.broadcast %1052 : vector<16x1xf32> to vector<16x256xf32>
    %1054 = arith.mulf %1024, %1053 : vector<16x256xf32>
    %1055 = arith.addf %1051, %1054 : vector<16x256xf32>
    %1056 = vector.extract_strided_slice %1013 {offsets = [0, 2], sizes = [16, 1], strides = [1, 1]} : vector<16x49xf32> to vector<16x1xf32>
    %1057 = vector.broadcast %1056 : vector<16x1xf32> to vector<16x256xf32>
    %1058 = arith.mulf %1029, %1057 : vector<16x256xf32>
    %1059 = arith.addf %1055, %1058 : vector<16x256xf32>
    %1060 = vector.extract_strided_slice %1013 {offsets = [0, 3], sizes = [16, 1], strides = [1, 1]} : vector<16x49xf32> to vector<16x1xf32>
    %1061 = vector.broadcast %1060 : vector<16x1xf32> to vector<16x256xf32>
    %1062 = arith.mulf %1033, %1061 : vector<16x256xf32>
    %1063 = arith.addf %1059, %1062 : vector<16x256xf32>
    %1064 = vector.extract_strided_slice %1013 {offsets = [0, 4], sizes = [16, 1], strides = [1, 1]} : vector<16x49xf32> to vector<16x1xf32>
    %1065 = vector.broadcast %1064 : vector<16x1xf32> to vector<16x256xf32>
    %1066 = arith.mulf %1038, %1065 : vector<16x256xf32>
    %1067 = arith.addf %1063, %1066 : vector<16x256xf32>
    %1068 = vector.extract_strided_slice %1013 {offsets = [0, 5], sizes = [16, 1], strides = [1, 1]} : vector<16x49xf32> to vector<16x1xf32>
    %1069 = vector.broadcast %1068 : vector<16x1xf32> to vector<16x256xf32>
    %1070 = arith.mulf %1043, %1069 : vector<16x256xf32>
    %1071 = arith.addf %1067, %1070 : vector<16x256xf32>
    %1072 = vector.extract_strided_slice %1013 {offsets = [0, 6], sizes = [16, 1], strides = [1, 1]} : vector<16x49xf32> to vector<16x1xf32>
    %1073 = vector.broadcast %1072 : vector<16x1xf32> to vector<16x256xf32>
    %1074 = arith.mulf %1048, %1073 : vector<16x256xf32>
    %1075 = arith.addf %1071, %1074 : vector<16x256xf32>
    %c144_i32_240 = arith.constant 144 : i32
    %1076 = tpu.dynamic_rotate %1075 by %c144_i32_240 dim 1 : vector<16x256xf32>, i32 -> vector<16x256xf32>
    %c0_241 = arith.constant 0 : index
    %c0_242 = arith.constant 0 : index
    %c0_243 = arith.constant 0 : index
    %1077 = vector.load %arg10[%c0_241, %c0_242, %c0_243] : memref<7x1x256xf32, #tpu.memory_space<vmem>>, vector<1x1x256xf32>
    %1078 = vector.shape_cast %1077 : vector<1x1x256xf32> to vector<1x256xf32>
    %1079 = vector.broadcast %1078 : vector<1x256xf32> to vector<16x256xf32>
    %1080 = arith.mulf %1076, %1079 : vector<16x256xf32>
    %1081 = vector.extract_strided_slice %1013 {offsets = [0, 7], sizes = [16, 1], strides = [1, 1]} : vector<16x49xf32> to vector<16x1xf32>
    %1082 = vector.broadcast %1081 : vector<16x1xf32> to vector<16x256xf32>
    %1083 = arith.mulf %1019, %1082 : vector<16x256xf32>
    %1084 = vector.extract_strided_slice %1013 {offsets = [0, 8], sizes = [16, 1], strides = [1, 1]} : vector<16x49xf32> to vector<16x1xf32>
    %1085 = vector.broadcast %1084 : vector<16x1xf32> to vector<16x256xf32>
    %1086 = arith.mulf %1024, %1085 : vector<16x256xf32>
    %1087 = arith.addf %1083, %1086 : vector<16x256xf32>
    %1088 = vector.extract_strided_slice %1013 {offsets = [0, 9], sizes = [16, 1], strides = [1, 1]} : vector<16x49xf32> to vector<16x1xf32>
    %1089 = vector.broadcast %1088 : vector<16x1xf32> to vector<16x256xf32>
    %1090 = arith.mulf %1029, %1089 : vector<16x256xf32>
    %1091 = arith.addf %1087, %1090 : vector<16x256xf32>
    %1092 = vector.extract_strided_slice %1013 {offsets = [0, 10], sizes = [16, 1], strides = [1, 1]} : vector<16x49xf32> to vector<16x1xf32>
    %1093 = vector.broadcast %1092 : vector<16x1xf32> to vector<16x256xf32>
    %1094 = arith.mulf %1033, %1093 : vector<16x256xf32>
    %1095 = arith.addf %1091, %1094 : vector<16x256xf32>
    %1096 = vector.extract_strided_slice %1013 {offsets = [0, 11], sizes = [16, 1], strides = [1, 1]} : vector<16x49xf32> to vector<16x1xf32>
    %1097 = vector.broadcast %1096 : vector<16x1xf32> to vector<16x256xf32>
    %1098 = arith.mulf %1038, %1097 : vector<16x256xf32>
    %1099 = arith.addf %1095, %1098 : vector<16x256xf32>
    %1100 = vector.extract_strided_slice %1013 {offsets = [0, 12], sizes = [16, 1], strides = [1, 1]} : vector<16x49xf32> to vector<16x1xf32>
    %1101 = vector.broadcast %1100 : vector<16x1xf32> to vector<16x256xf32>
    %1102 = arith.mulf %1043, %1101 : vector<16x256xf32>
    %1103 = arith.addf %1099, %1102 : vector<16x256xf32>
    %1104 = vector.extract_strided_slice %1013 {offsets = [0, 13], sizes = [16, 1], strides = [1, 1]} : vector<16x49xf32> to vector<16x1xf32>
    %1105 = vector.broadcast %1104 : vector<16x1xf32> to vector<16x256xf32>
    %1106 = arith.mulf %1048, %1105 : vector<16x256xf32>
    %1107 = arith.addf %1103, %1106 : vector<16x256xf32>
    %c96_i32_244 = arith.constant 96 : i32
    %1108 = tpu.dynamic_rotate %1107 by %c96_i32_244 dim 1 : vector<16x256xf32>, i32 -> vector<16x256xf32>
    %c1_245 = arith.constant 1 : index
    %c0_246 = arith.constant 0 : index
    %c0_247 = arith.constant 0 : index
    %1109 = vector.load %arg10[%c1_245, %c0_246, %c0_247] : memref<7x1x256xf32, #tpu.memory_space<vmem>>, vector<1x1x256xf32>
    %1110 = vector.shape_cast %1109 : vector<1x1x256xf32> to vector<1x256xf32>
    %1111 = vector.broadcast %1110 : vector<1x256xf32> to vector<16x256xf32>
    %1112 = arith.mulf %1108, %1111 : vector<16x256xf32>
    %1113 = arith.addf %1080, %1112 : vector<16x256xf32>
    %1114 = vector.extract_strided_slice %1013 {offsets = [0, 14], sizes = [16, 1], strides = [1, 1]} : vector<16x49xf32> to vector<16x1xf32>
    %1115 = vector.broadcast %1114 : vector<16x1xf32> to vector<16x256xf32>
    %1116 = arith.mulf %1019, %1115 : vector<16x256xf32>
    %1117 = vector.extract_strided_slice %1013 {offsets = [0, 15], sizes = [16, 1], strides = [1, 1]} : vector<16x49xf32> to vector<16x1xf32>
    %1118 = vector.broadcast %1117 : vector<16x1xf32> to vector<16x256xf32>
    %1119 = arith.mulf %1024, %1118 : vector<16x256xf32>
    %1120 = arith.addf %1116, %1119 : vector<16x256xf32>
    %1121 = vector.extract_strided_slice %1013 {offsets = [0, 16], sizes = [16, 1], strides = [1, 1]} : vector<16x49xf32> to vector<16x1xf32>
    %1122 = vector.broadcast %1121 : vector<16x1xf32> to vector<16x256xf32>
    %1123 = arith.mulf %1029, %1122 : vector<16x256xf32>
    %1124 = arith.addf %1120, %1123 : vector<16x256xf32>
    %1125 = vector.extract_strided_slice %1013 {offsets = [0, 17], sizes = [16, 1], strides = [1, 1]} : vector<16x49xf32> to vector<16x1xf32>
    %1126 = vector.broadcast %1125 : vector<16x1xf32> to vector<16x256xf32>
    %1127 = arith.mulf %1033, %1126 : vector<16x256xf32>
    %1128 = arith.addf %1124, %1127 : vector<16x256xf32>
    %1129 = vector.extract_strided_slice %1013 {offsets = [0, 18], sizes = [16, 1], strides = [1, 1]} : vector<16x49xf32> to vector<16x1xf32>
    %1130 = vector.broadcast %1129 : vector<16x1xf32> to vector<16x256xf32>
    %1131 = arith.mulf %1038, %1130 : vector<16x256xf32>
    %1132 = arith.addf %1128, %1131 : vector<16x256xf32>
    %1133 = vector.extract_strided_slice %1013 {offsets = [0, 19], sizes = [16, 1], strides = [1, 1]} : vector<16x49xf32> to vector<16x1xf32>
    %1134 = vector.broadcast %1133 : vector<16x1xf32> to vector<16x256xf32>
    %1135 = arith.mulf %1043, %1134 : vector<16x256xf32>
    %1136 = arith.addf %1132, %1135 : vector<16x256xf32>
    %1137 = vector.extract_strided_slice %1013 {offsets = [0, 20], sizes = [16, 1], strides = [1, 1]} : vector<16x49xf32> to vector<16x1xf32>
    %1138 = vector.broadcast %1137 : vector<16x1xf32> to vector<16x256xf32>
    %1139 = arith.mulf %1048, %1138 : vector<16x256xf32>
    %1140 = arith.addf %1136, %1139 : vector<16x256xf32>
    %c48_i32_248 = arith.constant 48 : i32
    %1141 = tpu.dynamic_rotate %1140 by %c48_i32_248 dim 1 : vector<16x256xf32>, i32 -> vector<16x256xf32>
    %c2_249 = arith.constant 2 : index
    %c0_250 = arith.constant 0 : index
    %c0_251 = arith.constant 0 : index
    %1142 = vector.load %arg10[%c2_249, %c0_250, %c0_251] : memref<7x1x256xf32, #tpu.memory_space<vmem>>, vector<1x1x256xf32>
    %1143 = vector.shape_cast %1142 : vector<1x1x256xf32> to vector<1x256xf32>
    %1144 = vector.broadcast %1143 : vector<1x256xf32> to vector<16x256xf32>
    %1145 = arith.mulf %1141, %1144 : vector<16x256xf32>
    %1146 = arith.addf %1113, %1145 : vector<16x256xf32>
    %1147 = vector.extract_strided_slice %1013 {offsets = [0, 21], sizes = [16, 1], strides = [1, 1]} : vector<16x49xf32> to vector<16x1xf32>
    %1148 = vector.broadcast %1147 : vector<16x1xf32> to vector<16x256xf32>
    %1149 = arith.mulf %1019, %1148 : vector<16x256xf32>
    %1150 = vector.extract_strided_slice %1013 {offsets = [0, 22], sizes = [16, 1], strides = [1, 1]} : vector<16x49xf32> to vector<16x1xf32>
    %1151 = vector.broadcast %1150 : vector<16x1xf32> to vector<16x256xf32>
    %1152 = arith.mulf %1024, %1151 : vector<16x256xf32>
    %1153 = arith.addf %1149, %1152 : vector<16x256xf32>
    %1154 = vector.extract_strided_slice %1013 {offsets = [0, 23], sizes = [16, 1], strides = [1, 1]} : vector<16x49xf32> to vector<16x1xf32>
    %1155 = vector.broadcast %1154 : vector<16x1xf32> to vector<16x256xf32>
    %1156 = arith.mulf %1029, %1155 : vector<16x256xf32>
    %1157 = arith.addf %1153, %1156 : vector<16x256xf32>
    %1158 = vector.extract_strided_slice %1013 {offsets = [0, 24], sizes = [16, 1], strides = [1, 1]} : vector<16x49xf32> to vector<16x1xf32>
    %1159 = vector.broadcast %1158 : vector<16x1xf32> to vector<16x256xf32>
    %1160 = arith.mulf %1033, %1159 : vector<16x256xf32>
    %1161 = arith.addf %1157, %1160 : vector<16x256xf32>
    %1162 = vector.extract_strided_slice %1013 {offsets = [0, 25], sizes = [16, 1], strides = [1, 1]} : vector<16x49xf32> to vector<16x1xf32>
    %1163 = vector.broadcast %1162 : vector<16x1xf32> to vector<16x256xf32>
    %1164 = arith.mulf %1038, %1163 : vector<16x256xf32>
    %1165 = arith.addf %1161, %1164 : vector<16x256xf32>
    %1166 = vector.extract_strided_slice %1013 {offsets = [0, 26], sizes = [16, 1], strides = [1, 1]} : vector<16x49xf32> to vector<16x1xf32>
    %1167 = vector.broadcast %1166 : vector<16x1xf32> to vector<16x256xf32>
    %1168 = arith.mulf %1043, %1167 : vector<16x256xf32>
    %1169 = arith.addf %1165, %1168 : vector<16x256xf32>
    %1170 = vector.extract_strided_slice %1013 {offsets = [0, 27], sizes = [16, 1], strides = [1, 1]} : vector<16x49xf32> to vector<16x1xf32>
    %1171 = vector.broadcast %1170 : vector<16x1xf32> to vector<16x256xf32>
    %1172 = arith.mulf %1048, %1171 : vector<16x256xf32>
    %1173 = arith.addf %1169, %1172 : vector<16x256xf32>
    %c3_252 = arith.constant 3 : index
    %c0_253 = arith.constant 0 : index
    %c0_254 = arith.constant 0 : index
    %1174 = vector.load %arg10[%c3_252, %c0_253, %c0_254] : memref<7x1x256xf32, #tpu.memory_space<vmem>>, vector<1x1x256xf32>
    %1175 = vector.shape_cast %1174 : vector<1x1x256xf32> to vector<1x256xf32>
    %1176 = vector.broadcast %1175 : vector<1x256xf32> to vector<16x256xf32>
    %1177 = arith.mulf %1173, %1176 : vector<16x256xf32>
    %1178 = arith.addf %1146, %1177 : vector<16x256xf32>
    %1179 = vector.extract_strided_slice %1013 {offsets = [0, 28], sizes = [16, 1], strides = [1, 1]} : vector<16x49xf32> to vector<16x1xf32>
    %1180 = vector.broadcast %1179 : vector<16x1xf32> to vector<16x256xf32>
    %1181 = arith.mulf %1019, %1180 : vector<16x256xf32>
    %1182 = vector.extract_strided_slice %1013 {offsets = [0, 29], sizes = [16, 1], strides = [1, 1]} : vector<16x49xf32> to vector<16x1xf32>
    %1183 = vector.broadcast %1182 : vector<16x1xf32> to vector<16x256xf32>
    %1184 = arith.mulf %1024, %1183 : vector<16x256xf32>
    %1185 = arith.addf %1181, %1184 : vector<16x256xf32>
    %1186 = vector.extract_strided_slice %1013 {offsets = [0, 30], sizes = [16, 1], strides = [1, 1]} : vector<16x49xf32> to vector<16x1xf32>
    %1187 = vector.broadcast %1186 : vector<16x1xf32> to vector<16x256xf32>
    %1188 = arith.mulf %1029, %1187 : vector<16x256xf32>
    %1189 = arith.addf %1185, %1188 : vector<16x256xf32>
    %1190 = vector.extract_strided_slice %1013 {offsets = [0, 31], sizes = [16, 1], strides = [1, 1]} : vector<16x49xf32> to vector<16x1xf32>
    %1191 = vector.broadcast %1190 : vector<16x1xf32> to vector<16x256xf32>
    %1192 = arith.mulf %1033, %1191 : vector<16x256xf32>
    %1193 = arith.addf %1189, %1192 : vector<16x256xf32>
    %1194 = vector.extract_strided_slice %1013 {offsets = [0, 32], sizes = [16, 1], strides = [1, 1]} : vector<16x49xf32> to vector<16x1xf32>
    %1195 = vector.broadcast %1194 : vector<16x1xf32> to vector<16x256xf32>
    %1196 = arith.mulf %1038, %1195 : vector<16x256xf32>
    %1197 = arith.addf %1193, %1196 : vector<16x256xf32>
    %1198 = vector.extract_strided_slice %1013 {offsets = [0, 33], sizes = [16, 1], strides = [1, 1]} : vector<16x49xf32> to vector<16x1xf32>
    %1199 = vector.broadcast %1198 : vector<16x1xf32> to vector<16x256xf32>
    %1200 = arith.mulf %1043, %1199 : vector<16x256xf32>
    %1201 = arith.addf %1197, %1200 : vector<16x256xf32>
    %1202 = vector.extract_strided_slice %1013 {offsets = [0, 34], sizes = [16, 1], strides = [1, 1]} : vector<16x49xf32> to vector<16x1xf32>
    %1203 = vector.broadcast %1202 : vector<16x1xf32> to vector<16x256xf32>
    %1204 = arith.mulf %1048, %1203 : vector<16x256xf32>
    %1205 = arith.addf %1201, %1204 : vector<16x256xf32>
    %c208_i32_255 = arith.constant 208 : i32
    %1206 = tpu.dynamic_rotate %1205 by %c208_i32_255 dim 1 : vector<16x256xf32>, i32 -> vector<16x256xf32>
    %c4_256 = arith.constant 4 : index
    %c0_257 = arith.constant 0 : index
    %c0_258 = arith.constant 0 : index
    %1207 = vector.load %arg10[%c4_256, %c0_257, %c0_258] : memref<7x1x256xf32, #tpu.memory_space<vmem>>, vector<1x1x256xf32>
    %1208 = vector.shape_cast %1207 : vector<1x1x256xf32> to vector<1x256xf32>
    %1209 = vector.broadcast %1208 : vector<1x256xf32> to vector<16x256xf32>
    %1210 = arith.mulf %1206, %1209 : vector<16x256xf32>
    %1211 = arith.addf %1178, %1210 : vector<16x256xf32>
    %1212 = vector.extract_strided_slice %1013 {offsets = [0, 35], sizes = [16, 1], strides = [1, 1]} : vector<16x49xf32> to vector<16x1xf32>
    %1213 = vector.broadcast %1212 : vector<16x1xf32> to vector<16x256xf32>
    %1214 = arith.mulf %1019, %1213 : vector<16x256xf32>
    %1215 = vector.extract_strided_slice %1013 {offsets = [0, 36], sizes = [16, 1], strides = [1, 1]} : vector<16x49xf32> to vector<16x1xf32>
    %1216 = vector.broadcast %1215 : vector<16x1xf32> to vector<16x256xf32>
    %1217 = arith.mulf %1024, %1216 : vector<16x256xf32>
    %1218 = arith.addf %1214, %1217 : vector<16x256xf32>
    %1219 = vector.extract_strided_slice %1013 {offsets = [0, 37], sizes = [16, 1], strides = [1, 1]} : vector<16x49xf32> to vector<16x1xf32>
    %1220 = vector.broadcast %1219 : vector<16x1xf32> to vector<16x256xf32>
    %1221 = arith.mulf %1029, %1220 : vector<16x256xf32>
    %1222 = arith.addf %1218, %1221 : vector<16x256xf32>
    %1223 = vector.extract_strided_slice %1013 {offsets = [0, 38], sizes = [16, 1], strides = [1, 1]} : vector<16x49xf32> to vector<16x1xf32>
    %1224 = vector.broadcast %1223 : vector<16x1xf32> to vector<16x256xf32>
    %1225 = arith.mulf %1033, %1224 : vector<16x256xf32>
    %1226 = arith.addf %1222, %1225 : vector<16x256xf32>
    %1227 = vector.extract_strided_slice %1013 {offsets = [0, 39], sizes = [16, 1], strides = [1, 1]} : vector<16x49xf32> to vector<16x1xf32>
    %1228 = vector.broadcast %1227 : vector<16x1xf32> to vector<16x256xf32>
    %1229 = arith.mulf %1038, %1228 : vector<16x256xf32>
    %1230 = arith.addf %1226, %1229 : vector<16x256xf32>
    %1231 = vector.extract_strided_slice %1013 {offsets = [0, 40], sizes = [16, 1], strides = [1, 1]} : vector<16x49xf32> to vector<16x1xf32>
    %1232 = vector.broadcast %1231 : vector<16x1xf32> to vector<16x256xf32>
    %1233 = arith.mulf %1043, %1232 : vector<16x256xf32>
    %1234 = arith.addf %1230, %1233 : vector<16x256xf32>
    %1235 = vector.extract_strided_slice %1013 {offsets = [0, 41], sizes = [16, 1], strides = [1, 1]} : vector<16x49xf32> to vector<16x1xf32>
    %1236 = vector.broadcast %1235 : vector<16x1xf32> to vector<16x256xf32>
    %1237 = arith.mulf %1048, %1236 : vector<16x256xf32>
    %1238 = arith.addf %1234, %1237 : vector<16x256xf32>
    %c160_i32_259 = arith.constant 160 : i32
    %1239 = tpu.dynamic_rotate %1238 by %c160_i32_259 dim 1 : vector<16x256xf32>, i32 -> vector<16x256xf32>
    %c5_260 = arith.constant 5 : index
    %c0_261 = arith.constant 0 : index
    %c0_262 = arith.constant 0 : index
    %1240 = vector.load %arg10[%c5_260, %c0_261, %c0_262] : memref<7x1x256xf32, #tpu.memory_space<vmem>>, vector<1x1x256xf32>
    %1241 = vector.shape_cast %1240 : vector<1x1x256xf32> to vector<1x256xf32>
    %1242 = vector.broadcast %1241 : vector<1x256xf32> to vector<16x256xf32>
    %1243 = arith.mulf %1239, %1242 : vector<16x256xf32>
    %1244 = arith.addf %1211, %1243 : vector<16x256xf32>
    %1245 = vector.extract_strided_slice %1013 {offsets = [0, 42], sizes = [16, 1], strides = [1, 1]} : vector<16x49xf32> to vector<16x1xf32>
    %1246 = vector.broadcast %1245 : vector<16x1xf32> to vector<16x256xf32>
    %1247 = arith.mulf %1019, %1246 : vector<16x256xf32>
    %1248 = vector.extract_strided_slice %1013 {offsets = [0, 43], sizes = [16, 1], strides = [1, 1]} : vector<16x49xf32> to vector<16x1xf32>
    %1249 = vector.broadcast %1248 : vector<16x1xf32> to vector<16x256xf32>
    %1250 = arith.mulf %1024, %1249 : vector<16x256xf32>
    %1251 = arith.addf %1247, %1250 : vector<16x256xf32>
    %1252 = vector.extract_strided_slice %1013 {offsets = [0, 44], sizes = [16, 1], strides = [1, 1]} : vector<16x49xf32> to vector<16x1xf32>
    %1253 = vector.broadcast %1252 : vector<16x1xf32> to vector<16x256xf32>
    %1254 = arith.mulf %1029, %1253 : vector<16x256xf32>
    %1255 = arith.addf %1251, %1254 : vector<16x256xf32>
    %1256 = vector.extract_strided_slice %1013 {offsets = [0, 45], sizes = [16, 1], strides = [1, 1]} : vector<16x49xf32> to vector<16x1xf32>
    %1257 = vector.broadcast %1256 : vector<16x1xf32> to vector<16x256xf32>
    %1258 = arith.mulf %1033, %1257 : vector<16x256xf32>
    %1259 = arith.addf %1255, %1258 : vector<16x256xf32>
    %1260 = vector.extract_strided_slice %1013 {offsets = [0, 46], sizes = [16, 1], strides = [1, 1]} : vector<16x49xf32> to vector<16x1xf32>
    %1261 = vector.broadcast %1260 : vector<16x1xf32> to vector<16x256xf32>
    %1262 = arith.mulf %1038, %1261 : vector<16x256xf32>
    %1263 = arith.addf %1259, %1262 : vector<16x256xf32>
    %1264 = vector.extract_strided_slice %1013 {offsets = [0, 47], sizes = [16, 1], strides = [1, 1]} : vector<16x49xf32> to vector<16x1xf32>
    %1265 = vector.broadcast %1264 : vector<16x1xf32> to vector<16x256xf32>
    %1266 = arith.mulf %1043, %1265 : vector<16x256xf32>
    %1267 = arith.addf %1263, %1266 : vector<16x256xf32>
    %1268 = vector.extract_strided_slice %1013 {offsets = [0, 48], sizes = [16, 1], strides = [1, 1]} : vector<16x49xf32> to vector<16x1xf32>
    %1269 = vector.broadcast %1268 : vector<16x1xf32> to vector<16x256xf32>
    %1270 = arith.mulf %1048, %1269 : vector<16x256xf32>
    %1271 = arith.addf %1267, %1270 : vector<16x256xf32>
    %c112_i32_263 = arith.constant 112 : i32
    %1272 = tpu.dynamic_rotate %1271 by %c112_i32_263 dim 1 : vector<16x256xf32>, i32 -> vector<16x256xf32>
    %c6_264 = arith.constant 6 : index
    %c0_265 = arith.constant 0 : index
    %c0_266 = arith.constant 0 : index
    %1273 = vector.load %arg10[%c6_264, %c0_265, %c0_266] : memref<7x1x256xf32, #tpu.memory_space<vmem>>, vector<1x1x256xf32>
    %1274 = vector.shape_cast %1273 : vector<1x1x256xf32> to vector<1x256xf32>
    %1275 = vector.broadcast %1274 : vector<1x256xf32> to vector<16x256xf32>
    %1276 = arith.mulf %1272, %1275 : vector<16x256xf32>
    %1277 = arith.addf %1244, %1276 : vector<16x256xf32>
    %1278 = vector.broadcast %1014 : vector<16x1xf32> to vector<16x256xf32>
    %1279 = arith.addf %1277, %1278 : vector<16x256xf32>
    %1280 = vector.extract_strided_slice %18 {offsets = [48, 0], sizes = [16, 256], strides = [1, 1]} : vector<64x256xf32> to vector<16x256xf32>
    %1281 = vector.extract_strided_slice %19 {offsets = [48, 0], sizes = [16, 25], strides = [1, 1]} : vector<64x25xf32> to vector<16x25xf32>
    %1282 = vector.extract_strided_slice %21 {offsets = [48, 0], sizes = [16, 1], strides = [1, 1]} : vector<64x1xf32> to vector<16x1xf32>
    %c2_i32_267 = arith.constant 2 : i32
    %1283 = tpu.dynamic_rotate %1280 by %c2_i32_267 dim 1 : vector<16x256xf32>, i32 -> vector<16x256xf32>
    %c0_268 = arith.constant 0 : index
    %c0_269 = arith.constant 0 : index
    %c0_270 = arith.constant 0 : index
    %1284 = vector.load %arg7[%c0_268, %c0_269, %c0_270] : memref<5x1x256xf32, #tpu.memory_space<vmem>>, vector<1x1x256xf32>
    %1285 = vector.shape_cast %1284 : vector<1x1x256xf32> to vector<1x256xf32>
    %1286 = vector.broadcast %1285 : vector<1x256xf32> to vector<16x256xf32>
    %1287 = arith.mulf %1283, %1286 : vector<16x256xf32>
    %c1_i32_271 = arith.constant 1 : i32
    %1288 = tpu.dynamic_rotate %1280 by %c1_i32_271 dim 1 : vector<16x256xf32>, i32 -> vector<16x256xf32>
    %c1_272 = arith.constant 1 : index
    %c0_273 = arith.constant 0 : index
    %c0_274 = arith.constant 0 : index
    %1289 = vector.load %arg7[%c1_272, %c0_273, %c0_274] : memref<5x1x256xf32, #tpu.memory_space<vmem>>, vector<1x1x256xf32>
    %1290 = vector.shape_cast %1289 : vector<1x1x256xf32> to vector<1x256xf32>
    %1291 = vector.broadcast %1290 : vector<1x256xf32> to vector<16x256xf32>
    %1292 = arith.mulf %1288, %1291 : vector<16x256xf32>
    %c2_275 = arith.constant 2 : index
    %c0_276 = arith.constant 0 : index
    %c0_277 = arith.constant 0 : index
    %1293 = vector.load %arg7[%c2_275, %c0_276, %c0_277] : memref<5x1x256xf32, #tpu.memory_space<vmem>>, vector<1x1x256xf32>
    %1294 = vector.shape_cast %1293 : vector<1x1x256xf32> to vector<1x256xf32>
    %1295 = vector.broadcast %1294 : vector<1x256xf32> to vector<16x256xf32>
    %1296 = arith.mulf %1280, %1295 : vector<16x256xf32>
    %c255_i32_278 = arith.constant 255 : i32
    %1297 = tpu.dynamic_rotate %1280 by %c255_i32_278 dim 1 : vector<16x256xf32>, i32 -> vector<16x256xf32>
    %c3_279 = arith.constant 3 : index
    %c0_280 = arith.constant 0 : index
    %c0_281 = arith.constant 0 : index
    %1298 = vector.load %arg7[%c3_279, %c0_280, %c0_281] : memref<5x1x256xf32, #tpu.memory_space<vmem>>, vector<1x1x256xf32>
    %1299 = vector.shape_cast %1298 : vector<1x1x256xf32> to vector<1x256xf32>
    %1300 = vector.broadcast %1299 : vector<1x256xf32> to vector<16x256xf32>
    %1301 = arith.mulf %1297, %1300 : vector<16x256xf32>
    %c254_i32_282 = arith.constant 254 : i32
    %1302 = tpu.dynamic_rotate %1280 by %c254_i32_282 dim 1 : vector<16x256xf32>, i32 -> vector<16x256xf32>
    %c4_283 = arith.constant 4 : index
    %c0_284 = arith.constant 0 : index
    %c0_285 = arith.constant 0 : index
    %1303 = vector.load %arg7[%c4_283, %c0_284, %c0_285] : memref<5x1x256xf32, #tpu.memory_space<vmem>>, vector<1x1x256xf32>
    %1304 = vector.shape_cast %1303 : vector<1x1x256xf32> to vector<1x256xf32>
    %1305 = vector.broadcast %1304 : vector<1x256xf32> to vector<16x256xf32>
    %1306 = arith.mulf %1302, %1305 : vector<16x256xf32>
    %1307 = vector.extract_strided_slice %1281 {offsets = [0, 0], sizes = [16, 1], strides = [1, 1]} : vector<16x25xf32> to vector<16x1xf32>
    %1308 = vector.broadcast %1307 : vector<16x1xf32> to vector<16x256xf32>
    %1309 = arith.mulf %1287, %1308 : vector<16x256xf32>
    %1310 = vector.extract_strided_slice %1281 {offsets = [0, 1], sizes = [16, 1], strides = [1, 1]} : vector<16x25xf32> to vector<16x1xf32>
    %1311 = vector.broadcast %1310 : vector<16x1xf32> to vector<16x256xf32>
    %1312 = arith.mulf %1292, %1311 : vector<16x256xf32>
    %1313 = arith.addf %1309, %1312 : vector<16x256xf32>
    %1314 = vector.extract_strided_slice %1281 {offsets = [0, 2], sizes = [16, 1], strides = [1, 1]} : vector<16x25xf32> to vector<16x1xf32>
    %1315 = vector.broadcast %1314 : vector<16x1xf32> to vector<16x256xf32>
    %1316 = arith.mulf %1296, %1315 : vector<16x256xf32>
    %1317 = arith.addf %1313, %1316 : vector<16x256xf32>
    %1318 = vector.extract_strided_slice %1281 {offsets = [0, 3], sizes = [16, 1], strides = [1, 1]} : vector<16x25xf32> to vector<16x1xf32>
    %1319 = vector.broadcast %1318 : vector<16x1xf32> to vector<16x256xf32>
    %1320 = arith.mulf %1301, %1319 : vector<16x256xf32>
    %1321 = arith.addf %1317, %1320 : vector<16x256xf32>
    %1322 = vector.extract_strided_slice %1281 {offsets = [0, 4], sizes = [16, 1], strides = [1, 1]} : vector<16x25xf32> to vector<16x1xf32>
    %1323 = vector.broadcast %1322 : vector<16x1xf32> to vector<16x256xf32>
    %1324 = arith.mulf %1306, %1323 : vector<16x256xf32>
    %1325 = arith.addf %1321, %1324 : vector<16x256xf32>
    %c32_i32_286 = arith.constant 32 : i32
    %1326 = tpu.dynamic_rotate %1325 by %c32_i32_286 dim 1 : vector<16x256xf32>, i32 -> vector<16x256xf32>
    %c0_287 = arith.constant 0 : index
    %c0_288 = arith.constant 0 : index
    %c0_289 = arith.constant 0 : index
    %1327 = vector.load %arg6[%c0_287, %c0_288, %c0_289] : memref<5x1x256xf32, #tpu.memory_space<vmem>>, vector<1x1x256xf32>
    %1328 = vector.shape_cast %1327 : vector<1x1x256xf32> to vector<1x256xf32>
    %1329 = vector.broadcast %1328 : vector<1x256xf32> to vector<16x256xf32>
    %1330 = arith.mulf %1326, %1329 : vector<16x256xf32>
    %1331 = vector.extract_strided_slice %1281 {offsets = [0, 5], sizes = [16, 1], strides = [1, 1]} : vector<16x25xf32> to vector<16x1xf32>
    %1332 = vector.broadcast %1331 : vector<16x1xf32> to vector<16x256xf32>
    %1333 = arith.mulf %1287, %1332 : vector<16x256xf32>
    %1334 = vector.extract_strided_slice %1281 {offsets = [0, 6], sizes = [16, 1], strides = [1, 1]} : vector<16x25xf32> to vector<16x1xf32>
    %1335 = vector.broadcast %1334 : vector<16x1xf32> to vector<16x256xf32>
    %1336 = arith.mulf %1292, %1335 : vector<16x256xf32>
    %1337 = arith.addf %1333, %1336 : vector<16x256xf32>
    %1338 = vector.extract_strided_slice %1281 {offsets = [0, 7], sizes = [16, 1], strides = [1, 1]} : vector<16x25xf32> to vector<16x1xf32>
    %1339 = vector.broadcast %1338 : vector<16x1xf32> to vector<16x256xf32>
    %1340 = arith.mulf %1296, %1339 : vector<16x256xf32>
    %1341 = arith.addf %1337, %1340 : vector<16x256xf32>
    %1342 = vector.extract_strided_slice %1281 {offsets = [0, 8], sizes = [16, 1], strides = [1, 1]} : vector<16x25xf32> to vector<16x1xf32>
    %1343 = vector.broadcast %1342 : vector<16x1xf32> to vector<16x256xf32>
    %1344 = arith.mulf %1301, %1343 : vector<16x256xf32>
    %1345 = arith.addf %1341, %1344 : vector<16x256xf32>
    %1346 = vector.extract_strided_slice %1281 {offsets = [0, 9], sizes = [16, 1], strides = [1, 1]} : vector<16x25xf32> to vector<16x1xf32>
    %1347 = vector.broadcast %1346 : vector<16x1xf32> to vector<16x256xf32>
    %1348 = arith.mulf %1306, %1347 : vector<16x256xf32>
    %1349 = arith.addf %1345, %1348 : vector<16x256xf32>
    %c16_i32_290 = arith.constant 16 : i32
    %1350 = tpu.dynamic_rotate %1349 by %c16_i32_290 dim 1 : vector<16x256xf32>, i32 -> vector<16x256xf32>
    %c1_291 = arith.constant 1 : index
    %c0_292 = arith.constant 0 : index
    %c0_293 = arith.constant 0 : index
    %1351 = vector.load %arg6[%c1_291, %c0_292, %c0_293] : memref<5x1x256xf32, #tpu.memory_space<vmem>>, vector<1x1x256xf32>
    %1352 = vector.shape_cast %1351 : vector<1x1x256xf32> to vector<1x256xf32>
    %1353 = vector.broadcast %1352 : vector<1x256xf32> to vector<16x256xf32>
    %1354 = arith.mulf %1350, %1353 : vector<16x256xf32>
    %1355 = arith.addf %1330, %1354 : vector<16x256xf32>
    %1356 = vector.extract_strided_slice %1281 {offsets = [0, 10], sizes = [16, 1], strides = [1, 1]} : vector<16x25xf32> to vector<16x1xf32>
    %1357 = vector.broadcast %1356 : vector<16x1xf32> to vector<16x256xf32>
    %1358 = arith.mulf %1287, %1357 : vector<16x256xf32>
    %1359 = vector.extract_strided_slice %1281 {offsets = [0, 11], sizes = [16, 1], strides = [1, 1]} : vector<16x25xf32> to vector<16x1xf32>
    %1360 = vector.broadcast %1359 : vector<16x1xf32> to vector<16x256xf32>
    %1361 = arith.mulf %1292, %1360 : vector<16x256xf32>
    %1362 = arith.addf %1358, %1361 : vector<16x256xf32>
    %1363 = vector.extract_strided_slice %1281 {offsets = [0, 12], sizes = [16, 1], strides = [1, 1]} : vector<16x25xf32> to vector<16x1xf32>
    %1364 = vector.broadcast %1363 : vector<16x1xf32> to vector<16x256xf32>
    %1365 = arith.mulf %1296, %1364 : vector<16x256xf32>
    %1366 = arith.addf %1362, %1365 : vector<16x256xf32>
    %1367 = vector.extract_strided_slice %1281 {offsets = [0, 13], sizes = [16, 1], strides = [1, 1]} : vector<16x25xf32> to vector<16x1xf32>
    %1368 = vector.broadcast %1367 : vector<16x1xf32> to vector<16x256xf32>
    %1369 = arith.mulf %1301, %1368 : vector<16x256xf32>
    %1370 = arith.addf %1366, %1369 : vector<16x256xf32>
    %1371 = vector.extract_strided_slice %1281 {offsets = [0, 14], sizes = [16, 1], strides = [1, 1]} : vector<16x25xf32> to vector<16x1xf32>
    %1372 = vector.broadcast %1371 : vector<16x1xf32> to vector<16x256xf32>
    %1373 = arith.mulf %1306, %1372 : vector<16x256xf32>
    %1374 = arith.addf %1370, %1373 : vector<16x256xf32>
    %c2_294 = arith.constant 2 : index
    %c0_295 = arith.constant 0 : index
    %c0_296 = arith.constant 0 : index
    %1375 = vector.load %arg6[%c2_294, %c0_295, %c0_296] : memref<5x1x256xf32, #tpu.memory_space<vmem>>, vector<1x1x256xf32>
    %1376 = vector.shape_cast %1375 : vector<1x1x256xf32> to vector<1x256xf32>
    %1377 = vector.broadcast %1376 : vector<1x256xf32> to vector<16x256xf32>
    %1378 = arith.mulf %1374, %1377 : vector<16x256xf32>
    %1379 = arith.addf %1355, %1378 : vector<16x256xf32>
    %1380 = vector.extract_strided_slice %1281 {offsets = [0, 15], sizes = [16, 1], strides = [1, 1]} : vector<16x25xf32> to vector<16x1xf32>
    %1381 = vector.broadcast %1380 : vector<16x1xf32> to vector<16x256xf32>
    %1382 = arith.mulf %1287, %1381 : vector<16x256xf32>
    %1383 = vector.extract_strided_slice %1281 {offsets = [0, 16], sizes = [16, 1], strides = [1, 1]} : vector<16x25xf32> to vector<16x1xf32>
    %1384 = vector.broadcast %1383 : vector<16x1xf32> to vector<16x256xf32>
    %1385 = arith.mulf %1292, %1384 : vector<16x256xf32>
    %1386 = arith.addf %1382, %1385 : vector<16x256xf32>
    %1387 = vector.extract_strided_slice %1281 {offsets = [0, 17], sizes = [16, 1], strides = [1, 1]} : vector<16x25xf32> to vector<16x1xf32>
    %1388 = vector.broadcast %1387 : vector<16x1xf32> to vector<16x256xf32>
    %1389 = arith.mulf %1296, %1388 : vector<16x256xf32>
    %1390 = arith.addf %1386, %1389 : vector<16x256xf32>
    %1391 = vector.extract_strided_slice %1281 {offsets = [0, 18], sizes = [16, 1], strides = [1, 1]} : vector<16x25xf32> to vector<16x1xf32>
    %1392 = vector.broadcast %1391 : vector<16x1xf32> to vector<16x256xf32>
    %1393 = arith.mulf %1301, %1392 : vector<16x256xf32>
    %1394 = arith.addf %1390, %1393 : vector<16x256xf32>
    %1395 = vector.extract_strided_slice %1281 {offsets = [0, 19], sizes = [16, 1], strides = [1, 1]} : vector<16x25xf32> to vector<16x1xf32>
    %1396 = vector.broadcast %1395 : vector<16x1xf32> to vector<16x256xf32>
    %1397 = arith.mulf %1306, %1396 : vector<16x256xf32>
    %1398 = arith.addf %1394, %1397 : vector<16x256xf32>
    %c240_i32_297 = arith.constant 240 : i32
    %1399 = tpu.dynamic_rotate %1398 by %c240_i32_297 dim 1 : vector<16x256xf32>, i32 -> vector<16x256xf32>
    %c3_298 = arith.constant 3 : index
    %c0_299 = arith.constant 0 : index
    %c0_300 = arith.constant 0 : index
    %1400 = vector.load %arg6[%c3_298, %c0_299, %c0_300] : memref<5x1x256xf32, #tpu.memory_space<vmem>>, vector<1x1x256xf32>
    %1401 = vector.shape_cast %1400 : vector<1x1x256xf32> to vector<1x256xf32>
    %1402 = vector.broadcast %1401 : vector<1x256xf32> to vector<16x256xf32>
    %1403 = arith.mulf %1399, %1402 : vector<16x256xf32>
    %1404 = arith.addf %1379, %1403 : vector<16x256xf32>
    %1405 = vector.extract_strided_slice %1281 {offsets = [0, 20], sizes = [16, 1], strides = [1, 1]} : vector<16x25xf32> to vector<16x1xf32>
    %1406 = vector.broadcast %1405 : vector<16x1xf32> to vector<16x256xf32>
    %1407 = arith.mulf %1287, %1406 : vector<16x256xf32>
    %1408 = vector.extract_strided_slice %1281 {offsets = [0, 21], sizes = [16, 1], strides = [1, 1]} : vector<16x25xf32> to vector<16x1xf32>
    %1409 = vector.broadcast %1408 : vector<16x1xf32> to vector<16x256xf32>
    %1410 = arith.mulf %1292, %1409 : vector<16x256xf32>
    %1411 = arith.addf %1407, %1410 : vector<16x256xf32>
    %1412 = vector.extract_strided_slice %1281 {offsets = [0, 22], sizes = [16, 1], strides = [1, 1]} : vector<16x25xf32> to vector<16x1xf32>
    %1413 = vector.broadcast %1412 : vector<16x1xf32> to vector<16x256xf32>
    %1414 = arith.mulf %1296, %1413 : vector<16x256xf32>
    %1415 = arith.addf %1411, %1414 : vector<16x256xf32>
    %1416 = vector.extract_strided_slice %1281 {offsets = [0, 23], sizes = [16, 1], strides = [1, 1]} : vector<16x25xf32> to vector<16x1xf32>
    %1417 = vector.broadcast %1416 : vector<16x1xf32> to vector<16x256xf32>
    %1418 = arith.mulf %1301, %1417 : vector<16x256xf32>
    %1419 = arith.addf %1415, %1418 : vector<16x256xf32>
    %1420 = vector.extract_strided_slice %1281 {offsets = [0, 24], sizes = [16, 1], strides = [1, 1]} : vector<16x25xf32> to vector<16x1xf32>
    %1421 = vector.broadcast %1420 : vector<16x1xf32> to vector<16x256xf32>
    %1422 = arith.mulf %1306, %1421 : vector<16x256xf32>
    %1423 = arith.addf %1419, %1422 : vector<16x256xf32>
    %c224_i32_301 = arith.constant 224 : i32
    %1424 = tpu.dynamic_rotate %1423 by %c224_i32_301 dim 1 : vector<16x256xf32>, i32 -> vector<16x256xf32>
    %c4_302 = arith.constant 4 : index
    %c0_303 = arith.constant 0 : index
    %c0_304 = arith.constant 0 : index
    %1425 = vector.load %arg6[%c4_302, %c0_303, %c0_304] : memref<5x1x256xf32, #tpu.memory_space<vmem>>, vector<1x1x256xf32>
    %1426 = vector.shape_cast %1425 : vector<1x1x256xf32> to vector<1x256xf32>
    %1427 = vector.broadcast %1426 : vector<1x256xf32> to vector<16x256xf32>
    %1428 = arith.mulf %1424, %1427 : vector<16x256xf32>
    %1429 = arith.addf %1404, %1428 : vector<16x256xf32>
    %1430 = vector.broadcast %1282 : vector<16x1xf32> to vector<16x256xf32>
    %1431 = arith.addf %1429, %1430 : vector<16x256xf32>
    %1432 = vector.extract_strided_slice %20 {offsets = [48, 0], sizes = [16, 49], strides = [1, 1]} : vector<64x49xf32> to vector<16x49xf32>
    %1433 = vector.extract_strided_slice %22 {offsets = [48, 0], sizes = [16, 1], strides = [1, 1]} : vector<64x1xf32> to vector<16x1xf32>
    %c9_i32_305 = arith.constant 9 : i32
    %1434 = tpu.dynamic_rotate %1431 by %c9_i32_305 dim 1 : vector<16x256xf32>, i32 -> vector<16x256xf32>
    %c0_306 = arith.constant 0 : index
    %c0_307 = arith.constant 0 : index
    %c0_308 = arith.constant 0 : index
    %1435 = vector.load %arg11[%c0_306, %c0_307, %c0_308] : memref<7x1x256xf32, #tpu.memory_space<vmem>>, vector<1x1x256xf32>
    %1436 = vector.shape_cast %1435 : vector<1x1x256xf32> to vector<1x256xf32>
    %1437 = vector.broadcast %1436 : vector<1x256xf32> to vector<16x256xf32>
    %1438 = arith.mulf %1434, %1437 : vector<16x256xf32>
    %c6_i32_309 = arith.constant 6 : i32
    %1439 = tpu.dynamic_rotate %1431 by %c6_i32_309 dim 1 : vector<16x256xf32>, i32 -> vector<16x256xf32>
    %c1_310 = arith.constant 1 : index
    %c0_311 = arith.constant 0 : index
    %c0_312 = arith.constant 0 : index
    %1440 = vector.load %arg11[%c1_310, %c0_311, %c0_312] : memref<7x1x256xf32, #tpu.memory_space<vmem>>, vector<1x1x256xf32>
    %1441 = vector.shape_cast %1440 : vector<1x1x256xf32> to vector<1x256xf32>
    %1442 = vector.broadcast %1441 : vector<1x256xf32> to vector<16x256xf32>
    %1443 = arith.mulf %1439, %1442 : vector<16x256xf32>
    %c3_i32_313 = arith.constant 3 : i32
    %1444 = tpu.dynamic_rotate %1431 by %c3_i32_313 dim 1 : vector<16x256xf32>, i32 -> vector<16x256xf32>
    %c2_314 = arith.constant 2 : index
    %c0_315 = arith.constant 0 : index
    %c0_316 = arith.constant 0 : index
    %1445 = vector.load %arg11[%c2_314, %c0_315, %c0_316] : memref<7x1x256xf32, #tpu.memory_space<vmem>>, vector<1x1x256xf32>
    %1446 = vector.shape_cast %1445 : vector<1x1x256xf32> to vector<1x256xf32>
    %1447 = vector.broadcast %1446 : vector<1x256xf32> to vector<16x256xf32>
    %1448 = arith.mulf %1444, %1447 : vector<16x256xf32>
    %c3_317 = arith.constant 3 : index
    %c0_318 = arith.constant 0 : index
    %c0_319 = arith.constant 0 : index
    %1449 = vector.load %arg11[%c3_317, %c0_318, %c0_319] : memref<7x1x256xf32, #tpu.memory_space<vmem>>, vector<1x1x256xf32>
    %1450 = vector.shape_cast %1449 : vector<1x1x256xf32> to vector<1x256xf32>
    %1451 = vector.broadcast %1450 : vector<1x256xf32> to vector<16x256xf32>
    %1452 = arith.mulf %1431, %1451 : vector<16x256xf32>
    %c253_i32_320 = arith.constant 253 : i32
    %1453 = tpu.dynamic_rotate %1431 by %c253_i32_320 dim 1 : vector<16x256xf32>, i32 -> vector<16x256xf32>
    %c4_321 = arith.constant 4 : index
    %c0_322 = arith.constant 0 : index
    %c0_323 = arith.constant 0 : index
    %1454 = vector.load %arg11[%c4_321, %c0_322, %c0_323] : memref<7x1x256xf32, #tpu.memory_space<vmem>>, vector<1x1x256xf32>
    %1455 = vector.shape_cast %1454 : vector<1x1x256xf32> to vector<1x256xf32>
    %1456 = vector.broadcast %1455 : vector<1x256xf32> to vector<16x256xf32>
    %1457 = arith.mulf %1453, %1456 : vector<16x256xf32>
    %c250_i32_324 = arith.constant 250 : i32
    %1458 = tpu.dynamic_rotate %1431 by %c250_i32_324 dim 1 : vector<16x256xf32>, i32 -> vector<16x256xf32>
    %c5_325 = arith.constant 5 : index
    %c0_326 = arith.constant 0 : index
    %c0_327 = arith.constant 0 : index
    %1459 = vector.load %arg11[%c5_325, %c0_326, %c0_327] : memref<7x1x256xf32, #tpu.memory_space<vmem>>, vector<1x1x256xf32>
    %1460 = vector.shape_cast %1459 : vector<1x1x256xf32> to vector<1x256xf32>
    %1461 = vector.broadcast %1460 : vector<1x256xf32> to vector<16x256xf32>
    %1462 = arith.mulf %1458, %1461 : vector<16x256xf32>
    %c247_i32_328 = arith.constant 247 : i32
    %1463 = tpu.dynamic_rotate %1431 by %c247_i32_328 dim 1 : vector<16x256xf32>, i32 -> vector<16x256xf32>
    %c6_329 = arith.constant 6 : index
    %c0_330 = arith.constant 0 : index
    %c0_331 = arith.constant 0 : index
    %1464 = vector.load %arg11[%c6_329, %c0_330, %c0_331] : memref<7x1x256xf32, #tpu.memory_space<vmem>>, vector<1x1x256xf32>
    %1465 = vector.shape_cast %1464 : vector<1x1x256xf32> to vector<1x256xf32>
    %1466 = vector.broadcast %1465 : vector<1x256xf32> to vector<16x256xf32>
    %1467 = arith.mulf %1463, %1466 : vector<16x256xf32>
    %1468 = vector.extract_strided_slice %1432 {offsets = [0, 0], sizes = [16, 1], strides = [1, 1]} : vector<16x49xf32> to vector<16x1xf32>
    %1469 = vector.broadcast %1468 : vector<16x1xf32> to vector<16x256xf32>
    %1470 = arith.mulf %1438, %1469 : vector<16x256xf32>
    %1471 = vector.extract_strided_slice %1432 {offsets = [0, 1], sizes = [16, 1], strides = [1, 1]} : vector<16x49xf32> to vector<16x1xf32>
    %1472 = vector.broadcast %1471 : vector<16x1xf32> to vector<16x256xf32>
    %1473 = arith.mulf %1443, %1472 : vector<16x256xf32>
    %1474 = arith.addf %1470, %1473 : vector<16x256xf32>
    %1475 = vector.extract_strided_slice %1432 {offsets = [0, 2], sizes = [16, 1], strides = [1, 1]} : vector<16x49xf32> to vector<16x1xf32>
    %1476 = vector.broadcast %1475 : vector<16x1xf32> to vector<16x256xf32>
    %1477 = arith.mulf %1448, %1476 : vector<16x256xf32>
    %1478 = arith.addf %1474, %1477 : vector<16x256xf32>
    %1479 = vector.extract_strided_slice %1432 {offsets = [0, 3], sizes = [16, 1], strides = [1, 1]} : vector<16x49xf32> to vector<16x1xf32>
    %1480 = vector.broadcast %1479 : vector<16x1xf32> to vector<16x256xf32>
    %1481 = arith.mulf %1452, %1480 : vector<16x256xf32>
    %1482 = arith.addf %1478, %1481 : vector<16x256xf32>
    %1483 = vector.extract_strided_slice %1432 {offsets = [0, 4], sizes = [16, 1], strides = [1, 1]} : vector<16x49xf32> to vector<16x1xf32>
    %1484 = vector.broadcast %1483 : vector<16x1xf32> to vector<16x256xf32>
    %1485 = arith.mulf %1457, %1484 : vector<16x256xf32>
    %1486 = arith.addf %1482, %1485 : vector<16x256xf32>
    %1487 = vector.extract_strided_slice %1432 {offsets = [0, 5], sizes = [16, 1], strides = [1, 1]} : vector<16x49xf32> to vector<16x1xf32>
    %1488 = vector.broadcast %1487 : vector<16x1xf32> to vector<16x256xf32>
    %1489 = arith.mulf %1462, %1488 : vector<16x256xf32>
    %1490 = arith.addf %1486, %1489 : vector<16x256xf32>
    %1491 = vector.extract_strided_slice %1432 {offsets = [0, 6], sizes = [16, 1], strides = [1, 1]} : vector<16x49xf32> to vector<16x1xf32>
    %1492 = vector.broadcast %1491 : vector<16x1xf32> to vector<16x256xf32>
    %1493 = arith.mulf %1467, %1492 : vector<16x256xf32>
    %1494 = arith.addf %1490, %1493 : vector<16x256xf32>
    %c144_i32_332 = arith.constant 144 : i32
    %1495 = tpu.dynamic_rotate %1494 by %c144_i32_332 dim 1 : vector<16x256xf32>, i32 -> vector<16x256xf32>
    %c0_333 = arith.constant 0 : index
    %c0_334 = arith.constant 0 : index
    %c0_335 = arith.constant 0 : index
    %1496 = vector.load %arg10[%c0_333, %c0_334, %c0_335] : memref<7x1x256xf32, #tpu.memory_space<vmem>>, vector<1x1x256xf32>
    %1497 = vector.shape_cast %1496 : vector<1x1x256xf32> to vector<1x256xf32>
    %1498 = vector.broadcast %1497 : vector<1x256xf32> to vector<16x256xf32>
    %1499 = arith.mulf %1495, %1498 : vector<16x256xf32>
    %1500 = vector.extract_strided_slice %1432 {offsets = [0, 7], sizes = [16, 1], strides = [1, 1]} : vector<16x49xf32> to vector<16x1xf32>
    %1501 = vector.broadcast %1500 : vector<16x1xf32> to vector<16x256xf32>
    %1502 = arith.mulf %1438, %1501 : vector<16x256xf32>
    %1503 = vector.extract_strided_slice %1432 {offsets = [0, 8], sizes = [16, 1], strides = [1, 1]} : vector<16x49xf32> to vector<16x1xf32>
    %1504 = vector.broadcast %1503 : vector<16x1xf32> to vector<16x256xf32>
    %1505 = arith.mulf %1443, %1504 : vector<16x256xf32>
    %1506 = arith.addf %1502, %1505 : vector<16x256xf32>
    %1507 = vector.extract_strided_slice %1432 {offsets = [0, 9], sizes = [16, 1], strides = [1, 1]} : vector<16x49xf32> to vector<16x1xf32>
    %1508 = vector.broadcast %1507 : vector<16x1xf32> to vector<16x256xf32>
    %1509 = arith.mulf %1448, %1508 : vector<16x256xf32>
    %1510 = arith.addf %1506, %1509 : vector<16x256xf32>
    %1511 = vector.extract_strided_slice %1432 {offsets = [0, 10], sizes = [16, 1], strides = [1, 1]} : vector<16x49xf32> to vector<16x1xf32>
    %1512 = vector.broadcast %1511 : vector<16x1xf32> to vector<16x256xf32>
    %1513 = arith.mulf %1452, %1512 : vector<16x256xf32>
    %1514 = arith.addf %1510, %1513 : vector<16x256xf32>
    %1515 = vector.extract_strided_slice %1432 {offsets = [0, 11], sizes = [16, 1], strides = [1, 1]} : vector<16x49xf32> to vector<16x1xf32>
    %1516 = vector.broadcast %1515 : vector<16x1xf32> to vector<16x256xf32>
    %1517 = arith.mulf %1457, %1516 : vector<16x256xf32>
    %1518 = arith.addf %1514, %1517 : vector<16x256xf32>
    %1519 = vector.extract_strided_slice %1432 {offsets = [0, 12], sizes = [16, 1], strides = [1, 1]} : vector<16x49xf32> to vector<16x1xf32>
    %1520 = vector.broadcast %1519 : vector<16x1xf32> to vector<16x256xf32>
    %1521 = arith.mulf %1462, %1520 : vector<16x256xf32>
    %1522 = arith.addf %1518, %1521 : vector<16x256xf32>
    %1523 = vector.extract_strided_slice %1432 {offsets = [0, 13], sizes = [16, 1], strides = [1, 1]} : vector<16x49xf32> to vector<16x1xf32>
    %1524 = vector.broadcast %1523 : vector<16x1xf32> to vector<16x256xf32>
    %1525 = arith.mulf %1467, %1524 : vector<16x256xf32>
    %1526 = arith.addf %1522, %1525 : vector<16x256xf32>
    %c96_i32_336 = arith.constant 96 : i32
    %1527 = tpu.dynamic_rotate %1526 by %c96_i32_336 dim 1 : vector<16x256xf32>, i32 -> vector<16x256xf32>
    %c1_337 = arith.constant 1 : index
    %c0_338 = arith.constant 0 : index
    %c0_339 = arith.constant 0 : index
    %1528 = vector.load %arg10[%c1_337, %c0_338, %c0_339] : memref<7x1x256xf32, #tpu.memory_space<vmem>>, vector<1x1x256xf32>
    %1529 = vector.shape_cast %1528 : vector<1x1x256xf32> to vector<1x256xf32>
    %1530 = vector.broadcast %1529 : vector<1x256xf32> to vector<16x256xf32>
    %1531 = arith.mulf %1527, %1530 : vector<16x256xf32>
    %1532 = arith.addf %1499, %1531 : vector<16x256xf32>
    %1533 = vector.extract_strided_slice %1432 {offsets = [0, 14], sizes = [16, 1], strides = [1, 1]} : vector<16x49xf32> to vector<16x1xf32>
    %1534 = vector.broadcast %1533 : vector<16x1xf32> to vector<16x256xf32>
    %1535 = arith.mulf %1438, %1534 : vector<16x256xf32>
    %1536 = vector.extract_strided_slice %1432 {offsets = [0, 15], sizes = [16, 1], strides = [1, 1]} : vector<16x49xf32> to vector<16x1xf32>
    %1537 = vector.broadcast %1536 : vector<16x1xf32> to vector<16x256xf32>
    %1538 = arith.mulf %1443, %1537 : vector<16x256xf32>
    %1539 = arith.addf %1535, %1538 : vector<16x256xf32>
    %1540 = vector.extract_strided_slice %1432 {offsets = [0, 16], sizes = [16, 1], strides = [1, 1]} : vector<16x49xf32> to vector<16x1xf32>
    %1541 = vector.broadcast %1540 : vector<16x1xf32> to vector<16x256xf32>
    %1542 = arith.mulf %1448, %1541 : vector<16x256xf32>
    %1543 = arith.addf %1539, %1542 : vector<16x256xf32>
    %1544 = vector.extract_strided_slice %1432 {offsets = [0, 17], sizes = [16, 1], strides = [1, 1]} : vector<16x49xf32> to vector<16x1xf32>
    %1545 = vector.broadcast %1544 : vector<16x1xf32> to vector<16x256xf32>
    %1546 = arith.mulf %1452, %1545 : vector<16x256xf32>
    %1547 = arith.addf %1543, %1546 : vector<16x256xf32>
    %1548 = vector.extract_strided_slice %1432 {offsets = [0, 18], sizes = [16, 1], strides = [1, 1]} : vector<16x49xf32> to vector<16x1xf32>
    %1549 = vector.broadcast %1548 : vector<16x1xf32> to vector<16x256xf32>
    %1550 = arith.mulf %1457, %1549 : vector<16x256xf32>
    %1551 = arith.addf %1547, %1550 : vector<16x256xf32>
    %1552 = vector.extract_strided_slice %1432 {offsets = [0, 19], sizes = [16, 1], strides = [1, 1]} : vector<16x49xf32> to vector<16x1xf32>
    %1553 = vector.broadcast %1552 : vector<16x1xf32> to vector<16x256xf32>
    %1554 = arith.mulf %1462, %1553 : vector<16x256xf32>
    %1555 = arith.addf %1551, %1554 : vector<16x256xf32>
    %1556 = vector.extract_strided_slice %1432 {offsets = [0, 20], sizes = [16, 1], strides = [1, 1]} : vector<16x49xf32> to vector<16x1xf32>
    %1557 = vector.broadcast %1556 : vector<16x1xf32> to vector<16x256xf32>
    %1558 = arith.mulf %1467, %1557 : vector<16x256xf32>
    %1559 = arith.addf %1555, %1558 : vector<16x256xf32>
    %c48_i32_340 = arith.constant 48 : i32
    %1560 = tpu.dynamic_rotate %1559 by %c48_i32_340 dim 1 : vector<16x256xf32>, i32 -> vector<16x256xf32>
    %c2_341 = arith.constant 2 : index
    %c0_342 = arith.constant 0 : index
    %c0_343 = arith.constant 0 : index
    %1561 = vector.load %arg10[%c2_341, %c0_342, %c0_343] : memref<7x1x256xf32, #tpu.memory_space<vmem>>, vector<1x1x256xf32>
    %1562 = vector.shape_cast %1561 : vector<1x1x256xf32> to vector<1x256xf32>
    %1563 = vector.broadcast %1562 : vector<1x256xf32> to vector<16x256xf32>
    %1564 = arith.mulf %1560, %1563 : vector<16x256xf32>
    %1565 = arith.addf %1532, %1564 : vector<16x256xf32>
    %1566 = vector.extract_strided_slice %1432 {offsets = [0, 21], sizes = [16, 1], strides = [1, 1]} : vector<16x49xf32> to vector<16x1xf32>
    %1567 = vector.broadcast %1566 : vector<16x1xf32> to vector<16x256xf32>
    %1568 = arith.mulf %1438, %1567 : vector<16x256xf32>
    %1569 = vector.extract_strided_slice %1432 {offsets = [0, 22], sizes = [16, 1], strides = [1, 1]} : vector<16x49xf32> to vector<16x1xf32>
    %1570 = vector.broadcast %1569 : vector<16x1xf32> to vector<16x256xf32>
    %1571 = arith.mulf %1443, %1570 : vector<16x256xf32>
    %1572 = arith.addf %1568, %1571 : vector<16x256xf32>
    %1573 = vector.extract_strided_slice %1432 {offsets = [0, 23], sizes = [16, 1], strides = [1, 1]} : vector<16x49xf32> to vector<16x1xf32>
    %1574 = vector.broadcast %1573 : vector<16x1xf32> to vector<16x256xf32>
    %1575 = arith.mulf %1448, %1574 : vector<16x256xf32>
    %1576 = arith.addf %1572, %1575 : vector<16x256xf32>
    %1577 = vector.extract_strided_slice %1432 {offsets = [0, 24], sizes = [16, 1], strides = [1, 1]} : vector<16x49xf32> to vector<16x1xf32>
    %1578 = vector.broadcast %1577 : vector<16x1xf32> to vector<16x256xf32>
    %1579 = arith.mulf %1452, %1578 : vector<16x256xf32>
    %1580 = arith.addf %1576, %1579 : vector<16x256xf32>
    %1581 = vector.extract_strided_slice %1432 {offsets = [0, 25], sizes = [16, 1], strides = [1, 1]} : vector<16x49xf32> to vector<16x1xf32>
    %1582 = vector.broadcast %1581 : vector<16x1xf32> to vector<16x256xf32>
    %1583 = arith.mulf %1457, %1582 : vector<16x256xf32>
    %1584 = arith.addf %1580, %1583 : vector<16x256xf32>
    %1585 = vector.extract_strided_slice %1432 {offsets = [0, 26], sizes = [16, 1], strides = [1, 1]} : vector<16x49xf32> to vector<16x1xf32>
    %1586 = vector.broadcast %1585 : vector<16x1xf32> to vector<16x256xf32>
    %1587 = arith.mulf %1462, %1586 : vector<16x256xf32>
    %1588 = arith.addf %1584, %1587 : vector<16x256xf32>
    %1589 = vector.extract_strided_slice %1432 {offsets = [0, 27], sizes = [16, 1], strides = [1, 1]} : vector<16x49xf32> to vector<16x1xf32>
    %1590 = vector.broadcast %1589 : vector<16x1xf32> to vector<16x256xf32>
    %1591 = arith.mulf %1467, %1590 : vector<16x256xf32>
    %1592 = arith.addf %1588, %1591 : vector<16x256xf32>
    %c3_344 = arith.constant 3 : index
    %c0_345 = arith.constant 0 : index
    %c0_346 = arith.constant 0 : index
    %1593 = vector.load %arg10[%c3_344, %c0_345, %c0_346] : memref<7x1x256xf32, #tpu.memory_space<vmem>>, vector<1x1x256xf32>
    %1594 = vector.shape_cast %1593 : vector<1x1x256xf32> to vector<1x256xf32>
    %1595 = vector.broadcast %1594 : vector<1x256xf32> to vector<16x256xf32>
    %1596 = arith.mulf %1592, %1595 : vector<16x256xf32>
    %1597 = arith.addf %1565, %1596 : vector<16x256xf32>
    %1598 = vector.extract_strided_slice %1432 {offsets = [0, 28], sizes = [16, 1], strides = [1, 1]} : vector<16x49xf32> to vector<16x1xf32>
    %1599 = vector.broadcast %1598 : vector<16x1xf32> to vector<16x256xf32>
    %1600 = arith.mulf %1438, %1599 : vector<16x256xf32>
    %1601 = vector.extract_strided_slice %1432 {offsets = [0, 29], sizes = [16, 1], strides = [1, 1]} : vector<16x49xf32> to vector<16x1xf32>
    %1602 = vector.broadcast %1601 : vector<16x1xf32> to vector<16x256xf32>
    %1603 = arith.mulf %1443, %1602 : vector<16x256xf32>
    %1604 = arith.addf %1600, %1603 : vector<16x256xf32>
    %1605 = vector.extract_strided_slice %1432 {offsets = [0, 30], sizes = [16, 1], strides = [1, 1]} : vector<16x49xf32> to vector<16x1xf32>
    %1606 = vector.broadcast %1605 : vector<16x1xf32> to vector<16x256xf32>
    %1607 = arith.mulf %1448, %1606 : vector<16x256xf32>
    %1608 = arith.addf %1604, %1607 : vector<16x256xf32>
    %1609 = vector.extract_strided_slice %1432 {offsets = [0, 31], sizes = [16, 1], strides = [1, 1]} : vector<16x49xf32> to vector<16x1xf32>
    %1610 = vector.broadcast %1609 : vector<16x1xf32> to vector<16x256xf32>
    %1611 = arith.mulf %1452, %1610 : vector<16x256xf32>
    %1612 = arith.addf %1608, %1611 : vector<16x256xf32>
    %1613 = vector.extract_strided_slice %1432 {offsets = [0, 32], sizes = [16, 1], strides = [1, 1]} : vector<16x49xf32> to vector<16x1xf32>
    %1614 = vector.broadcast %1613 : vector<16x1xf32> to vector<16x256xf32>
    %1615 = arith.mulf %1457, %1614 : vector<16x256xf32>
    %1616 = arith.addf %1612, %1615 : vector<16x256xf32>
    %1617 = vector.extract_strided_slice %1432 {offsets = [0, 33], sizes = [16, 1], strides = [1, 1]} : vector<16x49xf32> to vector<16x1xf32>
    %1618 = vector.broadcast %1617 : vector<16x1xf32> to vector<16x256xf32>
    %1619 = arith.mulf %1462, %1618 : vector<16x256xf32>
    %1620 = arith.addf %1616, %1619 : vector<16x256xf32>
    %1621 = vector.extract_strided_slice %1432 {offsets = [0, 34], sizes = [16, 1], strides = [1, 1]} : vector<16x49xf32> to vector<16x1xf32>
    %1622 = vector.broadcast %1621 : vector<16x1xf32> to vector<16x256xf32>
    %1623 = arith.mulf %1467, %1622 : vector<16x256xf32>
    %1624 = arith.addf %1620, %1623 : vector<16x256xf32>
    %c208_i32_347 = arith.constant 208 : i32
    %1625 = tpu.dynamic_rotate %1624 by %c208_i32_347 dim 1 : vector<16x256xf32>, i32 -> vector<16x256xf32>
    %c4_348 = arith.constant 4 : index
    %c0_349 = arith.constant 0 : index
    %c0_350 = arith.constant 0 : index
    %1626 = vector.load %arg10[%c4_348, %c0_349, %c0_350] : memref<7x1x256xf32, #tpu.memory_space<vmem>>, vector<1x1x256xf32>
    %1627 = vector.shape_cast %1626 : vector<1x1x256xf32> to vector<1x256xf32>
    %1628 = vector.broadcast %1627 : vector<1x256xf32> to vector<16x256xf32>
    %1629 = arith.mulf %1625, %1628 : vector<16x256xf32>
    %1630 = arith.addf %1597, %1629 : vector<16x256xf32>
    %1631 = vector.extract_strided_slice %1432 {offsets = [0, 35], sizes = [16, 1], strides = [1, 1]} : vector<16x49xf32> to vector<16x1xf32>
    %1632 = vector.broadcast %1631 : vector<16x1xf32> to vector<16x256xf32>
    %1633 = arith.mulf %1438, %1632 : vector<16x256xf32>
    %1634 = vector.extract_strided_slice %1432 {offsets = [0, 36], sizes = [16, 1], strides = [1, 1]} : vector<16x49xf32> to vector<16x1xf32>
    %1635 = vector.broadcast %1634 : vector<16x1xf32> to vector<16x256xf32>
    %1636 = arith.mulf %1443, %1635 : vector<16x256xf32>
    %1637 = arith.addf %1633, %1636 : vector<16x256xf32>
    %1638 = vector.extract_strided_slice %1432 {offsets = [0, 37], sizes = [16, 1], strides = [1, 1]} : vector<16x49xf32> to vector<16x1xf32>
    %1639 = vector.broadcast %1638 : vector<16x1xf32> to vector<16x256xf32>
    %1640 = arith.mulf %1448, %1639 : vector<16x256xf32>
    %1641 = arith.addf %1637, %1640 : vector<16x256xf32>
    %1642 = vector.extract_strided_slice %1432 {offsets = [0, 38], sizes = [16, 1], strides = [1, 1]} : vector<16x49xf32> to vector<16x1xf32>
    %1643 = vector.broadcast %1642 : vector<16x1xf32> to vector<16x256xf32>
    %1644 = arith.mulf %1452, %1643 : vector<16x256xf32>
    %1645 = arith.addf %1641, %1644 : vector<16x256xf32>
    %1646 = vector.extract_strided_slice %1432 {offsets = [0, 39], sizes = [16, 1], strides = [1, 1]} : vector<16x49xf32> to vector<16x1xf32>
    %1647 = vector.broadcast %1646 : vector<16x1xf32> to vector<16x256xf32>
    %1648 = arith.mulf %1457, %1647 : vector<16x256xf32>
    %1649 = arith.addf %1645, %1648 : vector<16x256xf32>
    %1650 = vector.extract_strided_slice %1432 {offsets = [0, 40], sizes = [16, 1], strides = [1, 1]} : vector<16x49xf32> to vector<16x1xf32>
    %1651 = vector.broadcast %1650 : vector<16x1xf32> to vector<16x256xf32>
    %1652 = arith.mulf %1462, %1651 : vector<16x256xf32>
    %1653 = arith.addf %1649, %1652 : vector<16x256xf32>
    %1654 = vector.extract_strided_slice %1432 {offsets = [0, 41], sizes = [16, 1], strides = [1, 1]} : vector<16x49xf32> to vector<16x1xf32>
    %1655 = vector.broadcast %1654 : vector<16x1xf32> to vector<16x256xf32>
    %1656 = arith.mulf %1467, %1655 : vector<16x256xf32>
    %1657 = arith.addf %1653, %1656 : vector<16x256xf32>
    %c160_i32_351 = arith.constant 160 : i32
    %1658 = tpu.dynamic_rotate %1657 by %c160_i32_351 dim 1 : vector<16x256xf32>, i32 -> vector<16x256xf32>
    %c5_352 = arith.constant 5 : index
    %c0_353 = arith.constant 0 : index
    %c0_354 = arith.constant 0 : index
    %1659 = vector.load %arg10[%c5_352, %c0_353, %c0_354] : memref<7x1x256xf32, #tpu.memory_space<vmem>>, vector<1x1x256xf32>
    %1660 = vector.shape_cast %1659 : vector<1x1x256xf32> to vector<1x256xf32>
    %1661 = vector.broadcast %1660 : vector<1x256xf32> to vector<16x256xf32>
    %1662 = arith.mulf %1658, %1661 : vector<16x256xf32>
    %1663 = arith.addf %1630, %1662 : vector<16x256xf32>
    %1664 = vector.extract_strided_slice %1432 {offsets = [0, 42], sizes = [16, 1], strides = [1, 1]} : vector<16x49xf32> to vector<16x1xf32>
    %1665 = vector.broadcast %1664 : vector<16x1xf32> to vector<16x256xf32>
    %1666 = arith.mulf %1438, %1665 : vector<16x256xf32>
    %1667 = vector.extract_strided_slice %1432 {offsets = [0, 43], sizes = [16, 1], strides = [1, 1]} : vector<16x49xf32> to vector<16x1xf32>
    %1668 = vector.broadcast %1667 : vector<16x1xf32> to vector<16x256xf32>
    %1669 = arith.mulf %1443, %1668 : vector<16x256xf32>
    %1670 = arith.addf %1666, %1669 : vector<16x256xf32>
    %1671 = vector.extract_strided_slice %1432 {offsets = [0, 44], sizes = [16, 1], strides = [1, 1]} : vector<16x49xf32> to vector<16x1xf32>
    %1672 = vector.broadcast %1671 : vector<16x1xf32> to vector<16x256xf32>
    %1673 = arith.mulf %1448, %1672 : vector<16x256xf32>
    %1674 = arith.addf %1670, %1673 : vector<16x256xf32>
    %1675 = vector.extract_strided_slice %1432 {offsets = [0, 45], sizes = [16, 1], strides = [1, 1]} : vector<16x49xf32> to vector<16x1xf32>
    %1676 = vector.broadcast %1675 : vector<16x1xf32> to vector<16x256xf32>
    %1677 = arith.mulf %1452, %1676 : vector<16x256xf32>
    %1678 = arith.addf %1674, %1677 : vector<16x256xf32>
    %1679 = vector.extract_strided_slice %1432 {offsets = [0, 46], sizes = [16, 1], strides = [1, 1]} : vector<16x49xf32> to vector<16x1xf32>
    %1680 = vector.broadcast %1679 : vector<16x1xf32> to vector<16x256xf32>
    %1681 = arith.mulf %1457, %1680 : vector<16x256xf32>
    %1682 = arith.addf %1678, %1681 : vector<16x256xf32>
    %1683 = vector.extract_strided_slice %1432 {offsets = [0, 47], sizes = [16, 1], strides = [1, 1]} : vector<16x49xf32> to vector<16x1xf32>
    %1684 = vector.broadcast %1683 : vector<16x1xf32> to vector<16x256xf32>
    %1685 = arith.mulf %1462, %1684 : vector<16x256xf32>
    %1686 = arith.addf %1682, %1685 : vector<16x256xf32>
    %1687 = vector.extract_strided_slice %1432 {offsets = [0, 48], sizes = [16, 1], strides = [1, 1]} : vector<16x49xf32> to vector<16x1xf32>
    %1688 = vector.broadcast %1687 : vector<16x1xf32> to vector<16x256xf32>
    %1689 = arith.mulf %1467, %1688 : vector<16x256xf32>
    %1690 = arith.addf %1686, %1689 : vector<16x256xf32>
    %c112_i32_355 = arith.constant 112 : i32
    %1691 = tpu.dynamic_rotate %1690 by %c112_i32_355 dim 1 : vector<16x256xf32>, i32 -> vector<16x256xf32>
    %c6_356 = arith.constant 6 : index
    %c0_357 = arith.constant 0 : index
    %c0_358 = arith.constant 0 : index
    %1692 = vector.load %arg10[%c6_356, %c0_357, %c0_358] : memref<7x1x256xf32, #tpu.memory_space<vmem>>, vector<1x1x256xf32>
    %1693 = vector.shape_cast %1692 : vector<1x1x256xf32> to vector<1x256xf32>
    %1694 = vector.broadcast %1693 : vector<1x256xf32> to vector<16x256xf32>
    %1695 = arith.mulf %1691, %1694 : vector<16x256xf32>
    %1696 = arith.addf %1663, %1695 : vector<16x256xf32>
    %1697 = vector.broadcast %1433 : vector<16x1xf32> to vector<16x256xf32>
    %1698 = arith.addf %1696, %1697 : vector<16x256xf32>
    %1699 = tpu.concatenate %441, %860, %1279, %1698 in 0 : vector<16x256xf32>, vector<16x256xf32>, vector<16x256xf32>, vector<16x256xf32> -> vector<64x256xf32>
    %c0_359 = arith.constant 0 : index
    %c0_360 = arith.constant 0 : index
    %1700 = vector.load %arg12[%c0_359, %c0_360] : memref<64x64xf32, #tpu.memory_space<vmem>>, vector<64x64xf32>
    %cst_361 = arith.constant dense<0.000000e+00> : vector<64x256xf32>
    %1701 = tpu.matmul %1700, %1699, %cst_361 {dimension_numbers = #tpu.dot_dimension_numbers<[1], [0], [0], [1], [0, 0, 1, 1], [], []>} : vector<64x64xf32>, vector<64x256xf32>, vector<64x256xf32> -> vector<64x256xf32>
    %c0_362 = arith.constant 0 : index
    %c0_363 = arith.constant 0 : index
    %1702 = vector.load %arg13[%c0_362, %c0_363] : memref<64x1xf32, #tpu.memory_space<vmem>>, vector<64x1xf32>
    %1703 = vector.broadcast %1702 : vector<64x1xf32> to vector<64x256xf32>
    %1704 = arith.addf %1701, %1703 : vector<64x256xf32>
    %cst_364 = arith.constant dense<0.000000e+00> : vector<64xf32>
    %1705 = vector.multi_reduction <add>, %18, %cst_364 [1] : vector<64x256xf32> to vector<64xf32>
    %1706 = vector.shape_cast %1705 : vector<64xf32> to vector<64x1xf32>
    %cst_365 = arith.constant 3.906250e-03 : f32
    %1707 = vector.broadcast %cst_365 : f32 to vector<64x1xf32>
    %1708 = arith.mulf %1706, %1707 : vector<64x1xf32>
    %c0_366 = arith.constant 0 : index
    %c0_367 = arith.constant 0 : index
    %1709 = vector.load %arg14[%c0_366, %c0_367] : memref<64x16xf32, #tpu.memory_space<vmem>>, vector<64x16xf32>
    %1710 = vector.broadcast %1708 : vector<64x1xf32> to vector<64x16xf32>
    %1711 = arith.mulf %1709, %1710 : vector<64x16xf32>
    %cst_368 = arith.constant dense<0.000000e+00> : vector<16xf32>
    %1712 = vector.multi_reduction <add>, %1711, %cst_368 [0] : vector<64x16xf32> to vector<16xf32>
    %1713 = vector.shape_cast %1712 : vector<16xf32> to vector<1x16xf32>
    %cst_369 = arith.constant 0.000000e+00 : f32
    %1714 = vector.broadcast %cst_369 : f32 to vector<1x16xf32>
    %1715 = arith.maximumf %1713, %1714 : vector<1x16xf32>
    %c0_370 = arith.constant 0 : index
    %c0_371 = arith.constant 0 : index
    %1716 = vector.load %arg15[%c0_370, %c0_371] : memref<64x16xf32, #tpu.memory_space<vmem>>, vector<64x16xf32>
    %1717 = vector.broadcast %1715 : vector<1x16xf32> to vector<64x16xf32>
    %1718 = arith.mulf %1716, %1717 : vector<64x16xf32>
    %cst_372 = arith.constant dense<0.000000e+00> : vector<64xf32>
    %1719 = vector.multi_reduction <add>, %1718, %cst_372 [1] : vector<64x16xf32> to vector<64xf32>
    %1720 = vector.shape_cast %1719 : vector<64xf32> to vector<64x1xf32>
    %1721 = arith.negf %1720 : vector<64x1xf32>
    %1722 = math.exp %1721 : vector<64x1xf32>
    %cst_373 = arith.constant 1.000000e+00 : f32
    %1723 = vector.broadcast %cst_373 : f32 to vector<64x1xf32>
    %1724 = arith.addf %1723, %1722 : vector<64x1xf32>
    %1725 = arith.divf %1723, %1724 : vector<64x1xf32>
    %1726 = vector.broadcast %1725 : vector<64x1xf32> to vector<64x256xf32>
    %1727 = arith.mulf %1726, %1704 : vector<64x256xf32>
    %1728 = arith.mulf %1727, %18 : vector<64x256xf32>
    %c0_374 = arith.constant 0 : index
    %c0_375 = arith.constant 0 : index
    %1729 = vector.load %arg16[%c0_374, %c0_375] : memref<64x64xf32, #tpu.memory_space<vmem>>, vector<64x64xf32>
    %cst_376 = arith.constant dense<0.000000e+00> : vector<64x256xf32>
    %1730 = tpu.matmul %1729, %1728, %cst_376 {dimension_numbers = #tpu.dot_dimension_numbers<[1], [0], [0], [1], [0, 0, 1, 1], [], []>} : vector<64x64xf32>, vector<64x256xf32>, vector<64x256xf32> -> vector<64x256xf32>
    %c0_377 = arith.constant 0 : index
    %c0_378 = arith.constant 0 : index
    %1731 = vector.load %arg17[%c0_377, %c0_378] : memref<64x1xf32, #tpu.memory_space<vmem>>, vector<64x1xf32>
    %1732 = vector.broadcast %1731 : vector<64x1xf32> to vector<64x256xf32>
    %1733 = arith.addf %1730, %1732 : vector<64x256xf32>
    %1734 = arith.addf %1733, %0 : vector<64x256xf32>
    %c0_379 = arith.constant 0 : index
    %c0_380 = arith.constant 0 : index
    %1735 = vector.load %arg18[%c0_379, %c0_380] : memref<64x256xf32, #tpu.memory_space<vmem>>, vector<64x256xf32>
    tpu.vector_store %arg18[%c0_379, %c0_380], %1734 {strides = array<i32>} : memref<64x256xf32, #tpu.memory_space<vmem>>, vector<64x256xf32>,
    return
  }
  func.func @transform_0(%arg0: i32) -> (i32, i32) {
    %c0_i32 = arith.constant 0 : i32
    %c0_i32_0 = arith.constant 0 : i32
    return %arg0, %c0_i32 : i32, i32
  }
  func.func @transform_1(%arg0: i32) -> (i32, i32) {
    %c0_i32 = arith.constant 0 : i32
    %c0_i32_0 = arith.constant 0 : i32
    %c0_i32_1 = arith.constant 0 : i32
    return %c0_i32, %c0_i32_0 : i32, i32
  }
  func.func @transform_2(%arg0: i32) -> (i32, i32) {
    %c0_i32 = arith.constant 0 : i32
    %c0_i32_0 = arith.constant 0 : i32
    %c0_i32_1 = arith.constant 0 : i32
    return %c0_i32, %c0_i32_0 : i32, i32
  }
  func.func @transform_3(%arg0: i32) -> (i32, i32) {
    %c0_i32 = arith.constant 0 : i32
    %c0_i32_0 = arith.constant 0 : i32
    %c0_i32_1 = arith.constant 0 : i32
    return %c0_i32, %c0_i32_0 : i32, i32
  }
  func.func @transform_4(%arg0: i32) -> (i32, i32) {
    %c0_i32 = arith.constant 0 : i32
    %c0_i32_0 = arith.constant 0 : i32
    %c0_i32_1 = arith.constant 0 : i32
    return %c0_i32, %c0_i32_0 : i32, i32
  }
  func.func @transform_5(%arg0: i32) -> (i32, i32, i32) {
    %c0_i32 = arith.constant 0 : i32
    %c0_i32_0 = arith.constant 0 : i32
    %c0_i32_1 = arith.constant 0 : i32
    %c0_i32_2 = arith.constant 0 : i32
    return %c0_i32, %c0_i32_0, %c0_i32_1 : i32, i32, i32
  }
  func.func @transform_6(%arg0: i32) -> (i32, i32, i32) {
    %c0_i32 = arith.constant 0 : i32
    %c0_i32_0 = arith.constant 0 : i32
    %c0_i32_1 = arith.constant 0 : i32
    %c0_i32_2 = arith.constant 0 : i32
    return %c0_i32, %c0_i32_0, %c0_i32_1 : i32, i32, i32
  }
  func.func @transform_7(%arg0: i32) -> (i32, i32) {
    %c0_i32 = arith.constant 0 : i32
    %c0_i32_0 = arith.constant 0 : i32
    %c0_i32_1 = arith.constant 0 : i32
    return %c0_i32, %c0_i32_0 : i32, i32
  }
  func.func @transform_8(%arg0: i32) -> (i32, i32) {
    %c0_i32 = arith.constant 0 : i32
    %c0_i32_0 = arith.constant 0 : i32
    %c0_i32_1 = arith.constant 0 : i32
    return %c0_i32, %c0_i32_0 : i32, i32
  }
  func.func @transform_9(%arg0: i32) -> (i32, i32, i32) {
    %c0_i32 = arith.constant 0 : i32
    %c0_i32_0 = arith.constant 0 : i32
    %c0_i32_1 = arith.constant 0 : i32
    %c0_i32_2 = arith.constant 0 : i32
    return %c0_i32, %c0_i32_0, %c0_i32_1 : i32, i32, i32
  }
  func.func @transform_10(%arg0: i32) -> (i32, i32, i32) {
    %c0_i32 = arith.constant 0 : i32
    %c0_i32_0 = arith.constant 0 : i32
    %c0_i32_1 = arith.constant 0 : i32
    %c0_i32_2 = arith.constant 0 : i32
    return %c0_i32, %c0_i32_0, %c0_i32_1 : i32, i32, i32
  }
  func.func @transform_11(%arg0: i32) -> (i32, i32) {
    %c0_i32 = arith.constant 0 : i32
    %c0_i32_0 = arith.constant 0 : i32
    %c0_i32_1 = arith.constant 0 : i32
    return %c0_i32, %c0_i32_0 : i32, i32
  }
  func.func @transform_12(%arg0: i32) -> (i32, i32) {
    %c0_i32 = arith.constant 0 : i32
    %c0_i32_0 = arith.constant 0 : i32
    %c0_i32_1 = arith.constant 0 : i32
    return %c0_i32, %c0_i32_0 : i32, i32
  }
  func.func @transform_13(%arg0: i32) -> (i32, i32) {
    %c0_i32 = arith.constant 0 : i32
    %c0_i32_0 = arith.constant 0 : i32
    %c0_i32_1 = arith.constant 0 : i32
    return %c0_i32, %c0_i32_0 : i32, i32
  }
  func.func @transform_14(%arg0: i32) -> (i32, i32) {
    %c0_i32 = arith.constant 0 : i32
    %c0_i32_0 = arith.constant 0 : i32
    %c0_i32_1 = arith.constant 0 : i32
    return %c0_i32, %c0_i32_0 : i32, i32
  }
  func.func @transform_15(%arg0: i32) -> (i32, i32) {
    %c0_i32 = arith.constant 0 : i32
    %c0_i32_0 = arith.constant 0 : i32
    %c0_i32_1 = arith.constant 0 : i32
    return %c0_i32, %c0_i32_0 : i32, i32
  }
  func.func @transform_16(%arg0: i32) -> (i32, i32) {
    %c0_i32 = arith.constant 0 : i32
    %c0_i32_0 = arith.constant 0 : i32
    %c0_i32_1 = arith.constant 0 : i32
    return %c0_i32, %c0_i32_0 : i32, i32
  }
  func.func @transform_17(%arg0: i32) -> (i32, i32) {
    %c0_i32 = arith.constant 0 : i32
    %c0_i32_0 = arith.constant 0 : i32
    return %arg0, %c0_i32 : i32, i32
  }
}

</mosaic_0001>

<llo_original>
// kernel: tpu_custom_call.1
$region0: #{tpu_custom_call.1}
  #allocation0 [shape = 'u32[]', space=smem, size = 0x4, offset = 0x4, fixed_abs, tag = 'smem constant byte address 0x4 - core index']
  #allocation1 [shape = 'u32[72,128]{1,0:T(1,128)}', space=vmem, size = 0x9000, scoped, tag = 'internal scratch']
  %s0 = inlined_call_operand.hbm [shape: f32[8,128], index: 0, kind: input, shape index: {}]
  %s1 = inlined_call_operand.hbm [shape: f32[8,128], index: 1, kind: output, shape index: {}]
  %s2 = sld [smem:[#allocation0]]
  $region18: #{tpu_custom_call.1} parent=0
    _
  %s4 = ssub.s32 1, %s2
  %s5 = scalar_select 0, %s4, %s2
  $region1: #{tpu_custom_call.1} parent=0
    #allocation2 [shape = 'u8[4096]{0}', space=vmem, size = 0x1000, scoped, tag = 'input window, operand 0, single buffered']
    #allocation3 [shape = 's32[1]{0}', space=sflag, size = 0x4, scoped, tag = 'scoped memory for tpu_custom_call.1']
    #allocation4 [shape = 's32[1]{0}', space=sflag, size = 0x4, scoped, tag = 'scoped memory for tpu_custom_call.1']
    #allocation5 [shape = 'u8[4096]{0}', space=vmem, size = 0x1000, scoped, tag = 'output window, operand 0, single buffered']
    %6 = vsyncpa [#allocation3], 0
    %7 = vsyncpa [#allocation4], 0
    // Predicated region
    $region2: #{tpu_custom_call.1} parent=1 // pred_check
      _
    $region3: #{tpu_custom_call.1} parent=1 // pred_check_branch
      %9 = sbr.rel (0) target = $region5
    $region4: #{tpu_custom_call.1} parent=1 // pred_region
      %11 = vsyncadd [#allocation3], 0
      %s13 = sshll.u32 %s0, 4
      %s14 = int_to_ptr.hbm [resolvable:$true] %s13
      %s15 = sshll.u32 [#allocation2], 4
      %s16 = int_to_ptr.vmem [resolvable:$true] %s15
      %18 = dma.hbm_to_vmem [thread:$0]  %s14, 128, %s16, [#allocation3]
    $region5: #{tpu_custom_call.1} parent=1 // pred_fallthru
      _
    // Predicated region
    $region6: #{tpu_custom_call.1} parent=1 // pred_check
      _
    $region7: #{tpu_custom_call.1} parent=1 // pred_check_branch
      %20 = sbr.rel (0) target = $region9
    $region8: #{tpu_custom_call.1} parent=1 // pred_region
      %22 = dma.done [#allocation3], 128
    $region9: #{tpu_custom_call.1} parent=1 // pred_fallthru
      _
    %v23 = vld [vmem:[#allocation2] sm:$0xff]
    %v24 = vmul.f32 %v23, %v23
    %v25 = vmin.f32 16.0, %v24
    %v26 = vmul.f32 %v25, 2.1237322e-06
    %v27 = vadd.f32 %v26, 0.00028619796
    %v28 = vmul.f32 %v25, %v27
    %v29 = vadd.f32 %v28, 0.0036580483
    %v30 = vmul.f32 %v25, %v29
    %v31 = vadd.f32 %v30, 0.05243302
    %v32 = vmul.f32 %v25, %v31
    %v33 = vadd.f32 %v32, 0.18741608
    %v34 = vmul.f32 %v25, %v33
    %v35 = vadd.f32 %v34, 1.1283791
    %v36 = vmul.f32 %v23, %v35
    %v37 = vmul.f32 %v25, 3.8918573e-05
    %v38 = vadd.f32 %v37, 0.001143296
    %v39 = vmul.f32 %v25, %v38
    %v40 = vadd.f32 %v39, 0.014752088
    %v41 = vmul.f32 %v25, %v40
    %v42 = vadd.f32 %v41, 0.112945676
    %v43 = vmul.f32 %v25, %v42
    %v44 = vadd.f32 %v43, 0.4994258
    %v45 = vmul.f32 %v25, %v44
    %v46 = vadd.f32 %v45, 1.0
    %v47 = vrcp.pop %v46
    %v48 = vmul.f32 %v46, %v47
    %v49 = vsub.f32 1.0, %v48
    %v50 = vmul.f32 %v47, %v49
    %v51 = vadd.f32 %v47, %v50
    %vm52 = vweird.f32 %v46
    %vm53 = vweird.f32 %v47
    %vm54 = vmor %vm52, %vm53
    %v55 = vsel %vm54, %v47, %v51
    %v56 = vand.u32 2147483647, %v46
    %vm57 = vcmp.eq.f32.partialorder %v56, 8.507059e+37
    %v58 = vand.u32 %v46, 2147483648
    %v59 = vor.u32 1.1754944e-38, %v58
    %v60 = vsel %vm57, %v59, %v55
    %v61 = vmul.f32 %v36, %v60
    %v62 = vmin.f32 %v61, 1.0
    %v63 = vmax.f32 %v62, -1.0
    %64 = vst [vmem:[#allocation5] sm:$0xff] %v63
    // Predicated region
    $region10: #{tpu_custom_call.1} parent=1 // pred_check
      _
    $region11: #{tpu_custom_call.1} parent=1 // pred_check_branch
      %66 = sbr.rel (0) target = $region13
    $region12: #{tpu_custom_call.1} parent=1 // pred_region
      %68 = vsyncadd [#allocation4], 0
      %s70 = sshll.u32 [#allocation5], 4
      %s71 = int_to_ptr.vmem [resolvable:$true] %s70
      %s72 = sshll.u32 %s1, 4
      %s73 = int_to_ptr.hbm [resolvable:$true] %s72
      %75 = dma.vmem_to_hbm [thread:$0]  %s71, 128, %s73, [#allocation4]
    $region13: #{tpu_custom_call.1} parent=1 // pred_fallthru
      _
    // Predicated region
    $region14: #{tpu_custom_call.1} parent=1 // pred_check
      _
    $region15: #{tpu_custom_call.1} parent=1 // pred_check_branch
      %77 = sbr.rel (0) target = $region17
    $region16: #{tpu_custom_call.1} parent=1 // pred_region
      %79 = dma.done [#allocation4], 128
    $region17: #{tpu_custom_call.1} parent=1 // pred_fallthru
      _
    %80 = vsyncpa [#allocation3], 1
    %81 = vsyncpa [#allocation4], 1

// kernel: tpu_custom_call.1
$region0: #{tpu_custom_call.1}
  #allocation0 [shape = 'u32[]', space=smem, size = 0x4, offset = 0x4, fixed_abs, tag = 'smem constant byte address 0x4 - core index']
  #allocation1 [shape = 'u32[72,128]{1,0:T(1,128)}', space=vmem, size = 0x9000, scoped, tag = 'internal scratch']
  %s0 = inlined_call_operand.hbm [shape: f32[128,256], index: 0, kind: input, shape index: {}]
  %s1 = inlined_call_operand.vmem [shape: f32[64,64], index: 1, kind: input, shape index: {}]
  %s2 = inlined_call_operand.vmem [shape: f32[64,1], index: 2, kind: input, shape index: {}]
  %s3 = inlined_call_operand.vmem [shape: f32[64,25], index: 3, kind: input, shape index: {}]
  %s4 = inlined_call_operand.vmem [shape: f32[64,1], index: 4, kind: input, shape index: {}]
  %s5 = inlined_call_operand.vmem [shape: f32[5,1,256], index: 5, kind: input, shape index: {}]
  %s6 = inlined_call_operand.vmem [shape: f32[5,1,256], index: 6, kind: input, shape index: {}]
  %s7 = inlined_call_operand.vmem [shape: f32[64,49], index: 7, kind: input, shape index: {}]
  %s8 = inlined_call_operand.vmem [shape: f32[64,1], index: 8, kind: input, shape index: {}]
  %s9 = inlined_call_operand.vmem [shape: f32[7,1,256], index: 9, kind: input, shape index: {}]
  %s10 = inlined_call_operand.vmem [shape: f32[7,1,256], index: 10, kind: input, shape index: {}]
  %s11 = inlined_call_operand.vmem [shape: f32[64,64], index: 11, kind: input, shape index: {}]
  %s12 = inlined_call_operand.vmem [shape: f32[64,1], index: 12, kind: input, shape index: {}]
  %s13 = inlined_call_operand.vmem [shape: f32[64,16], index: 13, kind: input, shape index: {}]
  %s14 = inlined_call_operand.vmem [shape: f32[64,16], index: 14, kind: input, shape index: {}]
  %s15 = inlined_call_operand.vmem [shape: f32[64,64], index: 15, kind: input, shape index: {}]
  %s16 = inlined_call_operand.vmem [shape: f32[64,1], index: 16, kind: input, shape index: {}]
  %s17 = inlined_call_operand.hbm [shape: f32[128,256], index: 17, kind: output, shape index: {}]
  %s18 = sld [smem:[#allocation0]]
  $region105: #{tpu_custom_call.1} parent=0
    _
  %s20 = ssub.s32 1, %s18
  %s21 = scalar_select 0, %s20, %s18
  $region1: #{tpu_custom_call.1} parent=0
    #allocation2 [shape = 'u8[131072]{0}', space=vmem, size = 0x20000, scoped, tag = 'input window, operand 0']
    #allocation3 [shape = 's32[2]{0}', space=sflag, size = 0x8, scoped, tag = 'scoped memory for tpu_custom_call.1']
    #allocation4 [shape = 's32[2]{0}', space=sflag, size = 0x8, scoped, tag = 'scoped memory for tpu_custom_call.1']
    #allocation5 [shape = 'u8[131072]{0}', space=vmem, size = 0x20000, scoped, tag = 'output window, operand 0']
    %22 = vsyncpa [#allocation3], 0
    %s23 = scalar_lea.sflag [#allocation3], 1
    %24 = vsyncpa %s23, 0
    %25 = vsyncpa [#allocation4], 0
    %s26 = scalar_lea.sflag [#allocation4], 1
    %27 = vsyncpa %s26, 0
    loop: start=0, step=1, limit=4
    $region2: #{tpu_custom_call.1} parent=1 // loop_pre_header
      _
    $region3: #{tpu_custom_call.1} parent=1 // loop_header
      %s29 = sphi 0, %s33
      %p30 = scmp.ge.s32.totalorder %s29, 4
      %s39 = sphi 0, %s41
      %s42 = sphi 0, %s39
      %s43 = sphi 0, %s42
      %s59 = sphi 0, %s43
      %s63 = sphi 0, %s63
      %s65 = sphi 0, %s63
      %s66 = sphi 0, %s65
      %s80 = sphi 0, %s66
      %s84 = sphi 0, %s84
      %s86 = sphi 0, %s84
      %s87 = sphi 0, %s86
      %s101 = sphi 0, %s87
      %s105 = sphi 0, %s105
      %s107 = sphi 0, %s105
      %s108 = sphi 0, %s107
      %s122 = sphi 0, %s108
      %s126 = sphi 0, %s126
      %s128 = sphi 0, %s126
      %s129 = sphi 0, %s128
      %s143 = sphi 0, %s129
      %s147 = sphi 0, %s147
      %s149 = sphi 0, %s147
      %s150 = sphi 0, %s149
      %s164 = sphi 0, %s150
      %s168 = sphi 0, %s168
      %s170 = sphi 0, %s168
      %s171 = sphi 0, %s170
      %s185 = sphi 0, %s171
      %s189 = sphi 0, %s189
      %s191 = sphi 0, %s189
      %s192 = sphi 0, %s191
      %s206 = sphi 0, %s192
      %s210 = sphi 0, %s210
      %s212 = sphi 0, %s210
      %s213 = sphi 0, %s212
      %s227 = sphi 0, %s213
      %s231 = sphi 0, %s231
      %s233 = sphi 0, %s231
      %s234 = sphi 0, %s233
      %s248 = sphi 0, %s234
      %s252 = sphi 0, %s252
      %s254 = sphi 0, %s252
      %s255 = sphi 0, %s254
      %s269 = sphi 0, %s255
      %s273 = sphi 0, %s273
      %s275 = sphi 0, %s273
      %s276 = sphi 0, %s275
      %s290 = sphi 0, %s276
      %s294 = sphi 0, %s294
      %s296 = sphi 0, %s294
      %s297 = sphi 0, %s296
      %s311 = sphi 0, %s297
      %s315 = sphi 0, %s315
      %s317 = sphi 0, %s315
      %s318 = sphi 0, %s317
      %s332 = sphi 0, %s318
      %s336 = sphi 0, %s336
      %s338 = sphi 0, %s336
      %s339 = sphi 0, %s338
      %s353 = sphi 0, %s339
      %s357 = sphi 0, %s357
      %s359 = sphi 0, %s357
      %s360 = sphi 0, %s359
      %s374 = sphi 0, %s360
      %s378 = sphi 0, %s378
      %s380 = sphi 0, %s378
      %s381 = sphi 0, %s380
      %s395 = sphi 0, %s381
      %s401 = sphi 0, %s403
      %s404 = sphi 0, %s401
      %s405 = sphi 0, %s404
      %s421 = sphi 0, %s405
    $region4: #{tpu_custom_call.1} parent=1 // loop_header_branch
      %32 = sbr.rel (%p30) target = $region8
    $region5: #{tpu_custom_call.1} parent=1 // loop_body
      %s34 = ssub.s32 %s29, 1
      %s35 = ssub.s32 %s29, 2
      %s36 = sadd.s32 %s29, 1
      %s37 = ssub.s32 %s29, %s36
      %p38 = scmp.eq.s32.totalorder %s37, 0
      %s40 = sadd.s32 %s39, 1
      %s41 = scalar_select %p38, %s39, %s40
      %p44 = pneg %p38
      %p45 = scmp.eq.s32.totalorder %s29, 1
      %p46 = por %p44, %p45
      %p47 = scmp.ne.s32.totalorder %s39, %s42
      %p48 = scmp.eq.s32.totalorder %s29, 0
      %p49 = por %p47, %p48
      %p50 = scmp.ne.s32.totalorder %s39, %s42
      %p51 = scmp.eq.s32.totalorder %s34, 1
      %p52 = por %p50, %p51
      %p53 = scmp.ne.s32.totalorder %s42, %s43
      %p54 = scmp.eq.s32.totalorder %s34, 0
      %p55 = por %p53, %p54
      %p56 = scmp.ne.s32.totalorder %s42, %s43
      %p57 = scmp.eq.s32.totalorder %s35, 1
      %p58 = por %p56, %p57
      %p60 = scmp.ne.s32.totalorder %s43, %s59
      %p61 = scmp.eq.s32.totalorder %s35, 0
      %p62 = por %p60, %p61
      %s64 = sadd.s32 %s63, 1
      %p67 = scmp.eq.s32.totalorder %s29, 1
      %p68 = scmp.ne.s32.totalorder %s63, %s65
      %p69 = scmp.eq.s32.totalorder %s29, 0
      %p70 = por %p68, %p69
      %p71 = scmp.ne.s32.totalorder %s63, %s65
      %p72 = scmp.eq.s32.totalorder %s34, 1
      %p73 = por %p71, %p72
      %p74 = scmp.ne.s32.totalorder %s65, %s66
      %p75 = scmp.eq.s32.totalorder %s34, 0
      %p76 = por %p74, %p75
      %p77 = scmp.ne.s32.totalorder %s65, %s66
      %p78 = scmp.eq.s32.totalorder %s35, 1
      %p79 = por %p77, %p78
      %p81 = scmp.ne.s32.totalorder %s66, %s80
      %p82 = scmp.eq.s32.totalorder %s35, 0
      %p83 = por %p81, %p82
      %s85 = sadd.s32 %s84, 1
      %p88 = scmp.eq.s32.totalorder %s29, 1
      %p89 = scmp.ne.s32.totalorder %s84, %s86
      %p90 = scmp.eq.s32.totalorder %s29, 0
      %p91 = por %p89, %p90
      %p92 = scmp.ne.s32.totalorder %s84, %s86
      %p93 = scmp.eq.s32.totalorder %s34, 1
      %p94 = por %p92, %p93
      %p95 = scmp.ne.s32.totalorder %s86, %s87
      %p96 = scmp.eq.s32.totalorder %s34, 0
      %p97 = por %p95, %p96
      %p98 = scmp.ne.s32.totalorder %s86, %s87
      %p99 = scmp.eq.s32.totalorder %s35, 1
      %p100 = por %p98, %p99
      %p102 = scmp.ne.s32.totalorder %s87, %s101
      %p103 = scmp.eq.s32.totalorder %s35, 0
      %p104 = por %p102, %p103
      %s106 = sadd.s32 %s105, 1
      %p109 = scmp.eq.s32.totalorder %s29, 1
      %p110 = scmp.ne.s32.totalorder %s105, %s107
      %p111 = scmp.eq.s32.totalorder %s29, 0
      %p112 = por %p110, %p111
      %p113 = scmp.ne.s32.totalorder %s105, %s107
      %p114 = scmp.eq.s32.totalorder %s34, 1
      %p115 = por %p113, %p114
      %p116 = scmp.ne.s32.totalorder %s107, %s108
      %p117 = scmp.eq.s32.totalorder %s34, 0
      %p118 = por %p116, %p117
      %p119 = scmp.ne.s32.totalorder %s107, %s108
      %p120 = scmp.eq.s32.totalorder %s35, 1
      %p121 = por %p119, %p120
      %p123 = scmp.ne.s32.totalorder %s108, %s122
      %p124 = scmp.eq.s32.totalorder %s35, 0
      %p125 = por %p123, %p124
      %s127 = sadd.s32 %s126, 1
      %p130 = scmp.eq.s32.totalorder %s29, 1
      %p131 = scmp.ne.s32.totalorder %s126, %s128
      %p132 = scmp.eq.s32.totalorder %s29, 0
      %p133 = por %p131, %p132
      %p134 = scmp.ne.s32.totalorder %s126, %s128
      %p135 = scmp.eq.s32.totalorder %s34, 1
      %p136 = por %p134, %p135
      %p137 = scmp.ne.s32.totalorder %s128, %s129
      %p138 = scmp.eq.s32.totalorder %s34, 0
      %p139 = por %p137, %p138
      %p140 = scmp.ne.s32.totalorder %s128, %s129
      %p141 = scmp.eq.s32.totalorder %s35, 1
      %p142 = por %p140, %p141
      %p144 = scmp.ne.s32.totalorder %s129, %s143
      %p145 = scmp.eq.s32.totalorder %s35, 0
      %p146 = por %p144, %p145
      %s148 = sadd.s32 %s147, 1
      %p151 = scmp.eq.s32.totalorder %s29, 1
      %p152 = scmp.ne.s32.totalorder %s147, %s149
      %p153 = scmp.eq.s32.totalorder %s29, 0
      %p154 = por %p152, %p153
      %p155 = scmp.ne.s32.totalorder %s147, %s149
      %p156 = scmp.eq.s32.totalorder %s34, 1
      %p157 = por %p155, %p156
      %p158 = scmp.ne.s32.totalorder %s149, %s150
      %p159 = scmp.eq.s32.totalorder %s34, 0
      %p160 = por %p158, %p159
      %p161 = scmp.ne.s32.totalorder %s149, %s150
      %p162 = scmp.eq.s32.totalorder %s35, 1
      %p163 = por %p161, %p162
      %p165 = scmp.ne.s32.totalorder %s150, %s164
      %p166 = scmp.eq.s32.totalorder %s35, 0
      %p167 = por %p165, %p166
      %s169 = sadd.s32 %s168, 1
      %p172 = scmp.eq.s32.totalorder %s29, 1
      %p173 = scmp.ne.s32.totalorder %s168, %s170
      %p174 = scmp.eq.s32.totalorder %s29, 0
      %p175 = por %p173, %p174
      %p176 = scmp.ne.s32.totalorder %s168, %s170
      %p177 = scmp.eq.s32.totalorder %s34, 1
      %p178 = por %p176, %p177
      %p179 = scmp.ne.s32.totalorder %s170, %s171
      %p180 = scmp.eq.s32.totalorder %s34, 0
      %p181 = por %p179, %p180
      %p182 = scmp.ne.s32.totalorder %s170, %s171
      %p183 = scmp.eq.s32.totalorder %s35, 1
      %p184 = por %p182, %p183
      %p186 = scmp.ne.s32.totalorder %s171, %s185
      %p187 = scmp.eq.s32.totalorder %s35, 0
      %p188 = por %p186, %p187
      %s190 = sadd.s32 %s189, 1
      %p193 = scmp.eq.s32.totalorder %s29, 1
      %p194 = scmp.ne.s32.totalorder %s189, %s191
      %p195 = scmp.eq.s32.totalorder %s29, 0
      %p196 = por %p194, %p195
      %p197 = scmp.ne.s32.totalorder %s189, %s191
      %p198 = scmp.eq.s32.totalorder %s34, 1
      %p199 = por %p197, %p198
      %p200 = scmp.ne.s32.totalorder %s191, %s192
      %p201 = scmp.eq.s32.totalorder %s34, 0
      %p202 = por %p200, %p201
      %p203 = scmp.ne.s32.totalorder %s191, %s192
      %p204 = scmp.eq.s32.totalorder %s35, 1
      %p205 = por %p203, %p204
      %p207 = scmp.ne.s32.totalorder %s192, %s206
      %p208 = scmp.eq.s32.totalorder %s35, 0
      %p209 = por %p207, %p208
      %s211 = sadd.s32 %s210, 1
      %p214 = scmp.eq.s32.totalorder %s29, 1
      %p215 = scmp.ne.s32.totalorder %s210, %s212
      %p216 = scmp.eq.s32.totalorder %s29, 0
      %p217 = por %p215, %p216
      %p218 = scmp.ne.s32.totalorder %s210, %s212
      %p219 = scmp.eq.s32.totalorder %s34, 1
      %p220 = por %p218, %p219
      %p221 = scmp.ne.s32.totalorder %s212, %s213
      %p222 = scmp.eq.s32.totalorder %s34, 0
      %p223 = por %p221, %p222
      %p224 = scmp.ne.s32.totalorder %s212, %s213
      %p225 = scmp.eq.s32.totalorder %s35, 1
      %p226 = por %p224, %p225
      %p228 = scmp.ne.s32.totalorder %s213, %s227
      %p229 = scmp.eq.s32.totalorder %s35, 0
      %p230 = por %p228, %p229
      %s232 = sadd.s32 %s231, 1
      %p235 = scmp.eq.s32.totalorder %s29, 1
      %p236 = scmp.ne.s32.totalorder %s231, %s233
      %p237 = scmp.eq.s32.totalorder %s29, 0
      %p238 = por %p236, %p237
      %p239 = scmp.ne.s32.totalorder %s231, %s233
      %p240 = scmp.eq.s32.totalorder %s34, 1
      %p241 = por %p239, %p240
      %p242 = scmp.ne.s32.totalorder %s233, %s234
      %p243 = scmp.eq.s32.totalorder %s34, 0
      %p244 = por %p242, %p243
      %p245 = scmp.ne.s32.totalorder %s233, %s234
      %p246 = scmp.eq.s32.totalorder %s35, 1
      %p247 = por %p245, %p246
      %p249 = scmp.ne.s32.totalorder %s234, %s248
      %p250 = scmp.eq.s32.totalorder %s35, 0
      %p251 = por %p249, %p250
      %s253 = sadd.s32 %s252, 1
      %p256 = scmp.eq.s32.totalorder %s29, 1
      %p257 = scmp.ne.s32.totalorder %s252, %s254
      %p258 = scmp.eq.s32.totalorder %s29, 0
      %p259 = por %p257, %p258
      %p260 = scmp.ne.s32.totalorder %s252, %s254
      %p261 = scmp.eq.s32.totalorder %s34, 1
      %p262 = por %p260, %p261
      %p263 = scmp.ne.s32.totalorder %s254, %s255
      %p264 = scmp.eq.s32.totalorder %s34, 0
      %p265 = por %p263, %p264
      %p266 = scmp.ne.s32.totalorder %s254, %s255
      %p267 = scmp.eq.s32.totalorder %s35, 1
      %p268 = por %p266, %p267
      %p270 = scmp.ne.s32.totalorder %s255, %s269
      %p271 = scmp.eq.s32.totalorder %s35, 0
      %p272 = por %p270, %p271
      %s274 = sadd.s32 %s273, 1
      %p277 = scmp.eq.s32.totalorder %s29, 1
      %p278 = scmp.ne.s32.totalorder %s273, %s275
      %p279 = scmp.eq.s32.totalorder %s29, 0
      %p280 = por %p278, %p279
      %p281 = scmp.ne.s32.totalorder %s273, %s275
      %p282 = scmp.eq.s32.totalorder %s34, 1
      %p283 = por %p281, %p282
      %p284 = scmp.ne.s32.totalorder %s275, %s276
      %p285 = scmp.eq.s32.totalorder %s34, 0
      %p286 = por %p284, %p285
      %p287 = scmp.ne.s32.totalorder %s275, %s276
      %p288 = scmp.eq.s32.totalorder %s35, 1
      %p289 = por %p287, %p288
      %p291 = scmp.ne.s32.totalorder %s276, %s290
      %p292 = scmp.eq.s32.totalorder %s35, 0
      %p293 = por %p291, %p292
      %s295 = sadd.s32 %s294, 1
      %p298 = scmp.eq.s32.totalorder %s29, 1
      %p299 = scmp.ne.s32.totalorder %s294, %s296
      %p300 = scmp.eq.s32.totalorder %s29, 0
      %p301 = por %p299, %p300
      %p302 = scmp.ne.s32.totalorder %s294, %s296
      %p303 = scmp.eq.s32.totalorder %s34, 1
      %p304 = por %p302, %p303
      %p305 = scmp.ne.s32.totalorder %s296, %s297
      %p306 = scmp.eq.s32.totalorder %s34, 0
      %p307 = por %p305, %p306
      %p308 = scmp.ne.s32.totalorder %s296, %s297
      %p309 = scmp.eq.s32.totalorder %s35, 1
      %p310 = por %p308, %p309
      %p312 = scmp.ne.s32.totalorder %s297, %s311
      %p313 = scmp.eq.s32.totalorder %s35, 0
      %p314 = por %p312, %p313
      %s316 = sadd.s32 %s315, 1
      %p319 = scmp.eq.s32.totalorder %s29, 1
      %p320 = scmp.ne.s32.totalorder %s315, %s317
      %p321 = scmp.eq.s32.totalorder %s29, 0
      %p322 = por %p320, %p321
      %p323 = scmp.ne.s32.totalorder %s315, %s317
      %p324 = scmp.eq.s32.totalorder %s34, 1
      %p325 = por %p323, %p324
      %p326 = scmp.ne.s32.totalorder %s317, %s318
      %p327 = scmp.eq.s32.totalorder %s34, 0
      %p328 = por %p326, %p327
      %p329 = scmp.ne.s32.totalorder %s317, %s318
      %p330 = scmp.eq.s32.totalorder %s35, 1
      %p331 = por %p329, %p330
      %p333 = scmp.ne.s32.totalorder %s318, %s332
      %p334 = scmp.eq.s32.totalorder %s35, 0
      %p335 = por %p333, %p334
      %s337 = sadd.s32 %s336, 1
      %p340 = scmp.eq.s32.totalorder %s29, 1
      %p341 = scmp.ne.s32.totalorder %s336, %s338
      %p342 = scmp.eq.s32.totalorder %s29, 0
      %p343 = por %p341, %p342
      %p344 = scmp.ne.s32.totalorder %s336, %s338
      %p345 = scmp.eq.s32.totalorder %s34, 1
      %p346 = por %p344, %p345
      %p347 = scmp.ne.s32.totalorder %s338, %s339
      %p348 = scmp.eq.s32.totalorder %s34, 0
      %p349 = por %p347, %p348
      %p350 = scmp.ne.s32.totalorder %s338, %s339
      %p351 = scmp.eq.s32.totalorder %s35, 1
      %p352 = por %p350, %p351
      %p354 = scmp.ne.s32.totalorder %s339, %s353
      %p355 = scmp.eq.s32.totalorder %s35, 0
      %p356 = por %p354, %p355
      %s358 = sadd.s32 %s357, 1
      %p361 = scmp.eq.s32.totalorder %s29, 1
      %p362 = scmp.ne.s32.totalorder %s357, %s359
      %p363 = scmp.eq.s32.totalorder %s29, 0
      %p364 = por %p362, %p363
      %p365 = scmp.ne.s32.totalorder %s357, %s359
      %p366 = scmp.eq.s32.totalorder %s34, 1
      %p367 = por %p365, %p366
      %p368 = scmp.ne.s32.totalorder %s359, %s360
      %p369 = scmp.eq.s32.totalorder %s34, 0
      %p370 = por %p368, %p369
      %p371 = scmp.ne.s32.totalorder %s359, %s360
      %p372 = scmp.eq.s32.totalorder %s35, 1
      %p373 = por %p371, %p372
      %p375 = scmp.ne.s32.totalorder %s360, %s374
      %p376 = scmp.eq.s32.totalorder %s35, 0
      %p377 = por %p375, %p376
      %s379 = sadd.s32 %s378, 1
      %p382 = scmp.eq.s32.totalorder %s29, 1
      %p383 = scmp.ne.s32.totalorder %s378, %s380
      %p384 = scmp.eq.s32.totalorder %s29, 0
      %p385 = por %p383, %p384
      %p386 = scmp.ne.s32.totalorder %s378, %s380
      %p387 = scmp.eq.s32.totalorder %s34, 1
      %p388 = por %p386, %p387
      %p389 = scmp.ne.s32.totalorder %s380, %s381
      %p390 = scmp.eq.s32.totalorder %s34, 0
      %p391 = por %p389, %p390
      %p392 = scmp.ne.s32.totalorder %s380, %s381
      %p393 = scmp.eq.s32.totalorder %s35, 1
      %p394 = por %p392, %p393
      %p396 = scmp.ne.s32.totalorder %s381, %s395
      %p397 = scmp.eq.s32.totalorder %s35, 0
      %p398 = por %p396, %p397
      %s399 = ssub.s32 %s29, %s36
      %p400 = scmp.eq.s32.totalorder %s399, 0
      %s402 = sadd.s32 %s401, 1
      %s403 = scalar_select %p400, %s401, %s402
      %p406 = pneg %p400
      %p407 = scmp.eq.s32.totalorder %s29, 1
      %p408 = por %p406, %p407
      %p409 = scmp.ne.s32.totalorder %s401, %s404
      %p410 = scmp.eq.s32.totalorder %s29, 0
      %p411 = por %p409, %p410
      %p412 = scmp.ne.s32.totalorder %s401, %s404
      %p413 = scmp.eq.s32.totalorder %s34, 1
      %p414 = por %p412, %p413
      %p415 = scmp.ne.s32.totalorder %s404, %s405
      %p416 = scmp.eq.s32.totalorder %s34, 0
      %p417 = por %p415, %p416
      %p418 = scmp.ne.s32.totalorder %s404, %s405
      %p419 = scmp.eq.s32.totalorder %s35, 1
      %p420 = por %p418, %p419
      %p422 = scmp.ne.s32.totalorder %s405, %s421
      %p423 = scmp.eq.s32.totalorder %s35, 0
      %p424 = por %p422, %p423
      %p425 = scmp.le.s32.totalorder 1, %s29
      %p426 = scmp.lt.s32.totalorder %s29, 3
      %p427 = pnand %p425, %p426
      %p428 = pneg %p427
      // Predicated region
      $region9: #{tpu_custom_call.1} parent=5 // pred_check
        _
      $region10: #{tpu_custom_call.1} parent=5 // pred_check_branch
        %430 = sbr.rel (%p427) target = $region12
      $region11: #{tpu_custom_call.1} parent=5 // pred_region
        %s431 = ssub.s32 %s29, 1
        // Predicated region
        $region13: #{tpu_custom_call.1} parent=11 // pred_check
          %p432 = pneg %p76
        $region14: #{tpu_custom_call.1} parent=11 // pred_check_branch
          %434 = sbr.rel (%p432) target = $region16
        $region15: #{tpu_custom_call.1} parent=11 // pred_region
          _
        $region16: #{tpu_custom_call.1} parent=11 // pred_fallthru
          _
        // Predicated region
        $region17: #{tpu_custom_call.1} parent=11 // pred_check
          %p435 = pneg %p97
        $region18: #{tpu_custom_call.1} parent=11 // pred_check_branch
          %437 = sbr.rel (%p435) target = $region20
        $region19: #{tpu_custom_call.1} parent=11 // pred_region
          _
        $region20: #{tpu_custom_call.1} parent=11 // pred_fallthru
          _
        // Predicated region
        $region21: #{tpu_custom_call.1} parent=11 // pred_check
          %p438 = pneg %p118
        $region22: #{tpu_custom_call.1} parent=11 // pred_check_branch
          %440 = sbr.rel (%p438) target = $region24
        $region23: #{tpu_custom_call.1} parent=11 // pred_region
          _
        $region24: #{tpu_custom_call.1} parent=11 // pred_fallthru
          _
        // Predicated region
        $region25: #{tpu_custom_call.1} parent=11 // pred_check
          %p441 = pneg %p139
        $region26: #{tpu_custom_call.1} parent=11 // pred_check_branch
          %443 = sbr.rel (%p441) target = $region28
        $region27: #{tpu_custom_call.1} parent=11 // pred_region
          _
        $region28: #{tpu_custom_call.1} parent=11 // pred_fallthru
          _
        // Predicated region
        $region29: #{tpu_custom_call.1} parent=11 // pred_check
          %p444 = pneg %p160
        $region30: #{tpu_custom_call.1} parent=11 // pred_check_branch
          %446 = sbr.rel (%p444) target = $region32
        $region31: #{tpu_custom_call.1} parent=11 // pred_region
          _
        $region32: #{tpu_custom_call.1} parent=11 // pred_fallthru
          _
        // Predicated region
        $region33: #{tpu_custom_call.1} parent=11 // pred_check
          %p447 = pneg %p181
        $region34: #{tpu_custom_call.1} parent=11 // pred_check_branch
          %449 = sbr.rel (%p447) target = $region36
        $region35: #{tpu_custom_call.1} parent=11 // pred_region
          _
        $region36: #{tpu_custom_call.1} parent=11 // pred_fallthru
          _
        // Predicated region
        $region37: #{tpu_custom_call.1} parent=11 // pred_check
          %p450 = pneg %p202
        $region38: #{tpu_custom_call.1} parent=11 // pred_check_branch
          %452 = sbr.rel (%p450) target = $region40
        $region39: #{tpu_custom_call.1} parent=11 // pred_region
          _
        $region40: #{tpu_custom_call.1} parent=11 // pred_fallthru
          _
        // Predicated region
        $region41: #{tpu_custom_call.1} parent=11 // pred_check
          %p453 = pneg %p223
        $region42: #{tpu_custom_call.1} parent=11 // pred_check_branch
          %455 = sbr.rel (%p453) target = $region44
        $region43: #{tpu_custom_call.1} parent=11 // pred_region
          _
        $region44: #{tpu_custom_call.1} parent=11 // pred_fallthru
          _
        // Predicated region
        $region45: #{tpu_custom_call.1} parent=11 // pred_check
          %p456 = pneg %p244
        $region46: #{tpu_custom_call.1} parent=11 // pred_check_branch
          %458 = sbr.rel (%p456) target = $region48
        $region47: #{tpu_custom_call.1} parent=11 // pred_region
          _
        $region48: #{tpu_custom_call.1} parent=11 // pred_fallthru
          _
        // Predicated region
        $region49: #{tpu_custom_call.1} parent=11 // pred_check
          %p459 = pneg %p265
        $region50: #{tpu_custom_call.1} parent=11 // pred_check_branch
          %461 = sbr.rel (%p459) target = $region52
        $region51: #{tpu_custom_call.1} parent=11 // pred_region
          _
        $region52: #{tpu_custom_call.1} parent=11 // pred_fallthru
          _
        // Predicated region
        $region53: #{tpu_custom_call.1} parent=11 // pred_check
          %p462 = pneg %p286
        $region54: #{tpu_custom_call.1} parent=11 // pred_check_branch
          %464 = sbr.rel (%p462) target = $region56
        $region55: #{tpu_custom_call.1} parent=11 // pred_region
          _
        $region56: #{tpu_custom_call.1} parent=11 // pred_fallthru
          _
        // Predicated region
        $region57: #{tpu_custom_call.1} parent=11 // pred_check
          %p465 = pneg %p307
        $region58: #{tpu_custom_call.1} parent=11 // pred_check_branch
          %467 = sbr.rel (%p465) target = $region60
        $region59: #{tpu_custom_call.1} parent=11 // pred_region
          _
        $region60: #{tpu_custom_call.1} parent=11 // pred_fallthru
          _
        // Predicated region
        $region61: #{tpu_custom_call.1} parent=11 // pred_check
          %p468 = pneg %p328
        $region62: #{tpu_custom_call.1} parent=11 // pred_check_branch
          %470 = sbr.rel (%p468) target = $region64
        $region63: #{tpu_custom_call.1} parent=11 // pred_region
          _
        $region64: #{tpu_custom_call.1} parent=11 // pred_fallthru
          _
        // Predicated region
        $region65: #{tpu_custom_call.1} parent=11 // pred_check
          %p471 = pneg %p349
        $region66: #{tpu_custom_call.1} parent=11 // pred_check_branch
          %473 = sbr.rel (%p471) target = $region68
        $region67: #{tpu_custom_call.1} parent=11 // pred_region
          _
        $region68: #{tpu_custom_call.1} parent=11 // pred_fallthru
          _
        // Predicated region
        $region69: #{tpu_custom_call.1} parent=11 // pred_check
          %p474 = pneg %p370
        $region70: #{tpu_custom_call.1} parent=11 // pred_check_branch
          %476 = sbr.rel (%p474) target = $region72
        $region71: #{tpu_custom_call.1} parent=11 // pred_region
          _
        $region72: #{tpu_custom_call.1} parent=11 // pred_fallthru
          _
        // Predicated region
        $region73: #{tpu_custom_call.1} parent=11 // pred_check
          %p477 = pneg %p391
        $region74: #{tpu_custom_call.1} parent=11 // pred_check_branch
          %479 = sbr.rel (%p477) target = $region76
        $region75: #{tpu_custom_call.1} parent=11 // pred_region
          _
        $region76: #{tpu_custom_call.1} parent=11 // pred_fallthru
          _
      $region12: #{tpu_custom_call.1} parent=5 // pred_fallthru
        _
      %p480 = scmp.lt.s32.totalorder %s29, 2
      // Predicated region
      $region77: #{tpu_custom_call.1} parent=5 // pred_check
        %p481 = pneg %p480
      $region78: #{tpu_custom_call.1} parent=5 // pred_check_branch
        %483 = sbr.rel (%p481) target = $region80
      $region79: #{tpu_custom_call.1} parent=5 // pred_region
        // Predicated region
        $region81: #{tpu_custom_call.1} parent=79 // pred_check
          %p484 = pneg %p49
        $region82: #{tpu_custom_call.1} parent=79 // pred_check_branch
          %486 = sbr.rel (%p484) target = $region84
        $region83: #{tpu_custom_call.1} parent=79 // pred_region
          %s487 = sand.u32 %s39, 1
          %s488 = scalar_lea.sflag [#allocation3], %s487
          %s489 = sand.u32 %s39, 1
          %s490 = smul.addr %s489, 128
          %s491 = scalar_lea.vmem [#allocation2], %s490
          %s492 = smul.u32 8, %s29
          %494 = vsyncadd %s488, 0
          %s495 = smul.addr %s492, 2
          %s496 = smul.addr %s495, 8
          %s497 = scalar_lea.hbm %s0, %s496
          %s498 = sshll.u32 %s497, 4
          %s499 = int_to_ptr.hbm [resolvable:$true] %s498
          %s500 = sshll.u32 %s491, 4
          %s501 = int_to_ptr.vmem [resolvable:$true] %s500
          %506 = dma.hbm_to_vmem [thread:$0]  %s499, 2048, %s501, %s488, 256, 256, 16
        $region84: #{tpu_custom_call.1} parent=79 // pred_fallthru
          _
      $region80: #{tpu_custom_call.1} parent=5 // pred_fallthru
        _
      %p507 = scmp.le.s32.totalorder 1, %s29
      %p508 = scmp.lt.s32.totalorder %s29, 3
      %p509 = pnand %p507, %p508
      %p510 = pneg %p509
      // Predicated region
      $region85: #{tpu_custom_call.1} parent=5 // pred_check
        _
      $region86: #{tpu_custom_call.1} parent=5 // pred_check_branch
        %512 = sbr.rel (%p509) target = $region88
      $region87: #{tpu_custom_call.1} parent=5 // pred_region
        %s513 = ssub.s32 %s29, 1
        %s514 = sand.u32 %s42, 1
        %s515 = scalar_lea.sflag [#allocation3], %s514
        %s516 = sand.u32 %s42, 1
        %s517 = smul.addr %s516, 128
        %s518 = scalar_lea.vmem [#allocation2], %s517
        // Predicated region
        $region89: #{tpu_custom_call.1} parent=87 // pred_check
          %p519 = pneg %p55
        $region90: #{tpu_custom_call.1} parent=87 // pred_check_branch
          %521 = sbr.rel (%p519) target = $region92
        $region91: #{tpu_custom_call.1} parent=87 // pred_region
          %523 = dma.done %s515, 2048
        $region92: #{tpu_custom_call.1} parent=87 // pred_fallthru
          _
        %s524 = sand.u32 %s42, 1
        %s525 = scalar_lea.sflag [#allocation3], %s524
        %s526 = sand.u32 %s42, 1
        %s527 = smul.addr %s526, 128
        %s528 = scalar_lea.vmem [#allocation2], %s527
        %p529 = pneg %p55
        %p530 = pneg %p52
        %p531 = pneg %p76
        %p532 = pneg %p73
        %p533 = pneg %p97
        %p534 = pneg %p94
        %p535 = pneg %p118
        %p536 = pneg %p115
        %p537 = pneg %p139
        %p538 = pneg %p136
        %p539 = pneg %p160
        %p540 = pneg %p157
        %p541 = pneg %p181
        %p542 = pneg %p178
        %p543 = pneg %p202
        %p544 = pneg %p199
        %p545 = pneg %p223
        %p546 = pneg %p220
        %p547 = pneg %p244
        %p548 = pneg %p241
        %p549 = pneg %p265
        %p550 = pneg %p262
        %p551 = pneg %p286
        %p552 = pneg %p283
        %p553 = pneg %p307
        %p554 = pneg %p304
        %p555 = pneg %p328
        %p556 = pneg %p325
        %p557 = pneg %p349
        %p558 = pneg %p346
        %p559 = pneg %p370
        %p560 = pneg %p367
        %p561 = pneg %p391
        %p562 = pneg %p388
        %p563 = pneg %p417
        %p564 = pneg %p414
        %s565 = sand.u32 %s404, 1
        %s566 = scalar_lea.sflag [#allocation4], %s565
        %s567 = sand.u32 %s404, 1
        %s568 = smul.addr %s567, 128
        %s569 = scalar_lea.vmem [#allocation5], %s568
        %s570 = smul.u32 8, %s34
        %s571 = smul.u32 8, %s34
        %v572 = vld [vmem:[%s518] sm:$0xff]
        %v573 = vld [vmem:[%s518 + $0x8] sm:$0xff]
        %v574 = vld [vmem:[%s518 + $0x10] sm:$0xff]
        %v575 = vld [vmem:[%s518 + $0x18] sm:$0xff]
        %v576 = vld [vmem:[%s518 + $0x20] sm:$0xff]
        %v577 = vld [vmem:[%s518 + $0x28] sm:$0xff]
        %v578 = vld [vmem:[%s518 + $0x30] sm:$0xff]
        %v579 = vld [vmem:[%s518 + $0x38] sm:$0xff]
        %v580 = vld [vmem:[%s518 + $0x40] sm:$0xff]
        %v581 = vld [vmem:[%s518 + $0x48] sm:$0xff]
        %v582 = vld [vmem:[%s518 + $0x50] sm:$0xff]
        %v583 = vld [vmem:[%s518 + $0x58] sm:$0xff]
        %v584 = vld [vmem:[%s518 + $0x60] sm:$0xff]
        %v585 = vld [vmem:[%s518 + $0x68] sm:$0xff]
        %v586 = vld [vmem:[%s518 + $0x70] sm:$0xff]
        %v587 = vld [vmem:[%s518 + $0x78] sm:$0xff]
        %v588 = vld [vmem:[%s1] sm:$0xff]
        %v589 = vld [vmem:[%s1 + $0x8] sm:$0xff]
        %v590 = vld [vmem:[%s1 + $0x10] sm:$0xff]
        %v591 = vld [vmem:[%s1 + $0x18] sm:$0xff]
        %v592 = vld [vmem:[%s1 + $0x20] sm:$0xff]
        %v593 = vld [vmem:[%s1 + $0x28] sm:$0xff]
        %v594 = vld [vmem:[%s1 + $0x30] sm:$0xff]
        %v595 = vld [vmem:[%s1 + $0x38] sm:$0xff]
        %v596 = vld [vmem:[%s2] sm:$0xff]
        %v597 = vld [vmem:[%s2 + $0x8] sm:$0xff]
        %v598 = vld [vmem:[%s2 + $0x10] sm:$0xff]
        %v599 = vld [vmem:[%s2 + $0x18] sm:$0xff]
        %v600 = vld [vmem:[%s2 + $0x20] sm:$0xff]
        %v601 = vld [vmem:[%s2 + $0x28] sm:$0xff]
        %v602 = vld [vmem:[%s2 + $0x30] sm:$0xff]
        %v603 = vld [vmem:[%s2 + $0x38] sm:$0xff]
        %605 = vset.pattern.permute.xlu0 0
        %606 = vperm.xlu0 %605, %v596
        %v607 = vpop.permute.xlu0 %606
        %610 = vset.pattern.permute.xlu0 0
        %611 = vperm.xlu0 %610, %v597
        %v612 = vpop.permute.xlu0 %611
        %615 = vset.pattern.permute.xlu0 0
        %616 = vperm.xlu0 %615, %v598
        %v617 = vpop.permute.xlu0 %616
        %620 = vset.pattern.permute.xlu0 0
        %621 = vperm.xlu0 %620, %v599
        %v622 = vpop.permute.xlu0 %621
        %625 = vset.pattern.permute.xlu0 0
        %626 = vperm.xlu0 %625, %v600
        %v627 = vpop.permute.xlu0 %626
        %630 = vset.pattern.permute.xlu0 0
        %631 = vperm.xlu0 %630, %v601
        %v632 = vpop.permute.xlu0 %631
        %635 = vset.pattern.permute.xlu0 0
        %636 = vperm.xlu0 %635, %v602
        %v637 = vpop.permute.xlu0 %636
        %640 = vset.pattern.permute.xlu0 0
        %641 = vperm.xlu0 %640, %v603
        %v642 = vpop.permute.xlu0 %641
        %vm644 = vcmask 523264
        %v646 = vsel %vm644, %v588, 0
        %v649 = vsel %vm644, %v589, 0
        %v652 = vsel %vm644, %v590, 0
        %v655 = vsel %vm644, %v591, 0
        %v658 = vsel %vm644, %v592, 0
        %v661 = vsel %vm644, %v593, 0
        %v664 = vsel %vm644, %v594, 0
        %v667 = vsel %vm644, %v595, 0
        %669 = vmatpush.msra.mxu0 0.0
        %670 = vmatpush.msra.mxu0 0.0
        %671 = vmatpush.msra.mxu0 0.0
        %672 = vmatpush.msra.mxu0 0.0
        %673 = vmatpush.msra.mxu0 0.0
        %674 = vmatpush.msra.mxu0 0.0
        %675 = vmatpush.msra.mxu0 0.0
        %676 = vmatpush.msra.mxu0 0.0
        %677 = vmatpush.msra.mxu0 %v586
        %678 = vmatpush.msra.mxu0 %v584
        %679 = vmatpush.msra.mxu0 %v582
        %680 = vmatpush.msra.mxu0 %v580
        %681 = vmatpush.msra.mxu0 %v578
        %682 = vmatpush.msra.mxu0 %v576
        %683 = vmatpush.msra.mxu0 %v574
        %684 = vmatpush.msra.mxu0 %v572
        %685 = vmatmul.f32.gmra.mxu0 %v646
        %v686 = vpop.f32.mrf.mxu0
        %v687 = vadd.f32 %v607, %v686
        %688 = vmatmul.f32.gmra.mxu0 %v649
        %v689 = vpop.f32.mrf.mxu0
        %v690 = vadd.f32 %v612, %v689
        %691 = vmatmul.f32.gmra.mxu0 %v652
        %v692 = vpop.f32.mrf.mxu0
        %v693 = vadd.f32 %v617, %v692
        %694 = vmatmul.f32.gmra.mxu0 %v655
        %v695 = vpop.f32.mrf.mxu0
        %v696 = vadd.f32 %v622, %v695
        %697 = vmatmul.f32.gmra.mxu0 %v658
        %v698 = vpop.f32.mrf.mxu0
        %v699 = vadd.f32 %v627, %v698
        %700 = vmatmul.f32.gmra.mxu0 %v661
        %v701 = vpop.f32.mrf.mxu0
        %v702 = vadd.f32 %v632, %v701
        %703 = vmatmul.f32.gmra.mxu0 %v664
        %v704 = vpop.f32.mrf.mxu0
        %v705 = vadd.f32 %v637, %v704
        %706 = vmatmul.f32.gmra.mxu0 %v667
        %v707 = vpop.f32.mrf.mxu0
        %v708 = vadd.f32 %v642, %v707
        %709 = vdwg.mxu0
        %710 = vmatpush.msra.mxu0 0.0
        %711 = vmatpush.msra.mxu0 0.0
        %712 = vmatpush.msra.mxu0 0.0
        %713 = vmatpush.msra.mxu0 0.0
        %714 = vmatpush.msra.mxu0 0.0
        %715 = vmatpush.msra.mxu0 0.0
        %716 = vmatpush.msra.mxu0 0.0
        %717 = vmatpush.msra.mxu0 0.0
        %718 = vmatpush.msra.mxu0 %v587
        %719 = vmatpush.msra.mxu0 %v585
        %720 = vmatpush.msra.mxu0 %v583
        %721 = vmatpush.msra.mxu0 %v581
        %722 = vmatpush.msra.mxu0 %v579
        %723 = vmatpush.msra.mxu0 %v577
        %724 = vmatpush.msra.mxu0 %v575
        %725 = vmatpush.msra.mxu0 %v573
        %726 = vmatmul.f32.gmra.mxu0 %v646
        %v727 = vpop.f32.mrf.mxu0
        %v728 = vadd.f32 %v607, %v727
        %729 = vmatmul.f32.gmra.mxu0 %v649
        %v730 = vpop.f32.mrf.mxu0
        %v731 = vadd.f32 %v612, %v730
        %732 = vmatmul.f32.gmra.mxu0 %v652
        %v733 = vpop.f32.mrf.mxu0
        %v734 = vadd.f32 %v617, %v733
        %735 = vmatmul.f32.gmra.mxu0 %v655
        %v736 = vpop.f32.mrf.mxu0
        %v737 = vadd.f32 %v622, %v736
        %738 = vmatmul.f32.gmra.mxu0 %v658
        %v739 = vpop.f32.mrf.mxu0
        %v740 = vadd.f32 %v627, %v739
        %741 = vmatmul.f32.gmra.mxu0 %v661
        %v742 = vpop.f32.mrf.mxu0
        %v743 = vadd.f32 %v632, %v742
        %744 = vmatmul.f32.gmra.mxu0 %v664
        %v745 = vpop.f32.mrf.mxu0
        %v746 = vadd.f32 %v637, %v745
        %747 = vmatmul.f32.gmra.mxu0 %v667
        %v748 = vpop.f32.mrf.mxu0
        %v749 = vadd.f32 %v642, %v748
        %750 = vdwg.mxu0
        %v751 = vmul.f32 %v687, %v687
        %v752 = vmul.f32 %v728, %v728
        %v753 = vmul.f32 %v690, %v690
        %v754 = vmul.f32 %v731, %v731
        %v755 = vmul.f32 %v693, %v693
        %v756 = vmul.f32 %v734, %v734
        %v757 = vmul.f32 %v696, %v696
        %v758 = vmul.f32 %v737, %v737
        %v759 = vmul.f32 %v699, %v699
        %v760 = vmul.f32 %v740, %v740
        %v761 = vmul.f32 %v702, %v702
        %v762 = vmul.f32 %v743, %v743
        %v763 = vmul.f32 %v705, %v705
        %v764 = vmul.f32 %v746, %v746
        %v765 = vmul.f32 %v708, %v708
        %v766 = vmul.f32 %v749, %v749
        %v767 = vmul.f32 %v687, %v751
        %v768 = vmul.f32 %v728, %v752
        %v769 = vmul.f32 %v690, %v753
        %v770 = vmul.f32 %v731, %v754
        %v771 = vmul.f32 %v693, %v755
        %v772 = vmul.f32 %v734, %v756
        %v773 = vmul.f32 %v696, %v757
        %v774 = vmul.f32 %v737, %v758
        %v775 = vmul.f32 %v699, %v759
        %v776 = vmul.f32 %v740, %v760
        %v777 = vmul.f32 %v702, %v761
        %v778 = vmul.f32 %v743, %v762
        %v779 = vmul.f32 %v705, %v763
        %v780 = vmul.f32 %v746, %v764
        %v781 = vmul.f32 %v708, %v765
        %v782 = vmul.f32 %v749, %v766
        %v783 = vmul.f32 %v767, 0.044715
        %v784 = vmul.f32 %v768, 0.044715
        %v785 = vmul.f32 %v769, 0.044715
        %v786 = vmul.f32 %v770, 0.044715
        %v787 = vmul.f32 %v771, 0.044715
        %v788 = vmul.f32 %v772, 0.044715
        %v789 = vmul.f32 %v773, 0.044715
        %v790 = vmul.f32 %v774, 0.044715
        %v791 = vmul.f32 %v775, 0.044715
        %v792 = vmul.f32 %v776, 0.044715
        %v793 = vmul.f32 %v777, 0.044715
        %v794 = vmul.f32 %v778, 0.044715
        %v795 = vmul.f32 %v779, 0.044715
        %v796 = vmul.f32 %v780, 0.044715
        %v797 = vmul.f32 %v781, 0.044715
        %v798 = vmul.f32 %v782, 0.044715
        %v799 = vadd.f32 %v687, %v783
        %v800 = vadd.f32 %v728, %v784
        %v801 = vadd.f32 %v690, %v785
        %v802 = vadd.f32 %v731, %v786
        %v803 = vadd.f32 %v693, %v787
        %v804 = vadd.f32 %v734, %v788
        %v805 = vadd.f32 %v696, %v789
        %v806 = vadd.f32 %v737, %v790
        %v807 = vadd.f32 %v699, %v791
        %v808 = vadd.f32 %v740, %v792
        %v809 = vadd.f32 %v702, %v793
        %v810 = vadd.f32 %v743, %v794
        %v811 = vadd.f32 %v705, %v795
        %v812 = vadd.f32 %v746, %v796
        %v813 = vadd.f32 %v708, %v797
        %v814 = vadd.f32 %v749, %v798
        %v815 = vmul.f32 %v799, 0.7978846
        %v816 = vmul.f32 %v800, 0.7978846
        %v817 = vmul.f32 %v801, 0.7978846
        %v818 = vmul.f32 %v802, 0.7978846
        %v819 = vmul.f32 %v803, 0.7978846
        %v820 = vmul.f32 %v804, 0.7978846
        %v821 = vmul.f32 %v805, 0.7978846
        %v822 = vmul.f32 %v806, 0.7978846
        %v823 = vmul.f32 %v807, 0.7978846
        %v824 = vmul.f32 %v808, 0.7978846
        %v825 = vmul.f32 %v809, 0.7978846
        %v826 = vmul.f32 %v810, 0.7978846
        %v827 = vmul.f32 %v811, 0.7978846
        %v828 = vmul.f32 %v812, 0.7978846
        %v829 = vmul.f32 %v813, 0.7978846
        %v830 = vmul.f32 %v814, 0.7978846
        %v831 = vtanh.pop %v815
        %v832 = vtanh.pop %v816
        %v833 = vtanh.pop %v817
        %v834 = vtanh.pop %v818
        %v835 = vtanh.pop %v819
        %v836 = vtanh.pop %v820
        %v837 = vtanh.pop %v821
        %v838 = vtanh.pop %v822
        %v839 = vtanh.pop %v823
        %v840 = vtanh.pop %v824
        %v841 = vtanh.pop %v825
        %v842 = vtanh.pop %v826
        %v843 = vtanh.pop %v827
        %v844 = vtanh.pop %v828
        %v845 = vtanh.pop %v829
        %v846 = vtanh.pop %v830
        %v847 = vadd.f32 %v831, 1.0
        %v848 = vadd.f32 %v832, 1.0
        %v849 = vadd.f32 %v833, 1.0
        %v850 = vadd.f32 %v834, 1.0
        %v851 = vadd.f32 %v835, 1.0
        %v852 = vadd.f32 %v836, 1.0
        %v853 = vadd.f32 %v837, 1.0
        %v854 = vadd.f32 %v838, 1.0
        %v855 = vadd.f32 %v839, 1.0
        %v856 = vadd.f32 %v840, 1.0
        %v857 = vadd.f32 %v841, 1.0
        %v858 = vadd.f32 %v842, 1.0
        %v859 = vadd.f32 %v843, 1.0
        %v860 = vadd.f32 %v844, 1.0
        %v861 = vadd.f32 %v845, 1.0
        %v862 = vadd.f32 %v846, 1.0
        %v863 = vmul.f32 %v847, 0.5
        %v864 = vmul.f32 %v848, 0.5
        %v865 = vmul.f32 %v849, 0.5
        %v866 = vmul.f32 %v850, 0.5
        %v867 = vmul.f32 %v851, 0.5
        %v868 = vmul.f32 %v852, 0.5
        %v869 = vmul.f32 %v853, 0.5
        %v870 = vmul.f32 %v854, 0.5
        %v871 = vmul.f32 %v855, 0.5
        %v872 = vmul.f32 %v856, 0.5
        %v873 = vmul.f32 %v857, 0.5
        %v874 = vmul.f32 %v858, 0.5
        %v875 = vmul.f32 %v859, 0.5
        %v876 = vmul.f32 %v860, 0.5
        %v877 = vmul.f32 %v861, 0.5
        %v878 = vmul.f32 %v862, 0.5
        %v879 = vmul.f32 %v687, %v863
        %v880 = vmul.f32 %v728, %v864
        %v881 = vmul.f32 %v690, %v865
        %v882 = vmul.f32 %v731, %v866
        %v883 = vmul.f32 %v693, %v867
        %v884 = vmul.f32 %v734, %v868
        %v885 = vmul.f32 %v696, %v869
        %v886 = vmul.f32 %v737, %v870
        %v887 = vmul.f32 %v699, %v871
        %v888 = vmul.f32 %v740, %v872
        %v889 = vmul.f32 %v702, %v873
        %v890 = vmul.f32 %v743, %v874
        %v891 = vmul.f32 %v705, %v875
        %v892 = vmul.f32 %v746, %v876
        %v893 = vmul.f32 %v708, %v877
        %v894 = vmul.f32 %v749, %v878
        %v895 = vld [vmem:[%s3] sm:$0xff]
        %v896 = vld [vmem:[%s3 + $0x8] sm:$0xff]
        %v897 = vld [vmem:[%s3 + $0x10] sm:$0xff]
        %v898 = vld [vmem:[%s3 + $0x18] sm:$0xff]
        %v899 = vld [vmem:[%s3 + $0x20] sm:$0xff]
        %v900 = vld [vmem:[%s3 + $0x28] sm:$0xff]
        %v901 = vld [vmem:[%s3 + $0x30] sm:$0xff]
        %v902 = vld [vmem:[%s3 + $0x38] sm:$0xff]
        %v903 = vld [vmem:[%s7] sm:$0xff]
        %v904 = vld [vmem:[%s7 + $0x8] sm:$0xff]
        %v905 = vld [vmem:[%s7 + $0x10] sm:$0xff]
        %v906 = vld [vmem:[%s7 + $0x18] sm:$0xff]
        %v907 = vld [vmem:[%s7 + $0x20] sm:$0xff]
        %v908 = vld [vmem:[%s7 + $0x28] sm:$0xff]
        %v909 = vld [vmem:[%s7 + $0x30] sm:$0xff]
        %v910 = vld [vmem:[%s7 + $0x38] sm:$0xff]
        %v911 = vld [vmem:[%s4] sm:$0xff]
        %v912 = vld [vmem:[%s4 + $0x8] sm:$0xff]
        %v913 = vld [vmem:[%s4 + $0x10] sm:$0xff]
        %v914 = vld [vmem:[%s4 + $0x18] sm:$0xff]
        %v915 = vld [vmem:[%s4 + $0x20] sm:$0xff]
        %v916 = vld [vmem:[%s4 + $0x28] sm:$0xff]
        %v917 = vld [vmem:[%s4 + $0x30] sm:$0xff]
        %v918 = vld [vmem:[%s4 + $0x38] sm:$0xff]
        %v919 = vld [vmem:[%s8] sm:$0xff]
        %v920 = vld [vmem:[%s8 + $0x8] sm:$0xff]
        %v921 = vld [vmem:[%s8 + $0x10] sm:$0xff]
        %v922 = vld [vmem:[%s8 + $0x18] sm:$0xff]
        %v923 = vld [vmem:[%s8 + $0x20] sm:$0xff]
        %v924 = vld [vmem:[%s8 + $0x28] sm:$0xff]
        %v925 = vld [vmem:[%s8 + $0x30] sm:$0xff]
        %v926 = vld [vmem:[%s8 + $0x38] sm:$0xff]
        %927 = vrot.lane.b32.xlu0 %v879, 2
        %v928 = vpop.permute.xlu0 %927
        %929 = vrot.lane.b32.xlu0 %v881, 2
        %v930 = vpop.permute.xlu0 %929
        %931 = vrot.lane.b32.xlu0 %v880, 2
        %v932 = vpop.permute.xlu0 %931
        %933 = vrot.lane.b32.xlu0 %v882, 2
        %v934 = vpop.permute.xlu0 %933
        %v935 = vlaneseq
        %v936 = vand.u32 %v935, 127
        %vm937 = vcmp.lt.s32.totalorder %v936, 2
        %v938 = vsel %vm937, %v928, %v932
        %v939 = vsel %vm937, %v930, %v934
        %v940 = vsel %vm937, %v932, %v928
        %v941 = vsel %vm937, %v934, %v930
        %v942 = vld [vmem:[%s6] sm:$0x3]
        %v944 = vperm.slane %v942, 0
        %v945 = vperm.slane %v942, 1
        %v948 = vmul.f32 %v940, %v944
        %v949 = vmul.f32 %v938, %v945
        %v950 = vmul.f32 %v941, %v944
        %v951 = vmul.f32 %v939, %v945
        %952 = vrot.lane.b32.xlu0 %v879, 1
        %v953 = vpop.permute.xlu0 %952
        %954 = vrot.lane.b32.xlu0 %v881, 1
        %v955 = vpop.permute.xlu0 %954
        %956 = vrot.lane.b32.xlu0 %v880, 1
        %v957 = vpop.permute.xlu0 %956
        %958 = vrot.lane.b32.xlu0 %v882, 1
        %v959 = vpop.permute.xlu0 %958
        %vm960 = vcmp.lt.s32.totalorder %v936, 1
        %v961 = vsel %vm960, %v953, %v957
        %v962 = vsel %vm960, %v955, %v959
        %v963 = vsel %vm960, %v957, %v953
        %v964 = vsel %vm960, %v959, %v955
        %s965 = scalar_lea.vmem %s6, 2
        %v966 = vld [vmem:[%s965] sm:$0x3]
        %v968 = vperm.slane %v966, 0
        %v969 = vperm.slane %v966, 1
        %v972 = vmul.f32 %v963, %v968
        %v973 = vmul.f32 %v961, %v969
        %v974 = vmul.f32 %v964, %v968
        %v975 = vmul.f32 %v962, %v969
        %s976 = scalar_lea.vmem %s6, 4
        %v977 = vld [vmem:[%s976] sm:$0x3]
        %v979 = vperm.slane %v977, 0
        %v980 = vperm.slane %v977, 1
        %v983 = vmul.f32 %v879, %v979
        %v984 = vmul.f32 %v880, %v980
        %v985 = vmul.f32 %v881, %v979
        %v986 = vmul.f32 %v882, %v980
        %987 = vrot.lane.b32.xlu0 %v879, 127
        %v988 = vpop.permute.xlu0 %987
        %989 = vrot.lane.b32.xlu0 %v881, 127
        %v990 = vpop.permute.xlu0 %989
        %991 = vrot.lane.b32.xlu0 %v880, 127
        %v992 = vpop.permute.xlu0 %991
        %993 = vrot.lane.b32.xlu0 %v882, 127
        %v994 = vpop.permute.xlu0 %993
        %vm995 = vcmp.lt.s32.totalorder %v936, 127
        %v996 = vsel %vm995, %v988, %v992
        %v997 = vsel %vm995, %v990, %v994
        %v998 = vsel %vm995, %v992, %v988
        %v999 = vsel %vm995, %v994, %v990
        %s1000 = scalar_lea.vmem %s6, 6
        %v1001 = vld [vmem:[%s1000] sm:$0x3]
        %v1003 = vperm.slane %v1001, 0
        %v1004 = vperm.slane %v1001, 1
        %v1007 = vmul.f32 %v996, %v1003
        %v1008 = vmul.f32 %v998, %v1004
        %v1009 = vmul.f32 %v997, %v1003
        %v1010 = vmul.f32 %v999, %v1004
        %1011 = vrot.lane.b32.xlu0 %v879, 126
        %v1012 = vpop.permute.xlu0 %1011
        %1013 = vrot.lane.b32.xlu0 %v881, 126
        %v1014 = vpop.permute.xlu0 %1013
        %1015 = vrot.lane.b32.xlu0 %v880, 126
        %v1016 = vpop.permute.xlu0 %1015
        %1017 = vrot.lane.b32.xlu0 %v882, 126
        %v1018 = vpop.permute.xlu0 %1017
        %vm1019 = vcmp.lt.s32.totalorder %v936, 126
        %v1020 = vsel %vm1019, %v1012, %v1016
        %v1021 = vsel %vm1019, %v1014, %v1018
        %v1022 = vsel %vm1019, %v1016, %v1012
        %v1023 = vsel %vm1019, %v1018, %v1014
        %s1024 = scalar_lea.vmem %s6, 8
        %v1025 = vld [vmem:[%s1024] sm:$0x3]
        %v1027 = vperm.slane %v1025, 0
        %v1028 = vperm.slane %v1025, 1
        %v1031 = vmul.f32 %v1020, %v1027
        %v1032 = vmul.f32 %v1022, %v1028
        %v1033 = vmul.f32 %v1021, %v1027
        %v1034 = vmul.f32 %v1023, %v1028
        %1036 = vset.pattern.permute.xlu0 0
        %1037 = vperm.xlu0 %1036, %v895
        %v1038 = vpop.permute.xlu0 %1037
        %1041 = vset.pattern.permute.xlu0 0
        %1042 = vperm.xlu0 %1041, %v896
        %v1043 = vpop.permute.xlu0 %1042
        %v1045 = vmul.f32 %v948, %v1038
        %v1046 = vmul.f32 %v949, %v1038
        %v1047 = vmul.f32 %v950, %v1043
        %v1048 = vmul.f32 %v951, %v1043
        %1049 = vset.pattern.permute.xlu0 1
        %1050 = vperm.xlu0 %1049, %v895
        %v1051 = vpop.permute.xlu0 %1050
        %1053 = vset.pattern.permute.xlu0 1
        %1054 = vperm.xlu0 %1053, %v896
        %v1055 = vpop.permute.xlu0 %1054
        %v1057 = vmul.f32 %v972, %v1051
        %v1058 = vmul.f32 %v973, %v1051
        %v1059 = vmul.f32 %v974, %v1055
        %v1060 = vmul.f32 %v975, %v1055
        %v1061 = vadd.f32 %v1045, %v1057
        %v1062 = vadd.f32 %v1046, %v1058
        %v1063 = vadd.f32 %v1047, %v1059
        %v1064 = vadd.f32 %v1048, %v1060
        %1065 = vset.pattern.permute.xlu0 2
        %1066 = vperm.xlu0 %1065, %v895
        %v1067 = vpop.permute.xlu0 %1066
        %1069 = vset.pattern.permute.xlu0 2
        %1070 = vperm.xlu0 %1069, %v896
        %v1071 = vpop.permute.xlu0 %1070
        %v1073 = vmul.f32 %v983, %v1067
        %v1074 = vmul.f32 %v984, %v1067
        %v1075 = vmul.f32 %v985, %v1071
        %v1076 = vmul.f32 %v986, %v1071
        %v1077 = vadd.f32 %v1061, %v1073
        %v1078 = vadd.f32 %v1062, %v1074
        %v1079 = vadd.f32 %v1063, %v1075
        %v1080 = vadd.f32 %v1064, %v1076
        %1081 = vset.pattern.permute.xlu0 3
        %1082 = vperm.xlu0 %1081, %v895
        %v1083 = vpop.permute.xlu0 %1082
        %1085 = vset.pattern.permute.xlu0 3
        %1086 = vperm.xlu0 %1085, %v896
        %v1087 = vpop.permute.xlu0 %1086
        %v1089 = vmul.f32 %v1007, %v1083
        %v1090 = vmul.f32 %v1008, %v1083
        %v1091 = vmul.f32 %v1009, %v1087
        %v1092 = vmul.f32 %v1010, %v1087
        %v1093 = vadd.f32 %v1077, %v1089
        %v1094 = vadd.f32 %v1078, %v1090
        %v1095 = vadd.f32 %v1079, %v1091
        %v1096 = vadd.f32 %v1080, %v1092
        %1097 = vset.pattern.permute.xlu0 4
        %1098 = vperm.xlu0 %1097, %v895
        %v1099 = vpop.permute.xlu0 %1098
        %1101 = vset.pattern.permute.xlu0 4
        %1102 = vperm.xlu0 %1101, %v896
        %v1103 = vpop.permute.xlu0 %1102
        %v1105 = vmul.f32 %v1031, %v1099
        %v1106 = vmul.f32 %v1032, %v1099
        %v1107 = vmul.f32 %v1033, %v1103
        %v1108 = vmul.f32 %v1034, %v1103
        %v1109 = vadd.f32 %v1093, %v1105
        %v1110 = vadd.f32 %v1094, %v1106
        %v1111 = vadd.f32 %v1095, %v1107
        %v1112 = vadd.f32 %v1096, %v1108
        %1113 = vrot.lane.b32.xlu0 %v1109, 32
        %v1114 = vpop.permute.xlu0 %1113
        %1115 = vrot.lane.b32.xlu0 %v1111, 32
        %v1116 = vpop.permute.xlu0 %1115
        %1117 = vrot.lane.b32.xlu0 %v1110, 32
        %v1118 = vpop.permute.xlu0 %1117
        %1119 = vrot.lane.b32.xlu0 %v1112, 32
        %v1120 = vpop.permute.xlu0 %1119
        %vm1121 = vcmp.lt.s32.totalorder %v936, 32
        %v1122 = vsel %vm1121, %v1114, %v1118
        %v1123 = vsel %vm1121, %v1116, %v1120
        %v1124 = vsel %vm1121, %v1118, %v1114
        %v1125 = vsel %vm1121, %v1120, %v1116
        %v1126 = vld [vmem:[%s5] sm:$0x3]
        %v1128 = vperm.slane %v1126, 0
        %v1129 = vperm.slane %v1126, 1
        %v1132 = vmul.f32 %v1124, %v1128
        %v1133 = vmul.f32 %v1122, %v1129
        %v1134 = vmul.f32 %v1125, %v1128
        %v1135 = vmul.f32 %v1123, %v1129
        %1136 = vset.pattern.permute.xlu0 5
        %1137 = vperm.xlu0 %1136, %v895
        %v1138 = vpop.permute.xlu0 %1137
        %1140 = vset.pattern.permute.xlu0 5
        %1141 = vperm.xlu0 %1140, %v896
        %v1142 = vpop.permute.xlu0 %1141
        %v1144 = vmul.f32 %v948, %v1138
        %v1145 = vmul.f32 %v949, %v1138
        %v1146 = vmul.f32 %v950, %v1142
        %v1147 = vmul.f32 %v951, %v1142
        %1148 = vset.pattern.permute.xlu0 6
        %1149 = vperm.xlu0 %1148, %v895
        %v1150 = vpop.permute.xlu0 %1149
        %1152 = vset.pattern.permute.xlu0 6
        %1153 = vperm.xlu0 %1152, %v896
        %v1154 = vpop.permute.xlu0 %1153
        %v1156 = vmul.f32 %v972, %v1150
        %v1157 = vmul.f32 %v973, %v1150
        %v1158 = vmul.f32 %v974, %v1154
        %v1159 = vmul.f32 %v975, %v1154
        %v1160 = vadd.f32 %v1144, %v1156
        %v1161 = vadd.f32 %v1145, %v1157
        %v1162 = vadd.f32 %v1146, %v1158
        %v1163 = vadd.f32 %v1147, %v1159
        %1164 = vset.pattern.permute.xlu0 7
        %1165 = vperm.xlu0 %1164, %v895
        %v1166 = vpop.permute.xlu0 %1165
        %1168 = vset.pattern.permute.xlu0 7
        %1169 = vperm.xlu0 %1168, %v896
        %v1170 = vpop.permute.xlu0 %1169
        %v1172 = vmul.f32 %v983, %v1166
        %v1173 = vmul.f32 %v984, %v1166
        %v1174 = vmul.f32 %v985, %v1170
        %v1175 = vmul.f32 %v986, %v1170
        %v1176 = vadd.f32 %v1160, %v1172
        %v1177 = vadd.f32 %v1161, %v1173
        %v1178 = vadd.f32 %v1162, %v1174
        %v1179 = vadd.f32 %v1163, %v1175
        %1180 = vset.pattern.permute.xlu0 8
        %1181 = vperm.xlu0 %1180, %v895
        %v1182 = vpop.permute.xlu0 %1181
        %1184 = vset.pattern.permute.xlu0 8
        %1185 = vperm.xlu0 %1184, %v896
        %v1186 = vpop.permute.xlu0 %1185
        %v1188 = vmul.f32 %v1007, %v1182
        %v1189 = vmul.f32 %v1008, %v1182
        %v1190 = vmul.f32 %v1009, %v1186
        %v1191 = vmul.f32 %v1010, %v1186
        %v1192 = vadd.f32 %v1176, %v1188
        %v1193 = vadd.f32 %v1177, %v1189
        %v1194 = vadd.f32 %v1178, %v1190
        %v1195 = vadd.f32 %v1179, %v1191
        %1196 = vset.pattern.permute.xlu0 9
        %1197 = vperm.xlu0 %1196, %v895
        %v1198 = vpop.permute.xlu0 %1197
        %1200 = vset.pattern.permute.xlu0 9
        %1201 = vperm.xlu0 %1200, %v896
        %v1202 = vpop.permute.xlu0 %1201
        %v1204 = vmul.f32 %v1031, %v1198
        %v1205 = vmul.f32 %v1032, %v1198
        %v1206 = vmul.f32 %v1033, %v1202
        %v1207 = vmul.f32 %v1034, %v1202
        %v1208 = vadd.f32 %v1192, %v1204
        %v1209 = vadd.f32 %v1193, %v1205
        %v1210 = vadd.f32 %v1194, %v1206
        %v1211 = vadd.f32 %v1195, %v1207
        %1212 = vrot.lane.b32.xlu0 %v1208, 16
        %v1213 = vpop.permute.xlu0 %1212
        %1214 = vrot.lane.b32.xlu0 %v1210, 16
        %v1215 = vpop.permute.xlu0 %1214
        %1216 = vrot.lane.b32.xlu0 %v1209, 16
        %v1217 = vpop.permute.xlu0 %1216
        %1218 = vrot.lane.b32.xlu0 %v1211, 16
        %v1219 = vpop.permute.xlu0 %1218
        %vm1220 = vcmp.lt.s32.totalorder %v936, 16
        %v1221 = vsel %vm1220, %v1213, %v1217
        %v1222 = vsel %vm1220, %v1215, %v1219
        %v1223 = vsel %vm1220, %v1217, %v1213
        %v1224 = vsel %vm1220, %v1219, %v1215
        %s1225 = scalar_lea.vmem %s5, 2
        %v1226 = vld [vmem:[%s1225] sm:$0x3]
        %v1228 = vperm.slane %v1226, 0
        %v1229 = vperm.slane %v1226, 1
        %v1232 = vmul.f32 %v1223, %v1228
        %v1233 = vmul.f32 %v1221, %v1229
        %v1234 = vmul.f32 %v1224, %v1228
        %v1235 = vmul.f32 %v1222, %v1229
        %v1236 = vadd.f32 %v1132, %v1232
        %v1237 = vadd.f32 %v1133, %v1233
        %v1238 = vadd.f32 %v1134, %v1234
        %v1239 = vadd.f32 %v1135, %v1235
        %1240 = vset.pattern.permute.xlu0 10
        %1241 = vperm.xlu0 %1240, %v895
        %v1242 = vpop.permute.xlu0 %1241
        %1244 = vset.pattern.permute.xlu0 10
        %1245 = vperm.xlu0 %1244, %v896
        %v1246 = vpop.permute.xlu0 %1245
        %v1248 = vmul.f32 %v948, %v1242
        %v1249 = vmul.f32 %v949, %v1242
        %v1250 = vmul.f32 %v950, %v1246
        %v1251 = vmul.f32 %v951, %v1246
        %1252 = vset.pattern.permute.xlu0 11
        %1253 = vperm.xlu0 %1252, %v895
        %v1254 = vpop.permute.xlu0 %1253
        %1256 = vset.pattern.permute.xlu0 11
        %1257 = vperm.xlu0 %1256, %v896
        %v1258 = vpop.permute.xlu0 %1257
        %v1260 = vmul.f32 %v972, %v1254
        %v1261 = vmul.f32 %v973, %v1254
        %v1262 = vmul.f32 %v974, %v1258
        %v1263 = vmul.f32 %v975, %v1258
        %v1264 = vadd.f32 %v1248, %v1260
        %v1265 = vadd.f32 %v1249, %v1261
        %v1266 = vadd.f32 %v1250, %v1262
        %v1267 = vadd.f32 %v1251, %v1263
        %1268 = vset.pattern.permute.xlu0 12
        %1269 = vperm.xlu0 %1268, %v895
        %v1270 = vpop.permute.xlu0 %1269
        %1272 = vset.pattern.permute.xlu0 12
        %1273 = vperm.xlu0 %1272, %v896
        %v1274 = vpop.permute.xlu0 %1273
        %v1276 = vmul.f32 %v983, %v1270
        %v1277 = vmul.f32 %v984, %v1270
        %v1278 = vmul.f32 %v985, %v1274
        %v1279 = vmul.f32 %v986, %v1274
        %v1280 = vadd.f32 %v1264, %v1276
        %v1281 = vadd.f32 %v1265, %v1277
        %v1282 = vadd.f32 %v1266, %v1278
        %v1283 = vadd.f32 %v1267, %v1279
        %1284 = vset.pattern.permute.xlu0 13
        %1285 = vperm.xlu0 %1284, %v895
        %v1286 = vpop.permute.xlu0 %1285
        %1288 = vset.pattern.permute.xlu0 13
        %1289 = vperm.xlu0 %1288, %v896
        %v1290 = vpop.permute.xlu0 %1289
        %v1292 = vmul.f32 %v1007, %v1286
        %v1293 = vmul.f32 %v1008, %v1286
        %v1294 = vmul.f32 %v1009, %v1290
        %v1295 = vmul.f32 %v1010, %v1290
        %v1296 = vadd.f32 %v1280, %v1292
        %v1297 = vadd.f32 %v1281, %v1293
        %v1298 = vadd.f32 %v1282, %v1294
        %v1299 = vadd.f32 %v1283, %v1295
        %1300 = vset.pattern.permute.xlu0 14
        %1301 = vperm.xlu0 %1300, %v895
        %v1302 = vpop.permute.xlu0 %1301
        %1304 = vset.pattern.permute.xlu0 14
        %1305 = vperm.xlu0 %1304, %v896
        %v1306 = vpop.permute.xlu0 %1305
        %v1308 = vmul.f32 %v1031, %v1302
        %v1309 = vmul.f32 %v1032, %v1302
        %v1310 = vmul.f32 %v1033, %v1306
        %v1311 = vmul.f32 %v1034, %v1306
        %v1312 = vadd.f32 %v1296, %v1308
        %v1313 = vadd.f32 %v1297, %v1309
        %v1314 = vadd.f32 %v1298, %v1310
        %v1315 = vadd.f32 %v1299, %v1311
        %s1316 = scalar_lea.vmem %s5, 4
        %v1317 = vld [vmem:[%s1316] sm:$0x3]
        %v1319 = vperm.slane %v1317, 0
        %v1320 = vperm.slane %v1317, 1
        %v1323 = vmul.f32 %v1312, %v1319
        %v1324 = vmul.f32 %v1313, %v1320
        %v1325 = vmul.f32 %v1314, %v1319
        %v1326 = vmul.f32 %v1315, %v1320
        %v1327 = vadd.f32 %v1236, %v1323
        %v1328 = vadd.f32 %v1237, %v1324
        %v1329 = vadd.f32 %v1238, %v1325
        %v1330 = vadd.f32 %v1239, %v1326
        %1331 = vset.pattern.permute.xlu0 15
        %1332 = vperm.xlu0 %1331, %v895
        %v1333 = vpop.permute.xlu0 %1332
        %1335 = vset.pattern.permute.xlu0 15
        %1336 = vperm.xlu0 %1335, %v896
        %v1337 = vpop.permute.xlu0 %1336
        %v1339 = vmul.f32 %v948, %v1333
        %v1340 = vmul.f32 %v949, %v1333
        %v1341 = vmul.f32 %v950, %v1337
        %v1342 = vmul.f32 %v951, %v1337
        %1343 = vset.pattern.permute.xlu0 16
        %1344 = vperm.xlu0 %1343, %v895
        %v1345 = vpop.permute.xlu0 %1344
        %1347 = vset.pattern.permute.xlu0 16
        %1348 = vperm.xlu0 %1347, %v896
        %v1349 = vpop.permute.xlu0 %1348
        %v1351 = vmul.f32 %v972, %v1345
        %v1352 = vmul.f32 %v973, %v1345
        %v1353 = vmul.f32 %v974, %v1349
        %v1354 = vmul.f32 %v975, %v1349
        %v1355 = vadd.f32 %v1339, %v1351
        %v1356 = vadd.f32 %v1340, %v1352
        %v1357 = vadd.f32 %v1341, %v1353
        %v1358 = vadd.f32 %v1342, %v1354
        %1359 = vset.pattern.permute.xlu0 17
        %1360 = vperm.xlu0 %1359, %v895
        %v1361 = vpop.permute.xlu0 %1360
        %1363 = vset.pattern.permute.xlu0 17
        %1364 = vperm.xlu0 %1363, %v896
        %v1365 = vpop.permute.xlu0 %1364
        %v1367 = vmul.f32 %v983, %v1361
        %v1368 = vmul.f32 %v984, %v1361
        %v1369 = vmul.f32 %v985, %v1365
        %v1370 = vmul.f32 %v986, %v1365
        %v1371 = vadd.f32 %v1355, %v1367
        %v1372 = vadd.f32 %v1356, %v1368
        %v1373 = vadd.f32 %v1357, %v1369
        %v1374 = vadd.f32 %v1358, %v1370
        %1375 = vset.pattern.permute.xlu0 18
        %1376 = vperm.xlu0 %1375, %v895
        %v1377 = vpop.permute.xlu0 %1376
        %1379 = vset.pattern.permute.xlu0 18
        %1380 = vperm.xlu0 %1379, %v896
        %v1381 = vpop.permute.xlu0 %1380
        %v1383 = vmul.f32 %v1007, %v1377
        %v1384 = vmul.f32 %v1008, %v1377
        %v1385 = vmul.f32 %v1009, %v1381
        %v1386 = vmul.f32 %v1010, %v1381
        %v1387 = vadd.f32 %v1371, %v1383
        %v1388 = vadd.f32 %v1372, %v1384
        %v1389 = vadd.f32 %v1373, %v1385
        %v1390 = vadd.f32 %v1374, %v1386
        %1391 = vset.pattern.permute.xlu0 19
        %1392 = vperm.xlu0 %1391, %v895
        %v1393 = vpop.permute.xlu0 %1392
        %1395 = vset.pattern.permute.xlu0 19
        %1396 = vperm.xlu0 %1395, %v896
        %v1397 = vpop.permute.xlu0 %1396
        %v1399 = vmul.f32 %v1031, %v1393
        %v1400 = vmul.f32 %v1032, %v1393
        %v1401 = vmul.f32 %v1033, %v1397
        %v1402 = vmul.f32 %v1034, %v1397
        %v1403 = vadd.f32 %v1387, %v1399
        %v1404 = vadd.f32 %v1388, %v1400
        %v1405 = vadd.f32 %v1389, %v1401
        %v1406 = vadd.f32 %v1390, %v1402
        %1407 = vrot.lane.b32.xlu0 %v1403, 112
        %v1408 = vpop.permute.xlu0 %1407
        %1409 = vrot.lane.b32.xlu0 %v1405, 112
        %v1410 = vpop.permute.xlu0 %1409
        %1411 = vrot.lane.b32.xlu0 %v1404, 112
        %v1412 = vpop.permute.xlu0 %1411
        %1413 = vrot.lane.b32.xlu0 %v1406, 112
        %v1414 = vpop.permute.xlu0 %1413
        %vm1415 = vcmp.lt.s32.totalorder %v936, 112
        %v1416 = vsel %vm1415, %v1408, %v1412
        %v1417 = vsel %vm1415, %v1410, %v1414
        %v1418 = vsel %vm1415, %v1412, %v1408
        %v1419 = vsel %vm1415, %v1414, %v1410
        %s1420 = scalar_lea.vmem %s5, 6
        %v1421 = vld [vmem:[%s1420] sm:$0x3]
        %v1423 = vperm.slane %v1421, 0
        %v1424 = vperm.slane %v1421, 1
        %v1427 = vmul.f32 %v1416, %v1423
        %v1428 = vmul.f32 %v1418, %v1424
        %v1429 = vmul.f32 %v1417, %v1423
        %v1430 = vmul.f32 %v1419, %v1424
        %v1431 = vadd.f32 %v1327, %v1427
        %v1432 = vadd.f32 %v1328, %v1428
        %v1433 = vadd.f32 %v1329, %v1429
        %v1434 = vadd.f32 %v1330, %v1430
        %1435 = vset.pattern.permute.xlu0 20
        %1436 = vperm.xlu0 %1435, %v895
        %v1437 = vpop.permute.xlu0 %1436
        %1439 = vset.pattern.permute.xlu0 20
        %1440 = vperm.xlu0 %1439, %v896
        %v1441 = vpop.permute.xlu0 %1440
        %v1443 = vmul.f32 %v948, %v1437
        %v1444 = vmul.f32 %v949, %v1437
        %v1445 = vmul.f32 %v950, %v1441
        %v1446 = vmul.f32 %v951, %v1441
        %1447 = vset.pattern.permute.xlu0 21
        %1448 = vperm.xlu0 %1447, %v895
        %v1449 = vpop.permute.xlu0 %1448
        %1451 = vset.pattern.permute.xlu0 21
        %1452 = vperm.xlu0 %1451, %v896
        %v1453 = vpop.permute.xlu0 %1452
        %v1455 = vmul.f32 %v972, %v1449
        %v1456 = vmul.f32 %v973, %v1449
        %v1457 = vmul.f32 %v974, %v1453
        %v1458 = vmul.f32 %v975, %v1453
        %v1459 = vadd.f32 %v1443, %v1455
        %v1460 = vadd.f32 %v1444, %v1456
        %v1461 = vadd.f32 %v1445, %v1457
        %v1462 = vadd.f32 %v1446, %v1458
        %1463 = vset.pattern.permute.xlu0 22
        %1464 = vperm.xlu0 %1463, %v895
        %v1465 = vpop.permute.xlu0 %1464
        %1467 = vset.pattern.permute.xlu0 22
        %1468 = vperm.xlu0 %1467, %v896
        %v1469 = vpop.permute.xlu0 %1468
        %v1471 = vmul.f32 %v983, %v1465
        %v1472 = vmul.f32 %v984, %v1465
        %v1473 = vmul.f32 %v985, %v1469
        %v1474 = vmul.f32 %v986, %v1469
        %v1475 = vadd.f32 %v1459, %v1471
        %v1476 = vadd.f32 %v1460, %v1472
        %v1477 = vadd.f32 %v1461, %v1473
        %v1478 = vadd.f32 %v1462, %v1474
        %1479 = vset.pattern.permute.xlu0 23
        %1480 = vperm.xlu0 %1479, %v895
        %v1481 = vpop.permute.xlu0 %1480
        %1483 = vset.pattern.permute.xlu0 23
        %1484 = vperm.xlu0 %1483, %v896
        %v1485 = vpop.permute.xlu0 %1484
        %v1487 = vmul.f32 %v1007, %v1481
        %v1488 = vmul.f32 %v1008, %v1481
        %v1489 = vmul.f32 %v1009, %v1485
        %v1490 = vmul.f32 %v1010, %v1485
        %v1491 = vadd.f32 %v1475, %v1487
        %v1492 = vadd.f32 %v1476, %v1488
        %v1493 = vadd.f32 %v1477, %v1489
        %v1494 = vadd.f32 %v1478, %v1490
        %1495 = vset.pattern.permute.xlu0 24
        %1496 = vperm.xlu0 %1495, %v895
        %v1497 = vpop.permute.xlu0 %1496
        %1499 = vset.pattern.permute.xlu0 24
        %1500 = vperm.xlu0 %1499, %v896
        %v1501 = vpop.permute.xlu0 %1500
        %v1503 = vmul.f32 %v1031, %v1497
        %v1504 = vmul.f32 %v1032, %v1497
        %v1505 = vmul.f32 %v1033, %v1501
        %v1506 = vmul.f32 %v1034, %v1501
        %v1507 = vadd.f32 %v1491, %v1503
        %v1508 = vadd.f32 %v1492, %v1504
        %v1509 = vadd.f32 %v1493, %v1505
        %v1510 = vadd.f32 %v1494, %v1506
        %1511 = vrot.lane.b32.xlu0 %v1507, 96
        %v1512 = vpop.permute.xlu0 %1511
        %1513 = vrot.lane.b32.xlu0 %v1509, 96
        %v1514 = vpop.permute.xlu0 %1513
        %1515 = vrot.lane.b32.xlu0 %v1508, 96
        %v1516 = vpop.permute.xlu0 %1515
        %1517 = vrot.lane.b32.xlu0 %v1510, 96
        %v1518 = vpop.permute.xlu0 %1517
        %vm1519 = vcmp.lt.s32.totalorder %v936, 96
        %v1520 = vsel %vm1519, %v1512, %v1516
        %v1521 = vsel %vm1519, %v1514, %v1518
        %v1522 = vsel %vm1519, %v1516, %v1512
        %v1523 = vsel %vm1519, %v1518, %v1514
        %s1524 = scalar_lea.vmem %s5, 8
        %v1525 = vld [vmem:[%s1524] sm:$0x3]
        %v1527 = vperm.slane %v1525, 0
        %v1528 = vperm.slane %v1525, 1
        %v1531 = vmul.f32 %v1520, %v1527
        %v1532 = vmul.f32 %v1522, %v1528
        %v1533 = vmul.f32 %v1521, %v1527
        %v1534 = vmul.f32 %v1523, %v1528
        %v1535 = vadd.f32 %v1431, %v1531
        %v1536 = vadd.f32 %v1432, %v1532
        %v1537 = vadd.f32 %v1433, %v1533
        %v1538 = vadd.f32 %v1434, %v1534
        %1540 = vset.pattern.permute.xlu0 0
        %1541 = vperm.xlu0 %1540, %v911
        %v1542 = vpop.permute.xlu0 %1541
        %1545 = vset.pattern.permute.xlu0 0
        %1546 = vperm.xlu0 %1545, %v912
        %v1547 = vpop.permute.xlu0 %1546
        %v1549 = vadd.f32 %v1535, %v1542
        %v1550 = vadd.f32 %v1536, %v1542
        %v1551 = vadd.f32 %v1537, %v1547
        %v1552 = vadd.f32 %v1538, %v1547
        %1553 = vrot.lane.b32.xlu0 %v1549, 9
        %v1554 = vpop.permute.xlu0 %1553
        %1555 = vrot.lane.b32.xlu0 %v1551, 9
        %v1556 = vpop.permute.xlu0 %1555
        %1557 = vrot.lane.b32.xlu0 %v1550, 9
        %v1558 = vpop.permute.xlu0 %1557
        %1559 = vrot.lane.b32.xlu0 %v1552, 9
        %v1560 = vpop.permute.xlu0 %1559
        %vm1561 = vcmp.lt.s32.totalorder %v936, 9
        %v1562 = vsel %vm1561, %v1554, %v1558
        %v1563 = vsel %vm1561, %v1556, %v1560
        %v1564 = vsel %vm1561, %v1558, %v1554
        %v1565 = vsel %vm1561, %v1560, %v1556
        %v1566 = vld [vmem:[%s10] sm:$0x3]
        %v1568 = vperm.slane %v1566, 0
        %v1569 = vperm.slane %v1566, 1
        %v1572 = vmul.f32 %v1564, %v1568
        %v1573 = vmul.f32 %v1562, %v1569
        %v1574 = vmul.f32 %v1565, %v1568
        %v1575 = vmul.f32 %v1563, %v1569
        %1576 = vrot.lane.b32.xlu0 %v1549, 6
        %v1577 = vpop.permute.xlu0 %1576
        %1578 = vrot.lane.b32.xlu0 %v1551, 6
        %v1579 = vpop.permute.xlu0 %1578
        %1580 = vrot.lane.b32.xlu0 %v1550, 6
        %v1581 = vpop.permute.xlu0 %1580
        %1582 = vrot.lane.b32.xlu0 %v1552, 6
        %v1583 = vpop.permute.xlu0 %1582
        %vm1584 = vcmp.lt.s32.totalorder %v936, 6
        %v1585 = vsel %vm1584, %v1577, %v1581
        %v1586 = vsel %vm1584, %v1579, %v1583
        %v1587 = vsel %vm1584, %v1581, %v1577
        %v1588 = vsel %vm1584, %v1583, %v1579
        %s1589 = scalar_lea.vmem %s10, 2
        %v1590 = vld [vmem:[%s1589] sm:$0x3]
        %v1592 = vperm.slane %v1590, 0
        %v1593 = vperm.slane %v1590, 1
        %v1596 = vmul.f32 %v1587, %v1592
        %v1597 = vmul.f32 %v1585, %v1593
        %v1598 = vmul.f32 %v1588, %v1592
        %v1599 = vmul.f32 %v1586, %v1593
        %1600 = vrot.lane.b32.xlu0 %v1549, 3
        %v1601 = vpop.permute.xlu0 %1600
        %1602 = vrot.lane.b32.xlu0 %v1551, 3
        %v1603 = vpop.permute.xlu0 %1602
        %1604 = vrot.lane.b32.xlu0 %v1550, 3
        %v1605 = vpop.permute.xlu0 %1604
        %1606 = vrot.lane.b32.xlu0 %v1552, 3
        %v1607 = vpop.permute.xlu0 %1606
        %vm1608 = vcmp.lt.s32.totalorder %v936, 3
        %v1609 = vsel %vm1608, %v1601, %v1605
        %v1610 = vsel %vm1608, %v1603, %v1607
        %v1611 = vsel %vm1608, %v1605, %v1601
        %v1612 = vsel %vm1608, %v1607, %v1603
        %s1613 = scalar_lea.vmem %s10, 4
        %v1614 = vld [vmem:[%s1613] sm:$0x3]
        %v1616 = vperm.slane %v1614, 0
        %v1617 = vperm.slane %v1614, 1
        %v1620 = vmul.f32 %v1611, %v1616
        %v1621 = vmul.f32 %v1609, %v1617
        %v1622 = vmul.f32 %v1612, %v1616
        %v1623 = vmul.f32 %v1610, %v1617
        %s1624 = scalar_lea.vmem %s10, 6
        %v1625 = vld [vmem:[%s1624] sm:$0x3]
        %v1627 = vperm.slane %v1625, 0
        %v1628 = vperm.slane %v1625, 1
        %v1631 = vmul.f32 %v1549, %v1627
        %v1632 = vmul.f32 %v1550, %v1628
        %v1633 = vmul.f32 %v1551, %v1627
        %v1634 = vmul.f32 %v1552, %v1628
        %1635 = vrot.lane.b32.xlu0 %v1549, 125
        %v1636 = vpop.permute.xlu0 %1635
        %1637 = vrot.lane.b32.xlu0 %v1551, 125
        %v1638 = vpop.permute.xlu0 %1637
        %1639 = vrot.lane.b32.xlu0 %v1550, 125
        %v1640 = vpop.permute.xlu0 %1639
        %1641 = vrot.lane.b32.xlu0 %v1552, 125
        %v1642 = vpop.permute.xlu0 %1641
        %vm1643 = vcmp.lt.s32.totalorder %v936, 125
        %v1644 = vsel %vm1643, %v1636, %v1640
        %v1645 = vsel %vm1643, %v1638, %v1642
        %v1646 = vsel %vm1643, %v1640, %v1636
        %v1647 = vsel %vm1643, %v1642, %v1638
        %s1648 = scalar_lea.vmem %s10, 8
        %v1649 = vld [vmem:[%s1648] sm:$0x3]
        %v1651 = vperm.slane %v1649, 0
        %v1652 = vperm.slane %v1649, 1
        %v1655 = vmul.f32 %v1644, %v1651
        %v1656 = vmul.f32 %v1646, %v1652
        %v1657 = vmul.f32 %v1645, %v1651
        %v1658 = vmul.f32 %v1647, %v1652
        %1659 = vrot.lane.b32.xlu0 %v1549, 122
        %v1660 = vpop.permute.xlu0 %1659
        %1661 = vrot.lane.b32.xlu0 %v1551, 122
        %v1662 = vpop.permute.xlu0 %1661
        %1663 = vrot.lane.b32.xlu0 %v1550, 122
        %v1664 = vpop.permute.xlu0 %1663
        %1665 = vrot.lane.b32.xlu0 %v1552, 122
        %v1666 = vpop.permute.xlu0 %1665
        %vm1667 = vcmp.lt.s32.totalorder %v936, 122
        %v1668 = vsel %vm1667, %v1660, %v1664
        %v1669 = vsel %vm1667, %v1662, %v1666
        %v1670 = vsel %vm1667, %v1664, %v1660
        %v1671 = vsel %vm1667, %v1666, %v1662
        %s1672 = scalar_lea.vmem %s10, 10
        %v1673 = vld [vmem:[%s1672] sm:$0x3]
        %v1675 = vperm.slane %v1673, 0
        %v1676 = vperm.slane %v1673, 1
        %v1679 = vmul.f32 %v1668, %v1675
        %v1680 = vmul.f32 %v1670, %v1676
        %v1681 = vmul.f32 %v1669, %v1675
        %v1682 = vmul.f32 %v1671, %v1676
        %1683 = vrot.lane.b32.xlu0 %v1549, 119
        %v1684 = vpop.permute.xlu0 %1683
        %1685 = vrot.lane.b32.xlu0 %v1551, 119
        %v1686 = vpop.permute.xlu0 %1685
        %1687 = vrot.lane.b32.xlu0 %v1550, 119
        %v1688 = vpop.permute.xlu0 %1687
        %1689 = vrot.lane.b32.xlu0 %v1552, 119
        %v1690 = vpop.permute.xlu0 %1689
        %vm1691 = vcmp.lt.s32.totalorder %v936, 119
        %v1692 = vsel %vm1691, %v1684, %v1688
        %v1693 = vsel %vm1691, %v1686, %v1690
        %v1694 = vsel %vm1691, %v1688, %v1684
        %v1695 = vsel %vm1691, %v1690, %v1686
        %s1696 = scalar_lea.vmem %s10, 12
        %v1697 = vld [vmem:[%s1696] sm:$0x3]
        %v1699 = vperm.slane %v1697, 0
        %v1700 = vperm.slane %v1697, 1
        %v1703 = vmul.f32 %v1692, %v1699
        %v1704 = vmul.f32 %v1694, %v1700
        %v1705 = vmul.f32 %v1693, %v1699
        %v1706 = vmul.f32 %v1695, %v1700
        %1708 = vset.pattern.permute.xlu0 0
        %1709 = vperm.xlu0 %1708, %v903
        %v1710 = vpop.permute.xlu0 %1709
        %1713 = vset.pattern.permute.xlu0 0
        %1714 = vperm.xlu0 %1713, %v904
        %v1715 = vpop.permute.xlu0 %1714
        %v1717 = vmul.f32 %v1572, %v1710
        %v1718 = vmul.f32 %v1573, %v1710
        %v1719 = vmul.f32 %v1574, %v1715
        %v1720 = vmul.f32 %v1575, %v1715
        %1721 = vset.pattern.permute.xlu0 1
        %1722 = vperm.xlu0 %1721, %v903
        %v1723 = vpop.permute.xlu0 %1722
        %1725 = vset.pattern.permute.xlu0 1
        %1726 = vperm.xlu0 %1725, %v904
        %v1727 = vpop.permute.xlu0 %1726
        %v1729 = vmul.f32 %v1596, %v1723
        %v1730 = vmul.f32 %v1597, %v1723
        %v1731 = vmul.f32 %v1598, %v1727
        %v1732 = vmul.f32 %v1599, %v1727
        %v1733 = vadd.f32 %v1717, %v1729
        %v1734 = vadd.f32 %v1718, %v1730
        %v1735 = vadd.f32 %v1719, %v1731
        %v1736 = vadd.f32 %v1720, %v1732
        %1737 = vset.pattern.permute.xlu0 2
        %1738 = vperm.xlu0 %1737, %v903
        %v1739 = vpop.permute.xlu0 %1738
        %1741 = vset.pattern.permute.xlu0 2
        %1742 = vperm.xlu0 %1741, %v904
        %v1743 = vpop.permute.xlu0 %1742
        %v1745 = vmul.f32 %v1620, %v1739
        %v1746 = vmul.f32 %v1621, %v1739
        %v1747 = vmul.f32 %v1622, %v1743
        %v1748 = vmul.f32 %v1623, %v1743
        %v1749 = vadd.f32 %v1733, %v1745
        %v1750 = vadd.f32 %v1734, %v1746
        %v1751 = vadd.f32 %v1735, %v1747
        %v1752 = vadd.f32 %v1736, %v1748
        %1753 = vset.pattern.permute.xlu0 3
        %1754 = vperm.xlu0 %1753, %v903
        %v1755 = vpop.permute.xlu0 %1754
        %1757 = vset.pattern.permute.xlu0 3
        %1758 = vperm.xlu0 %1757, %v904
        %v1759 = vpop.permute.xlu0 %1758
        %v1761 = vmul.f32 %v1631, %v1755
        %v1762 = vmul.f32 %v1632, %v1755
        %v1763 = vmul.f32 %v1633, %v1759
        %v1764 = vmul.f32 %v1634, %v1759
        %v1765 = vadd.f32 %v1749, %v1761
        %v1766 = vadd.f32 %v1750, %v1762
        %v1767 = vadd.f32 %v1751, %v1763
        %v1768 = vadd.f32 %v1752, %v1764
        %1769 = vset.pattern.permute.xlu0 4
        %1770 = vperm.xlu0 %1769, %v903
        %v1771 = vpop.permute.xlu0 %1770
        %1773 = vset.pattern.permute.xlu0 4
        %1774 = vperm.xlu0 %1773, %v904
        %v1775 = vpop.permute.xlu0 %1774
        %v1777 = vmul.f32 %v1655, %v1771
        %v1778 = vmul.f32 %v1656, %v1771
        %v1779 = vmul.f32 %v1657, %v1775
        %v1780 = vmul.f32 %v1658, %v1775
        %v1781 = vadd.f32 %v1765, %v1777
        %v1782 = vadd.f32 %v1766, %v1778
        %v1783 = vadd.f32 %v1767, %v1779
        %v1784 = vadd.f32 %v1768, %v1780
        %1785 = vset.pattern.permute.xlu0 5
        %1786 = vperm.xlu0 %1785, %v903
        %v1787 = vpop.permute.xlu0 %1786
        %1789 = vset.pattern.permute.xlu0 5
        %1790 = vperm.xlu0 %1789, %v904
        %v1791 = vpop.permute.xlu0 %1790
        %v1793 = vmul.f32 %v1679, %v1787
        %v1794 = vmul.f32 %v1680, %v1787
        %v1795 = vmul.f32 %v1681, %v1791
        %v1796 = vmul.f32 %v1682, %v1791
        %v1797 = vadd.f32 %v1781, %v1793
        %v1798 = vadd.f32 %v1782, %v1794
        %v1799 = vadd.f32 %v1783, %v1795
        %v1800 = vadd.f32 %v1784, %v1796
        %1801 = vset.pattern.permute.xlu0 6
        %1802 = vperm.xlu0 %1801, %v903
        %v1803 = vpop.permute.xlu0 %1802
        %1805 = vset.pattern.permute.xlu0 6
        %1806 = vperm.xlu0 %1805, %v904
        %v1807 = vpop.permute.xlu0 %1806
        %v1809 = vmul.f32 %v1703, %v1803
        %v1810 = vmul.f32 %v1704, %v1803
        %v1811 = vmul.f32 %v1705, %v1807
        %v1812 = vmul.f32 %v1706, %v1807
        %v1813 = vadd.f32 %v1797, %v1809
        %v1814 = vadd.f32 %v1798, %v1810
        %v1815 = vadd.f32 %v1799, %v1811
        %v1816 = vadd.f32 %v1800, %v1812
        %1817 = vrot.lane.b32.xlu0 %v1813, 16
        %v1818 = vpop.permute.xlu0 %1817
        %1819 = vrot.lane.b32.xlu0 %v1815, 16
        %v1820 = vpop.permute.xlu0 %1819
        %1821 = vrot.lane.b32.xlu0 %v1814, 16
        %v1822 = vpop.permute.xlu0 %1821
        %1823 = vrot.lane.b32.xlu0 %v1816, 16
        %v1824 = vpop.permute.xlu0 %1823
        %v1825 = vsel %vm1220, %v1818, %v1822
        %v1826 = vsel %vm1220, %v1820, %v1824
        %v1827 = vsel %vm1220, %v1822, %v1818
        %v1828 = vsel %vm1220, %v1824, %v1820
        %v1829 = vld [vmem:[%s9] sm:$0x3]
        %v1831 = vperm.slane %v1829, 0
        %v1832 = vperm.slane %v1829, 1
        %v1835 = vmul.f32 %v1825, %v1831
        %v1836 = vmul.f32 %v1827, %v1832
        %v1837 = vmul.f32 %v1826, %v1831
        %v1838 = vmul.f32 %v1828, %v1832
        %1839 = vset.pattern.permute.xlu0 7
        %1840 = vperm.xlu0 %1839, %v903
        %v1841 = vpop.permute.xlu0 %1840
        %1843 = vset.pattern.permute.xlu0 7
        %1844 = vperm.xlu0 %1843, %v904
        %v1845 = vpop.permute.xlu0 %1844
        %v1847 = vmul.f32 %v1572, %v1841
        %v1848 = vmul.f32 %v1573, %v1841
        %v1849 = vmul.f32 %v1574, %v1845
        %v1850 = vmul.f32 %v1575, %v1845
        %1851 = vset.pattern.permute.xlu0 8
        %1852 = vperm.xlu0 %1851, %v903
        %v1853 = vpop.permute.xlu0 %1852
        %1855 = vset.pattern.permute.xlu0 8
        %1856 = vperm.xlu0 %1855, %v904
        %v1857 = vpop.permute.xlu0 %1856
        %v1859 = vmul.f32 %v1596, %v1853
        %v1860 = vmul.f32 %v1597, %v1853
        %v1861 = vmul.f32 %v1598, %v1857
        %v1862 = vmul.f32 %v1599, %v1857
        %v1863 = vadd.f32 %v1847, %v1859
        %v1864 = vadd.f32 %v1848, %v1860
        %v1865 = vadd.f32 %v1849, %v1861
        %v1866 = vadd.f32 %v1850, %v1862
        %1867 = vset.pattern.permute.xlu0 9
        %1868 = vperm.xlu0 %1867, %v903
        %v1869 = vpop.permute.xlu0 %1868
        %1871 = vset.pattern.permute.xlu0 9
        %1872 = vperm.xlu0 %1871, %v904
        %v1873 = vpop.permute.xlu0 %1872
        %v1875 = vmul.f32 %v1620, %v1869
        %v1876 = vmul.f32 %v1621, %v1869
        %v1877 = vmul.f32 %v1622, %v1873
        %v1878 = vmul.f32 %v1623, %v1873
        %v1879 = vadd.f32 %v1863, %v1875
        %v1880 = vadd.f32 %v1864, %v1876
        %v1881 = vadd.f32 %v1865, %v1877
        %v1882 = vadd.f32 %v1866, %v1878
        %1883 = vset.pattern.permute.xlu0 10
        %1884 = vperm.xlu0 %1883, %v903
        %v1885 = vpop.permute.xlu0 %1884
        %1887 = vset.pattern.permute.xlu0 10
        %1888 = vperm.xlu0 %1887, %v904
        %v1889 = vpop.permute.xlu0 %1888
        %v1891 = vmul.f32 %v1631, %v1885
        %v1892 = vmul.f32 %v1632, %v1885
        %v1893 = vmul.f32 %v1633, %v1889
        %v1894 = vmul.f32 %v1634, %v1889
        %v1895 = vadd.f32 %v1879, %v1891
        %v1896 = vadd.f32 %v1880, %v1892
        %v1897 = vadd.f32 %v1881, %v1893
        %v1898 = vadd.f32 %v1882, %v1894
        %1899 = vset.pattern.permute.xlu0 11
        %1900 = vperm.xlu0 %1899, %v903
        %v1901 = vpop.permute.xlu0 %1900
        %1903 = vset.pattern.permute.xlu0 11
        %1904 = vperm.xlu0 %1903, %v904
        %v1905 = vpop.permute.xlu0 %1904
        %v1907 = vmul.f32 %v1655, %v1901
        %v1908 = vmul.f32 %v1656, %v1901
        %v1909 = vmul.f32 %v1657, %v1905
        %v1910 = vmul.f32 %v1658, %v1905
        %v1911 = vadd.f32 %v1895, %v1907
        %v1912 = vadd.f32 %v1896, %v1908
        %v1913 = vadd.f32 %v1897, %v1909
        %v1914 = vadd.f32 %v1898, %v1910
        %1915 = vset.pattern.permute.xlu0 12
        %1916 = vperm.xlu0 %1915, %v903
        %v1917 = vpop.permute.xlu0 %1916
        %1919 = vset.pattern.permute.xlu0 12
        %1920 = vperm.xlu0 %1919, %v904
        %v1921 = vpop.permute.xlu0 %1920
        %v1923 = vmul.f32 %v1679, %v1917
        %v1924 = vmul.f32 %v1680, %v1917
        %v1925 = vmul.f32 %v1681, %v1921
        %v1926 = vmul.f32 %v1682, %v1921
        %v1927 = vadd.f32 %v1911, %v1923
        %v1928 = vadd.f32 %v1912, %v1924
        %v1929 = vadd.f32 %v1913, %v1925
        %v1930 = vadd.f32 %v1914, %v1926
        %1931 = vset.pattern.permute.xlu0 13
        %1932 = vperm.xlu0 %1931, %v903
        %v1933 = vpop.permute.xlu0 %1932
        %1935 = vset.pattern.permute.xlu0 13
        %1936 = vperm.xlu0 %1935, %v904
        %v1937 = vpop.permute.xlu0 %1936
        %v1939 = vmul.f32 %v1703, %v1933
        %v1940 = vmul.f32 %v1704, %v1933
        %v1941 = vmul.f32 %v1705, %v1937
        %v1942 = vmul.f32 %v1706, %v1937
        %v1943 = vadd.f32 %v1927, %v1939
        %v1944 = vadd.f32 %v1928, %v1940
        %v1945 = vadd.f32 %v1929, %v1941
        %v1946 = vadd.f32 %v1930, %v1942
        %1947 = vrot.lane.b32.xlu0 %v1943, 96
        %v1948 = vpop.permute.xlu0 %1947
        %1949 = vrot.lane.b32.xlu0 %v1945, 96
        %v1950 = vpop.permute.xlu0 %1949
        %1951 = vrot.lane.b32.xlu0 %v1944, 96
        %v1952 = vpop.permute.xlu0 %1951
        %1953 = vrot.lane.b32.xlu0 %v1946, 96
        %v1954 = vpop.permute.xlu0 %1953
        %v1955 = vsel %vm1519, %v1948, %v1952
        %v1956 = vsel %vm1519, %v1950, %v1954
        %v1957 = vsel %vm1519, %v1952, %v1948
        %v1958 = vsel %vm1519, %v1954, %v1950
        %s1959 = scalar_lea.vmem %s9, 2
        %v1960 = vld [vmem:[%s1959] sm:$0x3]
        %v1962 = vperm.slane %v1960, 0
        %v1963 = vperm.slane %v1960, 1
        %v1966 = vmul.f32 %v1957, %v1962
        %v1967 = vmul.f32 %v1955, %v1963
        %v1968 = vmul.f32 %v1958, %v1962
        %v1969 = vmul.f32 %v1956, %v1963
        %v1970 = vadd.f32 %v1835, %v1966
        %v1971 = vadd.f32 %v1836, %v1967
        %v1972 = vadd.f32 %v1837, %v1968
        %v1973 = vadd.f32 %v1838, %v1969
        %1974 = vset.pattern.permute.xlu0 14
        %1975 = vperm.xlu0 %1974, %v903
        %v1976 = vpop.permute.xlu0 %1975
        %1978 = vset.pattern.permute.xlu0 14
        %1979 = vperm.xlu0 %1978, %v904
        %v1980 = vpop.permute.xlu0 %1979
        %v1982 = vmul.f32 %v1572, %v1976
        %v1983 = vmul.f32 %v1573, %v1976
        %v1984 = vmul.f32 %v1574, %v1980
        %v1985 = vmul.f32 %v1575, %v1980
        %1986 = vset.pattern.permute.xlu0 15
        %1987 = vperm.xlu0 %1986, %v903
        %v1988 = vpop.permute.xlu0 %1987
        %1990 = vset.pattern.permute.xlu0 15
        %1991 = vperm.xlu0 %1990, %v904
        %v1992 = vpop.permute.xlu0 %1991
        %v1994 = vmul.f32 %v1596, %v1988
        %v1995 = vmul.f32 %v1597, %v1988
        %v1996 = vmul.f32 %v1598, %v1992
        %v1997 = vmul.f32 %v1599, %v1992
        %v1998 = vadd.f32 %v1982, %v1994
        %v1999 = vadd.f32 %v1983, %v1995
        %v2000 = vadd.f32 %v1984, %v1996
        %v2001 = vadd.f32 %v1985, %v1997
        %2002 = vset.pattern.permute.xlu0 16
        %2003 = vperm.xlu0 %2002, %v903
        %v2004 = vpop.permute.xlu0 %2003
        %2006 = vset.pattern.permute.xlu0 16
        %2007 = vperm.xlu0 %2006, %v904
        %v2008 = vpop.permute.xlu0 %2007
        %v2010 = vmul.f32 %v1620, %v2004
        %v2011 = vmul.f32 %v1621, %v2004
        %v2012 = vmul.f32 %v1622, %v2008
        %v2013 = vmul.f32 %v1623, %v2008
        %v2014 = vadd.f32 %v1998, %v2010
        %v2015 = vadd.f32 %v1999, %v2011
        %v2016 = vadd.f32 %v2000, %v2012
        %v2017 = vadd.f32 %v2001, %v2013
        %2018 = vset.pattern.permute.xlu0 17
        %2019 = vperm.xlu0 %2018, %v903
        %v2020 = vpop.permute.xlu0 %2019
        %2022 = vset.pattern.permute.xlu0 17
        %2023 = vperm.xlu0 %2022, %v904
        %v2024 = vpop.permute.xlu0 %2023
        %v2026 = vmul.f32 %v1631, %v2020
        %v2027 = vmul.f32 %v1632, %v2020
        %v2028 = vmul.f32 %v1633, %v2024
        %v2029 = vmul.f32 %v1634, %v2024
        %v2030 = vadd.f32 %v2014, %v2026
        %v2031 = vadd.f32 %v2015, %v2027
        %v2032 = vadd.f32 %v2016, %v2028
        %v2033 = vadd.f32 %v2017, %v2029
        %2034 = vset.pattern.permute.xlu0 18
        %2035 = vperm.xlu0 %2034, %v903
        %v2036 = vpop.permute.xlu0 %2035
        %2038 = vset.pattern.permute.xlu0 18
        %2039 = vperm.xlu0 %2038, %v904
        %v2040 = vpop.permute.xlu0 %2039
        %v2042 = vmul.f32 %v1655, %v2036
        %v2043 = vmul.f32 %v1656, %v2036
        %v2044 = vmul.f32 %v1657, %v2040
        %v2045 = vmul.f32 %v1658, %v2040
        %v2046 = vadd.f32 %v2030, %v2042
        %v2047 = vadd.f32 %v2031, %v2043
        %v2048 = vadd.f32 %v2032, %v2044
        %v2049 = vadd.f32 %v2033, %v2045
        %2050 = vset.pattern.permute.xlu0 19
        %2051 = vperm.xlu0 %2050, %v903
        %v2052 = vpop.permute.xlu0 %2051
        %2054 = vset.pattern.permute.xlu0 19
        %2055 = vperm.xlu0 %2054, %v904
        %v2056 = vpop.permute.xlu0 %2055
        %v2058 = vmul.f32 %v1679, %v2052
        %v2059 = vmul.f32 %v1680, %v2052
        %v2060 = vmul.f32 %v1681, %v2056
        %v2061 = vmul.f32 %v1682, %v2056
        %v2062 = vadd.f32 %v2046, %v2058
        %v2063 = vadd.f32 %v2047, %v2059
        %v2064 = vadd.f32 %v2048, %v2060
        %v2065 = vadd.f32 %v2049, %v2061
        %2066 = vset.pattern.permute.xlu0 20
        %2067 = vperm.xlu0 %2066, %v903
        %v2068 = vpop.permute.xlu0 %2067
        %2070 = vset.pattern.permute.xlu0 20
        %2071 = vperm.xlu0 %2070, %v904
        %v2072 = vpop.permute.xlu0 %2071
        %v2074 = vmul.f32 %v1703, %v2068
        %v2075 = vmul.f32 %v1704, %v2068
        %v2076 = vmul.f32 %v1705, %v2072
        %v2077 = vmul.f32 %v1706, %v2072
        %v2078 = vadd.f32 %v2062, %v2074
        %v2079 = vadd.f32 %v2063, %v2075
        %v2080 = vadd.f32 %v2064, %v2076
        %v2081 = vadd.f32 %v2065, %v2077
        %2082 = vrot.lane.b32.xlu0 %v2078, 48
        %v2083 = vpop.permute.xlu0 %2082
        %2084 = vrot.lane.b32.xlu0 %v2080, 48
        %v2085 = vpop.permute.xlu0 %2084
        %2086 = vrot.lane.b32.xlu0 %v2079, 48
        %v2087 = vpop.permute.xlu0 %2086
        %2088 = vrot.lane.b32.xlu0 %v2081, 48
        %v2089 = vpop.permute.xlu0 %2088
        %vm2090 = vcmp.lt.s32.totalorder %v936, 48
        %v2091 = vsel %vm2090, %v2083, %v2087
        %v2092 = vsel %vm2090, %v2085, %v2089
        %v2093 = vsel %vm2090, %v2087, %v2083
        %v2094 = vsel %vm2090, %v2089, %v2085
        %s2095 = scalar_lea.vmem %s9, 4
        %v2096 = vld [vmem:[%s2095] sm:$0x3]
        %v2098 = vperm.slane %v2096, 0
        %v2099 = vperm.slane %v2096, 1
        %v2102 = vmul.f32 %v2093, %v2098
        %v2103 = vmul.f32 %v2091, %v2099
        %v2104 = vmul.f32 %v2094, %v2098
        %v2105 = vmul.f32 %v2092, %v2099
        %v2106 = vadd.f32 %v1970, %v2102
        %v2107 = vadd.f32 %v1971, %v2103
        %v2108 = vadd.f32 %v1972, %v2104
        %v2109 = vadd.f32 %v1973, %v2105
        %2110 = vset.pattern.permute.xlu0 21
        %2111 = vperm.xlu0 %2110, %v903
        %v2112 = vpop.permute.xlu0 %2111
        %2114 = vset.pattern.permute.xlu0 21
        %2115 = vperm.xlu0 %2114, %v904
        %v2116 = vpop.permute.xlu0 %2115
        %v2118 = vmul.f32 %v1572, %v2112
        %v2119 = vmul.f32 %v1573, %v2112
        %v2120 = vmul.f32 %v1574, %v2116
        %v2121 = vmul.f32 %v1575, %v2116
        %2122 = vset.pattern.permute.xlu0 22
        %2123 = vperm.xlu0 %2122, %v903
        %v2124 = vpop.permute.xlu0 %2123
        %2126 = vset.pattern.permute.xlu0 22
        %2127 = vperm.xlu0 %2126, %v904
        %v2128 = vpop.permute.xlu0 %2127
        %v2130 = vmul.f32 %v1596, %v2124
        %v2131 = vmul.f32 %v1597, %v2124
        %v2132 = vmul.f32 %v1598, %v2128
        %v2133 = vmul.f32 %v1599, %v2128
        %v2134 = vadd.f32 %v2118, %v2130
        %v2135 = vadd.f32 %v2119, %v2131
        %v2136 = vadd.f32 %v2120, %v2132
        %v2137 = vadd.f32 %v2121, %v2133
        %2138 = vset.pattern.permute.xlu0 23
        %2139 = vperm.xlu0 %2138, %v903
        %v2140 = vpop.permute.xlu0 %2139
        %2142 = vset.pattern.permute.xlu0 23
        %2143 = vperm.xlu0 %2142, %v904
        %v2144 = vpop.permute.xlu0 %2143
        %v2146 = vmul.f32 %v1620, %v2140
        %v2147 = vmul.f32 %v1621, %v2140
        %v2148 = vmul.f32 %v1622, %v2144
        %v2149 = vmul.f32 %v1623, %v2144
        %v2150 = vadd.f32 %v2134, %v2146
        %v2151 = vadd.f32 %v2135, %v2147
        %v2152 = vadd.f32 %v2136, %v2148
        %v2153 = vadd.f32 %v2137, %v2149
        %2154 = vset.pattern.permute.xlu0 24
        %2155 = vperm.xlu0 %2154, %v903
        %v2156 = vpop.permute.xlu0 %2155
        %2158 = vset.pattern.permute.xlu0 24
        %2159 = vperm.xlu0 %2158, %v904
        %v2160 = vpop.permute.xlu0 %2159
        %v2162 = vmul.f32 %v1631, %v2156
        %v2163 = vmul.f32 %v1632, %v2156
        %v2164 = vmul.f32 %v1633, %v2160
        %v2165 = vmul.f32 %v1634, %v2160
        %v2166 = vadd.f32 %v2150, %v2162
        %v2167 = vadd.f32 %v2151, %v2163
        %v2168 = vadd.f32 %v2152, %v2164
        %v2169 = vadd.f32 %v2153, %v2165
        %2170 = vset.pattern.permute.xlu0 25
        %2171 = vperm.xlu0 %2170, %v903
        %v2172 = vpop.permute.xlu0 %2171
        %2174 = vset.pattern.permute.xlu0 25
        %2175 = vperm.xlu0 %2174, %v904
        %v2176 = vpop.permute.xlu0 %2175
        %v2178 = vmul.f32 %v1655, %v2172
        %v2179 = vmul.f32 %v1656, %v2172
        %v2180 = vmul.f32 %v1657, %v2176
        %v2181 = vmul.f32 %v1658, %v2176
        %v2182 = vadd.f32 %v2166, %v2178
        %v2183 = vadd.f32 %v2167, %v2179
        %v2184 = vadd.f32 %v2168, %v2180
        %v2185 = vadd.f32 %v2169, %v2181
        %2186 = vset.pattern.permute.xlu0 26
        %2187 = vperm.xlu0 %2186, %v903
        %v2188 = vpop.permute.xlu0 %2187
        %2190 = vset.pattern.permute.xlu0 26
        %2191 = vperm.xlu0 %2190, %v904
        %v2192 = vpop.permute.xlu0 %2191
        %v2194 = vmul.f32 %v1679, %v2188
        %v2195 = vmul.f32 %v1680, %v2188
        %v2196 = vmul.f32 %v1681, %v2192
        %v2197 = vmul.f32 %v1682, %v2192
        %v2198 = vadd.f32 %v2182, %v2194
        %v2199 = vadd.f32 %v2183, %v2195
        %v2200 = vadd.f32 %v2184, %v2196
        %v2201 = vadd.f32 %v2185, %v2197
        %2202 = vset.pattern.permute.xlu0 27
        %2203 = vperm.xlu0 %2202, %v903
        %v2204 = vpop.permute.xlu0 %2203
        %2206 = vset.pattern.permute.xlu0 27
        %2207 = vperm.xlu0 %2206, %v904
        %v2208 = vpop.permute.xlu0 %2207
        %v2210 = vmul.f32 %v1703, %v2204
        %v2211 = vmul.f32 %v1704, %v2204
        %v2212 = vmul.f32 %v1705, %v2208
        %v2213 = vmul.f32 %v1706, %v2208
        %v2214 = vadd.f32 %v2198, %v2210
        %v2215 = vadd.f32 %v2199, %v2211
        %v2216 = vadd.f32 %v2200, %v2212
        %v2217 = vadd.f32 %v2201, %v2213
        %s2218 = scalar_lea.vmem %s9, 6
        %v2219 = vld [vmem:[%s2218] sm:$0x3]
        %v2221 = vperm.slane %v2219, 0
        %v2222 = vperm.slane %v2219, 1
        %v2225 = vmul.f32 %v2214, %v2221
        %v2226 = vmul.f32 %v2215, %v2222
        %v2227 = vmul.f32 %v2216, %v2221
        %v2228 = vmul.f32 %v2217, %v2222
        %v2229 = vadd.f32 %v2106, %v2225
        %v2230 = vadd.f32 %v2107, %v2226
        %v2231 = vadd.f32 %v2108, %v2227
        %v2232 = vadd.f32 %v2109, %v2228
        %2233 = vset.pattern.permute.xlu0 28
        %2234 = vperm.xlu0 %2233, %v903
        %v2235 = vpop.permute.xlu0 %2234
        %2237 = vset.pattern.permute.xlu0 28
        %2238 = vperm.xlu0 %2237, %v904
        %v2239 = vpop.permute.xlu0 %2238
        %v2241 = vmul.f32 %v1572, %v2235
        %v2242 = vmul.f32 %v1573, %v2235
        %v2243 = vmul.f32 %v1574, %v2239
        %v2244 = vmul.f32 %v1575, %v2239
        %2245 = vset.pattern.permute.xlu0 29
        %2246 = vperm.xlu0 %2245, %v903
        %v2247 = vpop.permute.xlu0 %2246
        %2249 = vset.pattern.permute.xlu0 29
        %2250 = vperm.xlu0 %2249, %v904
        %v2251 = vpop.permute.xlu0 %2250
        %v2253 = vmul.f32 %v1596, %v2247
        %v2254 = vmul.f32 %v1597, %v2247
        %v2255 = vmul.f32 %v1598, %v2251
        %v2256 = vmul.f32 %v1599, %v2251
        %v2257 = vadd.f32 %v2241, %v2253
        %v2258 = vadd.f32 %v2242, %v2254
        %v2259 = vadd.f32 %v2243, %v2255
        %v2260 = vadd.f32 %v2244, %v2256
        %2261 = vset.pattern.permute.xlu0 30
        %2262 = vperm.xlu0 %2261, %v903
        %v2263 = vpop.permute.xlu0 %2262
        %2265 = vset.pattern.permute.xlu0 30
        %2266 = vperm.xlu0 %2265, %v904
        %v2267 = vpop.permute.xlu0 %2266
        %v2269 = vmul.f32 %v1620, %v2263
        %v2270 = vmul.f32 %v1621, %v2263
        %v2271 = vmul.f32 %v1622, %v2267
        %v2272 = vmul.f32 %v1623, %v2267
        %v2273 = vadd.f32 %v2257, %v2269
        %v2274 = vadd.f32 %v2258, %v2270
        %v2275 = vadd.f32 %v2259, %v2271
        %v2276 = vadd.f32 %v2260, %v2272
        %2277 = vset.pattern.permute.xlu0 31
        %2278 = vperm.xlu0 %2277, %v903
        %v2279 = vpop.permute.xlu0 %2278
        %2281 = vset.pattern.permute.xlu0 31
        %2282 = vperm.xlu0 %2281, %v904
        %v2283 = vpop.permute.xlu0 %2282
        %v2285 = vmul.f32 %v1631, %v2279
        %v2286 = vmul.f32 %v1632, %v2279
        %v2287 = vmul.f32 %v1633, %v2283
        %v2288 = vmul.f32 %v1634, %v2283
        %v2289 = vadd.f32 %v2273, %v2285
        %v2290 = vadd.f32 %v2274, %v2286
        %v2291 = vadd.f32 %v2275, %v2287
        %v2292 = vadd.f32 %v2276, %v2288
        %2293 = vset.pattern.permute.xlu0 32
        %2294 = vperm.xlu0 %2293, %v903
        %v2295 = vpop.permute.xlu0 %2294
        %2297 = vset.pattern.permute.xlu0 32
        %2298 = vperm.xlu0 %2297, %v904
        %v2299 = vpop.permute.xlu0 %2298
        %v2301 = vmul.f32 %v1655, %v2295
        %v2302 = vmul.f32 %v1656, %v2295
        %v2303 = vmul.f32 %v1657, %v2299
        %v2304 = vmul.f32 %v1658, %v2299
        %v2305 = vadd.f32 %v2289, %v2301
        %v2306 = vadd.f32 %v2290, %v2302
        %v2307 = vadd.f32 %v2291, %v2303
        %v2308 = vadd.f32 %v2292, %v2304
        %2309 = vset.pattern.permute.xlu0 33
        %2310 = vperm.xlu0 %2309, %v903
        %v2311 = vpop.permute.xlu0 %2310
        %2313 = vset.pattern.permute.xlu0 33
        %2314 = vperm.xlu0 %2313, %v904
        %v2315 = vpop.permute.xlu0 %2314
        %v2317 = vmul.f32 %v1679, %v2311
        %v2318 = vmul.f32 %v1680, %v2311
        %v2319 = vmul.f32 %v1681, %v2315
        %v2320 = vmul.f32 %v1682, %v2315
        %v2321 = vadd.f32 %v2305, %v2317
        %v2322 = vadd.f32 %v2306, %v2318
        %v2323 = vadd.f32 %v2307, %v2319
        %v2324 = vadd.f32 %v2308, %v2320
        %2325 = vset.pattern.permute.xlu0 34
        %2326 = vperm.xlu0 %2325, %v903
        %v2327 = vpop.permute.xlu0 %2326
        %2329 = vset.pattern.permute.xlu0 34
        %2330 = vperm.xlu0 %2329, %v904
        %v2331 = vpop.permute.xlu0 %2330
        %v2333 = vmul.f32 %v1703, %v2327
        %v2334 = vmul.f32 %v1704, %v2327
        %v2335 = vmul.f32 %v1705, %v2331
        %v2336 = vmul.f32 %v1706, %v2331
        %v2337 = vadd.f32 %v2321, %v2333
        %v2338 = vadd.f32 %v2322, %v2334
        %v2339 = vadd.f32 %v2323, %v2335
        %v2340 = vadd.f32 %v2324, %v2336
        %2341 = vrot.lane.b32.xlu0 %v2337, 80
        %v2342 = vpop.permute.xlu0 %2341
        %2343 = vrot.lane.b32.xlu0 %v2339, 80
        %v2344 = vpop.permute.xlu0 %2343
        %2345 = vrot.lane.b32.xlu0 %v2338, 80
        %v2346 = vpop.permute.xlu0 %2345
        %2347 = vrot.lane.b32.xlu0 %v2340, 80
        %v2348 = vpop.permute.xlu0 %2347
        %vm2349 = vcmp.lt.s32.totalorder %v936, 80
        %v2350 = vsel %vm2349, %v2342, %v2346
        %v2351 = vsel %vm2349, %v2344, %v2348
        %v2352 = vsel %vm2349, %v2346, %v2342
        %v2353 = vsel %vm2349, %v2348, %v2344
        %s2354 = scalar_lea.vmem %s9, 8
        %v2355 = vld [vmem:[%s2354] sm:$0x3]
        %v2357 = vperm.slane %v2355, 0
        %v2358 = vperm.slane %v2355, 1
        %v2361 = vmul.f32 %v2350, %v2357
        %v2362 = vmul.f32 %v2352, %v2358
        %v2363 = vmul.f32 %v2351, %v2357
        %v2364 = vmul.f32 %v2353, %v2358
        %v2365 = vadd.f32 %v2229, %v2361
        %v2366 = vadd.f32 %v2230, %v2362
        %v2367 = vadd.f32 %v2231, %v2363
        %v2368 = vadd.f32 %v2232, %v2364
        %2369 = vset.pattern.permute.xlu0 35
        %2370 = vperm.xlu0 %2369, %v903
        %v2371 = vpop.permute.xlu0 %2370
        %2373 = vset.pattern.permute.xlu0 35
        %2374 = vperm.xlu0 %2373, %v904
        %v2375 = vpop.permute.xlu0 %2374
        %v2377 = vmul.f32 %v1572, %v2371
        %v2378 = vmul.f32 %v1573, %v2371
        %v2379 = vmul.f32 %v1574, %v2375
        %v2380 = vmul.f32 %v1575, %v2375
        %2381 = vset.pattern.permute.xlu0 36
        %2382 = vperm.xlu0 %2381, %v903
        %v2383 = vpop.permute.xlu0 %2382
        %2385 = vset.pattern.permute.xlu0 36
        %2386 = vperm.xlu0 %2385, %v904
        %v2387 = vpop.permute.xlu0 %2386
        %v2389 = vmul.f32 %v1596, %v2383
        %v2390 = vmul.f32 %v1597, %v2383
        %v2391 = vmul.f32 %v1598, %v2387
        %v2392 = vmul.f32 %v1599, %v2387
        %v2393 = vadd.f32 %v2377, %v2389
        %v2394 = vadd.f32 %v2378, %v2390
        %v2395 = vadd.f32 %v2379, %v2391
        %v2396 = vadd.f32 %v2380, %v2392
        %2397 = vset.pattern.permute.xlu0 37
        %2398 = vperm.xlu0 %2397, %v903
        %v2399 = vpop.permute.xlu0 %2398
        %2401 = vset.pattern.permute.xlu0 37
        %2402 = vperm.xlu0 %2401, %v904
        %v2403 = vpop.permute.xlu0 %2402
        %v2405 = vmul.f32 %v1620, %v2399
        %v2406 = vmul.f32 %v1621, %v2399
        %v2407 = vmul.f32 %v1622, %v2403
        %v2408 = vmul.f32 %v1623, %v2403
        %v2409 = vadd.f32 %v2393, %v2405
        %v2410 = vadd.f32 %v2394, %v2406
        %v2411 = vadd.f32 %v2395, %v2407
        %v2412 = vadd.f32 %v2396, %v2408
        %2413 = vset.pattern.permute.xlu0 38
        %2414 = vperm.xlu0 %2413, %v903
        %v2415 = vpop.permute.xlu0 %2414
        %2417 = vset.pattern.permute.xlu0 38
        %2418 = vperm.xlu0 %2417, %v904
        %v2419 = vpop.permute.xlu0 %2418
        %v2421 = vmul.f32 %v1631, %v2415
        %v2422 = vmul.f32 %v1632, %v2415
        %v2423 = vmul.f32 %v1633, %v2419
        %v2424 = vmul.f32 %v1634, %v2419
        %v2425 = vadd.f32 %v2409, %v2421
        %v2426 = vadd.f32 %v2410, %v2422
        %v2427 = vadd.f32 %v2411, %v2423
        %v2428 = vadd.f32 %v2412, %v2424
        %2429 = vset.pattern.permute.xlu0 39
        %2430 = vperm.xlu0 %2429, %v903
        %v2431 = vpop.permute.xlu0 %2430
        %2433 = vset.pattern.permute.xlu0 39
        %2434 = vperm.xlu0 %2433, %v904
        %v2435 = vpop.permute.xlu0 %2434
        %v2437 = vmul.f32 %v1655, %v2431
        %v2438 = vmul.f32 %v1656, %v2431
        %v2439 = vmul.f32 %v1657, %v2435
        %v2440 = vmul.f32 %v1658, %v2435
        %v2441 = vadd.f32 %v2425, %v2437
        %v2442 = vadd.f32 %v2426, %v2438
        %v2443 = vadd.f32 %v2427, %v2439
        %v2444 = vadd.f32 %v2428, %v2440
        %2445 = vset.pattern.permute.xlu0 40
        %2446 = vperm.xlu0 %2445, %v903
        %v2447 = vpop.permute.xlu0 %2446
        %2449 = vset.pattern.permute.xlu0 40
        %2450 = vperm.xlu0 %2449, %v904
        %v2451 = vpop.permute.xlu0 %2450
        %v2453 = vmul.f32 %v1679, %v2447
        %v2454 = vmul.f32 %v1680, %v2447
        %v2455 = vmul.f32 %v1681, %v2451
        %v2456 = vmul.f32 %v1682, %v2451
        %v2457 = vadd.f32 %v2441, %v2453
        %v2458 = vadd.f32 %v2442, %v2454
        %v2459 = vadd.f32 %v2443, %v2455
        %v2460 = vadd.f32 %v2444, %v2456
        %2461 = vset.pattern.permute.xlu0 41
        %2462 = vperm.xlu0 %2461, %v903
        %v2463 = vpop.permute.xlu0 %2462
        %2465 = vset.pattern.permute.xlu0 41
        %2466 = vperm.xlu0 %2465, %v904
        %v2467 = vpop.permute.xlu0 %2466
        %v2469 = vmul.f32 %v1703, %v2463
        %v2470 = vmul.f32 %v1704, %v2463
        %v2471 = vmul.f32 %v1705, %v2467
        %v2472 = vmul.f32 %v1706, %v2467
        %v2473 = vadd.f32 %v2457, %v2469
        %v2474 = vadd.f32 %v2458, %v2470
        %v2475 = vadd.f32 %v2459, %v2471
        %v2476 = vadd.f32 %v2460, %v2472
        %2477 = vrot.lane.b32.xlu0 %v2473, 32
        %v2478 = vpop.permute.xlu0 %2477
        %2479 = vrot.lane.b32.xlu0 %v2475, 32
        %v2480 = vpop.permute.xlu0 %2479
        %2481 = vrot.lane.b32.xlu0 %v2474, 32
        %v2482 = vpop.permute.xlu0 %2481
        %2483 = vrot.lane.b32.xlu0 %v2476, 32
        %v2484 = vpop.permute.xlu0 %2483
        %v2485 = vsel %vm1121, %v2478, %v2482
        %v2486 = vsel %vm1121, %v2480, %v2484
        %v2487 = vsel %vm1121, %v2482, %v2478
        %v2488 = vsel %vm1121, %v2484, %v2480
        %s2489 = scalar_lea.vmem %s9, 10
        %v2490 = vld [vmem:[%s2489] sm:$0x3]
        %v2492 = vperm.slane %v2490, 0
        %v2493 = vperm.slane %v2490, 1
        %v2496 = vmul.f32 %v2485, %v2492
        %v2497 = vmul.f32 %v2487, %v2493
        %v2498 = vmul.f32 %v2486, %v2492
        %v2499 = vmul.f32 %v2488, %v2493
        %v2500 = vadd.f32 %v2365, %v2496
        %v2501 = vadd.f32 %v2366, %v2497
        %v2502 = vadd.f32 %v2367, %v2498
        %v2503 = vadd.f32 %v2368, %v2499
        %2504 = vset.pattern.permute.xlu0 42
        %2505 = vperm.xlu0 %2504, %v903
        %v2506 = vpop.permute.xlu0 %2505
        %2508 = vset.pattern.permute.xlu0 42
        %2509 = vperm.xlu0 %2508, %v904
        %v2510 = vpop.permute.xlu0 %2509
        %v2512 = vmul.f32 %v1572, %v2506
        %v2513 = vmul.f32 %v1573, %v2506
        %v2514 = vmul.f32 %v1574, %v2510
        %v2515 = vmul.f32 %v1575, %v2510
        %2516 = vset.pattern.permute.xlu0 43
        %2517 = vperm.xlu0 %2516, %v903
        %v2518 = vpop.permute.xlu0 %2517
        %2520 = vset.pattern.permute.xlu0 43
        %2521 = vperm.xlu0 %2520, %v904
        %v2522 = vpop.permute.xlu0 %2521
        %v2524 = vmul.f32 %v1596, %v2518
        %v2525 = vmul.f32 %v1597, %v2518
        %v2526 = vmul.f32 %v1598, %v2522
        %v2527 = vmul.f32 %v1599, %v2522
        %v2528 = vadd.f32 %v2512, %v2524
        %v2529 = vadd.f32 %v2513, %v2525
        %v2530 = vadd.f32 %v2514, %v2526
        %v2531 = vadd.f32 %v2515, %v2527
        %2532 = vset.pattern.permute.xlu0 44
        %2533 = vperm.xlu0 %2532, %v903
        %v2534 = vpop.permute.xlu0 %2533
        %2536 = vset.pattern.permute.xlu0 44
        %2537 = vperm.xlu0 %2536, %v904
        %v2538 = vpop.permute.xlu0 %2537
        %v2540 = vmul.f32 %v1620, %v2534
        %v2541 = vmul.f32 %v1621, %v2534
        %v2542 = vmul.f32 %v1622, %v2538
        %v2543 = vmul.f32 %v1623, %v2538
        %v2544 = vadd.f32 %v2528, %v2540
        %v2545 = vadd.f32 %v2529, %v2541
        %v2546 = vadd.f32 %v2530, %v2542
        %v2547 = vadd.f32 %v2531, %v2543
        %2548 = vset.pattern.permute.xlu0 45
        %2549 = vperm.xlu0 %2548, %v903
        %v2550 = vpop.permute.xlu0 %2549
        %2552 = vset.pattern.permute.xlu0 45
        %2553 = vperm.xlu0 %2552, %v904
        %v2554 = vpop.permute.xlu0 %2553
        %v2556 = vmul.f32 %v1631, %v2550
        %v2557 = vmul.f32 %v1632, %v2550
        %v2558 = vmul.f32 %v1633, %v2554
        %v2559 = vmul.f32 %v1634, %v2554
        %v2560 = vadd.f32 %v2544, %v2556
        %v2561 = vadd.f32 %v2545, %v2557
        %v2562 = vadd.f32 %v2546, %v2558
        %v2563 = vadd.f32 %v2547, %v2559
        %2564 = vset.pattern.permute.xlu0 46
        %2565 = vperm.xlu0 %2564, %v903
        %v2566 = vpop.permute.xlu0 %2565
        %2568 = vset.pattern.permute.xlu0 46
        %2569 = vperm.xlu0 %2568, %v904
        %v2570 = vpop.permute.xlu0 %2569
        %v2572 = vmul.f32 %v1655, %v2566
        %v2573 = vmul.f32 %v1656, %v2566
        %v2574 = vmul.f32 %v1657, %v2570
        %v2575 = vmul.f32 %v1658, %v2570
        %v2576 = vadd.f32 %v2560, %v2572
        %v2577 = vadd.f32 %v2561, %v2573
        %v2578 = vadd.f32 %v2562, %v2574
        %v2579 = vadd.f32 %v2563, %v2575
        %2580 = vset.pattern.permute.xlu0 47
        %2581 = vperm.xlu0 %2580, %v903
        %v2582 = vpop.permute.xlu0 %2581
        %2584 = vset.pattern.permute.xlu0 47
        %2585 = vperm.xlu0 %2584, %v904
        %v2586 = vpop.permute.xlu0 %2585
        %v2588 = vmul.f32 %v1679, %v2582
        %v2589 = vmul.f32 %v1680, %v2582
        %v2590 = vmul.f32 %v1681, %v2586
        %v2591 = vmul.f32 %v1682, %v2586
        %v2592 = vadd.f32 %v2576, %v2588
        %v2593 = vadd.f32 %v2577, %v2589
        %v2594 = vadd.f32 %v2578, %v2590
        %v2595 = vadd.f32 %v2579, %v2591
        %2596 = vset.pattern.permute.xlu0 48
        %2597 = vperm.xlu0 %2596, %v903
        %v2598 = vpop.permute.xlu0 %2597
        %2600 = vset.pattern.permute.xlu0 48
        %2601 = vperm.xlu0 %2600, %v904
        %v2602 = vpop.permute.xlu0 %2601
        %v2604 = vmul.f32 %v1703, %v2598
        %v2605 = vmul.f32 %v1704, %v2598
        %v2606 = vmul.f32 %v1705, %v2602
        %v2607 = vmul.f32 %v1706, %v2602
        %v2608 = vadd.f32 %v2592, %v2604
        %v2609 = vadd.f32 %v2593, %v2605
        %v2610 = vadd.f32 %v2594, %v2606
        %v2611 = vadd.f32 %v2595, %v2607
        %2612 = vrot.lane.b32.xlu0 %v2608, 112
        %v2613 = vpop.permute.xlu0 %2612
        %2614 = vrot.lane.b32.xlu0 %v2610, 112
        %v2615 = vpop.permute.xlu0 %2614
        %2616 = vrot.lane.b32.xlu0 %v2609, 112
        %v2617 = vpop.permute.xlu0 %2616
        %2618 = vrot.lane.b32.xlu0 %v2611, 112
        %v2619 = vpop.permute.xlu0 %2618
        %v2620 = vsel %vm1415, %v2613, %v2617
        %v2621 = vsel %vm1415, %v2615, %v2619
        %v2622 = vsel %vm1415, %v2617, %v2613
        %v2623 = vsel %vm1415, %v2619, %v2615
        %s2624 = scalar_lea.vmem %s9, 12
        %v2625 = vld [vmem:[%s2624] sm:$0x3]
        %v2627 = vperm.slane %v2625, 0
        %v2628 = vperm.slane %v2625, 1
        %v2631 = vmul.f32 %v2622, %v2627
        %v2632 = vmul.f32 %v2620, %v2628
        %v2633 = vmul.f32 %v2623, %v2627
        %v2634 = vmul.f32 %v2621, %v2628
        %v2635 = vadd.f32 %v2500, %v2631
        %v2636 = vadd.f32 %v2501, %v2632
        %v2637 = vadd.f32 %v2502, %v2633
        %v2638 = vadd.f32 %v2503, %v2634
        %2640 = vset.pattern.permute.xlu0 0
        %2641 = vperm.xlu0 %2640, %v919
        %v2642 = vpop.permute.xlu0 %2641
        %2645 = vset.pattern.permute.xlu0 0
        %2646 = vperm.xlu0 %2645, %v920
        %v2647 = vpop.permute.xlu0 %2646
        %v2649 = vadd.f32 %v2635, %v2642
        %v2650 = vadd.f32 %v2636, %v2642
        %v2651 = vadd.f32 %v2637, %v2647
        %v2652 = vadd.f32 %v2638, %v2647
        %2653 = vrot.lane.b32.xlu0 %v883, 2
        %v2654 = vpop.permute.xlu0 %2653
        %2655 = vrot.lane.b32.xlu0 %v885, 2
        %v2656 = vpop.permute.xlu0 %2655
        %2657 = vrot.lane.b32.xlu0 %v884, 2
        %v2658 = vpop.permute.xlu0 %2657
        %2659 = vrot.lane.b32.xlu0 %v886, 2
        %v2660 = vpop.permute.xlu0 %2659
        %v2661 = vsel %vm937, %v2654, %v2658
        %v2662 = vsel %vm937, %v2656, %v2660
        %v2663 = vsel %vm937, %v2658, %v2654
        %v2664 = vsel %vm937, %v2660, %v2656
        %v2665 = vmul.f32 %v2663, %v944
        %v2666 = vmul.f32 %v2661, %v945
        %v2667 = vmul.f32 %v2664, %v944
        %v2668 = vmul.f32 %v2662, %v945
        %2669 = vrot.lane.b32.xlu0 %v883, 1
        %v2670 = vpop.permute.xlu0 %2669
        %2671 = vrot.lane.b32.xlu0 %v885, 1
        %v2672 = vpop.permute.xlu0 %2671
        %2673 = vrot.lane.b32.xlu0 %v884, 1
        %v2674 = vpop.permute.xlu0 %2673
        %2675 = vrot.lane.b32.xlu0 %v886, 1
        %v2676 = vpop.permute.xlu0 %2675
        %v2677 = vsel %vm960, %v2670, %v2674
        %v2678 = vsel %vm960, %v2672, %v2676
        %v2679 = vsel %vm960, %v2674, %v2670
        %v2680 = vsel %vm960, %v2676, %v2672
        %v2681 = vmul.f32 %v2679, %v968
        %v2682 = vmul.f32 %v2677, %v969
        %v2683 = vmul.f32 %v2680, %v968
        %v2684 = vmul.f32 %v2678, %v969
        %v2685 = vmul.f32 %v883, %v979
        %v2686 = vmul.f32 %v884, %v980
        %v2687 = vmul.f32 %v885, %v979
        %v2688 = vmul.f32 %v886, %v980
        %2689 = vrot.lane.b32.xlu0 %v883, 127
        %v2690 = vpop.permute.xlu0 %2689
        %2691 = vrot.lane.b32.xlu0 %v885, 127
        %v2692 = vpop.permute.xlu0 %2691
        %2693 = vrot.lane.b32.xlu0 %v884, 127
        %v2694 = vpop.permute.xlu0 %2693
        %2695 = vrot.lane.b32.xlu0 %v886, 127
        %v2696 = vpop.permute.xlu0 %2695
        %v2697 = vsel %vm995, %v2690, %v2694
        %v2698 = vsel %vm995, %v2692, %v2696
        %v2699 = vsel %vm995, %v2694, %v2690
        %v2700 = vsel %vm995, %v2696, %v2692
        %v2701 = vmul.f32 %v2697, %v1003
        %v2702 = vmul.f32 %v2699, %v1004
        %v2703 = vmul.f32 %v2698, %v1003
        %v2704 = vmul.f32 %v2700, %v1004
        %2705 = vrot.lane.b32.xlu0 %v883, 126
        %v2706 = vpop.permute.xlu0 %2705
        %2707 = vrot.lane.b32.xlu0 %v885, 126
        %v2708 = vpop.permute.xlu0 %2707
        %2709 = vrot.lane.b32.xlu0 %v884, 126
        %v2710 = vpop.permute.xlu0 %2709
        %2711 = vrot.lane.b32.xlu0 %v886, 126
        %v2712 = vpop.permute.xlu0 %2711
        %v2713 = vsel %vm1019, %v2706, %v2710
        %v2714 = vsel %vm1019, %v2708, %v2712
        %v2715 = vsel %vm1019, %v2710, %v2706
        %v2716 = vsel %vm1019, %v2712, %v2708
        %v2717 = vmul.f32 %v2713, %v1027
        %v2718 = vmul.f32 %v2715, %v1028
        %v2719 = vmul.f32 %v2714, %v1027
        %v2720 = vmul.f32 %v2716, %v1028
        %2722 = vset.pattern.permute.xlu0 0
        %2723 = vperm.xlu0 %2722, %v897
        %v2724 = vpop.permute.xlu0 %2723
        %2727 = vset.pattern.permute.xlu0 0
        %2728 = vperm.xlu0 %2727, %v898
        %v2729 = vpop.permute.xlu0 %2728
        %v2731 = vmul.f32 %v2665, %v2724
        %v2732 = vmul.f32 %v2666, %v2724
        %v2733 = vmul.f32 %v2667, %v2729
        %v2734 = vmul.f32 %v2668, %v2729
        %2735 = vset.pattern.permute.xlu0 1
        %2736 = vperm.xlu0 %2735, %v897
        %v2737 = vpop.permute.xlu0 %2736
        %2739 = vset.pattern.permute.xlu0 1
        %2740 = vperm.xlu0 %2739, %v898
        %v2741 = vpop.permute.xlu0 %2740
        %v2743 = vmul.f32 %v2681, %v2737
        %v2744 = vmul.f32 %v2682, %v2737
        %v2745 = vmul.f32 %v2683, %v2741
        %v2746 = vmul.f32 %v2684, %v2741
        %v2747 = vadd.f32 %v2731, %v2743
        %v2748 = vadd.f32 %v2732, %v2744
        %v2749 = vadd.f32 %v2733, %v2745
        %v2750 = vadd.f32 %v2734, %v2746
        %2751 = vset.pattern.permute.xlu0 2
        %2752 = vperm.xlu0 %2751, %v897
        %v2753 = vpop.permute.xlu0 %2752
        %2755 = vset.pattern.permute.xlu0 2
        %2756 = vperm.xlu0 %2755, %v898
        %v2757 = vpop.permute.xlu0 %2756
        %v2759 = vmul.f32 %v2685, %v2753
        %v2760 = vmul.f32 %v2686, %v2753
        %v2761 = vmul.f32 %v2687, %v2757
        %v2762 = vmul.f32 %v2688, %v2757
        %v2763 = vadd.f32 %v2747, %v2759
        %v2764 = vadd.f32 %v2748, %v2760
        %v2765 = vadd.f32 %v2749, %v2761
        %v2766 = vadd.f32 %v2750, %v2762
        %2767 = vset.pattern.permute.xlu0 3
        %2768 = vperm.xlu0 %2767, %v897
        %v2769 = vpop.permute.xlu0 %2768
        %2771 = vset.pattern.permute.xlu0 3
        %2772 = vperm.xlu0 %2771, %v898
        %v2773 = vpop.permute.xlu0 %2772
        %v2775 = vmul.f32 %v2701, %v2769
        %v2776 = vmul.f32 %v2702, %v2769
        %v2777 = vmul.f32 %v2703, %v2773
        %v2778 = vmul.f32 %v2704, %v2773
        %v2779 = vadd.f32 %v2763, %v2775
        %v2780 = vadd.f32 %v2764, %v2776
        %v2781 = vadd.f32 %v2765, %v2777
        %v2782 = vadd.f32 %v2766, %v2778
        %2783 = vset.pattern.permute.xlu0 4
        %2784 = vperm.xlu0 %2783, %v897
        %v2785 = vpop.permute.xlu0 %2784
        %2787 = vset.pattern.permute.xlu0 4
        %2788 = vperm.xlu0 %2787, %v898
        %v2789 = vpop.permute.xlu0 %2788
        %v2791 = vmul.f32 %v2717, %v2785
        %v2792 = vmul.f32 %v2718, %v2785
        %v2793 = vmul.f32 %v2719, %v2789
        %v2794 = vmul.f32 %v2720, %v2789
        %v2795 = vadd.f32 %v2779, %v2791
        %v2796 = vadd.f32 %v2780, %v2792
        %v2797 = vadd.f32 %v2781, %v2793
        %v2798 = vadd.f32 %v2782, %v2794
        %2799 = vrot.lane.b32.xlu0 %v2795, 32
        %v2800 = vpop.permute.xlu0 %2799
        %2801 = vrot.lane.b32.xlu0 %v2797, 32
        %v2802 = vpop.permute.xlu0 %2801
        %2803 = vrot.lane.b32.xlu0 %v2796, 32
        %v2804 = vpop.permute.xlu0 %2803
        %2805 = vrot.lane.b32.xlu0 %v2798, 32
        %v2806 = vpop.permute.xlu0 %2805
        %v2807 = vsel %vm1121, %v2800, %v2804
        %v2808 = vsel %vm1121, %v2802, %v2806
        %v2809 = vsel %vm1121, %v2804, %v2800
        %v2810 = vsel %vm1121, %v2806, %v2802
        %v2811 = vmul.f32 %v2809, %v1128
        %v2812 = vmul.f32 %v2807, %v1129
        %v2813 = vmul.f32 %v2810, %v1128
        %v2814 = vmul.f32 %v2808, %v1129
        %2815 = vset.pattern.permute.xlu0 5
        %2816 = vperm.xlu0 %2815, %v897
        %v2817 = vpop.permute.xlu0 %2816
        %2819 = vset.pattern.permute.xlu0 5
        %2820 = vperm.xlu0 %2819, %v898
        %v2821 = vpop.permute.xlu0 %2820
        %v2823 = vmul.f32 %v2665, %v2817
        %v2824 = vmul.f32 %v2666, %v2817
        %v2825 = vmul.f32 %v2667, %v2821
        %v2826 = vmul.f32 %v2668, %v2821
        %2827 = vset.pattern.permute.xlu0 6
        %2828 = vperm.xlu0 %2827, %v897
        %v2829 = vpop.permute.xlu0 %2828
        %2831 = vset.pattern.permute.xlu0 6
        %2832 = vperm.xlu0 %2831, %v898
        %v2833 = vpop.permute.xlu0 %2832
        %v2835 = vmul.f32 %v2681, %v2829
        %v2836 = vmul.f32 %v2682, %v2829
        %v2837 = vmul.f32 %v2683, %v2833
        %v2838 = vmul.f32 %v2684, %v2833
        %v2839 = vadd.f32 %v2823, %v2835
        %v2840 = vadd.f32 %v2824, %v2836
        %v2841 = vadd.f32 %v2825, %v2837
        %v2842 = vadd.f32 %v2826, %v2838
        %2843 = vset.pattern.permute.xlu0 7
        %2844 = vperm.xlu0 %2843, %v897
        %v2845 = vpop.permute.xlu0 %2844
        %2847 = vset.pattern.permute.xlu0 7
        %2848 = vperm.xlu0 %2847, %v898
        %v2849 = vpop.permute.xlu0 %2848
        %v2851 = vmul.f32 %v2685, %v2845
        %v2852 = vmul.f32 %v2686, %v2845
        %v2853 = vmul.f32 %v2687, %v2849
        %v2854 = vmul.f32 %v2688, %v2849
        %v2855 = vadd.f32 %v2839, %v2851
        %v2856 = vadd.f32 %v2840, %v2852
        %v2857 = vadd.f32 %v2841, %v2853
        %v2858 = vadd.f32 %v2842, %v2854
        %2859 = vset.pattern.permute.xlu0 8
        %2860 = vperm.xlu0 %2859, %v897
        %v2861 = vpop.permute.xlu0 %2860
        %2863 = vset.pattern.permute.xlu0 8
        %2864 = vperm.xlu0 %2863, %v898
        %v2865 = vpop.permute.xlu0 %2864
        %v2867 = vmul.f32 %v2701, %v2861
        %v2868 = vmul.f32 %v2702, %v2861
        %v2869 = vmul.f32 %v2703, %v2865
        %v2870 = vmul.f32 %v2704, %v2865
        %v2871 = vadd.f32 %v2855, %v2867
        %v2872 = vadd.f32 %v2856, %v2868
        %v2873 = vadd.f32 %v2857, %v2869
        %v2874 = vadd.f32 %v2858, %v2870
        %2875 = vset.pattern.permute.xlu0 9
        %2876 = vperm.xlu0 %2875, %v897
        %v2877 = vpop.permute.xlu0 %2876
        %2879 = vset.pattern.permute.xlu0 9
        %2880 = vperm.xlu0 %2879, %v898
        %v2881 = vpop.permute.xlu0 %2880
        %v2883 = vmul.f32 %v2717, %v2877
        %v2884 = vmul.f32 %v2718, %v2877
        %v2885 = vmul.f32 %v2719, %v2881
        %v2886 = vmul.f32 %v2720, %v2881
        %v2887 = vadd.f32 %v2871, %v2883
        %v2888 = vadd.f32 %v2872, %v2884
        %v2889 = vadd.f32 %v2873, %v2885
        %v2890 = vadd.f32 %v2874, %v2886
        %2891 = vrot.lane.b32.xlu0 %v2887, 16
        %v2892 = vpop.permute.xlu0 %2891
        %2893 = vrot.lane.b32.xlu0 %v2889, 16
        %v2894 = vpop.permute.xlu0 %2893
        %2895 = vrot.lane.b32.xlu0 %v2888, 16
        %v2896 = vpop.permute.xlu0 %2895
        %2897 = vrot.lane.b32.xlu0 %v2890, 16
        %v2898 = vpop.permute.xlu0 %2897
        %v2899 = vsel %vm1220, %v2892, %v2896
        %v2900 = vsel %vm1220, %v2894, %v2898
        %v2901 = vsel %vm1220, %v2896, %v2892
        %v2902 = vsel %vm1220, %v2898, %v2894
        %v2903 = vmul.f32 %v2901, %v1228
        %v2904 = vmul.f32 %v2899, %v1229
        %v2905 = vmul.f32 %v2902, %v1228
        %v2906 = vmul.f32 %v2900, %v1229
        %v2907 = vadd.f32 %v2811, %v2903
        %v2908 = vadd.f32 %v2812, %v2904
        %v2909 = vadd.f32 %v2813, %v2905
        %v2910 = vadd.f32 %v2814, %v2906
        %2911 = vset.pattern.permute.xlu0 10
        %2912 = vperm.xlu0 %2911, %v897
        %v2913 = vpop.permute.xlu0 %2912
        %2915 = vset.pattern.permute.xlu0 10
        %2916 = vperm.xlu0 %2915, %v898
        %v2917 = vpop.permute.xlu0 %2916
        %v2919 = vmul.f32 %v2665, %v2913
        %v2920 = vmul.f32 %v2666, %v2913
        %v2921 = vmul.f32 %v2667, %v2917
        %v2922 = vmul.f32 %v2668, %v2917
        %2923 = vset.pattern.permute.xlu0 11
        %2924 = vperm.xlu0 %2923, %v897
        %v2925 = vpop.permute.xlu0 %2924
        %2927 = vset.pattern.permute.xlu0 11
        %2928 = vperm.xlu0 %2927, %v898
        %v2929 = vpop.permute.xlu0 %2928
        %v2931 = vmul.f32 %v2681, %v2925
        %v2932 = vmul.f32 %v2682, %v2925
        %v2933 = vmul.f32 %v2683, %v2929
        %v2934 = vmul.f32 %v2684, %v2929
        %v2935 = vadd.f32 %v2919, %v2931
        %v2936 = vadd.f32 %v2920, %v2932
        %v2937 = vadd.f32 %v2921, %v2933
        %v2938 = vadd.f32 %v2922, %v2934
        %2939 = vset.pattern.permute.xlu0 12
        %2940 = vperm.xlu0 %2939, %v897
        %v2941 = vpop.permute.xlu0 %2940
        %2943 = vset.pattern.permute.xlu0 12
        %2944 = vperm.xlu0 %2943, %v898
        %v2945 = vpop.permute.xlu0 %2944
        %v2947 = vmul.f32 %v2685, %v2941
        %v2948 = vmul.f32 %v2686, %v2941
        %v2949 = vmul.f32 %v2687, %v2945
        %v2950 = vmul.f32 %v2688, %v2945
        %v2951 = vadd.f32 %v2935, %v2947
        %v2952 = vadd.f32 %v2936, %v2948
        %v2953 = vadd.f32 %v2937, %v2949
        %v2954 = vadd.f32 %v2938, %v2950
        %2955 = vset.pattern.permute.xlu0 13
        %2956 = vperm.xlu0 %2955, %v897
        %v2957 = vpop.permute.xlu0 %2956
        %2959 = vset.pattern.permute.xlu0 13
        %2960 = vperm.xlu0 %2959, %v898
        %v2961 = vpop.permute.xlu0 %2960
        %v2963 = vmul.f32 %v2701, %v2957
        %v2964 = vmul.f32 %v2702, %v2957
        %v2965 = vmul.f32 %v2703, %v2961
        %v2966 = vmul.f32 %v2704, %v2961
        %v2967 = vadd.f32 %v2951, %v2963
        %v2968 = vadd.f32 %v2952, %v2964
        %v2969 = vadd.f32 %v2953, %v2965
        %v2970 = vadd.f32 %v2954, %v2966
        %2971 = vset.pattern.permute.xlu0 14
        %2972 = vperm.xlu0 %2971, %v897
        %v2973 = vpop.permute.xlu0 %2972
        %2975 = vset.pattern.permute.xlu0 14
        %2976 = vperm.xlu0 %2975, %v898
        %v2977 = vpop.permute.xlu0 %2976
        %v2979 = vmul.f32 %v2717, %v2973
        %v2980 = vmul.f32 %v2718, %v2973
        %v2981 = vmul.f32 %v2719, %v2977
        %v2982 = vmul.f32 %v2720, %v2977
        %v2983 = vadd.f32 %v2967, %v2979
        %v2984 = vadd.f32 %v2968, %v2980
        %v2985 = vadd.f32 %v2969, %v2981
        %v2986 = vadd.f32 %v2970, %v2982
        %v2987 = vmul.f32 %v2983, %v1319
        %v2988 = vmul.f32 %v2984, %v1320
        %v2989 = vmul.f32 %v2985, %v1319
        %v2990 = vmul.f32 %v2986, %v1320
        %v2991 = vadd.f32 %v2907, %v2987
        %v2992 = vadd.f32 %v2908, %v2988
        %v2993 = vadd.f32 %v2909, %v2989
        %v2994 = vadd.f32 %v2910, %v2990
        %2995 = vset.pattern.permute.xlu0 15
        %2996 = vperm.xlu0 %2995, %v897
        %v2997 = vpop.permute.xlu0 %2996
        %2999 = vset.pattern.permute.xlu0 15
        %3000 = vperm.xlu0 %2999, %v898
        %v3001 = vpop.permute.xlu0 %3000
        %v3003 = vmul.f32 %v2665, %v2997
        %v3004 = vmul.f32 %v2666, %v2997
        %v3005 = vmul.f32 %v2667, %v3001
        %v3006 = vmul.f32 %v2668, %v3001
        %3007 = vset.pattern.permute.xlu0 16
        %3008 = vperm.xlu0 %3007, %v897
        %v3009 = vpop.permute.xlu0 %3008
        %3011 = vset.pattern.permute.xlu0 16
        %3012 = vperm.xlu0 %3011, %v898
        %v3013 = vpop.permute.xlu0 %3012
        %v3015 = vmul.f32 %v2681, %v3009
        %v3016 = vmul.f32 %v2682, %v3009
        %v3017 = vmul.f32 %v2683, %v3013
        %v3018 = vmul.f32 %v2684, %v3013
        %v3019 = vadd.f32 %v3003, %v3015
        %v3020 = vadd.f32 %v3004, %v3016
        %v3021 = vadd.f32 %v3005, %v3017
        %v3022 = vadd.f32 %v3006, %v3018
        %3023 = vset.pattern.permute.xlu0 17
        %3024 = vperm.xlu0 %3023, %v897
        %v3025 = vpop.permute.xlu0 %3024
        %3027 = vset.pattern.permute.xlu0 17
        %3028 = vperm.xlu0 %3027, %v898
        %v3029 = vpop.permute.xlu0 %3028
        %v3031 = vmul.f32 %v2685, %v3025
        %v3032 = vmul.f32 %v2686, %v3025
        %v3033 = vmul.f32 %v2687, %v3029
        %v3034 = vmul.f32 %v2688, %v3029
        %v3035 = vadd.f32 %v3019, %v3031
        %v3036 = vadd.f32 %v3020, %v3032
        %v3037 = vadd.f32 %v3021, %v3033
        %v3038 = vadd.f32 %v3022, %v3034
        %3039 = vset.pattern.permute.xlu0 18
        %3040 = vperm.xlu0 %3039, %v897
        %v3041 = vpop.permute.xlu0 %3040
        %3043 = vset.pattern.permute.xlu0 18
        %3044 = vperm.xlu0 %3043, %v898
        %v3045 = vpop.permute.xlu0 %3044
        %v3047 = vmul.f32 %v2701, %v3041
        %v3048 = vmul.f32 %v2702, %v3041
        %v3049 = vmul.f32 %v2703, %v3045
        %v3050 = vmul.f32 %v2704, %v3045
        %v3051 = vadd.f32 %v3035, %v3047
        %v3052 = vadd.f32 %v3036, %v3048
        %v3053 = vadd.f32 %v3037, %v3049
        %v3054 = vadd.f32 %v3038, %v3050
        %3055 = vset.pattern.permute.xlu0 19
        %3056 = vperm.xlu0 %3055, %v897
        %v3057 = vpop.permute.xlu0 %3056
        %3059 = vset.pattern.permute.xlu0 19
        %3060 = vperm.xlu0 %3059, %v898
        %v3061 = vpop.permute.xlu0 %3060
        %v3063 = vmul.f32 %v2717, %v3057
        %v3064 = vmul.f32 %v2718, %v3057
        %v3065 = vmul.f32 %v2719, %v3061
        %v3066 = vmul.f32 %v2720, %v3061
        %v3067 = vadd.f32 %v3051, %v3063
        %v3068 = vadd.f32 %v3052, %v3064
        %v3069 = vadd.f32 %v3053, %v3065
        %v3070 = vadd.f32 %v3054, %v3066
        %3071 = vrot.lane.b32.xlu0 %v3067, 112
        %v3072 = vpop.permute.xlu0 %3071
        %3073 = vrot.lane.b32.xlu0 %v3069, 112
        %v3074 = vpop.permute.xlu0 %3073
        %3075 = vrot.lane.b32.xlu0 %v3068, 112
        %v3076 = vpop.permute.xlu0 %3075
        %3077 = vrot.lane.b32.xlu0 %v3070, 112
        %v3078 = vpop.permute.xlu0 %3077
        %v3079 = vsel %vm1415, %v3072, %v3076
        %v3080 = vsel %vm1415, %v3074, %v3078
        %v3081 = vsel %vm1415, %v3076, %v3072
        %v3082 = vsel %vm1415, %v3078, %v3074
        %v3083 = vmul.f32 %v3079, %v1423
        %v3084 = vmul.f32 %v3081, %v1424
        %v3085 = vmul.f32 %v3080, %v1423
        %v3086 = vmul.f32 %v3082, %v1424
        %v3087 = vadd.f32 %v2991, %v3083
        %v3088 = vadd.f32 %v2992, %v3084
        %v3089 = vadd.f32 %v2993, %v3085
        %v3090 = vadd.f32 %v2994, %v3086
        %3091 = vset.pattern.permute.xlu0 20
        %3092 = vperm.xlu0 %3091, %v897
        %v3093 = vpop.permute.xlu0 %3092
        %3095 = vset.pattern.permute.xlu0 20
        %3096 = vperm.xlu0 %3095, %v898
        %v3097 = vpop.permute.xlu0 %3096
        %v3099 = vmul.f32 %v2665, %v3093
        %v3100 = vmul.f32 %v2666, %v3093
        %v3101 = vmul.f32 %v2667, %v3097
        %v3102 = vmul.f32 %v2668, %v3097
        %3103 = vset.pattern.permute.xlu0 21
        %3104 = vperm.xlu0 %3103, %v897
        %v3105 = vpop.permute.xlu0 %3104
        %3107 = vset.pattern.permute.xlu0 21
        %3108 = vperm.xlu0 %3107, %v898
        %v3109 = vpop.permute.xlu0 %3108
        %v3111 = vmul.f32 %v2681, %v3105
        %v3112 = vmul.f32 %v2682, %v3105
        %v3113 = vmul.f32 %v2683, %v3109
        %v3114 = vmul.f32 %v2684, %v3109
        %v3115 = vadd.f32 %v3099, %v3111
        %v3116 = vadd.f32 %v3100, %v3112
        %v3117 = vadd.f32 %v3101, %v3113
        %v3118 = vadd.f32 %v3102, %v3114
        %3119 = vset.pattern.permute.xlu0 22
        %3120 = vperm.xlu0 %3119, %v897
        %v3121 = vpop.permute.xlu0 %3120
        %3123 = vset.pattern.permute.xlu0 22
        %3124 = vperm.xlu0 %3123, %v898
        %v3125 = vpop.permute.xlu0 %3124
        %v3127 = vmul.f32 %v2685, %v3121
        %v3128 = vmul.f32 %v2686, %v3121
        %v3129 = vmul.f32 %v2687, %v3125
        %v3130 = vmul.f32 %v2688, %v3125
        %v3131 = vadd.f32 %v3115, %v3127
        %v3132 = vadd.f32 %v3116, %v3128
        %v3133 = vadd.f32 %v3117, %v3129
        %v3134 = vadd.f32 %v3118, %v3130
        %3135 = vset.pattern.permute.xlu0 23
        %3136 = vperm.xlu0 %3135, %v897
        %v3137 = vpop.permute.xlu0 %3136
        %3139 = vset.pattern.permute.xlu0 23
        %3140 = vperm.xlu0 %3139, %v898
        %v3141 = vpop.permute.xlu0 %3140
        %v3143 = vmul.f32 %v2701, %v3137
        %v3144 = vmul.f32 %v2702, %v3137
        %v3145 = vmul.f32 %v2703, %v3141
        %v3146 = vmul.f32 %v2704, %v3141
        %v3147 = vadd.f32 %v3131, %v3143
        %v3148 = vadd.f32 %v3132, %v3144
        %v3149 = vadd.f32 %v3133, %v3145
        %v3150 = vadd.f32 %v3134, %v3146
        %3151 = vset.pattern.permute.xlu0 24
        %3152 = vperm.xlu0 %3151, %v897
        %v3153 = vpop.permute.xlu0 %3152
        %3155 = vset.pattern.permute.xlu0 24
        %3156 = vperm.xlu0 %3155, %v898
        %v3157 = vpop.permute.xlu0 %3156
        %v3159 = vmul.f32 %v2717, %v3153
        %v3160 = vmul.f32 %v2718, %v3153
        %v3161 = vmul.f32 %v2719, %v3157
        %v3162 = vmul.f32 %v2720, %v3157
        %v3163 = vadd.f32 %v3147, %v3159
        %v3164 = vadd.f32 %v3148, %v3160
        %v3165 = vadd.f32 %v3149, %v3161
        %v3166 = vadd.f32 %v3150, %v3162
        %3167 = vrot.lane.b32.xlu0 %v3163, 96
        %v3168 = vpop.permute.xlu0 %3167
        %3169 = vrot.lane.b32.xlu0 %v3165, 96
        %v3170 = vpop.permute.xlu0 %3169
        %3171 = vrot.lane.b32.xlu0 %v3164, 96
        %v3172 = vpop.permute.xlu0 %3171
        %3173 = vrot.lane.b32.xlu0 %v3166, 96
        %v3174 = vpop.permute.xlu0 %3173
        %v3175 = vsel %vm1519, %v3168, %v3172
        %v3176 = vsel %vm1519, %v3170, %v3174
        %v3177 = vsel %vm1519, %v3172, %v3168
        %v3178 = vsel %vm1519, %v3174, %v3170
        %v3179 = vmul.f32 %v3175, %v1527
        %v3180 = vmul.f32 %v3177, %v1528
        %v3181 = vmul.f32 %v3176, %v1527
        %v3182 = vmul.f32 %v3178, %v1528
        %v3183 = vadd.f32 %v3087, %v3179
        %v3184 = vadd.f32 %v3088, %v3180
        %v3185 = vadd.f32 %v3089, %v3181
        %v3186 = vadd.f32 %v3090, %v3182
        %3188 = vset.pattern.permute.xlu0 0
        %3189 = vperm.xlu0 %3188, %v913
        %v3190 = vpop.permute.xlu0 %3189
        %3193 = vset.pattern.permute.xlu0 0
        %3194 = vperm.xlu0 %3193, %v914
        %v3195 = vpop.permute.xlu0 %3194
        %v3197 = vadd.f32 %v3183, %v3190
        %v3198 = vadd.f32 %v3184, %v3190
        %v3199 = vadd.f32 %v3185, %v3195
        %v3200 = vadd.f32 %v3186, %v3195
        %3201 = vrot.lane.b32.xlu0 %v3197, 9
        %v3202 = vpop.permute.xlu0 %3201
        %3203 = vrot.lane.b32.xlu0 %v3199, 9
        %v3204 = vpop.permute.xlu0 %3203
        %3205 = vrot.lane.b32.xlu0 %v3198, 9
        %v3206 = vpop.permute.xlu0 %3205
        %3207 = vrot.lane.b32.xlu0 %v3200, 9
        %v3208 = vpop.permute.xlu0 %3207
        %v3209 = vsel %vm1561, %v3202, %v3206
        %v3210 = vsel %vm1561, %v3204, %v3208
        %v3211 = vsel %vm1561, %v3206, %v3202
        %v3212 = vsel %vm1561, %v3208, %v3204
        %v3213 = vmul.f32 %v3211, %v1568
        %v3214 = vmul.f32 %v3209, %v1569
        %v3215 = vmul.f32 %v3212, %v1568
        %v3216 = vmul.f32 %v3210, %v1569
        %3217 = vrot.lane.b32.xlu0 %v3197, 6
        %v3218 = vpop.permute.xlu0 %3217
        %3219 = vrot.lane.b32.xlu0 %v3199, 6
        %v3220 = vpop.permute.xlu0 %3219
        %3221 = vrot.lane.b32.xlu0 %v3198, 6
        %v3222 = vpop.permute.xlu0 %3221
        %3223 = vrot.lane.b32.xlu0 %v3200, 6
        %v3224 = vpop.permute.xlu0 %3223
        %v3225 = vsel %vm1584, %v3218, %v3222
        %v3226 = vsel %vm1584, %v3220, %v3224
        %v3227 = vsel %vm1584, %v3222, %v3218
        %v3228 = vsel %vm1584, %v3224, %v3220
        %v3229 = vmul.f32 %v3227, %v1592
        %v3230 = vmul.f32 %v3225, %v1593
        %v3231 = vmul.f32 %v3228, %v1592
        %v3232 = vmul.f32 %v3226, %v1593
        %3233 = vrot.lane.b32.xlu0 %v3197, 3
        %v3234 = vpop.permute.xlu0 %3233
        %3235 = vrot.lane.b32.xlu0 %v3199, 3
        %v3236 = vpop.permute.xlu0 %3235
        %3237 = vrot.lane.b32.xlu0 %v3198, 3
        %v3238 = vpop.permute.xlu0 %3237
        %3239 = vrot.lane.b32.xlu0 %v3200, 3
        %v3240 = vpop.permute.xlu0 %3239
        %v3241 = vsel %vm1608, %v3234, %v3238
        %v3242 = vsel %vm1608, %v3236, %v3240
        %v3243 = vsel %vm1608, %v3238, %v3234
        %v3244 = vsel %vm1608, %v3240, %v3236
        %v3245 = vmul.f32 %v3243, %v1616
        %v3246 = vmul.f32 %v3241, %v1617
        %v3247 = vmul.f32 %v3244, %v1616
        %v3248 = vmul.f32 %v3242, %v1617
        %v3249 = vmul.f32 %v3197, %v1627
        %v3250 = vmul.f32 %v3198, %v1628
        %v3251 = vmul.f32 %v3199, %v1627
        %v3252 = vmul.f32 %v3200, %v1628
        %3253 = vrot.lane.b32.xlu0 %v3197, 125
        %v3254 = vpop.permute.xlu0 %3253
        %3255 = vrot.lane.b32.xlu0 %v3199, 125
        %v3256 = vpop.permute.xlu0 %3255
        %3257 = vrot.lane.b32.xlu0 %v3198, 125
        %v3258 = vpop.permute.xlu0 %3257
        %3259 = vrot.lane.b32.xlu0 %v3200, 125
        %v3260 = vpop.permute.xlu0 %3259
        %v3261 = vsel %vm1643, %v3254, %v3258
        %v3262 = vsel %vm1643, %v3256, %v3260
        %v3263 = vsel %vm1643, %v3258, %v3254
        %v3264 = vsel %vm1643, %v3260, %v3256
        %v3265 = vmul.f32 %v3261, %v1651
        %v3266 = vmul.f32 %v3263, %v1652
        %v3267 = vmul.f32 %v3262, %v1651
        %v3268 = vmul.f32 %v3264, %v1652
        %3269 = vrot.lane.b32.xlu0 %v3197, 122
        %v3270 = vpop.permute.xlu0 %3269
        %3271 = vrot.lane.b32.xlu0 %v3199, 122
        %v3272 = vpop.permute.xlu0 %3271
        %3273 = vrot.lane.b32.xlu0 %v3198, 122
        %v3274 = vpop.permute.xlu0 %3273
        %3275 = vrot.lane.b32.xlu0 %v3200, 122
        %v3276 = vpop.permute.xlu0 %3275
        %v3277 = vsel %vm1667, %v3270, %v3274
        %v3278 = vsel %vm1667, %v3272, %v3276
        %v3279 = vsel %vm1667, %v3274, %v3270
        %v3280 = vsel %vm1667, %v3276, %v3272
        %v3281 = vmul.f32 %v3277, %v1675
        %v3282 = vmul.f32 %v3279, %v1676
        %v3283 = vmul.f32 %v3278, %v1675
        %v3284 = vmul.f32 %v3280, %v1676
        %3285 = vrot.lane.b32.xlu0 %v3197, 119
        %v3286 = vpop.permute.xlu0 %3285
        %3287 = vrot.lane.b32.xlu0 %v3199, 119
        %v3288 = vpop.permute.xlu0 %3287
        %3289 = vrot.lane.b32.xlu0 %v3198, 119
        %v3290 = vpop.permute.xlu0 %3289
        %3291 = vrot.lane.b32.xlu0 %v3200, 119
        %v3292 = vpop.permute.xlu0 %3291
        %v3293 = vsel %vm1691, %v3286, %v3290
        %v3294 = vsel %vm1691, %v3288, %v3292
        %v3295 = vsel %vm1691, %v3290, %v3286
        %v3296 = vsel %vm1691, %v3292, %v3288
        %v3297 = vmul.f32 %v3293, %v1699
        %v3298 = vmul.f32 %v3295, %v1700
        %v3299 = vmul.f32 %v3294, %v1699
        %v3300 = vmul.f32 %v3296, %v1700
        %3302 = vset.pattern.permute.xlu0 0
        %3303 = vperm.xlu0 %3302, %v905
        %v3304 = vpop.permute.xlu0 %3303
        %3307 = vset.pattern.permute.xlu0 0
        %3308 = vperm.xlu0 %3307, %v906
        %v3309 = vpop.permute.xlu0 %3308
        %v3311 = vmul.f32 %v3213, %v3304
        %v3312 = vmul.f32 %v3214, %v3304
        %v3313 = vmul.f32 %v3215, %v3309
        %v3314 = vmul.f32 %v3216, %v3309
        %3315 = vset.pattern.permute.xlu0 1
        %3316 = vperm.xlu0 %3315, %v905
        %v3317 = vpop.permute.xlu0 %3316
        %3319 = vset.pattern.permute.xlu0 1
        %3320 = vperm.xlu0 %3319, %v906
        %v3321 = vpop.permute.xlu0 %3320
        %v3323 = vmul.f32 %v3229, %v3317
        %v3324 = vmul.f32 %v3230, %v3317
        %v3325 = vmul.f32 %v3231, %v3321
        %v3326 = vmul.f32 %v3232, %v3321
        %v3327 = vadd.f32 %v3311, %v3323
        %v3328 = vadd.f32 %v3312, %v3324
        %v3329 = vadd.f32 %v3313, %v3325
        %v3330 = vadd.f32 %v3314, %v3326
        %3331 = vset.pattern.permute.xlu0 2
        %3332 = vperm.xlu0 %3331, %v905
        %v3333 = vpop.permute.xlu0 %3332
        %3335 = vset.pattern.permute.xlu0 2
        %3336 = vperm.xlu0 %3335, %v906
        %v3337 = vpop.permute.xlu0 %3336
        %v3339 = vmul.f32 %v3245, %v3333
        %v3340 = vmul.f32 %v3246, %v3333
        %v3341 = vmul.f32 %v3247, %v3337
        %v3342 = vmul.f32 %v3248, %v3337
        %v3343 = vadd.f32 %v3327, %v3339
        %v3344 = vadd.f32 %v3328, %v3340
        %v3345 = vadd.f32 %v3329, %v3341
        %v3346 = vadd.f32 %v3330, %v3342
        %3347 = vset.pattern.permute.xlu0 3
        %3348 = vperm.xlu0 %3347, %v905
        %v3349 = vpop.permute.xlu0 %3348
        %3351 = vset.pattern.permute.xlu0 3
        %3352 = vperm.xlu0 %3351, %v906
        %v3353 = vpop.permute.xlu0 %3352
        %v3355 = vmul.f32 %v3249, %v3349
        %v3356 = vmul.f32 %v3250, %v3349
        %v3357 = vmul.f32 %v3251, %v3353
        %v3358 = vmul.f32 %v3252, %v3353
        %v3359 = vadd.f32 %v3343, %v3355
        %v3360 = vadd.f32 %v3344, %v3356
        %v3361 = vadd.f32 %v3345, %v3357
        %v3362 = vadd.f32 %v3346, %v3358
        %3363 = vset.pattern.permute.xlu0 4
        %3364 = vperm.xlu0 %3363, %v905
        %v3365 = vpop.permute.xlu0 %3364
        %3367 = vset.pattern.permute.xlu0 4
        %3368 = vperm.xlu0 %3367, %v906
        %v3369 = vpop.permute.xlu0 %3368
        %v3371 = vmul.f32 %v3265, %v3365
        %v3372 = vmul.f32 %v3266, %v3365
        %v3373 = vmul.f32 %v3267, %v3369
        %v3374 = vmul.f32 %v3268, %v3369
        %v3375 = vadd.f32 %v3359, %v3371
        %v3376 = vadd.f32 %v3360, %v3372
        %v3377 = vadd.f32 %v3361, %v3373
        %v3378 = vadd.f32 %v3362, %v3374
        %3379 = vset.pattern.permute.xlu0 5
        %3380 = vperm.xlu0 %3379, %v905
        %v3381 = vpop.permute.xlu0 %3380
        %3383 = vset.pattern.permute.xlu0 5
        %3384 = vperm.xlu0 %3383, %v906
        %v3385 = vpop.permute.xlu0 %3384
        %v3387 = vmul.f32 %v3281, %v3381
        %v3388 = vmul.f32 %v3282, %v3381
        %v3389 = vmul.f32 %v3283, %v3385
        %v3390 = vmul.f32 %v3284, %v3385
        %v3391 = vadd.f32 %v3375, %v3387
        %v3392 = vadd.f32 %v3376, %v3388
        %v3393 = vadd.f32 %v3377, %v3389
        %v3394 = vadd.f32 %v3378, %v3390
        %3395 = vset.pattern.permute.xlu0 6
        %3396 = vperm.xlu0 %3395, %v905
        %v3397 = vpop.permute.xlu0 %3396
        %3399 = vset.pattern.permute.xlu0 6
        %3400 = vperm.xlu0 %3399, %v906
        %v3401 = vpop.permute.xlu0 %3400
        %v3403 = vmul.f32 %v3297, %v3397
        %v3404 = vmul.f32 %v3298, %v3397
        %v3405 = vmul.f32 %v3299, %v3401
        %v3406 = vmul.f32 %v3300, %v3401
        %v3407 = vadd.f32 %v3391, %v3403
        %v3408 = vadd.f32 %v3392, %v3404
        %v3409 = vadd.f32 %v3393, %v3405
        %v3410 = vadd.f32 %v3394, %v3406
        %3411 = vrot.lane.b32.xlu0 %v3407, 16
        %v3412 = vpop.permute.xlu0 %3411
        %3413 = vrot.lane.b32.xlu0 %v3409, 16
        %v3414 = vpop.permute.xlu0 %3413
        %3415 = vrot.lane.b32.xlu0 %v3408, 16
        %v3416 = vpop.permute.xlu0 %3415
        %3417 = vrot.lane.b32.xlu0 %v3410, 16
        %v3418 = vpop.permute.xlu0 %3417
        %v3419 = vsel %vm1220, %v3412, %v3416
        %v3420 = vsel %vm1220, %v3414, %v3418
        %v3421 = vsel %vm1220, %v3416, %v3412
        %v3422 = vsel %vm1220, %v3418, %v3414
        %v3423 = vmul.f32 %v3419, %v1831
        %v3424 = vmul.f32 %v3421, %v1832
        %v3425 = vmul.f32 %v3420, %v1831
        %v3426 = vmul.f32 %v3422, %v1832
        %3427 = vset.pattern.permute.xlu0 7
        %3428 = vperm.xlu0 %3427, %v905
        %v3429 = vpop.permute.xlu0 %3428
        %3431 = vset.pattern.permute.xlu0 7
        %3432 = vperm.xlu0 %3431, %v906
        %v3433 = vpop.permute.xlu0 %3432
        %v3435 = vmul.f32 %v3213, %v3429
        %v3436 = vmul.f32 %v3214, %v3429
        %v3437 = vmul.f32 %v3215, %v3433
        %v3438 = vmul.f32 %v3216, %v3433
        %3439 = vset.pattern.permute.xlu0 8
        %3440 = vperm.xlu0 %3439, %v905
        %v3441 = vpop.permute.xlu0 %3440
        %3443 = vset.pattern.permute.xlu0 8
        %3444 = vperm.xlu0 %3443, %v906
        %v3445 = vpop.permute.xlu0 %3444
        %v3447 = vmul.f32 %v3229, %v3441
        %v3448 = vmul.f32 %v3230, %v3441
        %v3449 = vmul.f32 %v3231, %v3445
        %v3450 = vmul.f32 %v3232, %v3445
        %v3451 = vadd.f32 %v3435, %v3447
        %v3452 = vadd.f32 %v3436, %v3448
        %v3453 = vadd.f32 %v3437, %v3449
        %v3454 = vadd.f32 %v3438, %v3450
        %3455 = vset.pattern.permute.xlu0 9
        %3456 = vperm.xlu0 %3455, %v905
        %v3457 = vpop.permute.xlu0 %3456
        %3459 = vset.pattern.permute.xlu0 9
        %3460 = vperm.xlu0 %3459, %v906
        %v3461 = vpop.permute.xlu0 %3460
        %v3463 = vmul.f32 %v3245, %v3457
        %v3464 = vmul.f32 %v3246, %v3457
        %v3465 = vmul.f32 %v3247, %v3461
        %v3466 = vmul.f32 %v3248, %v3461
        %v3467 = vadd.f32 %v3451, %v3463
        %v3468 = vadd.f32 %v3452, %v3464
        %v3469 = vadd.f32 %v3453, %v3465
        %v3470 = vadd.f32 %v3454, %v3466
        %3471 = vset.pattern.permute.xlu0 10
        %3472 = vperm.xlu0 %3471, %v905
        %v3473 = vpop.permute.xlu0 %3472
        %3475 = vset.pattern.permute.xlu0 10
        %3476 = vperm.xlu0 %3475, %v906
        %v3477 = vpop.permute.xlu0 %3476
        %v3479 = vmul.f32 %v3249, %v3473
        %v3480 = vmul.f32 %v3250, %v3473
        %v3481 = vmul.f32 %v3251, %v3477
        %v3482 = vmul.f32 %v3252, %v3477
        %v3483 = vadd.f32 %v3467, %v3479
        %v3484 = vadd.f32 %v3468, %v3480
        %v3485 = vadd.f32 %v3469, %v3481
        %v3486 = vadd.f32 %v3470, %v3482
        %3487 = vset.pattern.permute.xlu0 11
        %3488 = vperm.xlu0 %3487, %v905
        %v3489 = vpop.permute.xlu0 %3488
        %3491 = vset.pattern.permute.xlu0 11
        %3492 = vperm.xlu0 %3491, %v906
        %v3493 = vpop.permute.xlu0 %3492
        %v3495 = vmul.f32 %v3265, %v3489
        %v3496 = vmul.f32 %v3266, %v3489
        %v3497 = vmul.f32 %v3267, %v3493
        %v3498 = vmul.f32 %v3268, %v3493
        %v3499 = vadd.f32 %v3483, %v3495
        %v3500 = vadd.f32 %v3484, %v3496
        %v3501 = vadd.f32 %v3485, %v3497
        %v3502 = vadd.f32 %v3486, %v3498
        %3503 = vset.pattern.permute.xlu0 12
        %3504 = vperm.xlu0 %3503, %v905
        %v3505 = vpop.permute.xlu0 %3504
        %3507 = vset.pattern.permute.xlu0 12
        %3508 = vperm.xlu0 %3507, %v906
        %v3509 = vpop.permute.xlu0 %3508
        %v3511 = vmul.f32 %v3281, %v3505
        %v3512 = vmul.f32 %v3282, %v3505
        %v3513 = vmul.f32 %v3283, %v3509
        %v3514 = vmul.f32 %v3284, %v3509
        %v3515 = vadd.f32 %v3499, %v3511
        %v3516 = vadd.f32 %v3500, %v3512
        %v3517 = vadd.f32 %v3501, %v3513
        %v3518 = vadd.f32 %v3502, %v3514
        %3519 = vset.pattern.permute.xlu0 13
        %3520 = vperm.xlu0 %3519, %v905
        %v3521 = vpop.permute.xlu0 %3520
        %3523 = vset.pattern.permute.xlu0 13
        %3524 = vperm.xlu0 %3523, %v906
        %v3525 = vpop.permute.xlu0 %3524
        %v3527 = vmul.f32 %v3297, %v3521
        %v3528 = vmul.f32 %v3298, %v3521
        %v3529 = vmul.f32 %v3299, %v3525
        %v3530 = vmul.f32 %v3300, %v3525
        %v3531 = vadd.f32 %v3515, %v3527
        %v3532 = vadd.f32 %v3516, %v3528
        %v3533 = vadd.f32 %v3517, %v3529
        %v3534 = vadd.f32 %v3518, %v3530
        %3535 = vrot.lane.b32.xlu0 %v3531, 96
        %v3536 = vpop.permute.xlu0 %3535
        %3537 = vrot.lane.b32.xlu0 %v3533, 96
        %v3538 = vpop.permute.xlu0 %3537
        %3539 = vrot.lane.b32.xlu0 %v3532, 96
        %v3540 = vpop.permute.xlu0 %3539
        %3541 = vrot.lane.b32.xlu0 %v3534, 96
        %v3542 = vpop.permute.xlu0 %3541
        %v3543 = vsel %vm1519, %v3536, %v3540
        %v3544 = vsel %vm1519, %v3538, %v3542
        %v3545 = vsel %vm1519, %v3540, %v3536
        %v3546 = vsel %vm1519, %v3542, %v3538
        %v3547 = vmul.f32 %v3545, %v1962
        %v3548 = vmul.f32 %v3543, %v1963
        %v3549 = vmul.f32 %v3546, %v1962
        %v3550 = vmul.f32 %v3544, %v1963
        %v3551 = vadd.f32 %v3423, %v3547
        %v3552 = vadd.f32 %v3424, %v3548
        %v3553 = vadd.f32 %v3425, %v3549
        %v3554 = vadd.f32 %v3426, %v3550
        %3555 = vset.pattern.permute.xlu0 14
        %3556 = vperm.xlu0 %3555, %v905
        %v3557 = vpop.permute.xlu0 %3556
        %3559 = vset.pattern.permute.xlu0 14
        %3560 = vperm.xlu0 %3559, %v906
        %v3561 = vpop.permute.xlu0 %3560
        %v3563 = vmul.f32 %v3213, %v3557
        %v3564 = vmul.f32 %v3214, %v3557
        %v3565 = vmul.f32 %v3215, %v3561
        %v3566 = vmul.f32 %v3216, %v3561
        %3567 = vset.pattern.permute.xlu0 15
        %3568 = vperm.xlu0 %3567, %v905
        %v3569 = vpop.permute.xlu0 %3568
        %3571 = vset.pattern.permute.xlu0 15
        %3572 = vperm.xlu0 %3571, %v906
        %v3573 = vpop.permute.xlu0 %3572
        %v3575 = vmul.f32 %v3229, %v3569
        %v3576 = vmul.f32 %v3230, %v3569
        %v3577 = vmul.f32 %v3231, %v3573
        %v3578 = vmul.f32 %v3232, %v3573
        %v3579 = vadd.f32 %v3563, %v3575
        %v3580 = vadd.f32 %v3564, %v3576
        %v3581 = vadd.f32 %v3565, %v3577
        %v3582 = vadd.f32 %v3566, %v3578
        %3583 = vset.pattern.permute.xlu0 16
        %3584 = vperm.xlu0 %3583, %v905
        %v3585 = vpop.permute.xlu0 %3584
        %3587 = vset.pattern.permute.xlu0 16
        %3588 = vperm.xlu0 %3587, %v906
        %v3589 = vpop.permute.xlu0 %3588
        %v3591 = vmul.f32 %v3245, %v3585
        %v3592 = vmul.f32 %v3246, %v3585
        %v3593 = vmul.f32 %v3247, %v3589
        %v3594 = vmul.f32 %v3248, %v3589
        %v3595 = vadd.f32 %v3579, %v3591
        %v3596 = vadd.f32 %v3580, %v3592
        %v3597 = vadd.f32 %v3581, %v3593
        %v3598 = vadd.f32 %v3582, %v3594
        %3599 = vset.pattern.permute.xlu0 17
        %3600 = vperm.xlu0 %3599, %v905
        %v3601 = vpop.permute.xlu0 %3600
        %3603 = vset.pattern.permute.xlu0 17
        %3604 = vperm.xlu0 %3603, %v906
        %v3605 = vpop.permute.xlu0 %3604
        %v3607 = vmul.f32 %v3249, %v3601
        %v3608 = vmul.f32 %v3250, %v3601
        %v3609 = vmul.f32 %v3251, %v3605
        %v3610 = vmul.f32 %v3252, %v3605
        %v3611 = vadd.f32 %v3595, %v3607
        %v3612 = vadd.f32 %v3596, %v3608
        %v3613 = vadd.f32 %v3597, %v3609
        %v3614 = vadd.f32 %v3598, %v3610
        %3615 = vset.pattern.permute.xlu0 18
        %3616 = vperm.xlu0 %3615, %v905
        %v3617 = vpop.permute.xlu0 %3616
        %3619 = vset.pattern.permute.xlu0 18
        %3620 = vperm.xlu0 %3619, %v906
        %v3621 = vpop.permute.xlu0 %3620
        %v3623 = vmul.f32 %v3265, %v3617
        %v3624 = vmul.f32 %v3266, %v3617
        %v3625 = vmul.f32 %v3267, %v3621
        %v3626 = vmul.f32 %v3268, %v3621
        %v3627 = vadd.f32 %v3611, %v3623
        %v3628 = vadd.f32 %v3612, %v3624
        %v3629 = vadd.f32 %v3613, %v3625
        %v3630 = vadd.f32 %v3614, %v3626
        %3631 = vset.pattern.permute.xlu0 19
        %3632 = vperm.xlu0 %3631, %v905
        %v3633 = vpop.permute.xlu0 %3632
        %3635 = vset.pattern.permute.xlu0 19
        %3636 = vperm.xlu0 %3635, %v906
        %v3637 = vpop.permute.xlu0 %3636
        %v3639 = vmul.f32 %v3281, %v3633
        %v3640 = vmul.f32 %v3282, %v3633
        %v3641 = vmul.f32 %v3283, %v3637
        %v3642 = vmul.f32 %v3284, %v3637
        %v3643 = vadd.f32 %v3627, %v3639
        %v3644 = vadd.f32 %v3628, %v3640
        %v3645 = vadd.f32 %v3629, %v3641
        %v3646 = vadd.f32 %v3630, %v3642
        %3647 = vset.pattern.permute.xlu0 20
        %3648 = vperm.xlu0 %3647, %v905
        %v3649 = vpop.permute.xlu0 %3648
        %3651 = vset.pattern.permute.xlu0 20
        %3652 = vperm.xlu0 %3651, %v906
        %v3653 = vpop.permute.xlu0 %3652
        %v3655 = vmul.f32 %v3297, %v3649
        %v3656 = vmul.f32 %v3298, %v3649
        %v3657 = vmul.f32 %v3299, %v3653
        %v3658 = vmul.f32 %v3300, %v3653
        %v3659 = vadd.f32 %v3643, %v3655
        %v3660 = vadd.f32 %v3644, %v3656
        %v3661 = vadd.f32 %v3645, %v3657
        %v3662 = vadd.f32 %v3646, %v3658
        %3663 = vrot.lane.b32.xlu0 %v3659, 48
        %v3664 = vpop.permute.xlu0 %3663
        %3665 = vrot.lane.b32.xlu0 %v3661, 48
        %v3666 = vpop.permute.xlu0 %3665
        %3667 = vrot.lane.b32.xlu0 %v3660, 48
        %v3668 = vpop.permute.xlu0 %3667
        %3669 = vrot.lane.b32.xlu0 %v3662, 48
        %v3670 = vpop.permute.xlu0 %3669
        %v3671 = vsel %vm2090, %v3664, %v3668
        %v3672 = vsel %vm2090, %v3666, %v3670
        %v3673 = vsel %vm2090, %v3668, %v3664
        %v3674 = vsel %vm2090, %v3670, %v3666
        %v3675 = vmul.f32 %v3673, %v2098
        %v3676 = vmul.f32 %v3671, %v2099
        %v3677 = vmul.f32 %v3674, %v2098
        %v3678 = vmul.f32 %v3672, %v2099
        %v3679 = vadd.f32 %v3551, %v3675
        %v3680 = vadd.f32 %v3552, %v3676
        %v3681 = vadd.f32 %v3553, %v3677
        %v3682 = vadd.f32 %v3554, %v3678
        %3683 = vset.pattern.permute.xlu0 21
        %3684 = vperm.xlu0 %3683, %v905
        %v3685 = vpop.permute.xlu0 %3684
        %3687 = vset.pattern.permute.xlu0 21
        %3688 = vperm.xlu0 %3687, %v906
        %v3689 = vpop.permute.xlu0 %3688
        %v3691 = vmul.f32 %v3213, %v3685
        %v3692 = vmul.f32 %v3214, %v3685
        %v3693 = vmul.f32 %v3215, %v3689
        %v3694 = vmul.f32 %v3216, %v3689
        %3695 = vset.pattern.permute.xlu0 22
        %3696 = vperm.xlu0 %3695, %v905
        %v3697 = vpop.permute.xlu0 %3696
        %3699 = vset.pattern.permute.xlu0 22
        %3700 = vperm.xlu0 %3699, %v906
        %v3701 = vpop.permute.xlu0 %3700
        %v3703 = vmul.f32 %v3229, %v3697
        %v3704 = vmul.f32 %v3230, %v3697
        %v3705 = vmul.f32 %v3231, %v3701
        %v3706 = vmul.f32 %v3232, %v3701
        %v3707 = vadd.f32 %v3691, %v3703
        %v3708 = vadd.f32 %v3692, %v3704
        %v3709 = vadd.f32 %v3693, %v3705
        %v3710 = vadd.f32 %v3694, %v3706
        %3711 = vset.pattern.permute.xlu0 23
        %3712 = vperm.xlu0 %3711, %v905
        %v3713 = vpop.permute.xlu0 %3712
        %3715 = vset.pattern.permute.xlu0 23
        %3716 = vperm.xlu0 %3715, %v906
        %v3717 = vpop.permute.xlu0 %3716
        %v3719 = vmul.f32 %v3245, %v3713
        %v3720 = vmul.f32 %v3246, %v3713
        %v3721 = vmul.f32 %v3247, %v3717
        %v3722 = vmul.f32 %v3248, %v3717
        %v3723 = vadd.f32 %v3707, %v3719
        %v3724 = vadd.f32 %v3708, %v3720
        %v3725 = vadd.f32 %v3709, %v3721
        %v3726 = vadd.f32 %v3710, %v3722
        %3727 = vset.pattern.permute.xlu0 24
        %3728 = vperm.xlu0 %3727, %v905
        %v3729 = vpop.permute.xlu0 %3728
        %3731 = vset.pattern.permute.xlu0 24
        %3732 = vperm.xlu0 %3731, %v906
        %v3733 = vpop.permute.xlu0 %3732
        %v3735 = vmul.f32 %v3249, %v3729
        %v3736 = vmul.f32 %v3250, %v3729
        %v3737 = vmul.f32 %v3251, %v3733
        %v3738 = vmul.f32 %v3252, %v3733
        %v3739 = vadd.f32 %v3723, %v3735
        %v3740 = vadd.f32 %v3724, %v3736
        %v3741 = vadd.f32 %v3725, %v3737
        %v3742 = vadd.f32 %v3726, %v3738
        %3743 = vset.pattern.permute.xlu0 25
        %3744 = vperm.xlu0 %3743, %v905
        %v3745 = vpop.permute.xlu0 %3744
        %3747 = vset.pattern.permute.xlu0 25
        %3748 = vperm.xlu0 %3747, %v906
        %v3749 = vpop.permute.xlu0 %3748
        %v3751 = vmul.f32 %v3265, %v3745
        %v3752 = vmul.f32 %v3266, %v3745
        %v3753 = vmul.f32 %v3267, %v3749
        %v3754 = vmul.f32 %v3268, %v3749
        %v3755 = vadd.f32 %v3739, %v3751
        %v3756 = vadd.f32 %v3740, %v3752
        %v3757 = vadd.f32 %v3741, %v3753
        %v3758 = vadd.f32 %v3742, %v3754
        %3759 = vset.pattern.permute.xlu0 26
        %3760 = vperm.xlu0 %3759, %v905
        %v3761 = vpop.permute.xlu0 %3760
        %3763 = vset.pattern.permute.xlu0 26
        %3764 = vperm.xlu0 %3763, %v906
        %v3765 = vpop.permute.xlu0 %3764
        %v3767 = vmul.f32 %v3281, %v3761
        %v3768 = vmul.f32 %v3282, %v3761
        %v3769 = vmul.f32 %v3283, %v3765
        %v3770 = vmul.f32 %v3284, %v3765
        %v3771 = vadd.f32 %v3755, %v3767
        %v3772 = vadd.f32 %v3756, %v3768
        %v3773 = vadd.f32 %v3757, %v3769
        %v3774 = vadd.f32 %v3758, %v3770
        %3775 = vset.pattern.permute.xlu0 27
        %3776 = vperm.xlu0 %3775, %v905
        %v3777 = vpop.permute.xlu0 %3776
        %3779 = vset.pattern.permute.xlu0 27
        %3780 = vperm.xlu0 %3779, %v906
        %v3781 = vpop.permute.xlu0 %3780
        %v3783 = vmul.f32 %v3297, %v3777
        %v3784 = vmul.f32 %v3298, %v3777
        %v3785 = vmul.f32 %v3299, %v3781
        %v3786 = vmul.f32 %v3300, %v3781
        %v3787 = vadd.f32 %v3771, %v3783
        %v3788 = vadd.f32 %v3772, %v3784
        %v3789 = vadd.f32 %v3773, %v3785
        %v3790 = vadd.f32 %v3774, %v3786
        %v3791 = vmul.f32 %v3787, %v2221
        %v3792 = vmul.f32 %v3788, %v2222
        %v3793 = vmul.f32 %v3789, %v2221
        %v3794 = vmul.f32 %v3790, %v2222
        %v3795 = vadd.f32 %v3679, %v3791
        %v3796 = vadd.f32 %v3680, %v3792
        %v3797 = vadd.f32 %v3681, %v3793
        %v3798 = vadd.f32 %v3682, %v3794
        %3799 = vset.pattern.permute.xlu0 28
        %3800 = vperm.xlu0 %3799, %v905
        %v3801 = vpop.permute.xlu0 %3800
        %3803 = vset.pattern.permute.xlu0 28
        %3804 = vperm.xlu0 %3803, %v906
        %v3805 = vpop.permute.xlu0 %3804
        %v3807 = vmul.f32 %v3213, %v3801
        %v3808 = vmul.f32 %v3214, %v3801
        %v3809 = vmul.f32 %v3215, %v3805
        %v3810 = vmul.f32 %v3216, %v3805
        %3811 = vset.pattern.permute.xlu0 29
        %3812 = vperm.xlu0 %3811, %v905
        %v3813 = vpop.permute.xlu0 %3812
        %3815 = vset.pattern.permute.xlu0 29
        %3816 = vperm.xlu0 %3815, %v906
        %v3817 = vpop.permute.xlu0 %3816
        %v3819 = vmul.f32 %v3229, %v3813
        %v3820 = vmul.f32 %v3230, %v3813
        %v3821 = vmul.f32 %v3231, %v3817
        %v3822 = vmul.f32 %v3232, %v3817
        %v3823 = vadd.f32 %v3807, %v3819
        %v3824 = vadd.f32 %v3808, %v3820
        %v3825 = vadd.f32 %v3809, %v3821
        %v3826 = vadd.f32 %v3810, %v3822
        %3827 = vset.pattern.permute.xlu0 30
        %3828 = vperm.xlu0 %3827, %v905
        %v3829 = vpop.permute.xlu0 %3828
        %3831 = vset.pattern.permute.xlu0 30
        %3832 = vperm.xlu0 %3831, %v906
        %v3833 = vpop.permute.xlu0 %3832
        %v3835 = vmul.f32 %v3245, %v3829
        %v3836 = vmul.f32 %v3246, %v3829
        %v3837 = vmul.f32 %v3247, %v3833
        %v3838 = vmul.f32 %v3248, %v3833
        %v3839 = vadd.f32 %v3823, %v3835
        %v3840 = vadd.f32 %v3824, %v3836
        %v3841 = vadd.f32 %v3825, %v3837
        %v3842 = vadd.f32 %v3826, %v3838
        %3843 = vset.pattern.permute.xlu0 31
        %3844 = vperm.xlu0 %3843, %v905
        %v3845 = vpop.permute.xlu0 %3844
        %3847 = vset.pattern.permute.xlu0 31
        %3848 = vperm.xlu0 %3847, %v906
        %v3849 = vpop.permute.xlu0 %3848
        %v3851 = vmul.f32 %v3249, %v3845
        %v3852 = vmul.f32 %v3250, %v3845
        %v3853 = vmul.f32 %v3251, %v3849
        %v3854 = vmul.f32 %v3252, %v3849
        %v3855 = vadd.f32 %v3839, %v3851
        %v3856 = vadd.f32 %v3840, %v3852
        %v3857 = vadd.f32 %v3841, %v3853
        %v3858 = vadd.f32 %v3842, %v3854
        %3859 = vset.pattern.permute.xlu0 32
        %3860 = vperm.xlu0 %3859, %v905
        %v3861 = vpop.permute.xlu0 %3860
        %3863 = vset.pattern.permute.xlu0 32
        %3864 = vperm.xlu0 %3863, %v906
        %v3865 = vpop.permute.xlu0 %3864
        %v3867 = vmul.f32 %v3265, %v3861
        %v3868 = vmul.f32 %v3266, %v3861
        %v3869 = vmul.f32 %v3267, %v3865
        %v3870 = vmul.f32 %v3268, %v3865
        %v3871 = vadd.f32 %v3855, %v3867
        %v3872 = vadd.f32 %v3856, %v3868
        %v3873 = vadd.f32 %v3857, %v3869
        %v3874 = vadd.f32 %v3858, %v3870
        %3875 = vset.pattern.permute.xlu0 33
        %3876 = vperm.xlu0 %3875, %v905
        %v3877 = vpop.permute.xlu0 %3876
        %3879 = vset.pattern.permute.xlu0 33
        %3880 = vperm.xlu0 %3879, %v906
        %v3881 = vpop.permute.xlu0 %3880
        %v3883 = vmul.f32 %v3281, %v3877
        %v3884 = vmul.f32 %v3282, %v3877
        %v3885 = vmul.f32 %v3283, %v3881
        %v3886 = vmul.f32 %v3284, %v3881
        %v3887 = vadd.f32 %v3871, %v3883
        %v3888 = vadd.f32 %v3872, %v3884
        %v3889 = vadd.f32 %v3873, %v3885
        %v3890 = vadd.f32 %v3874, %v3886
        %3891 = vset.pattern.permute.xlu0 34
        %3892 = vperm.xlu0 %3891, %v905
        %v3893 = vpop.permute.xlu0 %3892
        %3895 = vset.pattern.permute.xlu0 34
        %3896 = vperm.xlu0 %3895, %v906
        %v3897 = vpop.permute.xlu0 %3896
        %v3899 = vmul.f32 %v3297, %v3893
        %v3900 = vmul.f32 %v3298, %v3893
        %v3901 = vmul.f32 %v3299, %v3897
        %v3902 = vmul.f32 %v3300, %v3897
        %v3903 = vadd.f32 %v3887, %v3899
        %v3904 = vadd.f32 %v3888, %v3900
        %v3905 = vadd.f32 %v3889, %v3901
        %v3906 = vadd.f32 %v3890, %v3902
        %3907 = vrot.lane.b32.xlu0 %v3903, 80
        %v3908 = vpop.permute.xlu0 %3907
        %3909 = vrot.lane.b32.xlu0 %v3905, 80
        %v3910 = vpop.permute.xlu0 %3909
        %3911 = vrot.lane.b32.xlu0 %v3904, 80
        %v3912 = vpop.permute.xlu0 %3911
        %3913 = vrot.lane.b32.xlu0 %v3906, 80
        %v3914 = vpop.permute.xlu0 %3913
        %v3915 = vsel %vm2349, %v3908, %v3912
        %v3916 = vsel %vm2349, %v3910, %v3914
        %v3917 = vsel %vm2349, %v3912, %v3908
        %v3918 = vsel %vm2349, %v3914, %v3910
        %v3919 = vmul.f32 %v3915, %v2357
        %v3920 = vmul.f32 %v3917, %v2358
        %v3921 = vmul.f32 %v3916, %v2357
        %v3922 = vmul.f32 %v3918, %v2358
        %v3923 = vadd.f32 %v3795, %v3919
        %v3924 = vadd.f32 %v3796, %v3920
        %v3925 = vadd.f32 %v3797, %v3921
        %v3926 = vadd.f32 %v3798, %v3922
        %3927 = vset.pattern.permute.xlu0 35
        %3928 = vperm.xlu0 %3927, %v905
        %v3929 = vpop.permute.xlu0 %3928
        %3931 = vset.pattern.permute.xlu0 35
        %3932 = vperm.xlu0 %3931, %v906
        %v3933 = vpop.permute.xlu0 %3932
        %v3935 = vmul.f32 %v3213, %v3929
        %v3936 = vmul.f32 %v3214, %v3929
        %v3937 = vmul.f32 %v3215, %v3933
        %v3938 = vmul.f32 %v3216, %v3933
        %3939 = vset.pattern.permute.xlu0 36
        %3940 = vperm.xlu0 %3939, %v905
        %v3941 = vpop.permute.xlu0 %3940
        %3943 = vset.pattern.permute.xlu0 36
        %3944 = vperm.xlu0 %3943, %v906
        %v3945 = vpop.permute.xlu0 %3944
        %v3947 = vmul.f32 %v3229, %v3941
        %v3948 = vmul.f32 %v3230, %v3941
        %v3949 = vmul.f32 %v3231, %v3945
        %v3950 = vmul.f32 %v3232, %v3945
        %v3951 = vadd.f32 %v3935, %v3947
        %v3952 = vadd.f32 %v3936, %v3948
        %v3953 = vadd.f32 %v3937, %v3949
        %v3954 = vadd.f32 %v3938, %v3950
        %3955 = vset.pattern.permute.xlu0 37
        %3956 = vperm.xlu0 %3955, %v905
        %v3957 = vpop.permute.xlu0 %3956
        %3959 = vset.pattern.permute.xlu0 37
        %3960 = vperm.xlu0 %3959, %v906
        %v3961 = vpop.permute.xlu0 %3960
        %v3963 = vmul.f32 %v3245, %v3957
        %v3964 = vmul.f32 %v3246, %v3957
        %v3965 = vmul.f32 %v3247, %v3961
        %v3966 = vmul.f32 %v3248, %v3961
        %v3967 = vadd.f32 %v3951, %v3963
        %v3968 = vadd.f32 %v3952, %v3964
        %v3969 = vadd.f32 %v3953, %v3965
        %v3970 = vadd.f32 %v3954, %v3966
        %3971 = vset.pattern.permute.xlu0 38
        %3972 = vperm.xlu0 %3971, %v905
        %v3973 = vpop.permute.xlu0 %3972
        %3975 = vset.pattern.permute.xlu0 38
        %3976 = vperm.xlu0 %3975, %v906
        %v3977 = vpop.permute.xlu0 %3976
        %v3979 = vmul.f32 %v3249, %v3973
        %v3980 = vmul.f32 %v3250, %v3973
        %v3981 = vmul.f32 %v3251, %v3977
        %v3982 = vmul.f32 %v3252, %v3977
        %v3983 = vadd.f32 %v3967, %v3979
        %v3984 = vadd.f32 %v3968, %v3980
        %v3985 = vadd.f32 %v3969, %v3981
        %v3986 = vadd.f32 %v3970, %v3982
        %3987 = vset.pattern.permute.xlu0 39
        %3988 = vperm.xlu0 %3987, %v905
        %v3989 = vpop.permute.xlu0 %3988
        %3991 = vset.pattern.permute.xlu0 39
        %3992 = vperm.xlu0 %3991, %v906
        %v3993 = vpop.permute.xlu0 %3992
        %v3995 = vmul.f32 %v3265, %v3989
        %v3996 = vmul.f32 %v3266, %v3989
        %v3997 = vmul.f32 %v3267, %v3993
        %v3998 = vmul.f32 %v3268, %v3993
        %v3999 = vadd.f32 %v3983, %v3995
        %v4000 = vadd.f32 %v3984, %v3996
        %v4001 = vadd.f32 %v3985, %v3997
        %v4002 = vadd.f32 %v3986, %v3998
        %4003 = vset.pattern.permute.xlu0 40
        %4004 = vperm.xlu0 %4003, %v905
        %v4005 = vpop.permute.xlu0 %4004
        %4007 = vset.pattern.permute.xlu0 40
        %4008 = vperm.xlu0 %4007, %v906
        %v4009 = vpop.permute.xlu0 %4008
        %v4011 = vmul.f32 %v3281, %v4005
        %v4012 = vmul.f32 %v3282, %v4005
        %v4013 = vmul.f32 %v3283, %v4009
        %v4014 = vmul.f32 %v3284, %v4009
        %v4015 = vadd.f32 %v3999, %v4011
        %v4016 = vadd.f32 %v4000, %v4012
        %v4017 = vadd.f32 %v4001, %v4013
        %v4018 = vadd.f32 %v4002, %v4014
        %4019 = vset.pattern.permute.xlu0 41
        %4020 = vperm.xlu0 %4019, %v905
        %v4021 = vpop.permute.xlu0 %4020
        %4023 = vset.pattern.permute.xlu0 41
        %4024 = vperm.xlu0 %4023, %v906
        %v4025 = vpop.permute.xlu0 %4024
        %v4027 = vmul.f32 %v3297, %v4021
        %v4028 = vmul.f32 %v3298, %v4021
        %v4029 = vmul.f32 %v3299, %v4025
        %v4030 = vmul.f32 %v3300, %v4025
        %v4031 = vadd.f32 %v4015, %v4027
        %v4032 = vadd.f32 %v4016, %v4028
        %v4033 = vadd.f32 %v4017, %v4029
        %v4034 = vadd.f32 %v4018, %v4030
        %4035 = vrot.lane.b32.xlu0 %v4031, 32
        %v4036 = vpop.permute.xlu0 %4035
        %4037 = vrot.lane.b32.xlu0 %v4033, 32
        %v4038 = vpop.permute.xlu0 %4037
        %4039 = vrot.lane.b32.xlu0 %v4032, 32
        %v4040 = vpop.permute.xlu0 %4039
        %4041 = vrot.lane.b32.xlu0 %v4034, 32
        %v4042 = vpop.permute.xlu0 %4041
        %v4043 = vsel %vm1121, %v4036, %v4040
        %v4044 = vsel %vm1121, %v4038, %v4042
        %v4045 = vsel %vm1121, %v4040, %v4036
        %v4046 = vsel %vm1121, %v4042, %v4038
        %v4047 = vmul.f32 %v4043, %v2492
        %v4048 = vmul.f32 %v4045, %v2493
        %v4049 = vmul.f32 %v4044, %v2492
        %v4050 = vmul.f32 %v4046, %v2493
        %v4051 = vadd.f32 %v3923, %v4047
        %v4052 = vadd.f32 %v3924, %v4048
        %v4053 = vadd.f32 %v3925, %v4049
        %v4054 = vadd.f32 %v3926, %v4050
        %4055 = vset.pattern.permute.xlu0 42
        %4056 = vperm.xlu0 %4055, %v905
        %v4057 = vpop.permute.xlu0 %4056
        %4059 = vset.pattern.permute.xlu0 42
        %4060 = vperm.xlu0 %4059, %v906
        %v4061 = vpop.permute.xlu0 %4060
        %v4063 = vmul.f32 %v3213, %v4057
        %v4064 = vmul.f32 %v3214, %v4057
        %v4065 = vmul.f32 %v3215, %v4061
        %v4066 = vmul.f32 %v3216, %v4061
        %4067 = vset.pattern.permute.xlu0 43
        %4068 = vperm.xlu0 %4067, %v905
        %v4069 = vpop.permute.xlu0 %4068
        %4071 = vset.pattern.permute.xlu0 43
        %4072 = vperm.xlu0 %4071, %v906
        %v4073 = vpop.permute.xlu0 %4072
        %v4075 = vmul.f32 %v3229, %v4069
        %v4076 = vmul.f32 %v3230, %v4069
        %v4077 = vmul.f32 %v3231, %v4073
        %v4078 = vmul.f32 %v3232, %v4073
        %v4079 = vadd.f32 %v4063, %v4075
        %v4080 = vadd.f32 %v4064, %v4076
        %v4081 = vadd.f32 %v4065, %v4077
        %v4082 = vadd.f32 %v4066, %v4078
        %4083 = vset.pattern.permute.xlu0 44
        %4084 = vperm.xlu0 %4083, %v905
        %v4085 = vpop.permute.xlu0 %4084
        %4087 = vset.pattern.permute.xlu0 44
        %4088 = vperm.xlu0 %4087, %v906
        %v4089 = vpop.permute.xlu0 %4088
        %v4091 = vmul.f32 %v3245, %v4085
        %v4092 = vmul.f32 %v3246, %v4085
        %v4093 = vmul.f32 %v3247, %v4089
        %v4094 = vmul.f32 %v3248, %v4089
        %v4095 = vadd.f32 %v4079, %v4091
        %v4096 = vadd.f32 %v4080, %v4092
        %v4097 = vadd.f32 %v4081, %v4093
        %v4098 = vadd.f32 %v4082, %v4094
        %4099 = vset.pattern.permute.xlu0 45
        %4100 = vperm.xlu0 %4099, %v905
        %v4101 = vpop.permute.xlu0 %4100
        %4103 = vset.pattern.permute.xlu0 45
        %4104 = vperm.xlu0 %4103, %v906
        %v4105 = vpop.permute.xlu0 %4104
        %v4107 = vmul.f32 %v3249, %v4101
        %v4108 = vmul.f32 %v3250, %v4101
        %v4109 = vmul.f32 %v3251, %v4105
        %v4110 = vmul.f32 %v3252, %v4105
        %v4111 = vadd.f32 %v4095, %v4107
        %v4112 = vadd.f32 %v4096, %v4108
        %v4113 = vadd.f32 %v4097, %v4109
        %v4114 = vadd.f32 %v4098, %v4110
        %4115 = vset.pattern.permute.xlu0 46
        %4116 = vperm.xlu0 %4115, %v905
        %v4117 = vpop.permute.xlu0 %4116
        %4119 = vset.pattern.permute.xlu0 46
        %4120 = vperm.xlu0 %4119, %v906
        %v4121 = vpop.permute.xlu0 %4120
        %v4123 = vmul.f32 %v3265, %v4117
        %v4124 = vmul.f32 %v3266, %v4117
        %v4125 = vmul.f32 %v3267, %v4121
        %v4126 = vmul.f32 %v3268, %v4121
        %v4127 = vadd.f32 %v4111, %v4123
        %v4128 = vadd.f32 %v4112, %v4124
        %v4129 = vadd.f32 %v4113, %v4125
        %v4130 = vadd.f32 %v4114, %v4126
        %4131 = vset.pattern.permute.xlu0 47
        %4132 = vperm.xlu0 %4131, %v905
        %v4133 = vpop.permute.xlu0 %4132
        %4135 = vset.pattern.permute.xlu0 47
        %4136 = vperm.xlu0 %4135, %v906
        %v4137 = vpop.permute.xlu0 %4136
        %v4139 = vmul.f32 %v3281, %v4133
        %v4140 = vmul.f32 %v3282, %v4133
        %v4141 = vmul.f32 %v3283, %v4137
        %v4142 = vmul.f32 %v3284, %v4137
        %v4143 = vadd.f32 %v4127, %v4139
        %v4144 = vadd.f32 %v4128, %v4140
        %v4145 = vadd.f32 %v4129, %v4141
        %v4146 = vadd.f32 %v4130, %v4142
        %4147 = vset.pattern.permute.xlu0 48
        %4148 = vperm.xlu0 %4147, %v905
        %v4149 = vpop.permute.xlu0 %4148
        %4151 = vset.pattern.permute.xlu0 48
        %4152 = vperm.xlu0 %4151, %v906
        %v4153 = vpop.permute.xlu0 %4152
        %v4155 = vmul.f32 %v3297, %v4149
        %v4156 = vmul.f32 %v3298, %v4149
        %v4157 = vmul.f32 %v3299, %v4153
        %v4158 = vmul.f32 %v3300, %v4153
        %v4159 = vadd.f32 %v4143, %v4155
        %v4160 = vadd.f32 %v4144, %v4156
        %v4161 = vadd.f32 %v4145, %v4157
        %v4162 = vadd.f32 %v4146, %v4158
        %4163 = vrot.lane.b32.xlu0 %v4159, 112
        %v4164 = vpop.permute.xlu0 %4163
        %4165 = vrot.lane.b32.xlu0 %v4161, 112
        %v4166 = vpop.permute.xlu0 %4165
        %4167 = vrot.lane.b32.xlu0 %v4160, 112
        %v4168 = vpop.permute.xlu0 %4167
        %4169 = vrot.lane.b32.xlu0 %v4162, 112
        %v4170 = vpop.permute.xlu0 %4169
        %v4171 = vsel %vm1415, %v4164, %v4168
        %v4172 = vsel %vm1415, %v4166, %v4170
        %v4173 = vsel %vm1415, %v4168, %v4164
        %v4174 = vsel %vm1415, %v4170, %v4166
        %v4175 = vmul.f32 %v4173, %v2627
        %v4176 = vmul.f32 %v4171, %v2628
        %v4177 = vmul.f32 %v4174, %v2627
        %v4178 = vmul.f32 %v4172, %v2628
        %v4179 = vadd.f32 %v4051, %v4175
        %v4180 = vadd.f32 %v4052, %v4176
        %v4181 = vadd.f32 %v4053, %v4177
        %v4182 = vadd.f32 %v4054, %v4178
        %4184 = vset.pattern.permute.xlu0 0
        %4185 = vperm.xlu0 %4184, %v921
        %v4186 = vpop.permute.xlu0 %4185
        %4189 = vset.pattern.permute.xlu0 0
        %4190 = vperm.xlu0 %4189, %v922
        %v4191 = vpop.permute.xlu0 %4190
        %v4193 = vadd.f32 %v4179, %v4186
        %v4194 = vadd.f32 %v4180, %v4186
        %v4195 = vadd.f32 %v4181, %v4191
        %v4196 = vadd.f32 %v4182, %v4191
        %4197 = vrot.lane.b32.xlu0 %v887, 2
        %v4198 = vpop.permute.xlu0 %4197
        %4199 = vrot.lane.b32.xlu0 %v889, 2
        %v4200 = vpop.permute.xlu0 %4199
        %4201 = vrot.lane.b32.xlu0 %v888, 2
        %v4202 = vpop.permute.xlu0 %4201
        %4203 = vrot.lane.b32.xlu0 %v890, 2
        %v4204 = vpop.permute.xlu0 %4203
        %v4205 = vsel %vm937, %v4198, %v4202
        %v4206 = vsel %vm937, %v4200, %v4204
        %v4207 = vsel %vm937, %v4202, %v4198
        %v4208 = vsel %vm937, %v4204, %v4200
        %v4209 = vmul.f32 %v4207, %v944
        %v4210 = vmul.f32 %v4205, %v945
        %v4211 = vmul.f32 %v4208, %v944
        %v4212 = vmul.f32 %v4206, %v945
        %4213 = vrot.lane.b32.xlu0 %v887, 1
        %v4214 = vpop.permute.xlu0 %4213
        %4215 = vrot.lane.b32.xlu0 %v889, 1
        %v4216 = vpop.permute.xlu0 %4215
        %4217 = vrot.lane.b32.xlu0 %v888, 1
        %v4218 = vpop.permute.xlu0 %4217
        %4219 = vrot.lane.b32.xlu0 %v890, 1
        %v4220 = vpop.permute.xlu0 %4219
        %v4221 = vsel %vm960, %v4214, %v4218
        %v4222 = vsel %vm960, %v4216, %v4220
        %v4223 = vsel %vm960, %v4218, %v4214
        %v4224 = vsel %vm960, %v4220, %v4216
        %v4225 = vmul.f32 %v4223, %v968
        %v4226 = vmul.f32 %v4221, %v969
        %v4227 = vmul.f32 %v4224, %v968
        %v4228 = vmul.f32 %v4222, %v969
        %v4229 = vmul.f32 %v887, %v979
        %v4230 = vmul.f32 %v888, %v980
        %v4231 = vmul.f32 %v889, %v979
        %v4232 = vmul.f32 %v890, %v980
        %4233 = vrot.lane.b32.xlu0 %v887, 127
        %v4234 = vpop.permute.xlu0 %4233
        %4235 = vrot.lane.b32.xlu0 %v889, 127
        %v4236 = vpop.permute.xlu0 %4235
        %4237 = vrot.lane.b32.xlu0 %v888, 127
        %v4238 = vpop.permute.xlu0 %4237
        %4239 = vrot.lane.b32.xlu0 %v890, 127
        %v4240 = vpop.permute.xlu0 %4239
        %v4241 = vsel %vm995, %v4234, %v4238
        %v4242 = vsel %vm995, %v4236, %v4240
        %v4243 = vsel %vm995, %v4238, %v4234
        %v4244 = vsel %vm995, %v4240, %v4236
        %v4245 = vmul.f32 %v4241, %v1003
        %v4246 = vmul.f32 %v4243, %v1004
        %v4247 = vmul.f32 %v4242, %v1003
        %v4248 = vmul.f32 %v4244, %v1004
        %4249 = vrot.lane.b32.xlu0 %v887, 126
        %v4250 = vpop.permute.xlu0 %4249
        %4251 = vrot.lane.b32.xlu0 %v889, 126
        %v4252 = vpop.permute.xlu0 %4251
        %4253 = vrot.lane.b32.xlu0 %v888, 126
        %v4254 = vpop.permute.xlu0 %4253
        %4255 = vrot.lane.b32.xlu0 %v890, 126
        %v4256 = vpop.permute.xlu0 %4255
        %v4257 = vsel %vm1019, %v4250, %v4254
        %v4258 = vsel %vm1019, %v4252, %v4256
        %v4259 = vsel %vm1019, %v4254, %v4250
        %v4260 = vsel %vm1019, %v4256, %v4252
        %v4261 = vmul.f32 %v4257, %v1027
        %v4262 = vmul.f32 %v4259, %v1028
        %v4263 = vmul.f32 %v4258, %v1027
        %v4264 = vmul.f32 %v4260, %v1028
        %4266 = vset.pattern.permute.xlu0 0
        %4267 = vperm.xlu0 %4266, %v899
        %v4268 = vpop.permute.xlu0 %4267
        %4271 = vset.pattern.permute.xlu0 0
        %4272 = vperm.xlu0 %4271, %v900
        %v4273 = vpop.permute.xlu0 %4272
        %v4275 = vmul.f32 %v4209, %v4268
        %v4276 = vmul.f32 %v4210, %v4268
        %v4277 = vmul.f32 %v4211, %v4273
        %v4278 = vmul.f32 %v4212, %v4273
        %4279 = vset.pattern.permute.xlu0 1
        %4280 = vperm.xlu0 %4279, %v899
        %v4281 = vpop.permute.xlu0 %4280
        %4283 = vset.pattern.permute.xlu0 1
        %4284 = vperm.xlu0 %4283, %v900
        %v4285 = vpop.permute.xlu0 %4284
        %v4287 = vmul.f32 %v4225, %v4281
        %v4288 = vmul.f32 %v4226, %v4281
        %v4289 = vmul.f32 %v4227, %v4285
        %v4290 = vmul.f32 %v4228, %v4285
        %v4291 = vadd.f32 %v4275, %v4287
        %v4292 = vadd.f32 %v4276, %v4288
        %v4293 = vadd.f32 %v4277, %v4289
        %v4294 = vadd.f32 %v4278, %v4290
        %4295 = vset.pattern.permute.xlu0 2
        %4296 = vperm.xlu0 %4295, %v899
        %v4297 = vpop.permute.xlu0 %4296
        %4299 = vset.pattern.permute.xlu0 2
        %4300 = vperm.xlu0 %4299, %v900
        %v4301 = vpop.permute.xlu0 %4300
        %v4303 = vmul.f32 %v4229, %v4297
        %v4304 = vmul.f32 %v4230, %v4297
        %v4305 = vmul.f32 %v4231, %v4301
        %v4306 = vmul.f32 %v4232, %v4301
        %v4307 = vadd.f32 %v4291, %v4303
        %v4308 = vadd.f32 %v4292, %v4304
        %v4309 = vadd.f32 %v4293, %v4305
        %v4310 = vadd.f32 %v4294, %v4306
        %4311 = vset.pattern.permute.xlu0 3
        %4312 = vperm.xlu0 %4311, %v899
        %v4313 = vpop.permute.xlu0 %4312
        %4315 = vset.pattern.permute.xlu0 3
        %4316 = vperm.xlu0 %4315, %v900
        %v4317 = vpop.permute.xlu0 %4316
        %v4319 = vmul.f32 %v4245, %v4313
        %v4320 = vmul.f32 %v4246, %v4313
        %v4321 = vmul.f32 %v4247, %v4317
        %v4322 = vmul.f32 %v4248, %v4317
        %v4323 = vadd.f32 %v4307, %v4319
        %v4324 = vadd.f32 %v4308, %v4320
        %v4325 = vadd.f32 %v4309, %v4321
        %v4326 = vadd.f32 %v4310, %v4322
        %4327 = vset.pattern.permute.xlu0 4
        %4328 = vperm.xlu0 %4327, %v899
        %v4329 = vpop.permute.xlu0 %4328
        %4331 = vset.pattern.permute.xlu0 4
        %4332 = vperm.xlu0 %4331, %v900
        %v4333 = vpop.permute.xlu0 %4332
        %v4335 = vmul.f32 %v4261, %v4329
        %v4336 = vmul.f32 %v4262, %v4329
        %v4337 = vmul.f32 %v4263, %v4333
        %v4338 = vmul.f32 %v4264, %v4333
        %v4339 = vadd.f32 %v4323, %v4335
        %v4340 = vadd.f32 %v4324, %v4336
        %v4341 = vadd.f32 %v4325, %v4337
        %v4342 = vadd.f32 %v4326, %v4338
        %4343 = vrot.lane.b32.xlu0 %v4339, 32
        %v4344 = vpop.permute.xlu0 %4343
        %4345 = vrot.lane.b32.xlu0 %v4341, 32
        %v4346 = vpop.permute.xlu0 %4345
        %4347 = vrot.lane.b32.xlu0 %v4340, 32
        %v4348 = vpop.permute.xlu0 %4347
        %4349 = vrot.lane.b32.xlu0 %v4342, 32
        %v4350 = vpop.permute.xlu0 %4349
        %v4351 = vsel %vm1121, %v4344, %v4348
        %v4352 = vsel %vm1121, %v4346, %v4350
        %v4353 = vsel %vm1121, %v4348, %v4344
        %v4354 = vsel %vm1121, %v4350, %v4346
        %v4355 = vmul.f32 %v4353, %v1128
        %v4356 = vmul.f32 %v4351, %v1129
        %v4357 = vmul.f32 %v4354, %v1128
        %v4358 = vmul.f32 %v4352, %v1129
        %4359 = vset.pattern.permute.xlu0 5
        %4360 = vperm.xlu0 %4359, %v899
        %v4361 = vpop.permute.xlu0 %4360
        %4363 = vset.pattern.permute.xlu0 5
        %4364 = vperm.xlu0 %4363, %v900
        %v4365 = vpop.permute.xlu0 %4364
        %v4367 = vmul.f32 %v4209, %v4361
        %v4368 = vmul.f32 %v4210, %v4361
        %v4369 = vmul.f32 %v4211, %v4365
        %v4370 = vmul.f32 %v4212, %v4365
        %4371 = vset.pattern.permute.xlu0 6
        %4372 = vperm.xlu0 %4371, %v899
        %v4373 = vpop.permute.xlu0 %4372
        %4375 = vset.pattern.permute.xlu0 6
        %4376 = vperm.xlu0 %4375, %v900
        %v4377 = vpop.permute.xlu0 %4376
        %v4379 = vmul.f32 %v4225, %v4373
        %v4380 = vmul.f32 %v4226, %v4373
        %v4381 = vmul.f32 %v4227, %v4377
        %v4382 = vmul.f32 %v4228, %v4377
        %v4383 = vadd.f32 %v4367, %v4379
        %v4384 = vadd.f32 %v4368, %v4380
        %v4385 = vadd.f32 %v4369, %v4381
        %v4386 = vadd.f32 %v4370, %v4382
        %4387 = vset.pattern.permute.xlu0 7
        %4388 = vperm.xlu0 %4387, %v899
        %v4389 = vpop.permute.xlu0 %4388
        %4391 = vset.pattern.permute.xlu0 7
        %4392 = vperm.xlu0 %4391, %v900
        %v4393 = vpop.permute.xlu0 %4392
        %v4395 = vmul.f32 %v4229, %v4389
        %v4396 = vmul.f32 %v4230, %v4389
        %v4397 = vmul.f32 %v4231, %v4393
        %v4398 = vmul.f32 %v4232, %v4393
        %v4399 = vadd.f32 %v4383, %v4395
        %v4400 = vadd.f32 %v4384, %v4396
        %v4401 = vadd.f32 %v4385, %v4397
        %v4402 = vadd.f32 %v4386, %v4398
        %4403 = vset.pattern.permute.xlu0 8
        %4404 = vperm.xlu0 %4403, %v899
        %v4405 = vpop.permute.xlu0 %4404
        %4407 = vset.pattern.permute.xlu0 8
        %4408 = vperm.xlu0 %4407, %v900
        %v4409 = vpop.permute.xlu0 %4408
        %v4411 = vmul.f32 %v4245, %v4405
        %v4412 = vmul.f32 %v4246, %v4405
        %v4413 = vmul.f32 %v4247, %v4409
        %v4414 = vmul.f32 %v4248, %v4409
        %v4415 = vadd.f32 %v4399, %v4411
        %v4416 = vadd.f32 %v4400, %v4412
        %v4417 = vadd.f32 %v4401, %v4413
        %v4418 = vadd.f32 %v4402, %v4414
        %4419 = vset.pattern.permute.xlu0 9
        %4420 = vperm.xlu0 %4419, %v899
        %v4421 = vpop.permute.xlu0 %4420
        %4423 = vset.pattern.permute.xlu0 9
        %4424 = vperm.xlu0 %4423, %v900
        %v4425 = vpop.permute.xlu0 %4424
        %v4427 = vmul.f32 %v4261, %v4421
        %v4428 = vmul.f32 %v4262, %v4421
        %v4429 = vmul.f32 %v4263, %v4425
        %v4430 = vmul.f32 %v4264, %v4425
        %v4431 = vadd.f32 %v4415, %v4427
        %v4432 = vadd.f32 %v4416, %v4428
        %v4433 = vadd.f32 %v4417, %v4429
        %v4434 = vadd.f32 %v4418, %v4430
        %4435 = vrot.lane.b32.xlu0 %v4431, 16
        %v4436 = vpop.permute.xlu0 %4435
        %4437 = vrot.lane.b32.xlu0 %v4433, 16
        %v4438 = vpop.permute.xlu0 %4437
        %4439 = vrot.lane.b32.xlu0 %v4432, 16
        %v4440 = vpop.permute.xlu0 %4439
        %4441 = vrot.lane.b32.xlu0 %v4434, 16
        %v4442 = vpop.permute.xlu0 %4441
        %v4443 = vsel %vm1220, %v4436, %v4440
        %v4444 = vsel %vm1220, %v4438, %v4442
        %v4445 = vsel %vm1220, %v4440, %v4436
        %v4446 = vsel %vm1220, %v4442, %v4438
        %v4447 = vmul.f32 %v4445, %v1228
        %v4448 = vmul.f32 %v4443, %v1229
        %v4449 = vmul.f32 %v4446, %v1228
        %v4450 = vmul.f32 %v4444, %v1229
        %v4451 = vadd.f32 %v4355, %v4447
        %v4452 = vadd.f32 %v4356, %v4448
        %v4453 = vadd.f32 %v4357, %v4449
        %v4454 = vadd.f32 %v4358, %v4450
        %4455 = vset.pattern.permute.xlu0 10
        %4456 = vperm.xlu0 %4455, %v899
        %v4457 = vpop.permute.xlu0 %4456
        %4459 = vset.pattern.permute.xlu0 10
        %4460 = vperm.xlu0 %4459, %v900
        %v4461 = vpop.permute.xlu0 %4460
        %v4463 = vmul.f32 %v4209, %v4457
        %v4464 = vmul.f32 %v4210, %v4457
        %v4465 = vmul.f32 %v4211, %v4461
        %v4466 = vmul.f32 %v4212, %v4461
        %4467 = vset.pattern.permute.xlu0 11
        %4468 = vperm.xlu0 %4467, %v899
        %v4469 = vpop.permute.xlu0 %4468
        %4471 = vset.pattern.permute.xlu0 11
        %4472 = vperm.xlu0 %4471, %v900
        %v4473 = vpop.permute.xlu0 %4472
        %v4475 = vmul.f32 %v4225, %v4469
        %v4476 = vmul.f32 %v4226, %v4469
        %v4477 = vmul.f32 %v4227, %v4473
        %v4478 = vmul.f32 %v4228, %v4473
        %v4479 = vadd.f32 %v4463, %v4475
        %v4480 = vadd.f32 %v4464, %v4476
        %v4481 = vadd.f32 %v4465, %v4477
        %v4482 = vadd.f32 %v4466, %v4478
        %4483 = vset.pattern.permute.xlu0 12
        %4484 = vperm.xlu0 %4483, %v899
        %v4485 = vpop.permute.xlu0 %4484
        %4487 = vset.pattern.permute.xlu0 12
        %4488 = vperm.xlu0 %4487, %v900
        %v4489 = vpop.permute.xlu0 %4488
        %v4491 = vmul.f32 %v4229, %v4485
        %v4492 = vmul.f32 %v4230, %v4485
        %v4493 = vmul.f32 %v4231, %v4489
        %v4494 = vmul.f32 %v4232, %v4489
        %v4495 = vadd.f32 %v4479, %v4491
        %v4496 = vadd.f32 %v4480, %v4492
        %v4497 = vadd.f32 %v4481, %v4493
        %v4498 = vadd.f32 %v4482, %v4494
        %4499 = vset.pattern.permute.xlu0 13
        %4500 = vperm.xlu0 %4499, %v899
        %v4501 = vpop.permute.xlu0 %4500
        %4503 = vset.pattern.permute.xlu0 13
        %4504 = vperm.xlu0 %4503, %v900
        %v4505 = vpop.permute.xlu0 %4504
        %v4507 = vmul.f32 %v4245, %v4501
        %v4508 = vmul.f32 %v4246, %v4501
        %v4509 = vmul.f32 %v4247, %v4505
        %v4510 = vmul.f32 %v4248, %v4505
        %v4511 = vadd.f32 %v4495, %v4507
        %v4512 = vadd.f32 %v4496, %v4508
        %v4513 = vadd.f32 %v4497, %v4509
        %v4514 = vadd.f32 %v4498, %v4510
        %4515 = vset.pattern.permute.xlu0 14
        %4516 = vperm.xlu0 %4515, %v899
        %v4517 = vpop.permute.xlu0 %4516
        %4519 = vset.pattern.permute.xlu0 14
        %4520 = vperm.xlu0 %4519, %v900
        %v4521 = vpop.permute.xlu0 %4520
        %v4523 = vmul.f32 %v4261, %v4517
        %v4524 = vmul.f32 %v4262, %v4517
        %v4525 = vmul.f32 %v4263, %v4521
        %v4526 = vmul.f32 %v4264, %v4521
        %v4527 = vadd.f32 %v4511, %v4523
        %v4528 = vadd.f32 %v4512, %v4524
        %v4529 = vadd.f32 %v4513, %v4525
        %v4530 = vadd.f32 %v4514, %v4526
        %v4531 = vmul.f32 %v4527, %v1319
        %v4532 = vmul.f32 %v4528, %v1320
        %v4533 = vmul.f32 %v4529, %v1319
        %v4534 = vmul.f32 %v4530, %v1320
        %v4535 = vadd.f32 %v4451, %v4531
        %v4536 = vadd.f32 %v4452, %v4532
        %v4537 = vadd.f32 %v4453, %v4533
        %v4538 = vadd.f32 %v4454, %v4534
        %4539 = vset.pattern.permute.xlu0 15
        %4540 = vperm.xlu0 %4539, %v899
        %v4541 = vpop.permute.xlu0 %4540
        %4543 = vset.pattern.permute.xlu0 15
        %4544 = vperm.xlu0 %4543, %v900
        %v4545 = vpop.permute.xlu0 %4544
        %v4547 = vmul.f32 %v4209, %v4541
        %v4548 = vmul.f32 %v4210, %v4541
        %v4549 = vmul.f32 %v4211, %v4545
        %v4550 = vmul.f32 %v4212, %v4545
        %4551 = vset.pattern.permute.xlu0 16
        %4552 = vperm.xlu0 %4551, %v899
        %v4553 = vpop.permute.xlu0 %4552
        %4555 = vset.pattern.permute.xlu0 16
        %4556 = vperm.xlu0 %4555, %v900
        %v4557 = vpop.permute.xlu0 %4556
        %v4559 = vmul.f32 %v4225, %v4553
        %v4560 = vmul.f32 %v4226, %v4553
        %v4561 = vmul.f32 %v4227, %v4557
        %v4562 = vmul.f32 %v4228, %v4557
        %v4563 = vadd.f32 %v4547, %v4559
        %v4564 = vadd.f32 %v4548, %v4560
        %v4565 = vadd.f32 %v4549, %v4561
        %v4566 = vadd.f32 %v4550, %v4562
        %4567 = vset.pattern.permute.xlu0 17
        %4568 = vperm.xlu0 %4567, %v899
        %v4569 = vpop.permute.xlu0 %4568
        %4571 = vset.pattern.permute.xlu0 17
        %4572 = vperm.xlu0 %4571, %v900
        %v4573 = vpop.permute.xlu0 %4572
        %v4575 = vmul.f32 %v4229, %v4569
        %v4576 = vmul.f32 %v4230, %v4569
        %v4577 = vmul.f32 %v4231, %v4573
        %v4578 = vmul.f32 %v4232, %v4573
        %v4579 = vadd.f32 %v4563, %v4575
        %v4580 = vadd.f32 %v4564, %v4576
        %v4581 = vadd.f32 %v4565, %v4577
        %v4582 = vadd.f32 %v4566, %v4578
        %4583 = vset.pattern.permute.xlu0 18
        %4584 = vperm.xlu0 %4583, %v899
        %v4585 = vpop.permute.xlu0 %4584
        %4587 = vset.pattern.permute.xlu0 18
        %4588 = vperm.xlu0 %4587, %v900
        %v4589 = vpop.permute.xlu0 %4588
        %v4591 = vmul.f32 %v4245, %v4585
        %v4592 = vmul.f32 %v4246, %v4585
        %v4593 = vmul.f32 %v4247, %v4589
        %v4594 = vmul.f32 %v4248, %v4589
        %v4595 = vadd.f32 %v4579, %v4591
        %v4596 = vadd.f32 %v4580, %v4592
        %v4597 = vadd.f32 %v4581, %v4593
        %v4598 = vadd.f32 %v4582, %v4594
        %4599 = vset.pattern.permute.xlu0 19
        %4600 = vperm.xlu0 %4599, %v899
        %v4601 = vpop.permute.xlu0 %4600
        %4603 = vset.pattern.permute.xlu0 19
        %4604 = vperm.xlu0 %4603, %v900
        %v4605 = vpop.permute.xlu0 %4604
        %v4607 = vmul.f32 %v4261, %v4601
        %v4608 = vmul.f32 %v4262, %v4601
        %v4609 = vmul.f32 %v4263, %v4605
        %v4610 = vmul.f32 %v4264, %v4605
        %v4611 = vadd.f32 %v4595, %v4607
        %v4612 = vadd.f32 %v4596, %v4608
        %v4613 = vadd.f32 %v4597, %v4609
        %v4614 = vadd.f32 %v4598, %v4610
        %4615 = vrot.lane.b32.xlu0 %v4611, 112
        %v4616 = vpop.permute.xlu0 %4615
        %4617 = vrot.lane.b32.xlu0 %v4613, 112
        %v4618 = vpop.permute.xlu0 %4617
        %4619 = vrot.lane.b32.xlu0 %v4612, 112
        %v4620 = vpop.permute.xlu0 %4619
        %4621 = vrot.lane.b32.xlu0 %v4614, 112
        %v4622 = vpop.permute.xlu0 %4621
        %v4623 = vsel %vm1415, %v4616, %v4620
        %v4624 = vsel %vm1415, %v4618, %v4622
        %v4625 = vsel %vm1415, %v4620, %v4616
        %v4626 = vsel %vm1415, %v4622, %v4618
        %v4627 = vmul.f32 %v4623, %v1423
        %v4628 = vmul.f32 %v4625, %v1424
        %v4629 = vmul.f32 %v4624, %v1423
        %v4630 = vmul.f32 %v4626, %v1424
        %v4631 = vadd.f32 %v4535, %v4627
        %v4632 = vadd.f32 %v4536, %v4628
        %v4633 = vadd.f32 %v4537, %v4629
        %v4634 = vadd.f32 %v4538, %v4630
        %4635 = vset.pattern.permute.xlu0 20
        %4636 = vperm.xlu0 %4635, %v899
        %v4637 = vpop.permute.xlu0 %4636
        %4639 = vset.pattern.permute.xlu0 20
        %4640 = vperm.xlu0 %4639, %v900
        %v4641 = vpop.permute.xlu0 %4640
        %v4643 = vmul.f32 %v4209, %v4637
        %v4644 = vmul.f32 %v4210, %v4637
        %v4645 = vmul.f32 %v4211, %v4641
        %v4646 = vmul.f32 %v4212, %v4641
        %4647 = vset.pattern.permute.xlu0 21
        %4648 = vperm.xlu0 %4647, %v899
        %v4649 = vpop.permute.xlu0 %4648
        %4651 = vset.pattern.permute.xlu0 21
        %4652 = vperm.xlu0 %4651, %v900
        %v4653 = vpop.permute.xlu0 %4652
        %v4655 = vmul.f32 %v4225, %v4649
        %v4656 = vmul.f32 %v4226, %v4649
        %v4657 = vmul.f32 %v4227, %v4653
        %v4658 = vmul.f32 %v4228, %v4653
        %v4659 = vadd.f32 %v4643, %v4655
        %v4660 = vadd.f32 %v4644, %v4656
        %v4661 = vadd.f32 %v4645, %v4657
        %v4662 = vadd.f32 %v4646, %v4658
        %4663 = vset.pattern.permute.xlu0 22
        %4664 = vperm.xlu0 %4663, %v899
        %v4665 = vpop.permute.xlu0 %4664
        %4667 = vset.pattern.permute.xlu0 22
        %4668 = vperm.xlu0 %4667, %v900
        %v4669 = vpop.permute.xlu0 %4668
        %v4671 = vmul.f32 %v4229, %v4665
        %v4672 = vmul.f32 %v4230, %v4665
        %v4673 = vmul.f32 %v4231, %v4669
        %v4674 = vmul.f32 %v4232, %v4669
        %v4675 = vadd.f32 %v4659, %v4671
        %v4676 = vadd.f32 %v4660, %v4672
        %v4677 = vadd.f32 %v4661, %v4673
        %v4678 = vadd.f32 %v4662, %v4674
        %4679 = vset.pattern.permute.xlu0 23
        %4680 = vperm.xlu0 %4679, %v899
        %v4681 = vpop.permute.xlu0 %4680
        %4683 = vset.pattern.permute.xlu0 23
        %4684 = vperm.xlu0 %4683, %v900
        %v4685 = vpop.permute.xlu0 %4684
        %v4687 = vmul.f32 %v4245, %v4681
        %v4688 = vmul.f32 %v4246, %v4681
        %v4689 = vmul.f32 %v4247, %v4685
        %v4690 = vmul.f32 %v4248, %v4685
        %v4691 = vadd.f32 %v4675, %v4687
        %v4692 = vadd.f32 %v4676, %v4688
        %v4693 = vadd.f32 %v4677, %v4689
        %v4694 = vadd.f32 %v4678, %v4690
        %4695 = vset.pattern.permute.xlu0 24
        %4696 = vperm.xlu0 %4695, %v899
        %v4697 = vpop.permute.xlu0 %4696
        %4699 = vset.pattern.permute.xlu0 24
        %4700 = vperm.xlu0 %4699, %v900
        %v4701 = vpop.permute.xlu0 %4700
        %v4703 = vmul.f32 %v4261, %v4697
        %v4704 = vmul.f32 %v4262, %v4697
        %v4705 = vmul.f32 %v4263, %v4701
        %v4706 = vmul.f32 %v4264, %v4701
        %v4707 = vadd.f32 %v4691, %v4703
        %v4708 = vadd.f32 %v4692, %v4704
        %v4709 = vadd.f32 %v4693, %v4705
        %v4710 = vadd.f32 %v4694, %v4706
        %4711 = vrot.lane.b32.xlu0 %v4707, 96
        %v4712 = vpop.permute.xlu0 %4711
        %4713 = vrot.lane.b32.xlu0 %v4709, 96
        %v4714 = vpop.permute.xlu0 %4713
        %4715 = vrot.lane.b32.xlu0 %v4708, 96
        %v4716 = vpop.permute.xlu0 %4715
        %4717 = vrot.lane.b32.xlu0 %v4710, 96
        %v4718 = vpop.permute.xlu0 %4717
        %v4719 = vsel %vm1519, %v4712, %v4716
        %v4720 = vsel %vm1519, %v4714, %v4718
        %v4721 = vsel %vm1519, %v4716, %v4712
        %v4722 = vsel %vm1519, %v4718, %v4714
        %v4723 = vmul.f32 %v4719, %v1527
        %v4724 = vmul.f32 %v4721, %v1528
        %v4725 = vmul.f32 %v4720, %v1527
        %v4726 = vmul.f32 %v4722, %v1528
        %v4727 = vadd.f32 %v4631, %v4723
        %v4728 = vadd.f32 %v4632, %v4724
        %v4729 = vadd.f32 %v4633, %v4725
        %v4730 = vadd.f32 %v4634, %v4726
        %4732 = vset.pattern.permute.xlu0 0
        %4733 = vperm.xlu0 %4732, %v915
        %v4734 = vpop.permute.xlu0 %4733
        %4737 = vset.pattern.permute.xlu0 0
        %4738 = vperm.xlu0 %4737, %v916
        %v4739 = vpop.permute.xlu0 %4738
        %v4741 = vadd.f32 %v4727, %v4734
        %v4742 = vadd.f32 %v4728, %v4734
        %v4743 = vadd.f32 %v4729, %v4739
        %v4744 = vadd.f32 %v4730, %v4739
        %4745 = vrot.lane.b32.xlu0 %v4741, 9
        %v4746 = vpop.permute.xlu0 %4745
        %4747 = vrot.lane.b32.xlu0 %v4743, 9
        %v4748 = vpop.permute.xlu0 %4747
        %4749 = vrot.lane.b32.xlu0 %v4742, 9
        %v4750 = vpop.permute.xlu0 %4749
        %4751 = vrot.lane.b32.xlu0 %v4744, 9
        %v4752 = vpop.permute.xlu0 %4751
        %v4753 = vsel %vm1561, %v4746, %v4750
        %v4754 = vsel %vm1561, %v4748, %v4752
        %v4755 = vsel %vm1561, %v4750, %v4746
        %v4756 = vsel %vm1561, %v4752, %v4748
        %v4757 = vmul.f32 %v4755, %v1568
        %v4758 = vmul.f32 %v4753, %v1569
        %v4759 = vmul.f32 %v4756, %v1568
        %v4760 = vmul.f32 %v4754, %v1569
        %4761 = vrot.lane.b32.xlu0 %v4741, 6
        %v4762 = vpop.permute.xlu0 %4761
        %4763 = vrot.lane.b32.xlu0 %v4743, 6
        %v4764 = vpop.permute.xlu0 %4763
        %4765 = vrot.lane.b32.xlu0 %v4742, 6
        %v4766 = vpop.permute.xlu0 %4765
        %4767 = vrot.lane.b32.xlu0 %v4744, 6
        %v4768 = vpop.permute.xlu0 %4767
        %v4769 = vsel %vm1584, %v4762, %v4766
        %v4770 = vsel %vm1584, %v4764, %v4768
        %v4771 = vsel %vm1584, %v4766, %v4762
        %v4772 = vsel %vm1584, %v4768, %v4764
        %v4773 = vmul.f32 %v4771, %v1592
        %v4774 = vmul.f32 %v4769, %v1593
        %v4775 = vmul.f32 %v4772, %v1592
        %v4776 = vmul.f32 %v4770, %v1593
        %4777 = vrot.lane.b32.xlu0 %v4741, 3
        %v4778 = vpop.permute.xlu0 %4777
        %4779 = vrot.lane.b32.xlu0 %v4743, 3
        %v4780 = vpop.permute.xlu0 %4779
        %4781 = vrot.lane.b32.xlu0 %v4742, 3
        %v4782 = vpop.permute.xlu0 %4781
        %4783 = vrot.lane.b32.xlu0 %v4744, 3
        %v4784 = vpop.permute.xlu0 %4783
        %v4785 = vsel %vm1608, %v4778, %v4782
        %v4786 = vsel %vm1608, %v4780, %v4784
        %v4787 = vsel %vm1608, %v4782, %v4778
        %v4788 = vsel %vm1608, %v4784, %v4780
        %v4789 = vmul.f32 %v4787, %v1616
        %v4790 = vmul.f32 %v4785, %v1617
        %v4791 = vmul.f32 %v4788, %v1616
        %v4792 = vmul.f32 %v4786, %v1617
        %v4793 = vmul.f32 %v4741, %v1627
        %v4794 = vmul.f32 %v4742, %v1628
        %v4795 = vmul.f32 %v4743, %v1627
        %v4796 = vmul.f32 %v4744, %v1628
        %4797 = vrot.lane.b32.xlu0 %v4741, 125
        %v4798 = vpop.permute.xlu0 %4797
        %4799 = vrot.lane.b32.xlu0 %v4743, 125
        %v4800 = vpop.permute.xlu0 %4799
        %4801 = vrot.lane.b32.xlu0 %v4742, 125
        %v4802 = vpop.permute.xlu0 %4801
        %4803 = vrot.lane.b32.xlu0 %v4744, 125
        %v4804 = vpop.permute.xlu0 %4803
        %v4805 = vsel %vm1643, %v4798, %v4802
        %v4806 = vsel %vm1643, %v4800, %v4804
        %v4807 = vsel %vm1643, %v4802, %v4798
        %v4808 = vsel %vm1643, %v4804, %v4800
        %v4809 = vmul.f32 %v4805, %v1651
        %v4810 = vmul.f32 %v4807, %v1652
        %v4811 = vmul.f32 %v4806, %v1651
        %v4812 = vmul.f32 %v4808, %v1652
        %4813 = vrot.lane.b32.xlu0 %v4741, 122
        %v4814 = vpop.permute.xlu0 %4813
        %4815 = vrot.lane.b32.xlu0 %v4743, 122
        %v4816 = vpop.permute.xlu0 %4815
        %4817 = vrot.lane.b32.xlu0 %v4742, 122
        %v4818 = vpop.permute.xlu0 %4817
        %4819 = vrot.lane.b32.xlu0 %v4744, 122
        %v4820 = vpop.permute.xlu0 %4819
        %v4821 = vsel %vm1667, %v4814, %v4818
        %v4822 = vsel %vm1667, %v4816, %v4820
        %v4823 = vsel %vm1667, %v4818, %v4814
        %v4824 = vsel %vm1667, %v4820, %v4816
        %v4825 = vmul.f32 %v4821, %v1675
        %v4826 = vmul.f32 %v4823, %v1676
        %v4827 = vmul.f32 %v4822, %v1675
        %v4828 = vmul.f32 %v4824, %v1676
        %4829 = vrot.lane.b32.xlu0 %v4741, 119
        %v4830 = vpop.permute.xlu0 %4829
        %4831 = vrot.lane.b32.xlu0 %v4743, 119
        %v4832 = vpop.permute.xlu0 %4831
        %4833 = vrot.lane.b32.xlu0 %v4742, 119
        %v4834 = vpop.permute.xlu0 %4833
        %4835 = vrot.lane.b32.xlu0 %v4744, 119
        %v4836 = vpop.permute.xlu0 %4835
        %v4837 = vsel %vm1691, %v4830, %v4834
        %v4838 = vsel %vm1691, %v4832, %v4836
        %v4839 = vsel %vm1691, %v4834, %v4830
        %v4840 = vsel %vm1691, %v4836, %v4832
        %v4841 = vmul.f32 %v4837, %v1699
        %v4842 = vmul.f32 %v4839, %v1700
        %v4843 = vmul.f32 %v4838, %v1699
        %v4844 = vmul.f32 %v4840, %v1700
        %4846 = vset.pattern.permute.xlu0 0
        %4847 = vperm.xlu0 %4846, %v907
        %v4848 = vpop.permute.xlu0 %4847
        %4851 = vset.pattern.permute.xlu0 0
        %4852 = vperm.xlu0 %4851, %v908
        %v4853 = vpop.permute.xlu0 %4852
        %v4855 = vmul.f32 %v4757, %v4848
        %v4856 = vmul.f32 %v4758, %v4848
        %v4857 = vmul.f32 %v4759, %v4853
        %v4858 = vmul.f32 %v4760, %v4853
        %4859 = vset.pattern.permute.xlu0 1
        %4860 = vperm.xlu0 %4859, %v907
        %v4861 = vpop.permute.xlu0 %4860
        %4863 = vset.pattern.permute.xlu0 1
        %4864 = vperm.xlu0 %4863, %v908
        %v4865 = vpop.permute.xlu0 %4864
        %v4867 = vmul.f32 %v4773, %v4861
        %v4868 = vmul.f32 %v4774, %v4861
        %v4869 = vmul.f32 %v4775, %v4865
        %v4870 = vmul.f32 %v4776, %v4865
        %v4871 = vadd.f32 %v4855, %v4867
        %v4872 = vadd.f32 %v4856, %v4868
        %v4873 = vadd.f32 %v4857, %v4869
        %v4874 = vadd.f32 %v4858, %v4870
        %4875 = vset.pattern.permute.xlu0 2
        %4876 = vperm.xlu0 %4875, %v907
        %v4877 = vpop.permute.xlu0 %4876
        %4879 = vset.pattern.permute.xlu0 2
        %4880 = vperm.xlu0 %4879, %v908
        %v4881 = vpop.permute.xlu0 %4880
        %v4883 = vmul.f32 %v4789, %v4877
        %v4884 = vmul.f32 %v4790, %v4877
        %v4885 = vmul.f32 %v4791, %v4881
        %v4886 = vmul.f32 %v4792, %v4881
        %v4887 = vadd.f32 %v4871, %v4883
        %v4888 = vadd.f32 %v4872, %v4884
        %v4889 = vadd.f32 %v4873, %v4885
        %v4890 = vadd.f32 %v4874, %v4886
        %4891 = vset.pattern.permute.xlu0 3
        %4892 = vperm.xlu0 %4891, %v907
        %v4893 = vpop.permute.xlu0 %4892
        %4895 = vset.pattern.permute.xlu0 3
        %4896 = vperm.xlu0 %4895, %v908
        %v4897 = vpop.permute.xlu0 %4896
        %v4899 = vmul.f32 %v4793, %v4893
        %v4900 = vmul.f32 %v4794, %v4893
        %v4901 = vmul.f32 %v4795, %v4897
        %v4902 = vmul.f32 %v4796, %v4897
        %v4903 = vadd.f32 %v4887, %v4899
        %v4904 = vadd.f32 %v4888, %v4900
        %v4905 = vadd.f32 %v4889, %v4901
        %v4906 = vadd.f32 %v4890, %v4902
        %4907 = vset.pattern.permute.xlu0 4
        %4908 = vperm.xlu0 %4907, %v907
        %v4909 = vpop.permute.xlu0 %4908
        %4911 = vset.pattern.permute.xlu0 4
        %4912 = vperm.xlu0 %4911, %v908
        %v4913 = vpop.permute.xlu0 %4912
        %v4915 = vmul.f32 %v4809, %v4909
        %v4916 = vmul.f32 %v4810, %v4909
        %v4917 = vmul.f32 %v4811, %v4913
        %v4918 = vmul.f32 %v4812, %v4913
        %v4919 = vadd.f32 %v4903, %v4915
        %v4920 = vadd.f32 %v4904, %v4916
        %v4921 = vadd.f32 %v4905, %v4917
        %v4922 = vadd.f32 %v4906, %v4918
        %4923 = vset.pattern.permute.xlu0 5
        %4924 = vperm.xlu0 %4923, %v907
        %v4925 = vpop.permute.xlu0 %4924
        %4927 = vset.pattern.permute.xlu0 5
        %4928 = vperm.xlu0 %4927, %v908
        %v4929 = vpop.permute.xlu0 %4928
        %v4931 = vmul.f32 %v4825, %v4925
        %v4932 = vmul.f32 %v4826, %v4925
        %v4933 = vmul.f32 %v4827, %v4929
        %v4934 = vmul.f32 %v4828, %v4929
        %v4935 = vadd.f32 %v4919, %v4931
        %v4936 = vadd.f32 %v4920, %v4932
        %v4937 = vadd.f32 %v4921, %v4933
        %v4938 = vadd.f32 %v4922, %v4934
        %4939 = vset.pattern.permute.xlu0 6
        %4940 = vperm.xlu0 %4939, %v907
        %v4941 = vpop.permute.xlu0 %4940
        %4943 = vset.pattern.permute.xlu0 6
        %4944 = vperm.xlu0 %4943, %v908
        %v4945 = vpop.permute.xlu0 %4944
        %v4947 = vmul.f32 %v4841, %v4941
        %v4948 = vmul.f32 %v4842, %v4941
        %v4949 = vmul.f32 %v4843, %v4945
        %v4950 = vmul.f32 %v4844, %v4945
        %v4951 = vadd.f32 %v4935, %v4947
        %v4952 = vadd.f32 %v4936, %v4948
        %v4953 = vadd.f32 %v4937, %v4949
        %v4954 = vadd.f32 %v4938, %v4950
        %4955 = vrot.lane.b32.xlu0 %v4951, 16
        %v4956 = vpop.permute.xlu0 %4955
        %4957 = vrot.lane.b32.xlu0 %v4953, 16
        %v4958 = vpop.permute.xlu0 %4957
        %4959 = vrot.lane.b32.xlu0 %v4952, 16
        %v4960 = vpop.permute.xlu0 %4959
        %4961 = vrot.lane.b32.xlu0 %v4954, 16
        %v4962 = vpop.permute.xlu0 %4961
        %v4963 = vsel %vm1220, %v4956, %v4960
        %v4964 = vsel %vm1220, %v4958, %v4962
        %v4965 = vsel %vm1220, %v4960, %v4956
        %v4966 = vsel %vm1220, %v4962, %v4958
        %v4967 = vmul.f32 %v4963, %v1831
        %v4968 = vmul.f32 %v4965, %v1832
        %v4969 = vmul.f32 %v4964, %v1831
        %v4970 = vmul.f32 %v4966, %v1832
        %4971 = vset.pattern.permute.xlu0 7
        %4972 = vperm.xlu0 %4971, %v907
        %v4973 = vpop.permute.xlu0 %4972
        %4975 = vset.pattern.permute.xlu0 7
        %4976 = vperm.xlu0 %4975, %v908
        %v4977 = vpop.permute.xlu0 %4976
        %v4979 = vmul.f32 %v4757, %v4973
        %v4980 = vmul.f32 %v4758, %v4973
        %v4981 = vmul.f32 %v4759, %v4977
        %v4982 = vmul.f32 %v4760, %v4977
        %4983 = vset.pattern.permute.xlu0 8
        %4984 = vperm.xlu0 %4983, %v907
        %v4985 = vpop.permute.xlu0 %4984
        %4987 = vset.pattern.permute.xlu0 8
        %4988 = vperm.xlu0 %4987, %v908
        %v4989 = vpop.permute.xlu0 %4988
        %v4991 = vmul.f32 %v4773, %v4985
        %v4992 = vmul.f32 %v4774, %v4985
        %v4993 = vmul.f32 %v4775, %v4989
        %v4994 = vmul.f32 %v4776, %v4989
        %v4995 = vadd.f32 %v4979, %v4991
        %v4996 = vadd.f32 %v4980, %v4992
        %v4997 = vadd.f32 %v4981, %v4993
        %v4998 = vadd.f32 %v4982, %v4994
        %4999 = vset.pattern.permute.xlu0 9
        %5000 = vperm.xlu0 %4999, %v907
        %v5001 = vpop.permute.xlu0 %5000
        %5003 = vset.pattern.permute.xlu0 9
        %5004 = vperm.xlu0 %5003, %v908
        %v5005 = vpop.permute.xlu0 %5004
        %v5007 = vmul.f32 %v4789, %v5001
        %v5008 = vmul.f32 %v4790, %v5001
        %v5009 = vmul.f32 %v4791, %v5005
        %v5010 = vmul.f32 %v4792, %v5005
        %v5011 = vadd.f32 %v4995, %v5007
        %v5012 = vadd.f32 %v4996, %v5008
        %v5013 = vadd.f32 %v4997, %v5009
        %v5014 = vadd.f32 %v4998, %v5010
        %5015 = vset.pattern.permute.xlu0 10
        %5016 = vperm.xlu0 %5015, %v907
        %v5017 = vpop.permute.xlu0 %5016
        %5019 = vset.pattern.permute.xlu0 10
        %5020 = vperm.xlu0 %5019, %v908
        %v5021 = vpop.permute.xlu0 %5020
        %v5023 = vmul.f32 %v4793, %v5017
        %v5024 = vmul.f32 %v4794, %v5017
        %v5025 = vmul.f32 %v4795, %v5021
        %v5026 = vmul.f32 %v4796, %v5021
        %v5027 = vadd.f32 %v5011, %v5023
        %v5028 = vadd.f32 %v5012, %v5024
        %v5029 = vadd.f32 %v5013, %v5025
        %v5030 = vadd.f32 %v5014, %v5026
        %5031 = vset.pattern.permute.xlu0 11
        %5032 = vperm.xlu0 %5031, %v907
        %v5033 = vpop.permute.xlu0 %5032
        %5035 = vset.pattern.permute.xlu0 11
        %5036 = vperm.xlu0 %5035, %v908
        %v5037 = vpop.permute.xlu0 %5036
        %v5039 = vmul.f32 %v4809, %v5033
        %v5040 = vmul.f32 %v4810, %v5033
        %v5041 = vmul.f32 %v4811, %v5037
        %v5042 = vmul.f32 %v4812, %v5037
        %v5043 = vadd.f32 %v5027, %v5039
        %v5044 = vadd.f32 %v5028, %v5040
        %v5045 = vadd.f32 %v5029, %v5041
        %v5046 = vadd.f32 %v5030, %v5042
        %5047 = vset.pattern.permute.xlu0 12
        %5048 = vperm.xlu0 %5047, %v907
        %v5049 = vpop.permute.xlu0 %5048
        %5051 = vset.pattern.permute.xlu0 12
        %5052 = vperm.xlu0 %5051, %v908
        %v5053 = vpop.permute.xlu0 %5052
        %v5055 = vmul.f32 %v4825, %v5049
        %v5056 = vmul.f32 %v4826, %v5049
        %v5057 = vmul.f32 %v4827, %v5053
        %v5058 = vmul.f32 %v4828, %v5053
        %v5059 = vadd.f32 %v5043, %v5055
        %v5060 = vadd.f32 %v5044, %v5056
        %v5061 = vadd.f32 %v5045, %v5057
        %v5062 = vadd.f32 %v5046, %v5058
        %5063 = vset.pattern.permute.xlu0 13
        %5064 = vperm.xlu0 %5063, %v907
        %v5065 = vpop.permute.xlu0 %5064
        %5067 = vset.pattern.permute.xlu0 13
        %5068 = vperm.xlu0 %5067, %v908
        %v5069 = vpop.permute.xlu0 %5068
        %v5071 = vmul.f32 %v4841, %v5065
        %v5072 = vmul.f32 %v4842, %v5065
        %v5073 = vmul.f32 %v4843, %v5069
        %v5074 = vmul.f32 %v4844, %v5069
        %v5075 = vadd.f32 %v5059, %v5071
        %v5076 = vadd.f32 %v5060, %v5072
        %v5077 = vadd.f32 %v5061, %v5073
        %v5078 = vadd.f32 %v5062, %v5074
        %5079 = vrot.lane.b32.xlu0 %v5075, 96
        %v5080 = vpop.permute.xlu0 %5079
        %5081 = vrot.lane.b32.xlu0 %v5077, 96
        %v5082 = vpop.permute.xlu0 %5081
        %5083 = vrot.lane.b32.xlu0 %v5076, 96
        %v5084 = vpop.permute.xlu0 %5083
        %5085 = vrot.lane.b32.xlu0 %v5078, 96
        %v5086 = vpop.permute.xlu0 %5085
        %v5087 = vsel %vm1519, %v5080, %v5084
        %v5088 = vsel %vm1519, %v5082, %v5086
        %v5089 = vsel %vm1519, %v5084, %v5080
        %v5090 = vsel %vm1519, %v5086, %v5082
        %v5091 = vmul.f32 %v5089, %v1962
        %v5092 = vmul.f32 %v5087, %v1963
        %v5093 = vmul.f32 %v5090, %v1962
        %v5094 = vmul.f32 %v5088, %v1963
        %v5095 = vadd.f32 %v4967, %v5091
        %v5096 = vadd.f32 %v4968, %v5092
        %v5097 = vadd.f32 %v4969, %v5093
        %v5098 = vadd.f32 %v4970, %v5094
        %5099 = vset.pattern.permute.xlu0 14
        %5100 = vperm.xlu0 %5099, %v907
        %v5101 = vpop.permute.xlu0 %5100
        %5103 = vset.pattern.permute.xlu0 14
        %5104 = vperm.xlu0 %5103, %v908
        %v5105 = vpop.permute.xlu0 %5104
        %v5107 = vmul.f32 %v4757, %v5101
        %v5108 = vmul.f32 %v4758, %v5101
        %v5109 = vmul.f32 %v4759, %v5105
        %v5110 = vmul.f32 %v4760, %v5105
        %5111 = vset.pattern.permute.xlu0 15
        %5112 = vperm.xlu0 %5111, %v907
        %v5113 = vpop.permute.xlu0 %5112
        %5115 = vset.pattern.permute.xlu0 15
        %5116 = vperm.xlu0 %5115, %v908
        %v5117 = vpop.permute.xlu0 %5116
        %v5119 = vmul.f32 %v4773, %v5113
        %v5120 = vmul.f32 %v4774, %v5113
        %v5121 = vmul.f32 %v4775, %v5117
        %v5122 = vmul.f32 %v4776, %v5117
        %v5123 = vadd.f32 %v5107, %v5119
        %v5124 = vadd.f32 %v5108, %v5120
        %v5125 = vadd.f32 %v5109, %v5121
        %v5126 = vadd.f32 %v5110, %v5122
        %5127 = vset.pattern.permute.xlu0 16
        %5128 = vperm.xlu0 %5127, %v907
        %v5129 = vpop.permute.xlu0 %5128
        %5131 = vset.pattern.permute.xlu0 16
        %5132 = vperm.xlu0 %5131, %v908
        %v5133 = vpop.permute.xlu0 %5132
        %v5135 = vmul.f32 %v4789, %v5129
        %v5136 = vmul.f32 %v4790, %v5129
        %v5137 = vmul.f32 %v4791, %v5133
        %v5138 = vmul.f32 %v4792, %v5133
        %v5139 = vadd.f32 %v5123, %v5135
        %v5140 = vadd.f32 %v5124, %v5136
        %v5141 = vadd.f32 %v5125, %v5137
        %v5142 = vadd.f32 %v5126, %v5138
        %5143 = vset.pattern.permute.xlu0 17
        %5144 = vperm.xlu0 %5143, %v907
        %v5145 = vpop.permute.xlu0 %5144
        %5147 = vset.pattern.permute.xlu0 17
        %5148 = vperm.xlu0 %5147, %v908
        %v5149 = vpop.permute.xlu0 %5148
        %v5151 = vmul.f32 %v4793, %v5145
        %v5152 = vmul.f32 %v4794, %v5145
        %v5153 = vmul.f32 %v4795, %v5149
        %v5154 = vmul.f32 %v4796, %v5149
        %v5155 = vadd.f32 %v5139, %v5151
        %v5156 = vadd.f32 %v5140, %v5152
        %v5157 = vadd.f32 %v5141, %v5153
        %v5158 = vadd.f32 %v5142, %v5154
        %5159 = vset.pattern.permute.xlu0 18
        %5160 = vperm.xlu0 %5159, %v907
        %v5161 = vpop.permute.xlu0 %5160
        %5163 = vset.pattern.permute.xlu0 18
        %5164 = vperm.xlu0 %5163, %v908
        %v5165 = vpop.permute.xlu0 %5164
        %v5167 = vmul.f32 %v4809, %v5161
        %v5168 = vmul.f32 %v4810, %v5161
        %v5169 = vmul.f32 %v4811, %v5165
        %v5170 = vmul.f32 %v4812, %v5165
        %v5171 = vadd.f32 %v5155, %v5167
        %v5172 = vadd.f32 %v5156, %v5168
        %v5173 = vadd.f32 %v5157, %v5169
        %v5174 = vadd.f32 %v5158, %v5170
        %5175 = vset.pattern.permute.xlu0 19
        %5176 = vperm.xlu0 %5175, %v907
        %v5177 = vpop.permute.xlu0 %5176
        %5179 = vset.pattern.permute.xlu0 19
        %5180 = vperm.xlu0 %5179, %v908
        %v5181 = vpop.permute.xlu0 %5180
        %v5183 = vmul.f32 %v4825, %v5177
        %v5184 = vmul.f32 %v4826, %v5177
        %v5185 = vmul.f32 %v4827, %v5181
        %v5186 = vmul.f32 %v4828, %v5181
        %v5187 = vadd.f32 %v5171, %v5183
        %v5188 = vadd.f32 %v5172, %v5184
        %v5189 = vadd.f32 %v5173, %v5185
        %v5190 = vadd.f32 %v5174, %v5186
        %5191 = vset.pattern.permute.xlu0 20
        %5192 = vperm.xlu0 %5191, %v907
        %v5193 = vpop.permute.xlu0 %5192
        %5195 = vset.pattern.permute.xlu0 20
        %5196 = vperm.xlu0 %5195, %v908
        %v5197 = vpop.permute.xlu0 %5196
        %v5199 = vmul.f32 %v4841, %v5193
        %v5200 = vmul.f32 %v4842, %v5193
        %v5201 = vmul.f32 %v4843, %v5197
        %v5202 = vmul.f32 %v4844, %v5197
        %v5203 = vadd.f32 %v5187, %v5199
        %v5204 = vadd.f32 %v5188, %v5200
        %v5205 = vadd.f32 %v5189, %v5201
        %v5206 = vadd.f32 %v5190, %v5202
        %5207 = vrot.lane.b32.xlu0 %v5203, 48
        %v5208 = vpop.permute.xlu0 %5207
        %5209 = vrot.lane.b32.xlu0 %v5205, 48
        %v5210 = vpop.permute.xlu0 %5209
        %5211 = vrot.lane.b32.xlu0 %v5204, 48
        %v5212 = vpop.permute.xlu0 %5211
        %5213 = vrot.lane.b32.xlu0 %v5206, 48
        %v5214 = vpop.permute.xlu0 %5213
        %v5215 = vsel %vm2090, %v5208, %v5212
        %v5216 = vsel %vm2090, %v5210, %v5214
        %v5217 = vsel %vm2090, %v5212, %v5208
        %v5218 = vsel %vm2090, %v5214, %v5210
        %v5219 = vmul.f32 %v5217, %v2098
        %v5220 = vmul.f32 %v5215, %v2099
        %v5221 = vmul.f32 %v5218, %v2098
        %v5222 = vmul.f32 %v5216, %v2099
        %v5223 = vadd.f32 %v5095, %v5219
        %v5224 = vadd.f32 %v5096, %v5220
        %v5225 = vadd.f32 %v5097, %v5221
        %v5226 = vadd.f32 %v5098, %v5222
        %5227 = vset.pattern.permute.xlu0 21
        %5228 = vperm.xlu0 %5227, %v907
        %v5229 = vpop.permute.xlu0 %5228
        %5231 = vset.pattern.permute.xlu0 21
        %5232 = vperm.xlu0 %5231, %v908
        %v5233 = vpop.permute.xlu0 %5232
        %v5235 = vmul.f32 %v4757, %v5229
        %v5236 = vmul.f32 %v4758, %v5229
        %v5237 = vmul.f32 %v4759, %v5233
        %v5238 = vmul.f32 %v4760, %v5233
        %5239 = vset.pattern.permute.xlu0 22
        %5240 = vperm.xlu0 %5239, %v907
        %v5241 = vpop.permute.xlu0 %5240
        %5243 = vset.pattern.permute.xlu0 22
        %5244 = vperm.xlu0 %5243, %v908
        %v5245 = vpop.permute.xlu0 %5244
        %v5247 = vmul.f32 %v4773, %v5241
        %v5248 = vmul.f32 %v4774, %v5241
        %v5249 = vmul.f32 %v4775, %v5245
        %v5250 = vmul.f32 %v4776, %v5245
        %v5251 = vadd.f32 %v5235, %v5247
        %v5252 = vadd.f32 %v5236, %v5248
        %v5253 = vadd.f32 %v5237, %v5249
        %v5254 = vadd.f32 %v5238, %v5250
        %5255 = vset.pattern.permute.xlu0 23
        %5256 = vperm.xlu0 %5255, %v907
        %v5257 = vpop.permute.xlu0 %5256
        %5259 = vset.pattern.permute.xlu0 23
        %5260 = vperm.xlu0 %5259, %v908
        %v5261 = vpop.permute.xlu0 %5260
        %v5263 = vmul.f32 %v4789, %v5257
        %v5264 = vmul.f32 %v4790, %v5257
        %v5265 = vmul.f32 %v4791, %v5261
        %v5266 = vmul.f32 %v4792, %v5261
        %v5267 = vadd.f32 %v5251, %v5263
        %v5268 = vadd.f32 %v5252, %v5264
        %v5269 = vadd.f32 %v5253, %v5265
        %v5270 = vadd.f32 %v5254, %v5266
        %5271 = vset.pattern.permute.xlu0 24
        %5272 = vperm.xlu0 %5271, %v907
        %v5273 = vpop.permute.xlu0 %5272
        %5275 = vset.pattern.permute.xlu0 24
        %5276 = vperm.xlu0 %5275, %v908
        %v5277 = vpop.permute.xlu0 %5276
        %v5279 = vmul.f32 %v4793, %v5273
        %v5280 = vmul.f32 %v4794, %v5273
        %v5281 = vmul.f32 %v4795, %v5277
        %v5282 = vmul.f32 %v4796, %v5277
        %v5283 = vadd.f32 %v5267, %v5279
        %v5284 = vadd.f32 %v5268, %v5280
        %v5285 = vadd.f32 %v5269, %v5281
        %v5286 = vadd.f32 %v5270, %v5282
        %5287 = vset.pattern.permute.xlu0 25
        %5288 = vperm.xlu0 %5287, %v907
        %v5289 = vpop.permute.xlu0 %5288
        %5291 = vset.pattern.permute.xlu0 25
        %5292 = vperm.xlu0 %5291, %v908
        %v5293 = vpop.permute.xlu0 %5292
        %v5295 = vmul.f32 %v4809, %v5289
        %v5296 = vmul.f32 %v4810, %v5289
        %v5297 = vmul.f32 %v4811, %v5293
        %v5298 = vmul.f32 %v4812, %v5293
        %v5299 = vadd.f32 %v5283, %v5295
        %v5300 = vadd.f32 %v5284, %v5296
        %v5301 = vadd.f32 %v5285, %v5297
        %v5302 = vadd.f32 %v5286, %v5298
        %5303 = vset.pattern.permute.xlu0 26
        %5304 = vperm.xlu0 %5303, %v907
        %v5305 = vpop.permute.xlu0 %5304
        %5307 = vset.pattern.permute.xlu0 26
        %5308 = vperm.xlu0 %5307, %v908
        %v5309 = vpop.permute.xlu0 %5308
        %v5311 = vmul.f32 %v4825, %v5305
        %v5312 = vmul.f32 %v4826, %v5305
        %v5313 = vmul.f32 %v4827, %v5309
        %v5314 = vmul.f32 %v4828, %v5309
        %v5315 = vadd.f32 %v5299, %v5311
        %v5316 = vadd.f32 %v5300, %v5312
        %v5317 = vadd.f32 %v5301, %v5313
        %v5318 = vadd.f32 %v5302, %v5314
        %5319 = vset.pattern.permute.xlu0 27
        %5320 = vperm.xlu0 %5319, %v907
        %v5321 = vpop.permute.xlu0 %5320
        %5323 = vset.pattern.permute.xlu0 27
        %5324 = vperm.xlu0 %5323, %v908
        %v5325 = vpop.permute.xlu0 %5324
        %v5327 = vmul.f32 %v4841, %v5321
        %v5328 = vmul.f32 %v4842, %v5321
        %v5329 = vmul.f32 %v4843, %v5325
        %v5330 = vmul.f32 %v4844, %v5325
        %v5331 = vadd.f32 %v5315, %v5327
        %v5332 = vadd.f32 %v5316, %v5328
        %v5333 = vadd.f32 %v5317, %v5329
        %v5334 = vadd.f32 %v5318, %v5330
        %v5335 = vmul.f32 %v5331, %v2221
        %v5336 = vmul.f32 %v5332, %v2222
        %v5337 = vmul.f32 %v5333, %v2221
        %v5338 = vmul.f32 %v5334, %v2222
        %v5339 = vadd.f32 %v5223, %v5335
        %v5340 = vadd.f32 %v5224, %v5336
        %v5341 = vadd.f32 %v5225, %v5337
        %v5342 = vadd.f32 %v5226, %v5338
        %5343 = vset.pattern.permute.xlu0 28
        %5344 = vperm.xlu0 %5343, %v907
        %v5345 = vpop.permute.xlu0 %5344
        %5347 = vset.pattern.permute.xlu0 28
        %5348 = vperm.xlu0 %5347, %v908
        %v5349 = vpop.permute.xlu0 %5348
        %v5351 = vmul.f32 %v4757, %v5345
        %v5352 = vmul.f32 %v4758, %v5345
        %v5353 = vmul.f32 %v4759, %v5349
        %v5354 = vmul.f32 %v4760, %v5349
        %5355 = vset.pattern.permute.xlu0 29
        %5356 = vperm.xlu0 %5355, %v907
        %v5357 = vpop.permute.xlu0 %5356
        %5359 = vset.pattern.permute.xlu0 29
        %5360 = vperm.xlu0 %5359, %v908
        %v5361 = vpop.permute.xlu0 %5360
        %v5363 = vmul.f32 %v4773, %v5357
        %v5364 = vmul.f32 %v4774, %v5357
        %v5365 = vmul.f32 %v4775, %v5361
        %v5366 = vmul.f32 %v4776, %v5361
        %v5367 = vadd.f32 %v5351, %v5363
        %v5368 = vadd.f32 %v5352, %v5364
        %v5369 = vadd.f32 %v5353, %v5365
        %v5370 = vadd.f32 %v5354, %v5366
        %5371 = vset.pattern.permute.xlu0 30
        %5372 = vperm.xlu0 %5371, %v907
        %v5373 = vpop.permute.xlu0 %5372
        %5375 = vset.pattern.permute.xlu0 30
        %5376 = vperm.xlu0 %5375, %v908
        %v5377 = vpop.permute.xlu0 %5376
        %v5379 = vmul.f32 %v4789, %v5373
        %v5380 = vmul.f32 %v4790, %v5373
        %v5381 = vmul.f32 %v4791, %v5377
        %v5382 = vmul.f32 %v4792, %v5377
        %v5383 = vadd.f32 %v5367, %v5379
        %v5384 = vadd.f32 %v5368, %v5380
        %v5385 = vadd.f32 %v5369, %v5381
        %v5386 = vadd.f32 %v5370, %v5382
        %5387 = vset.pattern.permute.xlu0 31
        %5388 = vperm.xlu0 %5387, %v907
        %v5389 = vpop.permute.xlu0 %5388
        %5391 = vset.pattern.permute.xlu0 31
        %5392 = vperm.xlu0 %5391, %v908
        %v5393 = vpop.permute.xlu0 %5392
        %v5395 = vmul.f32 %v4793, %v5389
        %v5396 = vmul.f32 %v4794, %v5389
        %v5397 = vmul.f32 %v4795, %v5393
        %v5398 = vmul.f32 %v4796, %v5393
        %v5399 = vadd.f32 %v5383, %v5395
        %v5400 = vadd.f32 %v5384, %v5396
        %v5401 = vadd.f32 %v5385, %v5397
        %v5402 = vadd.f32 %v5386, %v5398
        %5403 = vset.pattern.permute.xlu0 32
        %5404 = vperm.xlu0 %5403, %v907
        %v5405 = vpop.permute.xlu0 %5404
        %5407 = vset.pattern.permute.xlu0 32
        %5408 = vperm.xlu0 %5407, %v908
        %v5409 = vpop.permute.xlu0 %5408
        %v5411 = vmul.f32 %v4809, %v5405
        %v5412 = vmul.f32 %v4810, %v5405
        %v5413 = vmul.f32 %v4811, %v5409
        %v5414 = vmul.f32 %v4812, %v5409
        %v5415 = vadd.f32 %v5399, %v5411
        %v5416 = vadd.f32 %v5400, %v5412
        %v5417 = vadd.f32 %v5401, %v5413
        %v5418 = vadd.f32 %v5402, %v5414
        %5419 = vset.pattern.permute.xlu0 33
        %5420 = vperm.xlu0 %5419, %v907
        %v5421 = vpop.permute.xlu0 %5420
        %5423 = vset.pattern.permute.xlu0 33
        %5424 = vperm.xlu0 %5423, %v908
        %v5425 = vpop.permute.xlu0 %5424
        %v5427 = vmul.f32 %v4825, %v5421
        %v5428 = vmul.f32 %v4826, %v5421
        %v5429 = vmul.f32 %v4827, %v5425
        %v5430 = vmul.f32 %v4828, %v5425
        %v5431 = vadd.f32 %v5415, %v5427
        %v5432 = vadd.f32 %v5416, %v5428
        %v5433 = vadd.f32 %v5417, %v5429
        %v5434 = vadd.f32 %v5418, %v5430
        %5435 = vset.pattern.permute.xlu0 34
        %5436 = vperm.xlu0 %5435, %v907
        %v5437 = vpop.permute.xlu0 %5436
        %5439 = vset.pattern.permute.xlu0 34
        %5440 = vperm.xlu0 %5439, %v908
        %v5441 = vpop.permute.xlu0 %5440
        %v5443 = vmul.f32 %v4841, %v5437
        %v5444 = vmul.f32 %v4842, %v5437
        %v5445 = vmul.f32 %v4843, %v5441
        %v5446 = vmul.f32 %v4844, %v5441
        %v5447 = vadd.f32 %v5431, %v5443
        %v5448 = vadd.f32 %v5432, %v5444
        %v5449 = vadd.f32 %v5433, %v5445
        %v5450 = vadd.f32 %v5434, %v5446
        %5451 = vrot.lane.b32.xlu0 %v5447, 80
        %v5452 = vpop.permute.xlu0 %5451
        %5453 = vrot.lane.b32.xlu0 %v5449, 80
        %v5454 = vpop.permute.xlu0 %5453
        %5455 = vrot.lane.b32.xlu0 %v5448, 80
        %v5456 = vpop.permute.xlu0 %5455
        %5457 = vrot.lane.b32.xlu0 %v5450, 80
        %v5458 = vpop.permute.xlu0 %5457
        %v5459 = vsel %vm2349, %v5452, %v5456
        %v5460 = vsel %vm2349, %v5454, %v5458
        %v5461 = vsel %vm2349, %v5456, %v5452
        %v5462 = vsel %vm2349, %v5458, %v5454
        %v5463 = vmul.f32 %v5459, %v2357
        %v5464 = vmul.f32 %v5461, %v2358
        %v5465 = vmul.f32 %v5460, %v2357
        %v5466 = vmul.f32 %v5462, %v2358
        %v5467 = vadd.f32 %v5339, %v5463
        %v5468 = vadd.f32 %v5340, %v5464
        %v5469 = vadd.f32 %v5341, %v5465
        %v5470 = vadd.f32 %v5342, %v5466
        %5471 = vset.pattern.permute.xlu0 35
        %5472 = vperm.xlu0 %5471, %v907
        %v5473 = vpop.permute.xlu0 %5472
        %5475 = vset.pattern.permute.xlu0 35
        %5476 = vperm.xlu0 %5475, %v908
        %v5477 = vpop.permute.xlu0 %5476
        %v5479 = vmul.f32 %v4757, %v5473
        %v5480 = vmul.f32 %v4758, %v5473
        %v5481 = vmul.f32 %v4759, %v5477
        %v5482 = vmul.f32 %v4760, %v5477
        %5483 = vset.pattern.permute.xlu0 36
        %5484 = vperm.xlu0 %5483, %v907
        %v5485 = vpop.permute.xlu0 %5484
        %5487 = vset.pattern.permute.xlu0 36
        %5488 = vperm.xlu0 %5487, %v908
        %v5489 = vpop.permute.xlu0 %5488
        %v5491 = vmul.f32 %v4773, %v5485
        %v5492 = vmul.f32 %v4774, %v5485
        %v5493 = vmul.f32 %v4775, %v5489
        %v5494 = vmul.f32 %v4776, %v5489
        %v5495 = vadd.f32 %v5479, %v5491
        %v5496 = vadd.f32 %v5480, %v5492
        %v5497 = vadd.f32 %v5481, %v5493
        %v5498 = vadd.f32 %v5482, %v5494
        %5499 = vset.pattern.permute.xlu0 37
        %5500 = vperm.xlu0 %5499, %v907
        %v5501 = vpop.permute.xlu0 %5500
        %5503 = vset.pattern.permute.xlu0 37
        %5504 = vperm.xlu0 %5503, %v908
        %v5505 = vpop.permute.xlu0 %5504
        %v5507 = vmul.f32 %v4789, %v5501
        %v5508 = vmul.f32 %v4790, %v5501
        %v5509 = vmul.f32 %v4791, %v5505
        %v5510 = vmul.f32 %v4792, %v5505
        %v5511 = vadd.f32 %v5495, %v5507
        %v5512 = vadd.f32 %v5496, %v5508
        %v5513 = vadd.f32 %v5497, %v5509
        %v5514 = vadd.f32 %v5498, %v5510
        %5515 = vset.pattern.permute.xlu0 38
        %5516 = vperm.xlu0 %5515, %v907
        %v5517 = vpop.permute.xlu0 %5516
        %5519 = vset.pattern.permute.xlu0 38
        %5520 = vperm.xlu0 %5519, %v908
        %v5521 = vpop.permute.xlu0 %5520
        %v5523 = vmul.f32 %v4793, %v5517
        %v5524 = vmul.f32 %v4794, %v5517
        %v5525 = vmul.f32 %v4795, %v5521
        %v5526 = vmul.f32 %v4796, %v5521
        %v5527 = vadd.f32 %v5511, %v5523
        %v5528 = vadd.f32 %v5512, %v5524
        %v5529 = vadd.f32 %v5513, %v5525
        %v5530 = vadd.f32 %v5514, %v5526
        %5531 = vset.pattern.permute.xlu0 39
        %5532 = vperm.xlu0 %5531, %v907
        %v5533 = vpop.permute.xlu0 %5532
        %5535 = vset.pattern.permute.xlu0 39
        %5536 = vperm.xlu0 %5535, %v908
        %v5537 = vpop.permute.xlu0 %5536
        %v5539 = vmul.f32 %v4809, %v5533
        %v5540 = vmul.f32 %v4810, %v5533
        %v5541 = vmul.f32 %v4811, %v5537
        %v5542 = vmul.f32 %v4812, %v5537
        %v5543 = vadd.f32 %v5527, %v5539
        %v5544 = vadd.f32 %v5528, %v5540
        %v5545 = vadd.f32 %v5529, %v5541
        %v5546 = vadd.f32 %v5530, %v5542
        %5547 = vset.pattern.permute.xlu0 40
        %5548 = vperm.xlu0 %5547, %v907
        %v5549 = vpop.permute.xlu0 %5548
        %5551 = vset.pattern.permute.xlu0 40
        %5552 = vperm.xlu0 %5551, %v908
        %v5553 = vpop.permute.xlu0 %5552
        %v5555 = vmul.f32 %v4825, %v5549
        %v5556 = vmul.f32 %v4826, %v5549
        %v5557 = vmul.f32 %v4827, %v5553
        %v5558 = vmul.f32 %v4828, %v5553
        %v5559 = vadd.f32 %v5543, %v5555
        %v5560 = vadd.f32 %v5544, %v5556
        %v5561 = vadd.f32 %v5545, %v5557
        %v5562 = vadd.f32 %v5546, %v5558
        %5563 = vset.pattern.permute.xlu0 41
        %5564 = vperm.xlu0 %5563, %v907
        %v5565 = vpop.permute.xlu0 %5564
        %5567 = vset.pattern.permute.xlu0 41
        %5568 = vperm.xlu0 %5567, %v908
        %v5569 = vpop.permute.xlu0 %5568
        %v5571 = vmul.f32 %v4841, %v5565
        %v5572 = vmul.f32 %v4842, %v5565
        %v5573 = vmul.f32 %v4843, %v5569
        %v5574 = vmul.f32 %v4844, %v5569
        %v5575 = vadd.f32 %v5559, %v5571
        %v5576 = vadd.f32 %v5560, %v5572
        %v5577 = vadd.f32 %v5561, %v5573
        %v5578 = vadd.f32 %v5562, %v5574
        %5579 = vrot.lane.b32.xlu0 %v5575, 32
        %v5580 = vpop.permute.xlu0 %5579
        %5581 = vrot.lane.b32.xlu0 %v5577, 32
        %v5582 = vpop.permute.xlu0 %5581
        %5583 = vrot.lane.b32.xlu0 %v5576, 32
        %v5584 = vpop.permute.xlu0 %5583
        %5585 = vrot.lane.b32.xlu0 %v5578, 32
        %v5586 = vpop.permute.xlu0 %5585
        %v5587 = vsel %vm1121, %v5580, %v5584
        %v5588 = vsel %vm1121, %v5582, %v5586
        %v5589 = vsel %vm1121, %v5584, %v5580
        %v5590 = vsel %vm1121, %v5586, %v5582
        %v5591 = vmul.f32 %v5587, %v2492
        %v5592 = vmul.f32 %v5589, %v2493
        %v5593 = vmul.f32 %v5588, %v2492
        %v5594 = vmul.f32 %v5590, %v2493
        %v5595 = vadd.f32 %v5467, %v5591
        %v5596 = vadd.f32 %v5468, %v5592
        %v5597 = vadd.f32 %v5469, %v5593
        %v5598 = vadd.f32 %v5470, %v5594
        %5599 = vset.pattern.permute.xlu0 42
        %5600 = vperm.xlu0 %5599, %v907
        %v5601 = vpop.permute.xlu0 %5600
        %5603 = vset.pattern.permute.xlu0 42
        %5604 = vperm.xlu0 %5603, %v908
        %v5605 = vpop.permute.xlu0 %5604
        %v5607 = vmul.f32 %v4757, %v5601
        %v5608 = vmul.f32 %v4758, %v5601
        %v5609 = vmul.f32 %v4759, %v5605
        %v5610 = vmul.f32 %v4760, %v5605
        %5611 = vset.pattern.permute.xlu0 43
        %5612 = vperm.xlu0 %5611, %v907
        %v5613 = vpop.permute.xlu0 %5612
        %5615 = vset.pattern.permute.xlu0 43
        %5616 = vperm.xlu0 %5615, %v908
        %v5617 = vpop.permute.xlu0 %5616
        %v5619 = vmul.f32 %v4773, %v5613
        %v5620 = vmul.f32 %v4774, %v5613
        %v5621 = vmul.f32 %v4775, %v5617
        %v5622 = vmul.f32 %v4776, %v5617
        %v5623 = vadd.f32 %v5607, %v5619
        %v5624 = vadd.f32 %v5608, %v5620
        %v5625 = vadd.f32 %v5609, %v5621
        %v5626 = vadd.f32 %v5610, %v5622
        %5627 = vset.pattern.permute.xlu0 44
        %5628 = vperm.xlu0 %5627, %v907
        %v5629 = vpop.permute.xlu0 %5628
        %5631 = vset.pattern.permute.xlu0 44
        %5632 = vperm.xlu0 %5631, %v908
        %v5633 = vpop.permute.xlu0 %5632
        %v5635 = vmul.f32 %v4789, %v5629
        %v5636 = vmul.f32 %v4790, %v5629
        %v5637 = vmul.f32 %v4791, %v5633
        %v5638 = vmul.f32 %v4792, %v5633
        %v5639 = vadd.f32 %v5623, %v5635
        %v5640 = vadd.f32 %v5624, %v5636
        %v5641 = vadd.f32 %v5625, %v5637
        %v5642 = vadd.f32 %v5626, %v5638
        %5643 = vset.pattern.permute.xlu0 45
        %5644 = vperm.xlu0 %5643, %v907
        %v5645 = vpop.permute.xlu0 %5644
        %5647 = vset.pattern.permute.xlu0 45
        %5648 = vperm.xlu0 %5647, %v908
        %v5649 = vpop.permute.xlu0 %5648
        %v5651 = vmul.f32 %v4793, %v5645
        %v5652 = vmul.f32 %v4794, %v5645
        %v5653 = vmul.f32 %v4795, %v5649
        %v5654 = vmul.f32 %v4796, %v5649
        %v5655 = vadd.f32 %v5639, %v5651
        %v5656 = vadd.f32 %v5640, %v5652
        %v5657 = vadd.f32 %v5641, %v5653
        %v5658 = vadd.f32 %v5642, %v5654
        %5659 = vset.pattern.permute.xlu0 46
        %5660 = vperm.xlu0 %5659, %v907
        %v5661 = vpop.permute.xlu0 %5660
        %5663 = vset.pattern.permute.xlu0 46
        %5664 = vperm.xlu0 %5663, %v908
        %v5665 = vpop.permute.xlu0 %5664
        %v5667 = vmul.f32 %v4809, %v5661
        %v5668 = vmul.f32 %v4810, %v5661
        %v5669 = vmul.f32 %v4811, %v5665
        %v5670 = vmul.f32 %v4812, %v5665
        %v5671 = vadd.f32 %v5655, %v5667
        %v5672 = vadd.f32 %v5656, %v5668
        %v5673 = vadd.f32 %v5657, %v5669
        %v5674 = vadd.f32 %v5658, %v5670
        %5675 = vset.pattern.permute.xlu0 47
        %5676 = vperm.xlu0 %5675, %v907
        %v5677 = vpop.permute.xlu0 %5676
        %5679 = vset.pattern.permute.xlu0 47
        %5680 = vperm.xlu0 %5679, %v908
        %v5681 = vpop.permute.xlu0 %5680
        %v5683 = vmul.f32 %v4825, %v5677
        %v5684 = vmul.f32 %v4826, %v5677
        %v5685 = vmul.f32 %v4827, %v5681
        %v5686 = vmul.f32 %v4828, %v5681
        %v5687 = vadd.f32 %v5671, %v5683
        %v5688 = vadd.f32 %v5672, %v5684
        %v5689 = vadd.f32 %v5673, %v5685
        %v5690 = vadd.f32 %v5674, %v5686
        %5691 = vset.pattern.permute.xlu0 48
        %5692 = vperm.xlu0 %5691, %v907
        %v5693 = vpop.permute.xlu0 %5692
        %5695 = vset.pattern.permute.xlu0 48
        %5696 = vperm.xlu0 %5695, %v908
        %v5697 = vpop.permute.xlu0 %5696
        %v5699 = vmul.f32 %v4841, %v5693
        %v5700 = vmul.f32 %v4842, %v5693
        %v5701 = vmul.f32 %v4843, %v5697
        %v5702 = vmul.f32 %v4844, %v5697
        %v5703 = vadd.f32 %v5687, %v5699
        %v5704 = vadd.f32 %v5688, %v5700
        %v5705 = vadd.f32 %v5689, %v5701
        %v5706 = vadd.f32 %v5690, %v5702
        %5707 = vrot.lane.b32.xlu0 %v5703, 112
        %v5708 = vpop.permute.xlu0 %5707
        %5709 = vrot.lane.b32.xlu0 %v5705, 112
        %v5710 = vpop.permute.xlu0 %5709
        %5711 = vrot.lane.b32.xlu0 %v5704, 112
        %v5712 = vpop.permute.xlu0 %5711
        %5713 = vrot.lane.b32.xlu0 %v5706, 112
        %v5714 = vpop.permute.xlu0 %5713
        %v5715 = vsel %vm1415, %v5708, %v5712
        %v5716 = vsel %vm1415, %v5710, %v5714
        %v5717 = vsel %vm1415, %v5712, %v5708
        %v5718 = vsel %vm1415, %v5714, %v5710
        %v5719 = vmul.f32 %v5717, %v2627
        %v5720 = vmul.f32 %v5715, %v2628
        %v5721 = vmul.f32 %v5718, %v2627
        %v5722 = vmul.f32 %v5716, %v2628
        %v5723 = vadd.f32 %v5595, %v5719
        %v5724 = vadd.f32 %v5596, %v5720
        %v5725 = vadd.f32 %v5597, %v5721
        %v5726 = vadd.f32 %v5598, %v5722
        %5728 = vset.pattern.permute.xlu0 0
        %5729 = vperm.xlu0 %5728, %v923
        %v5730 = vpop.permute.xlu0 %5729
        %5733 = vset.pattern.permute.xlu0 0
        %5734 = vperm.xlu0 %5733, %v924
        %v5735 = vpop.permute.xlu0 %5734
        %v5737 = vadd.f32 %v5723, %v5730
        %v5738 = vadd.f32 %v5724, %v5730
        %v5739 = vadd.f32 %v5725, %v5735
        %v5740 = vadd.f32 %v5726, %v5735
        %5741 = vrot.lane.b32.xlu0 %v891, 2
        %v5742 = vpop.permute.xlu0 %5741
        %5743 = vrot.lane.b32.xlu0 %v893, 2
        %v5744 = vpop.permute.xlu0 %5743
        %5745 = vrot.lane.b32.xlu0 %v892, 2
        %v5746 = vpop.permute.xlu0 %5745
        %5747 = vrot.lane.b32.xlu0 %v894, 2
        %v5748 = vpop.permute.xlu0 %5747
        %v5749 = vsel %vm937, %v5742, %v5746
        %v5750 = vsel %vm937, %v5744, %v5748
        %v5751 = vsel %vm937, %v5746, %v5742
        %v5752 = vsel %vm937, %v5748, %v5744
        %v5753 = vmul.f32 %v5751, %v944
        %v5754 = vmul.f32 %v5749, %v945
        %v5755 = vmul.f32 %v5752, %v944
        %v5756 = vmul.f32 %v5750, %v945
        %5757 = vrot.lane.b32.xlu0 %v891, 1
        %v5758 = vpop.permute.xlu0 %5757
        %5759 = vrot.lane.b32.xlu0 %v893, 1
        %v5760 = vpop.permute.xlu0 %5759
        %5761 = vrot.lane.b32.xlu0 %v892, 1
        %v5762 = vpop.permute.xlu0 %5761
        %5763 = vrot.lane.b32.xlu0 %v894, 1
        %v5764 = vpop.permute.xlu0 %5763
        %v5765 = vsel %vm960, %v5758, %v5762
        %v5766 = vsel %vm960, %v5760, %v5764
        %v5767 = vsel %vm960, %v5762, %v5758
        %v5768 = vsel %vm960, %v5764, %v5760
        %v5769 = vmul.f32 %v5767, %v968
        %v5770 = vmul.f32 %v5765, %v969
        %v5771 = vmul.f32 %v5768, %v968
        %v5772 = vmul.f32 %v5766, %v969
        %v5773 = vmul.f32 %v891, %v979
        %v5774 = vmul.f32 %v892, %v980
        %v5775 = vmul.f32 %v893, %v979
        %v5776 = vmul.f32 %v894, %v980
        %5777 = vrot.lane.b32.xlu0 %v891, 127
        %v5778 = vpop.permute.xlu0 %5777
        %5779 = vrot.lane.b32.xlu0 %v893, 127
        %v5780 = vpop.permute.xlu0 %5779
        %5781 = vrot.lane.b32.xlu0 %v892, 127
        %v5782 = vpop.permute.xlu0 %5781
        %5783 = vrot.lane.b32.xlu0 %v894, 127
        %v5784 = vpop.permute.xlu0 %5783
        %v5785 = vsel %vm995, %v5778, %v5782
        %v5786 = vsel %vm995, %v5780, %v5784
        %v5787 = vsel %vm995, %v5782, %v5778
        %v5788 = vsel %vm995, %v5784, %v5780
        %v5789 = vmul.f32 %v5785, %v1003
        %v5790 = vmul.f32 %v5787, %v1004
        %v5791 = vmul.f32 %v5786, %v1003
        %v5792 = vmul.f32 %v5788, %v1004
        %5793 = vrot.lane.b32.xlu0 %v891, 126
        %v5794 = vpop.permute.xlu0 %5793
        %5795 = vrot.lane.b32.xlu0 %v893, 126
        %v5796 = vpop.permute.xlu0 %5795
        %5797 = vrot.lane.b32.xlu0 %v892, 126
        %v5798 = vpop.permute.xlu0 %5797
        %5799 = vrot.lane.b32.xlu0 %v894, 126
        %v5800 = vpop.permute.xlu0 %5799
        %v5801 = vsel %vm1019, %v5794, %v5798
        %v5802 = vsel %vm1019, %v5796, %v5800
        %v5803 = vsel %vm1019, %v5798, %v5794
        %v5804 = vsel %vm1019, %v5800, %v5796
        %v5805 = vmul.f32 %v5801, %v1027
        %v5806 = vmul.f32 %v5803, %v1028
        %v5807 = vmul.f32 %v5802, %v1027
        %v5808 = vmul.f32 %v5804, %v1028
        %5810 = vset.pattern.permute.xlu0 0
        %5811 = vperm.xlu0 %5810, %v901
        %v5812 = vpop.permute.xlu0 %5811
        %5815 = vset.pattern.permute.xlu0 0
        %5816 = vperm.xlu0 %5815, %v902
        %v5817 = vpop.permute.xlu0 %5816
        %v5819 = vmul.f32 %v5753, %v5812
        %v5820 = vmul.f32 %v5754, %v5812
        %v5821 = vmul.f32 %v5755, %v5817
        %v5822 = vmul.f32 %v5756, %v5817
        %5823 = vset.pattern.permute.xlu0 1
        %5824 = vperm.xlu0 %5823, %v901
        %v5825 = vpop.permute.xlu0 %5824
        %5827 = vset.pattern.permute.xlu0 1
        %5828 = vperm.xlu0 %5827, %v902
        %v5829 = vpop.permute.xlu0 %5828
        %v5831 = vmul.f32 %v5769, %v5825
        %v5832 = vmul.f32 %v5770, %v5825
        %v5833 = vmul.f32 %v5771, %v5829
        %v5834 = vmul.f32 %v5772, %v5829
        %v5835 = vadd.f32 %v5819, %v5831
        %v5836 = vadd.f32 %v5820, %v5832
        %v5837 = vadd.f32 %v5821, %v5833
        %v5838 = vadd.f32 %v5822, %v5834
        %5839 = vset.pattern.permute.xlu0 2
        %5840 = vperm.xlu0 %5839, %v901
        %v5841 = vpop.permute.xlu0 %5840
        %5843 = vset.pattern.permute.xlu0 2
        %5844 = vperm.xlu0 %5843, %v902
        %v5845 = vpop.permute.xlu0 %5844
        %v5847 = vmul.f32 %v5773, %v5841
        %v5848 = vmul.f32 %v5774, %v5841
        %v5849 = vmul.f32 %v5775, %v5845
        %v5850 = vmul.f32 %v5776, %v5845
        %v5851 = vadd.f32 %v5835, %v5847
        %v5852 = vadd.f32 %v5836, %v5848
        %v5853 = vadd.f32 %v5837, %v5849
        %v5854 = vadd.f32 %v5838, %v5850
        %5855 = vset.pattern.permute.xlu0 3
        %5856 = vperm.xlu0 %5855, %v901
        %v5857 = vpop.permute.xlu0 %5856
        %5859 = vset.pattern.permute.xlu0 3
        %5860 = vperm.xlu0 %5859, %v902
        %v5861 = vpop.permute.xlu0 %5860
        %v5863 = vmul.f32 %v5789, %v5857
        %v5864 = vmul.f32 %v5790, %v5857
        %v5865 = vmul.f32 %v5791, %v5861
        %v5866 = vmul.f32 %v5792, %v5861
        %v5867 = vadd.f32 %v5851, %v5863
        %v5868 = vadd.f32 %v5852, %v5864
        %v5869 = vadd.f32 %v5853, %v5865
        %v5870 = vadd.f32 %v5854, %v5866
        %5871 = vset.pattern.permute.xlu0 4
        %5872 = vperm.xlu0 %5871, %v901
        %v5873 = vpop.permute.xlu0 %5872
        %5875 = vset.pattern.permute.xlu0 4
        %5876 = vperm.xlu0 %5875, %v902
        %v5877 = vpop.permute.xlu0 %5876
        %v5879 = vmul.f32 %v5805, %v5873
        %v5880 = vmul.f32 %v5806, %v5873
        %v5881 = vmul.f32 %v5807, %v5877
        %v5882 = vmul.f32 %v5808, %v5877
        %v5883 = vadd.f32 %v5867, %v5879
        %v5884 = vadd.f32 %v5868, %v5880
        %v5885 = vadd.f32 %v5869, %v5881
        %v5886 = vadd.f32 %v5870, %v5882
        %5887 = vrot.lane.b32.xlu0 %v5883, 32
        %v5888 = vpop.permute.xlu0 %5887
        %5889 = vrot.lane.b32.xlu0 %v5885, 32
        %v5890 = vpop.permute.xlu0 %5889
        %5891 = vrot.lane.b32.xlu0 %v5884, 32
        %v5892 = vpop.permute.xlu0 %5891
        %5893 = vrot.lane.b32.xlu0 %v5886, 32
        %v5894 = vpop.permute.xlu0 %5893
        %v5895 = vsel %vm1121, %v5888, %v5892
        %v5896 = vsel %vm1121, %v5890, %v5894
        %v5897 = vsel %vm1121, %v5892, %v5888
        %v5898 = vsel %vm1121, %v5894, %v5890
        %v5899 = vmul.f32 %v5897, %v1128
        %v5900 = vmul.f32 %v5895, %v1129
        %v5901 = vmul.f32 %v5898, %v1128
        %v5902 = vmul.f32 %v5896, %v1129
        %5903 = vset.pattern.permute.xlu0 5
        %5904 = vperm.xlu0 %5903, %v901
        %v5905 = vpop.permute.xlu0 %5904
        %5907 = vset.pattern.permute.xlu0 5
        %5908 = vperm.xlu0 %5907, %v902
        %v5909 = vpop.permute.xlu0 %5908
        %v5911 = vmul.f32 %v5753, %v5905
        %v5912 = vmul.f32 %v5754, %v5905
        %v5913 = vmul.f32 %v5755, %v5909
        %v5914 = vmul.f32 %v5756, %v5909
        %5915 = vset.pattern.permute.xlu0 6
        %5916 = vperm.xlu0 %5915, %v901
        %v5917 = vpop.permute.xlu0 %5916
        %5919 = vset.pattern.permute.xlu0 6
        %5920 = vperm.xlu0 %5919, %v902
        %v5921 = vpop.permute.xlu0 %5920
        %v5923 = vmul.f32 %v5769, %v5917
        %v5924 = vmul.f32 %v5770, %v5917
        %v5925 = vmul.f32 %v5771, %v5921
        %v5926 = vmul.f32 %v5772, %v5921
        %v5927 = vadd.f32 %v5911, %v5923
        %v5928 = vadd.f32 %v5912, %v5924
        %v5929 = vadd.f32 %v5913, %v5925
        %v5930 = vadd.f32 %v5914, %v5926
        %5931 = vset.pattern.permute.xlu0 7
        %5932 = vperm.xlu0 %5931, %v901
        %v5933 = vpop.permute.xlu0 %5932
        %5935 = vset.pattern.permute.xlu0 7
        %5936 = vperm.xlu0 %5935, %v902
        %v5937 = vpop.permute.xlu0 %5936
        %v5939 = vmul.f32 %v5773, %v5933
        %v5940 = vmul.f32 %v5774, %v5933
        %v5941 = vmul.f32 %v5775, %v5937
        %v5942 = vmul.f32 %v5776, %v5937
        %v5943 = vadd.f32 %v5927, %v5939
        %v5944 = vadd.f32 %v5928, %v5940
        %v5945 = vadd.f32 %v5929, %v5941
        %v5946 = vadd.f32 %v5930, %v5942
        %5947 = vset.pattern.permute.xlu0 8
        %5948 = vperm.xlu0 %5947, %v901
        %v5949 = vpop.permute.xlu0 %5948
        %5951 = vset.pattern.permute.xlu0 8
        %5952 = vperm.xlu0 %5951, %v902
        %v5953 = vpop.permute.xlu0 %5952
        %v5955 = vmul.f32 %v5789, %v5949
        %v5956 = vmul.f32 %v5790, %v5949
        %v5957 = vmul.f32 %v5791, %v5953
        %v5958 = vmul.f32 %v5792, %v5953
        %v5959 = vadd.f32 %v5943, %v5955
        %v5960 = vadd.f32 %v5944, %v5956
        %v5961 = vadd.f32 %v5945, %v5957
        %v5962 = vadd.f32 %v5946, %v5958
        %5963 = vset.pattern.permute.xlu0 9
        %5964 = vperm.xlu0 %5963, %v901
        %v5965 = vpop.permute.xlu0 %5964
        %5967 = vset.pattern.permute.xlu0 9
        %5968 = vperm.xlu0 %5967, %v902
        %v5969 = vpop.permute.xlu0 %5968
        %v5971 = vmul.f32 %v5805, %v5965
        %v5972 = vmul.f32 %v5806, %v5965
        %v5973 = vmul.f32 %v5807, %v5969
        %v5974 = vmul.f32 %v5808, %v5969
        %v5975 = vadd.f32 %v5959, %v5971
        %v5976 = vadd.f32 %v5960, %v5972
        %v5977 = vadd.f32 %v5961, %v5973
        %v5978 = vadd.f32 %v5962, %v5974
        %5979 = vrot.lane.b32.xlu0 %v5975, 16
        %v5980 = vpop.permute.xlu0 %5979
        %5981 = vrot.lane.b32.xlu0 %v5977, 16
        %v5982 = vpop.permute.xlu0 %5981
        %5983 = vrot.lane.b32.xlu0 %v5976, 16
        %v5984 = vpop.permute.xlu0 %5983
        %5985 = vrot.lane.b32.xlu0 %v5978, 16
        %v5986 = vpop.permute.xlu0 %5985
        %v5987 = vsel %vm1220, %v5980, %v5984
        %v5988 = vsel %vm1220, %v5982, %v5986
        %v5989 = vsel %vm1220, %v5984, %v5980
        %v5990 = vsel %vm1220, %v5986, %v5982
        %v5991 = vmul.f32 %v5989, %v1228
        %v5992 = vmul.f32 %v5987, %v1229
        %v5993 = vmul.f32 %v5990, %v1228
        %v5994 = vmul.f32 %v5988, %v1229
        %v5995 = vadd.f32 %v5899, %v5991
        %v5996 = vadd.f32 %v5900, %v5992
        %v5997 = vadd.f32 %v5901, %v5993
        %v5998 = vadd.f32 %v5902, %v5994
        %5999 = vset.pattern.permute.xlu0 10
        %6000 = vperm.xlu0 %5999, %v901
        %v6001 = vpop.permute.xlu0 %6000
        %6003 = vset.pattern.permute.xlu0 10
        %6004 = vperm.xlu0 %6003, %v902
        %v6005 = vpop.permute.xlu0 %6004
        %v6007 = vmul.f32 %v5753, %v6001
        %v6008 = vmul.f32 %v5754, %v6001
        %v6009 = vmul.f32 %v5755, %v6005
        %v6010 = vmul.f32 %v5756, %v6005
        %6011 = vset.pattern.permute.xlu0 11
        %6012 = vperm.xlu0 %6011, %v901
        %v6013 = vpop.permute.xlu0 %6012
        %6015 = vset.pattern.permute.xlu0 11
        %6016 = vperm.xlu0 %6015, %v902
        %v6017 = vpop.permute.xlu0 %6016
        %v6019 = vmul.f32 %v5769, %v6013
        %v6020 = vmul.f32 %v5770, %v6013
        %v6021 = vmul.f32 %v5771, %v6017
        %v6022 = vmul.f32 %v5772, %v6017
        %v6023 = vadd.f32 %v6007, %v6019
        %v6024 = vadd.f32 %v6008, %v6020
        %v6025 = vadd.f32 %v6009, %v6021
        %v6026 = vadd.f32 %v6010, %v6022
        %6027 = vset.pattern.permute.xlu0 12
        %6028 = vperm.xlu0 %6027, %v901
        %v6029 = vpop.permute.xlu0 %6028
        %6031 = vset.pattern.permute.xlu0 12
        %6032 = vperm.xlu0 %6031, %v902
        %v6033 = vpop.permute.xlu0 %6032
        %v6035 = vmul.f32 %v5773, %v6029
        %v6036 = vmul.f32 %v5774, %v6029
        %v6037 = vmul.f32 %v5775, %v6033
        %v6038 = vmul.f32 %v5776, %v6033
        %v6039 = vadd.f32 %v6023, %v6035
        %v6040 = vadd.f32 %v6024, %v6036
        %v6041 = vadd.f32 %v6025, %v6037
        %v6042 = vadd.f32 %v6026, %v6038
        %6043 = vset.pattern.permute.xlu0 13
        %6044 = vperm.xlu0 %6043, %v901
        %v6045 = vpop.permute.xlu0 %6044
        %6047 = vset.pattern.permute.xlu0 13
        %6048 = vperm.xlu0 %6047, %v902
        %v6049 = vpop.permute.xlu0 %6048
        %v6051 = vmul.f32 %v5789, %v6045
        %v6052 = vmul.f32 %v5790, %v6045
        %v6053 = vmul.f32 %v5791, %v6049
        %v6054 = vmul.f32 %v5792, %v6049
        %v6055 = vadd.f32 %v6039, %v6051
        %v6056 = vadd.f32 %v6040, %v6052
        %v6057 = vadd.f32 %v6041, %v6053
        %v6058 = vadd.f32 %v6042, %v6054
        %6059 = vset.pattern.permute.xlu0 14
        %6060 = vperm.xlu0 %6059, %v901
        %v6061 = vpop.permute.xlu0 %6060
        %6063 = vset.pattern.permute.xlu0 14
        %6064 = vperm.xlu0 %6063, %v902
        %v6065 = vpop.permute.xlu0 %6064
        %v6067 = vmul.f32 %v5805, %v6061
        %v6068 = vmul.f32 %v5806, %v6061
        %v6069 = vmul.f32 %v5807, %v6065
        %v6070 = vmul.f32 %v5808, %v6065
        %v6071 = vadd.f32 %v6055, %v6067
        %v6072 = vadd.f32 %v6056, %v6068
        %v6073 = vadd.f32 %v6057, %v6069
        %v6074 = vadd.f32 %v6058, %v6070
        %v6075 = vmul.f32 %v6071, %v1319
        %v6076 = vmul.f32 %v6072, %v1320
        %v6077 = vmul.f32 %v6073, %v1319
        %v6078 = vmul.f32 %v6074, %v1320
        %v6079 = vadd.f32 %v5995, %v6075
        %v6080 = vadd.f32 %v5996, %v6076
        %v6081 = vadd.f32 %v5997, %v6077
        %v6082 = vadd.f32 %v5998, %v6078
        %6083 = vset.pattern.permute.xlu0 15
        %6084 = vperm.xlu0 %6083, %v901
        %v6085 = vpop.permute.xlu0 %6084
        %6087 = vset.pattern.permute.xlu0 15
        %6088 = vperm.xlu0 %6087, %v902
        %v6089 = vpop.permute.xlu0 %6088
        %v6091 = vmul.f32 %v5753, %v6085
        %v6092 = vmul.f32 %v5754, %v6085
        %v6093 = vmul.f32 %v5755, %v6089
        %v6094 = vmul.f32 %v5756, %v6089
        %6095 = vset.pattern.permute.xlu0 16
        %6096 = vperm.xlu0 %6095, %v901
        %v6097 = vpop.permute.xlu0 %6096
        %6099 = vset.pattern.permute.xlu0 16
        %6100 = vperm.xlu0 %6099, %v902
        %v6101 = vpop.permute.xlu0 %6100
        %v6103 = vmul.f32 %v5769, %v6097
        %v6104 = vmul.f32 %v5770, %v6097
        %v6105 = vmul.f32 %v5771, %v6101
        %v6106 = vmul.f32 %v5772, %v6101
        %v6107 = vadd.f32 %v6091, %v6103
        %v6108 = vadd.f32 %v6092, %v6104
        %v6109 = vadd.f32 %v6093, %v6105
        %v6110 = vadd.f32 %v6094, %v6106
        %6111 = vset.pattern.permute.xlu0 17
        %6112 = vperm.xlu0 %6111, %v901
        %v6113 = vpop.permute.xlu0 %6112
        %6115 = vset.pattern.permute.xlu0 17
        %6116 = vperm.xlu0 %6115, %v902
        %v6117 = vpop.permute.xlu0 %6116
        %v6119 = vmul.f32 %v5773, %v6113
        %v6120 = vmul.f32 %v5774, %v6113
        %v6121 = vmul.f32 %v5775, %v6117
        %v6122 = vmul.f32 %v5776, %v6117
        %v6123 = vadd.f32 %v6107, %v6119
        %v6124 = vadd.f32 %v6108, %v6120
        %v6125 = vadd.f32 %v6109, %v6121
        %v6126 = vadd.f32 %v6110, %v6122
        %6127 = vset.pattern.permute.xlu0 18
        %6128 = vperm.xlu0 %6127, %v901
        %v6129 = vpop.permute.xlu0 %6128
        %6131 = vset.pattern.permute.xlu0 18
        %6132 = vperm.xlu0 %6131, %v902
        %v6133 = vpop.permute.xlu0 %6132
        %v6135 = vmul.f32 %v5789, %v6129
        %v6136 = vmul.f32 %v5790, %v6129
        %v6137 = vmul.f32 %v5791, %v6133
        %v6138 = vmul.f32 %v5792, %v6133
        %v6139 = vadd.f32 %v6123, %v6135
        %v6140 = vadd.f32 %v6124, %v6136
        %v6141 = vadd.f32 %v6125, %v6137
        %v6142 = vadd.f32 %v6126, %v6138
        %6143 = vset.pattern.permute.xlu0 19
        %6144 = vperm.xlu0 %6143, %v901
        %v6145 = vpop.permute.xlu0 %6144
        %6147 = vset.pattern.permute.xlu0 19
        %6148 = vperm.xlu0 %6147, %v902
        %v6149 = vpop.permute.xlu0 %6148
        %v6151 = vmul.f32 %v5805, %v6145
        %v6152 = vmul.f32 %v5806, %v6145
        %v6153 = vmul.f32 %v5807, %v6149
        %v6154 = vmul.f32 %v5808, %v6149
        %v6155 = vadd.f32 %v6139, %v6151
        %v6156 = vadd.f32 %v6140, %v6152
        %v6157 = vadd.f32 %v6141, %v6153
        %v6158 = vadd.f32 %v6142, %v6154
        %6159 = vrot.lane.b32.xlu0 %v6155, 112
        %v6160 = vpop.permute.xlu0 %6159
        %6161 = vrot.lane.b32.xlu0 %v6157, 112
        %v6162 = vpop.permute.xlu0 %6161
        %6163 = vrot.lane.b32.xlu0 %v6156, 112
        %v6164 = vpop.permute.xlu0 %6163
        %6165 = vrot.lane.b32.xlu0 %v6158, 112
        %v6166 = vpop.permute.xlu0 %6165
        %v6167 = vsel %vm1415, %v6160, %v6164
        %v6168 = vsel %vm1415, %v6162, %v6166
        %v6169 = vsel %vm1415, %v6164, %v6160
        %v6170 = vsel %vm1415, %v6166, %v6162
        %v6171 = vmul.f32 %v6167, %v1423
        %v6172 = vmul.f32 %v6169, %v1424
        %v6173 = vmul.f32 %v6168, %v1423
        %v6174 = vmul.f32 %v6170, %v1424
        %v6175 = vadd.f32 %v6079, %v6171
        %v6176 = vadd.f32 %v6080, %v6172
        %v6177 = vadd.f32 %v6081, %v6173
        %v6178 = vadd.f32 %v6082, %v6174
        %6179 = vset.pattern.permute.xlu0 20
        %6180 = vperm.xlu0 %6179, %v901
        %v6181 = vpop.permute.xlu0 %6180
        %6183 = vset.pattern.permute.xlu0 20
        %6184 = vperm.xlu0 %6183, %v902
        %v6185 = vpop.permute.xlu0 %6184
        %v6187 = vmul.f32 %v5753, %v6181
        %v6188 = vmul.f32 %v5754, %v6181
        %v6189 = vmul.f32 %v5755, %v6185
        %v6190 = vmul.f32 %v5756, %v6185
        %6191 = vset.pattern.permute.xlu0 21
        %6192 = vperm.xlu0 %6191, %v901
        %v6193 = vpop.permute.xlu0 %6192
        %6195 = vset.pattern.permute.xlu0 21
        %6196 = vperm.xlu0 %6195, %v902
        %v6197 = vpop.permute.xlu0 %6196
        %v6199 = vmul.f32 %v5769, %v6193
        %v6200 = vmul.f32 %v5770, %v6193
        %v6201 = vmul.f32 %v5771, %v6197
        %v6202 = vmul.f32 %v5772, %v6197
        %v6203 = vadd.f32 %v6187, %v6199
        %v6204 = vadd.f32 %v6188, %v6200
        %v6205 = vadd.f32 %v6189, %v6201
        %v6206 = vadd.f32 %v6190, %v6202
        %6207 = vset.pattern.permute.xlu0 22
        %6208 = vperm.xlu0 %6207, %v901
        %v6209 = vpop.permute.xlu0 %6208
        %6211 = vset.pattern.permute.xlu0 22
        %6212 = vperm.xlu0 %6211, %v902
        %v6213 = vpop.permute.xlu0 %6212
        %v6215 = vmul.f32 %v5773, %v6209
        %v6216 = vmul.f32 %v5774, %v6209
        %v6217 = vmul.f32 %v5775, %v6213
        %v6218 = vmul.f32 %v5776, %v6213
        %v6219 = vadd.f32 %v6203, %v6215
        %v6220 = vadd.f32 %v6204, %v6216
        %v6221 = vadd.f32 %v6205, %v6217
        %v6222 = vadd.f32 %v6206, %v6218
        %6223 = vset.pattern.permute.xlu0 23
        %6224 = vperm.xlu0 %6223, %v901
        %v6225 = vpop.permute.xlu0 %6224
        %6227 = vset.pattern.permute.xlu0 23
        %6228 = vperm.xlu0 %6227, %v902
        %v6229 = vpop.permute.xlu0 %6228
        %v6231 = vmul.f32 %v5789, %v6225
        %v6232 = vmul.f32 %v5790, %v6225
        %v6233 = vmul.f32 %v5791, %v6229
        %v6234 = vmul.f32 %v5792, %v6229
        %v6235 = vadd.f32 %v6219, %v6231
        %v6236 = vadd.f32 %v6220, %v6232
        %v6237 = vadd.f32 %v6221, %v6233
        %v6238 = vadd.f32 %v6222, %v6234
        %6239 = vset.pattern.permute.xlu0 24
        %6240 = vperm.xlu0 %6239, %v901
        %v6241 = vpop.permute.xlu0 %6240
        %6243 = vset.pattern.permute.xlu0 24
        %6244 = vperm.xlu0 %6243, %v902
        %v6245 = vpop.permute.xlu0 %6244
        %v6247 = vmul.f32 %v5805, %v6241
        %v6248 = vmul.f32 %v5806, %v6241
        %v6249 = vmul.f32 %v5807, %v6245
        %v6250 = vmul.f32 %v5808, %v6245
        %v6251 = vadd.f32 %v6235, %v6247
        %v6252 = vadd.f32 %v6236, %v6248
        %v6253 = vadd.f32 %v6237, %v6249
        %v6254 = vadd.f32 %v6238, %v6250
        %6255 = vrot.lane.b32.xlu0 %v6251, 96
        %v6256 = vpop.permute.xlu0 %6255
        %6257 = vrot.lane.b32.xlu0 %v6253, 96
        %v6258 = vpop.permute.xlu0 %6257
        %6259 = vrot.lane.b32.xlu0 %v6252, 96
        %v6260 = vpop.permute.xlu0 %6259
        %6261 = vrot.lane.b32.xlu0 %v6254, 96
        %v6262 = vpop.permute.xlu0 %6261
        %v6263 = vsel %vm1519, %v6256, %v6260
        %v6264 = vsel %vm1519, %v6258, %v6262
        %v6265 = vsel %vm1519, %v6260, %v6256
        %v6266 = vsel %vm1519, %v6262, %v6258
        %v6267 = vmul.f32 %v6263, %v1527
        %v6268 = vmul.f32 %v6265, %v1528
        %v6269 = vmul.f32 %v6264, %v1527
        %v6270 = vmul.f32 %v6266, %v1528
        %v6271 = vadd.f32 %v6175, %v6267
        %v6272 = vadd.f32 %v6176, %v6268
        %v6273 = vadd.f32 %v6177, %v6269
        %v6274 = vadd.f32 %v6178, %v6270
        %6276 = vset.pattern.permute.xlu0 0
        %6277 = vperm.xlu0 %6276, %v917
        %v6278 = vpop.permute.xlu0 %6277
        %6281 = vset.pattern.permute.xlu0 0
        %6282 = vperm.xlu0 %6281, %v918
        %v6283 = vpop.permute.xlu0 %6282
        %v6285 = vadd.f32 %v6271, %v6278
        %v6286 = vadd.f32 %v6272, %v6278
        %v6287 = vadd.f32 %v6273, %v6283
        %v6288 = vadd.f32 %v6274, %v6283
        %6289 = vrot.lane.b32.xlu0 %v6285, 9
        %v6290 = vpop.permute.xlu0 %6289
        %6291 = vrot.lane.b32.xlu0 %v6287, 9
        %v6292 = vpop.permute.xlu0 %6291
        %6293 = vrot.lane.b32.xlu0 %v6286, 9
        %v6294 = vpop.permute.xlu0 %6293
        %6295 = vrot.lane.b32.xlu0 %v6288, 9
        %v6296 = vpop.permute.xlu0 %6295
        %v6297 = vsel %vm1561, %v6290, %v6294
        %v6298 = vsel %vm1561, %v6292, %v6296
        %v6299 = vsel %vm1561, %v6294, %v6290
        %v6300 = vsel %vm1561, %v6296, %v6292
        %v6301 = vmul.f32 %v6299, %v1568
        %v6302 = vmul.f32 %v6297, %v1569
        %v6303 = vmul.f32 %v6300, %v1568
        %v6304 = vmul.f32 %v6298, %v1569
        %6305 = vrot.lane.b32.xlu0 %v6285, 6
        %v6306 = vpop.permute.xlu0 %6305
        %6307 = vrot.lane.b32.xlu0 %v6287, 6
        %v6308 = vpop.permute.xlu0 %6307
        %6309 = vrot.lane.b32.xlu0 %v6286, 6
        %v6310 = vpop.permute.xlu0 %6309
        %6311 = vrot.lane.b32.xlu0 %v6288, 6
        %v6312 = vpop.permute.xlu0 %6311
        %v6313 = vsel %vm1584, %v6306, %v6310
        %v6314 = vsel %vm1584, %v6308, %v6312
        %v6315 = vsel %vm1584, %v6310, %v6306
        %v6316 = vsel %vm1584, %v6312, %v6308
        %v6317 = vmul.f32 %v6315, %v1592
        %v6318 = vmul.f32 %v6313, %v1593
        %v6319 = vmul.f32 %v6316, %v1592
        %v6320 = vmul.f32 %v6314, %v1593
        %6321 = vrot.lane.b32.xlu0 %v6285, 3
        %v6322 = vpop.permute.xlu0 %6321
        %6323 = vrot.lane.b32.xlu0 %v6287, 3
        %v6324 = vpop.permute.xlu0 %6323
        %6325 = vrot.lane.b32.xlu0 %v6286, 3
        %v6326 = vpop.permute.xlu0 %6325
        %6327 = vrot.lane.b32.xlu0 %v6288, 3
        %v6328 = vpop.permute.xlu0 %6327
        %v6329 = vsel %vm1608, %v6322, %v6326
        %v6330 = vsel %vm1608, %v6324, %v6328
        %v6331 = vsel %vm1608, %v6326, %v6322
        %v6332 = vsel %vm1608, %v6328, %v6324
        %v6333 = vmul.f32 %v6331, %v1616
        %v6334 = vmul.f32 %v6329, %v1617
        %v6335 = vmul.f32 %v6332, %v1616
        %v6336 = vmul.f32 %v6330, %v1617
        %v6337 = vmul.f32 %v6285, %v1627
        %v6338 = vmul.f32 %v6286, %v1628
        %v6339 = vmul.f32 %v6287, %v1627
        %v6340 = vmul.f32 %v6288, %v1628
        %6341 = vrot.lane.b32.xlu0 %v6285, 125
        %v6342 = vpop.permute.xlu0 %6341
        %6343 = vrot.lane.b32.xlu0 %v6287, 125
        %v6344 = vpop.permute.xlu0 %6343
        %6345 = vrot.lane.b32.xlu0 %v6286, 125
        %v6346 = vpop.permute.xlu0 %6345
        %6347 = vrot.lane.b32.xlu0 %v6288, 125
        %v6348 = vpop.permute.xlu0 %6347
        %v6349 = vsel %vm1643, %v6342, %v6346
        %v6350 = vsel %vm1643, %v6344, %v6348
        %v6351 = vsel %vm1643, %v6346, %v6342
        %v6352 = vsel %vm1643, %v6348, %v6344
        %v6353 = vmul.f32 %v6349, %v1651
        %v6354 = vmul.f32 %v6351, %v1652
        %v6355 = vmul.f32 %v6350, %v1651
        %v6356 = vmul.f32 %v6352, %v1652
        %6357 = vrot.lane.b32.xlu0 %v6285, 122
        %v6358 = vpop.permute.xlu0 %6357
        %6359 = vrot.lane.b32.xlu0 %v6287, 122
        %v6360 = vpop.permute.xlu0 %6359
        %6361 = vrot.lane.b32.xlu0 %v6286, 122
        %v6362 = vpop.permute.xlu0 %6361
        %6363 = vrot.lane.b32.xlu0 %v6288, 122
        %v6364 = vpop.permute.xlu0 %6363
        %v6365 = vsel %vm1667, %v6358, %v6362
        %v6366 = vsel %vm1667, %v6360, %v6364
        %v6367 = vsel %vm1667, %v6362, %v6358
        %v6368 = vsel %vm1667, %v6364, %v6360
        %v6369 = vmul.f32 %v6365, %v1675
        %v6370 = vmul.f32 %v6367, %v1676
        %v6371 = vmul.f32 %v6366, %v1675
        %v6372 = vmul.f32 %v6368, %v1676
        %6373 = vrot.lane.b32.xlu0 %v6285, 119
        %v6374 = vpop.permute.xlu0 %6373
        %6375 = vrot.lane.b32.xlu0 %v6287, 119
        %v6376 = vpop.permute.xlu0 %6375
        %6377 = vrot.lane.b32.xlu0 %v6286, 119
        %v6378 = vpop.permute.xlu0 %6377
        %6379 = vrot.lane.b32.xlu0 %v6288, 119
        %v6380 = vpop.permute.xlu0 %6379
        %v6381 = vsel %vm1691, %v6374, %v6378
        %v6382 = vsel %vm1691, %v6376, %v6380
        %v6383 = vsel %vm1691, %v6378, %v6374
        %v6384 = vsel %vm1691, %v6380, %v6376
        %v6385 = vmul.f32 %v6381, %v1699
        %v6386 = vmul.f32 %v6383, %v1700
        %v6387 = vmul.f32 %v6382, %v1699
        %v6388 = vmul.f32 %v6384, %v1700
        %6390 = vset.pattern.permute.xlu0 0
        %6391 = vperm.xlu0 %6390, %v909
        %v6392 = vpop.permute.xlu0 %6391
        %6395 = vset.pattern.permute.xlu0 0
        %6396 = vperm.xlu0 %6395, %v910
        %v6397 = vpop.permute.xlu0 %6396
        %v6399 = vmul.f32 %v6301, %v6392
        %v6400 = vmul.f32 %v6302, %v6392
        %v6401 = vmul.f32 %v6303, %v6397
        %v6402 = vmul.f32 %v6304, %v6397
        %6403 = vset.pattern.permute.xlu0 1
        %6404 = vperm.xlu0 %6403, %v909
        %v6405 = vpop.permute.xlu0 %6404
        %6407 = vset.pattern.permute.xlu0 1
        %6408 = vperm.xlu0 %6407, %v910
        %v6409 = vpop.permute.xlu0 %6408
        %v6411 = vmul.f32 %v6317, %v6405
        %v6412 = vmul.f32 %v6318, %v6405
        %v6413 = vmul.f32 %v6319, %v6409
        %v6414 = vmul.f32 %v6320, %v6409
        %v6415 = vadd.f32 %v6399, %v6411
        %v6416 = vadd.f32 %v6400, %v6412
        %v6417 = vadd.f32 %v6401, %v6413
        %v6418 = vadd.f32 %v6402, %v6414
        %6419 = vset.pattern.permute.xlu0 2
        %6420 = vperm.xlu0 %6419, %v909
        %v6421 = vpop.permute.xlu0 %6420
        %6423 = vset.pattern.permute.xlu0 2
        %6424 = vperm.xlu0 %6423, %v910
        %v6425 = vpop.permute.xlu0 %6424
        %v6427 = vmul.f32 %v6333, %v6421
        %v6428 = vmul.f32 %v6334, %v6421
        %v6429 = vmul.f32 %v6335, %v6425
        %v6430 = vmul.f32 %v6336, %v6425
        %v6431 = vadd.f32 %v6415, %v6427
        %v6432 = vadd.f32 %v6416, %v6428
        %v6433 = vadd.f32 %v6417, %v6429
        %v6434 = vadd.f32 %v6418, %v6430
        %6435 = vset.pattern.permute.xlu0 3
        %6436 = vperm.xlu0 %6435, %v909
        %v6437 = vpop.permute.xlu0 %6436
        %6439 = vset.pattern.permute.xlu0 3
        %6440 = vperm.xlu0 %6439, %v910
        %v6441 = vpop.permute.xlu0 %6440
        %v6443 = vmul.f32 %v6337, %v6437
        %v6444 = vmul.f32 %v6338, %v6437
        %v6445 = vmul.f32 %v6339, %v6441
        %v6446 = vmul.f32 %v6340, %v6441
        %v6447 = vadd.f32 %v6431, %v6443
        %v6448 = vadd.f32 %v6432, %v6444
        %v6449 = vadd.f32 %v6433, %v6445
        %v6450 = vadd.f32 %v6434, %v6446
        %6451 = vset.pattern.permute.xlu0 4
        %6452 = vperm.xlu0 %6451, %v909
        %v6453 = vpop.permute.xlu0 %6452
        %6455 = vset.pattern.permute.xlu0 4
        %6456 = vperm.xlu0 %6455, %v910
        %v6457 = vpop.permute.xlu0 %6456
        %v6459 = vmul.f32 %v6353, %v6453
        %v6460 = vmul.f32 %v6354, %v6453
        %v6461 = vmul.f32 %v6355, %v6457
        %v6462 = vmul.f32 %v6356, %v6457
        %v6463 = vadd.f32 %v6447, %v6459
        %v6464 = vadd.f32 %v6448, %v6460
        %v6465 = vadd.f32 %v6449, %v6461
        %v6466 = vadd.f32 %v6450, %v6462
        %6467 = vset.pattern.permute.xlu0 5
        %6468 = vperm.xlu0 %6467, %v909
        %v6469 = vpop.permute.xlu0 %6468
        %6471 = vset.pattern.permute.xlu0 5
        %6472 = vperm.xlu0 %6471, %v910
        %v6473 = vpop.permute.xlu0 %6472
        %v6475 = vmul.f32 %v6369, %v6469
        %v6476 = vmul.f32 %v6370, %v6469
        %v6477 = vmul.f32 %v6371, %v6473
        %v6478 = vmul.f32 %v6372, %v6473
        %v6479 = vadd.f32 %v6463, %v6475
        %v6480 = vadd.f32 %v6464, %v6476
        %v6481 = vadd.f32 %v6465, %v6477
        %v6482 = vadd.f32 %v6466, %v6478
        %6483 = vset.pattern.permute.xlu0 6
        %6484 = vperm.xlu0 %6483, %v909
        %v6485 = vpop.permute.xlu0 %6484
        %6487 = vset.pattern.permute.xlu0 6
        %6488 = vperm.xlu0 %6487, %v910
        %v6489 = vpop.permute.xlu0 %6488
        %v6491 = vmul.f32 %v6385, %v6485
        %v6492 = vmul.f32 %v6386, %v6485
        %v6493 = vmul.f32 %v6387, %v6489
        %v6494 = vmul.f32 %v6388, %v6489
        %v6495 = vadd.f32 %v6479, %v6491
        %v6496 = vadd.f32 %v6480, %v6492
        %v6497 = vadd.f32 %v6481, %v6493
        %v6498 = vadd.f32 %v6482, %v6494
        %6499 = vrot.lane.b32.xlu0 %v6495, 16
        %v6500 = vpop.permute.xlu0 %6499
        %6501 = vrot.lane.b32.xlu0 %v6497, 16
        %v6502 = vpop.permute.xlu0 %6501
        %6503 = vrot.lane.b32.xlu0 %v6496, 16
        %v6504 = vpop.permute.xlu0 %6503
        %6505 = vrot.lane.b32.xlu0 %v6498, 16
        %v6506 = vpop.permute.xlu0 %6505
        %v6507 = vsel %vm1220, %v6500, %v6504
        %v6508 = vsel %vm1220, %v6502, %v6506
        %v6509 = vsel %vm1220, %v6504, %v6500
        %v6510 = vsel %vm1220, %v6506, %v6502
        %v6511 = vmul.f32 %v6507, %v1831
        %v6512 = vmul.f32 %v6509, %v1832
        %v6513 = vmul.f32 %v6508, %v1831
        %v6514 = vmul.f32 %v6510, %v1832
        %6515 = vset.pattern.permute.xlu0 7
        %6516 = vperm.xlu0 %6515, %v909
        %v6517 = vpop.permute.xlu0 %6516
        %6519 = vset.pattern.permute.xlu0 7
        %6520 = vperm.xlu0 %6519, %v910
        %v6521 = vpop.permute.xlu0 %6520
        %v6523 = vmul.f32 %v6301, %v6517
        %v6524 = vmul.f32 %v6302, %v6517
        %v6525 = vmul.f32 %v6303, %v6521
        %v6526 = vmul.f32 %v6304, %v6521
        %6527 = vset.pattern.permute.xlu0 8
        %6528 = vperm.xlu0 %6527, %v909
        %v6529 = vpop.permute.xlu0 %6528
        %6531 = vset.pattern.permute.xlu0 8
        %6532 = vperm.xlu0 %6531, %v910
        %v6533 = vpop.permute.xlu0 %6532
        %v6535 = vmul.f32 %v6317, %v6529
        %v6536 = vmul.f32 %v6318, %v6529
        %v6537 = vmul.f32 %v6319, %v6533
        %v6538 = vmul.f32 %v6320, %v6533
        %v6539 = vadd.f32 %v6523, %v6535
        %v6540 = vadd.f32 %v6524, %v6536
        %v6541 = vadd.f32 %v6525, %v6537
        %v6542 = vadd.f32 %v6526, %v6538
        %6543 = vset.pattern.permute.xlu0 9
        %6544 = vperm.xlu0 %6543, %v909
        %v6545 = vpop.permute.xlu0 %6544
        %6547 = vset.pattern.permute.xlu0 9
        %6548 = vperm.xlu0 %6547, %v910
        %v6549 = vpop.permute.xlu0 %6548
        %v6551 = vmul.f32 %v6333, %v6545
        %v6552 = vmul.f32 %v6334, %v6545
        %v6553 = vmul.f32 %v6335, %v6549
        %v6554 = vmul.f32 %v6336, %v6549
        %v6555 = vadd.f32 %v6539, %v6551
        %v6556 = vadd.f32 %v6540, %v6552
        %v6557 = vadd.f32 %v6541, %v6553
        %v6558 = vadd.f32 %v6542, %v6554
        %6559 = vset.pattern.permute.xlu0 10
        %6560 = vperm.xlu0 %6559, %v909
        %v6561 = vpop.permute.xlu0 %6560
        %6563 = vset.pattern.permute.xlu0 10
        %6564 = vperm.xlu0 %6563, %v910
        %v6565 = vpop.permute.xlu0 %6564
        %v6567 = vmul.f32 %v6337, %v6561
        %v6568 = vmul.f32 %v6338, %v6561
        %v6569 = vmul.f32 %v6339, %v6565
        %v6570 = vmul.f32 %v6340, %v6565
        %v6571 = vadd.f32 %v6555, %v6567
        %v6572 = vadd.f32 %v6556, %v6568
        %v6573 = vadd.f32 %v6557, %v6569
        %v6574 = vadd.f32 %v6558, %v6570
        %6575 = vset.pattern.permute.xlu0 11
        %6576 = vperm.xlu0 %6575, %v909
        %v6577 = vpop.permute.xlu0 %6576
        %6579 = vset.pattern.permute.xlu0 11
        %6580 = vperm.xlu0 %6579, %v910
        %v6581 = vpop.permute.xlu0 %6580
        %v6583 = vmul.f32 %v6353, %v6577
        %v6584 = vmul.f32 %v6354, %v6577
        %v6585 = vmul.f32 %v6355, %v6581
        %v6586 = vmul.f32 %v6356, %v6581
        %v6587 = vadd.f32 %v6571, %v6583
        %v6588 = vadd.f32 %v6572, %v6584
        %v6589 = vadd.f32 %v6573, %v6585
        %v6590 = vadd.f32 %v6574, %v6586
        %6591 = vset.pattern.permute.xlu0 12
        %6592 = vperm.xlu0 %6591, %v909
        %v6593 = vpop.permute.xlu0 %6592
        %6595 = vset.pattern.permute.xlu0 12
        %6596 = vperm.xlu0 %6595, %v910
        %v6597 = vpop.permute.xlu0 %6596
        %v6599 = vmul.f32 %v6369, %v6593
        %v6600 = vmul.f32 %v6370, %v6593
        %v6601 = vmul.f32 %v6371, %v6597
        %v6602 = vmul.f32 %v6372, %v6597
        %v6603 = vadd.f32 %v6587, %v6599
        %v6604 = vadd.f32 %v6588, %v6600
        %v6605 = vadd.f32 %v6589, %v6601
        %v6606 = vadd.f32 %v6590, %v6602
        %6607 = vset.pattern.permute.xlu0 13
        %6608 = vperm.xlu0 %6607, %v909
        %v6609 = vpop.permute.xlu0 %6608
        %6611 = vset.pattern.permute.xlu0 13
        %6612 = vperm.xlu0 %6611, %v910
        %v6613 = vpop.permute.xlu0 %6612
        %v6615 = vmul.f32 %v6385, %v6609
        %v6616 = vmul.f32 %v6386, %v6609
        %v6617 = vmul.f32 %v6387, %v6613
        %v6618 = vmul.f32 %v6388, %v6613
        %v6619 = vadd.f32 %v6603, %v6615
        %v6620 = vadd.f32 %v6604, %v6616
        %v6621 = vadd.f32 %v6605, %v6617
        %v6622 = vadd.f32 %v6606, %v6618
        %6623 = vrot.lane.b32.xlu0 %v6619, 96
        %v6624 = vpop.permute.xlu0 %6623
        %6625 = vrot.lane.b32.xlu0 %v6621, 96
        %v6626 = vpop.permute.xlu0 %6625
        %6627 = vrot.lane.b32.xlu0 %v6620, 96
        %v6628 = vpop.permute.xlu0 %6627
        %6629 = vrot.lane.b32.xlu0 %v6622, 96
        %v6630 = vpop.permute.xlu0 %6629
        %v6631 = vsel %vm1519, %v6624, %v6628
        %v6632 = vsel %vm1519, %v6626, %v6630
        %v6633 = vsel %vm1519, %v6628, %v6624
        %v6634 = vsel %vm1519, %v6630, %v6626
        %v6635 = vmul.f32 %v6633, %v1962
        %v6636 = vmul.f32 %v6631, %v1963
        %v6637 = vmul.f32 %v6634, %v1962
        %v6638 = vmul.f32 %v6632, %v1963
        %v6639 = vadd.f32 %v6511, %v6635
        %v6640 = vadd.f32 %v6512, %v6636
        %v6641 = vadd.f32 %v6513, %v6637
        %v6642 = vadd.f32 %v6514, %v6638
        %6643 = vset.pattern.permute.xlu0 14
        %6644 = vperm.xlu0 %6643, %v909
        %v6645 = vpop.permute.xlu0 %6644
        %6647 = vset.pattern.permute.xlu0 14
        %6648 = vperm.xlu0 %6647, %v910
        %v6649 = vpop.permute.xlu0 %6648
        %v6651 = vmul.f32 %v6301, %v6645
        %v6652 = vmul.f32 %v6302, %v6645
        %v6653 = vmul.f32 %v6303, %v6649
        %v6654 = vmul.f32 %v6304, %v6649
        %6655 = vset.pattern.permute.xlu0 15
        %6656 = vperm.xlu0 %6655, %v909
        %v6657 = vpop.permute.xlu0 %6656
        %6659 = vset.pattern.permute.xlu0 15
        %6660 = vperm.xlu0 %6659, %v910
        %v6661 = vpop.permute.xlu0 %6660
        %v6663 = vmul.f32 %v6317, %v6657
        %v6664 = vmul.f32 %v6318, %v6657
        %v6665 = vmul.f32 %v6319, %v6661
        %v6666 = vmul.f32 %v6320, %v6661
        %v6667 = vadd.f32 %v6651, %v6663
        %v6668 = vadd.f32 %v6652, %v6664
        %v6669 = vadd.f32 %v6653, %v6665
        %v6670 = vadd.f32 %v6654, %v6666
        %6671 = vset.pattern.permute.xlu0 16
        %6672 = vperm.xlu0 %6671, %v909
        %v6673 = vpop.permute.xlu0 %6672
        %6675 = vset.pattern.permute.xlu0 16
        %6676 = vperm.xlu0 %6675, %v910
        %v6677 = vpop.permute.xlu0 %6676
        %v6679 = vmul.f32 %v6333, %v6673
        %v6680 = vmul.f32 %v6334, %v6673
        %v6681 = vmul.f32 %v6335, %v6677
        %v6682 = vmul.f32 %v6336, %v6677
        %v6683 = vadd.f32 %v6667, %v6679
        %v6684 = vadd.f32 %v6668, %v6680
        %v6685 = vadd.f32 %v6669, %v6681
        %v6686 = vadd.f32 %v6670, %v6682
        %6687 = vset.pattern.permute.xlu0 17
        %6688 = vperm.xlu0 %6687, %v909
        %v6689 = vpop.permute.xlu0 %6688
        %6691 = vset.pattern.permute.xlu0 17
        %6692 = vperm.xlu0 %6691, %v910
        %v6693 = vpop.permute.xlu0 %6692
        %v6695 = vmul.f32 %v6337, %v6689
        %v6696 = vmul.f32 %v6338, %v6689
        %v6697 = vmul.f32 %v6339, %v6693
        %v6698 = vmul.f32 %v6340, %v6693
        %v6699 = vadd.f32 %v6683, %v6695
        %v6700 = vadd.f32 %v6684, %v6696
        %v6701 = vadd.f32 %v6685, %v6697
        %v6702 = vadd.f32 %v6686, %v6698
        %6703 = vset.pattern.permute.xlu0 18
        %6704 = vperm.xlu0 %6703, %v909
        %v6705 = vpop.permute.xlu0 %6704
        %6707 = vset.pattern.permute.xlu0 18
        %6708 = vperm.xlu0 %6707, %v910
        %v6709 = vpop.permute.xlu0 %6708
        %v6711 = vmul.f32 %v6353, %v6705
        %v6712 = vmul.f32 %v6354, %v6705
        %v6713 = vmul.f32 %v6355, %v6709
        %v6714 = vmul.f32 %v6356, %v6709
        %v6715 = vadd.f32 %v6699, %v6711
        %v6716 = vadd.f32 %v6700, %v6712
        %v6717 = vadd.f32 %v6701, %v6713
        %v6718 = vadd.f32 %v6702, %v6714
        %6719 = vset.pattern.permute.xlu0 19
        %6720 = vperm.xlu0 %6719, %v909
        %v6721 = vpop.permute.xlu0 %6720
        %6723 = vset.pattern.permute.xlu0 19
        %6724 = vperm.xlu0 %6723, %v910
        %v6725 = vpop.permute.xlu0 %6724
        %v6727 = vmul.f32 %v6369, %v6721
        %v6728 = vmul.f32 %v6370, %v6721
        %v6729 = vmul.f32 %v6371, %v6725
        %v6730 = vmul.f32 %v6372, %v6725
        %v6731 = vadd.f32 %v6715, %v6727
        %v6732 = vadd.f32 %v6716, %v6728
        %v6733 = vadd.f32 %v6717, %v6729
        %v6734 = vadd.f32 %v6718, %v6730
        %6735 = vset.pattern.permute.xlu0 20
        %6736 = vperm.xlu0 %6735, %v909
        %v6737 = vpop.permute.xlu0 %6736
        %6739 = vset.pattern.permute.xlu0 20
        %6740 = vperm.xlu0 %6739, %v910
        %v6741 = vpop.permute.xlu0 %6740
        %v6743 = vmul.f32 %v6385, %v6737
        %v6744 = vmul.f32 %v6386, %v6737
        %v6745 = vmul.f32 %v6387, %v6741
        %v6746 = vmul.f32 %v6388, %v6741
        %v6747 = vadd.f32 %v6731, %v6743
        %v6748 = vadd.f32 %v6732, %v6744
        %v6749 = vadd.f32 %v6733, %v6745
        %v6750 = vadd.f32 %v6734, %v6746
        %6751 = vrot.lane.b32.xlu0 %v6747, 48
        %v6752 = vpop.permute.xlu0 %6751
        %6753 = vrot.lane.b32.xlu0 %v6749, 48
        %v6754 = vpop.permute.xlu0 %6753
        %6755 = vrot.lane.b32.xlu0 %v6748, 48
        %v6756 = vpop.permute.xlu0 %6755
        %6757 = vrot.lane.b32.xlu0 %v6750, 48
        %v6758 = vpop.permute.xlu0 %6757
        %v6759 = vsel %vm2090, %v6752, %v6756
        %v6760 = vsel %vm2090, %v6754, %v6758
        %v6761 = vsel %vm2090, %v6756, %v6752
        %v6762 = vsel %vm2090, %v6758, %v6754
        %v6763 = vmul.f32 %v6761, %v2098
        %v6764 = vmul.f32 %v6759, %v2099
        %v6765 = vmul.f32 %v6762, %v2098
        %v6766 = vmul.f32 %v6760, %v2099
        %v6767 = vadd.f32 %v6639, %v6763
        %v6768 = vadd.f32 %v6640, %v6764
        %v6769 = vadd.f32 %v6641, %v6765
        %v6770 = vadd.f32 %v6642, %v6766
        %6771 = vset.pattern.permute.xlu0 21
        %6772 = vperm.xlu0 %6771, %v909
        %v6773 = vpop.permute.xlu0 %6772
        %6775 = vset.pattern.permute.xlu0 21
        %6776 = vperm.xlu0 %6775, %v910
        %v6777 = vpop.permute.xlu0 %6776
        %v6779 = vmul.f32 %v6301, %v6773
        %v6780 = vmul.f32 %v6302, %v6773
        %v6781 = vmul.f32 %v6303, %v6777
        %v6782 = vmul.f32 %v6304, %v6777
        %6783 = vset.pattern.permute.xlu0 22
        %6784 = vperm.xlu0 %6783, %v909
        %v6785 = vpop.permute.xlu0 %6784
        %6787 = vset.pattern.permute.xlu0 22
        %6788 = vperm.xlu0 %6787, %v910
        %v6789 = vpop.permute.xlu0 %6788
        %v6791 = vmul.f32 %v6317, %v6785
        %v6792 = vmul.f32 %v6318, %v6785
        %v6793 = vmul.f32 %v6319, %v6789
        %v6794 = vmul.f32 %v6320, %v6789
        %v6795 = vadd.f32 %v6779, %v6791
        %v6796 = vadd.f32 %v6780, %v6792
        %v6797 = vadd.f32 %v6781, %v6793
        %v6798 = vadd.f32 %v6782, %v6794
        %6799 = vset.pattern.permute.xlu0 23
        %6800 = vperm.xlu0 %6799, %v909
        %v6801 = vpop.permute.xlu0 %6800
        %6803 = vset.pattern.permute.xlu0 23
        %6804 = vperm.xlu0 %6803, %v910
        %v6805 = vpop.permute.xlu0 %6804
        %v6807 = vmul.f32 %v6333, %v6801
        %v6808 = vmul.f32 %v6334, %v6801
        %v6809 = vmul.f32 %v6335, %v6805
        %v6810 = vmul.f32 %v6336, %v6805
        %v6811 = vadd.f32 %v6795, %v6807
        %v6812 = vadd.f32 %v6796, %v6808
        %v6813 = vadd.f32 %v6797, %v6809
        %v6814 = vadd.f32 %v6798, %v6810
        %6815 = vset.pattern.permute.xlu0 24
        %6816 = vperm.xlu0 %6815, %v909
        %v6817 = vpop.permute.xlu0 %6816
        %6819 = vset.pattern.permute.xlu0 24
        %6820 = vperm.xlu0 %6819, %v910
        %v6821 = vpop.permute.xlu0 %6820
        %v6823 = vmul.f32 %v6337, %v6817
        %v6824 = vmul.f32 %v6338, %v6817
        %v6825 = vmul.f32 %v6339, %v6821
        %v6826 = vmul.f32 %v6340, %v6821
        %v6827 = vadd.f32 %v6811, %v6823
        %v6828 = vadd.f32 %v6812, %v6824
        %v6829 = vadd.f32 %v6813, %v6825
        %v6830 = vadd.f32 %v6814, %v6826
        %6831 = vset.pattern.permute.xlu0 25
        %6832 = vperm.xlu0 %6831, %v909
        %v6833 = vpop.permute.xlu0 %6832
        %6835 = vset.pattern.permute.xlu0 25
        %6836 = vperm.xlu0 %6835, %v910
        %v6837 = vpop.permute.xlu0 %6836
        %v6839 = vmul.f32 %v6353, %v6833
        %v6840 = vmul.f32 %v6354, %v6833
        %v6841 = vmul.f32 %v6355, %v6837
        %v6842 = vmul.f32 %v6356, %v6837
        %v6843 = vadd.f32 %v6827, %v6839
        %v6844 = vadd.f32 %v6828, %v6840
        %v6845 = vadd.f32 %v6829, %v6841
        %v6846 = vadd.f32 %v6830, %v6842
        %6847 = vset.pattern.permute.xlu0 26
        %6848 = vperm.xlu0 %6847, %v909
        %v6849 = vpop.permute.xlu0 %6848
        %6851 = vset.pattern.permute.xlu0 26
        %6852 = vperm.xlu0 %6851, %v910
        %v6853 = vpop.permute.xlu0 %6852
        %v6855 = vmul.f32 %v6369, %v6849
        %v6856 = vmul.f32 %v6370, %v6849
        %v6857 = vmul.f32 %v6371, %v6853
        %v6858 = vmul.f32 %v6372, %v6853
        %v6859 = vadd.f32 %v6843, %v6855
        %v6860 = vadd.f32 %v6844, %v6856
        %v6861 = vadd.f32 %v6845, %v6857
        %v6862 = vadd.f32 %v6846, %v6858
        %6863 = vset.pattern.permute.xlu0 27
        %6864 = vperm.xlu0 %6863, %v909
        %v6865 = vpop.permute.xlu0 %6864
        %6867 = vset.pattern.permute.xlu0 27
        %6868 = vperm.xlu0 %6867, %v910
        %v6869 = vpop.permute.xlu0 %6868
        %v6871 = vmul.f32 %v6385, %v6865
        %v6872 = vmul.f32 %v6386, %v6865
        %v6873 = vmul.f32 %v6387, %v6869
        %v6874 = vmul.f32 %v6388, %v6869
        %v6875 = vadd.f32 %v6859, %v6871
        %v6876 = vadd.f32 %v6860, %v6872
        %v6877 = vadd.f32 %v6861, %v6873
        %v6878 = vadd.f32 %v6862, %v6874
        %v6879 = vmul.f32 %v6875, %v2221
        %v6880 = vmul.f32 %v6876, %v2222
        %v6881 = vmul.f32 %v6877, %v2221
        %v6882 = vmul.f32 %v6878, %v2222
        %v6883 = vadd.f32 %v6767, %v6879
        %v6884 = vadd.f32 %v6768, %v6880
        %v6885 = vadd.f32 %v6769, %v6881
        %v6886 = vadd.f32 %v6770, %v6882
        %6887 = vset.pattern.permute.xlu0 28
        %6888 = vperm.xlu0 %6887, %v909
        %v6889 = vpop.permute.xlu0 %6888
        %6891 = vset.pattern.permute.xlu0 28
        %6892 = vperm.xlu0 %6891, %v910
        %v6893 = vpop.permute.xlu0 %6892
        %v6895 = vmul.f32 %v6301, %v6889
        %v6896 = vmul.f32 %v6302, %v6889
        %v6897 = vmul.f32 %v6303, %v6893
        %v6898 = vmul.f32 %v6304, %v6893
        %6899 = vset.pattern.permute.xlu0 29
        %6900 = vperm.xlu0 %6899, %v909
        %v6901 = vpop.permute.xlu0 %6900
        %6903 = vset.pattern.permute.xlu0 29
        %6904 = vperm.xlu0 %6903, %v910
        %v6905 = vpop.permute.xlu0 %6904
        %v6907 = vmul.f32 %v6317, %v6901
        %v6908 = vmul.f32 %v6318, %v6901
        %v6909 = vmul.f32 %v6319, %v6905
        %v6910 = vmul.f32 %v6320, %v6905
        %v6911 = vadd.f32 %v6895, %v6907
        %v6912 = vadd.f32 %v6896, %v6908
        %v6913 = vadd.f32 %v6897, %v6909
        %v6914 = vadd.f32 %v6898, %v6910
        %6915 = vset.pattern.permute.xlu0 30
        %6916 = vperm.xlu0 %6915, %v909
        %v6917 = vpop.permute.xlu0 %6916
        %6919 = vset.pattern.permute.xlu0 30
        %6920 = vperm.xlu0 %6919, %v910
        %v6921 = vpop.permute.xlu0 %6920
        %v6923 = vmul.f32 %v6333, %v6917
        %v6924 = vmul.f32 %v6334, %v6917
        %v6925 = vmul.f32 %v6335, %v6921
        %v6926 = vmul.f32 %v6336, %v6921
        %v6927 = vadd.f32 %v6911, %v6923
        %v6928 = vadd.f32 %v6912, %v6924
        %v6929 = vadd.f32 %v6913, %v6925
        %v6930 = vadd.f32 %v6914, %v6926
        %6931 = vset.pattern.permute.xlu0 31
        %6932 = vperm.xlu0 %6931, %v909
        %v6933 = vpop.permute.xlu0 %6932
        %6935 = vset.pattern.permute.xlu0 31
        %6936 = vperm.xlu0 %6935, %v910
        %v6937 = vpop.permute.xlu0 %6936
        %v6939 = vmul.f32 %v6337, %v6933
        %v6940 = vmul.f32 %v6338, %v6933
        %v6941 = vmul.f32 %v6339, %v6937
        %v6942 = vmul.f32 %v6340, %v6937
        %v6943 = vadd.f32 %v6927, %v6939
        %v6944 = vadd.f32 %v6928, %v6940
        %v6945 = vadd.f32 %v6929, %v6941
        %v6946 = vadd.f32 %v6930, %v6942
        %6947 = vset.pattern.permute.xlu0 32
        %6948 = vperm.xlu0 %6947, %v909
        %v6949 = vpop.permute.xlu0 %6948
        %6951 = vset.pattern.permute.xlu0 32
        %6952 = vperm.xlu0 %6951, %v910
        %v6953 = vpop.permute.xlu0 %6952
        %v6955 = vmul.f32 %v6353, %v6949
        %v6956 = vmul.f32 %v6354, %v6949
        %v6957 = vmul.f32 %v6355, %v6953
        %v6958 = vmul.f32 %v6356, %v6953
        %v6959 = vadd.f32 %v6943, %v6955
        %v6960 = vadd.f32 %v6944, %v6956
        %v6961 = vadd.f32 %v6945, %v6957
        %v6962 = vadd.f32 %v6946, %v6958
        %6963 = vset.pattern.permute.xlu0 33
        %6964 = vperm.xlu0 %6963, %v909
        %v6965 = vpop.permute.xlu0 %6964
        %6967 = vset.pattern.permute.xlu0 33
        %6968 = vperm.xlu0 %6967, %v910
        %v6969 = vpop.permute.xlu0 %6968
        %v6971 = vmul.f32 %v6369, %v6965
        %v6972 = vmul.f32 %v6370, %v6965
        %v6973 = vmul.f32 %v6371, %v6969
        %v6974 = vmul.f32 %v6372, %v6969
        %v6975 = vadd.f32 %v6959, %v6971
        %v6976 = vadd.f32 %v6960, %v6972
        %v6977 = vadd.f32 %v6961, %v6973
        %v6978 = vadd.f32 %v6962, %v6974
        %6979 = vset.pattern.permute.xlu0 34
        %6980 = vperm.xlu0 %6979, %v909
        %v6981 = vpop.permute.xlu0 %6980
        %6983 = vset.pattern.permute.xlu0 34
        %6984 = vperm.xlu0 %6983, %v910
        %v6985 = vpop.permute.xlu0 %6984
        %v6987 = vmul.f32 %v6385, %v6981
        %v6988 = vmul.f32 %v6386, %v6981
        %v6989 = vmul.f32 %v6387, %v6985
        %v6990 = vmul.f32 %v6388, %v6985
        %v6991 = vadd.f32 %v6975, %v6987
        %v6992 = vadd.f32 %v6976, %v6988
        %v6993 = vadd.f32 %v6977, %v6989
        %v6994 = vadd.f32 %v6978, %v6990
        %6995 = vrot.lane.b32.xlu0 %v6991, 80
        %v6996 = vpop.permute.xlu0 %6995
        %6997 = vrot.lane.b32.xlu0 %v6993, 80
        %v6998 = vpop.permute.xlu0 %6997
        %6999 = vrot.lane.b32.xlu0 %v6992, 80
        %v7000 = vpop.permute.xlu0 %6999
        %7001 = vrot.lane.b32.xlu0 %v6994, 80
        %v7002 = vpop.permute.xlu0 %7001
        %v7003 = vsel %vm2349, %v6996, %v7000
        %v7004 = vsel %vm2349, %v6998, %v7002
        %v7005 = vsel %vm2349, %v7000, %v6996
        %v7006 = vsel %vm2349, %v7002, %v6998
        %v7007 = vmul.f32 %v7003, %v2357
        %v7008 = vmul.f32 %v7005, %v2358
        %v7009 = vmul.f32 %v7004, %v2357
        %v7010 = vmul.f32 %v7006, %v2358
        %v7011 = vadd.f32 %v6883, %v7007
        %v7012 = vadd.f32 %v6884, %v7008
        %v7013 = vadd.f32 %v6885, %v7009
        %v7014 = vadd.f32 %v6886, %v7010
        %7015 = vset.pattern.permute.xlu0 35
        %7016 = vperm.xlu0 %7015, %v909
        %v7017 = vpop.permute.xlu0 %7016
        %7019 = vset.pattern.permute.xlu0 35
        %7020 = vperm.xlu0 %7019, %v910
        %v7021 = vpop.permute.xlu0 %7020
        %v7023 = vmul.f32 %v6301, %v7017
        %v7024 = vmul.f32 %v6302, %v7017
        %v7025 = vmul.f32 %v6303, %v7021
        %v7026 = vmul.f32 %v6304, %v7021
        %7027 = vset.pattern.permute.xlu0 36
        %7028 = vperm.xlu0 %7027, %v909
        %v7029 = vpop.permute.xlu0 %7028
        %7031 = vset.pattern.permute.xlu0 36
        %7032 = vperm.xlu0 %7031, %v910
        %v7033 = vpop.permute.xlu0 %7032
        %v7035 = vmul.f32 %v6317, %v7029
        %v7036 = vmul.f32 %v6318, %v7029
        %v7037 = vmul.f32 %v6319, %v7033
        %v7038 = vmul.f32 %v6320, %v7033
        %v7039 = vadd.f32 %v7023, %v7035
        %v7040 = vadd.f32 %v7024, %v7036
        %v7041 = vadd.f32 %v7025, %v7037
        %v7042 = vadd.f32 %v7026, %v7038
        %7043 = vset.pattern.permute.xlu0 37
        %7044 = vperm.xlu0 %7043, %v909
        %v7045 = vpop.permute.xlu0 %7044
        %7047 = vset.pattern.permute.xlu0 37
        %7048 = vperm.xlu0 %7047, %v910
        %v7049 = vpop.permute.xlu0 %7048
        %v7051 = vmul.f32 %v6333, %v7045
        %v7052 = vmul.f32 %v6334, %v7045
        %v7053 = vmul.f32 %v6335, %v7049
        %v7054 = vmul.f32 %v6336, %v7049
        %v7055 = vadd.f32 %v7039, %v7051
        %v7056 = vadd.f32 %v7040, %v7052
        %v7057 = vadd.f32 %v7041, %v7053
        %v7058 = vadd.f32 %v7042, %v7054
        %7059 = vset.pattern.permute.xlu0 38
        %7060 = vperm.xlu0 %7059, %v909
        %v7061 = vpop.permute.xlu0 %7060
        %7063 = vset.pattern.permute.xlu0 38
        %7064 = vperm.xlu0 %7063, %v910
        %v7065 = vpop.permute.xlu0 %7064
        %v7067 = vmul.f32 %v6337, %v7061
        %v7068 = vmul.f32 %v6338, %v7061
        %v7069 = vmul.f32 %v6339, %v7065
        %v7070 = vmul.f32 %v6340, %v7065
        %v7071 = vadd.f32 %v7055, %v7067
        %v7072 = vadd.f32 %v7056, %v7068
        %v7073 = vadd.f32 %v7057, %v7069
        %v7074 = vadd.f32 %v7058, %v7070
        %7075 = vset.pattern.permute.xlu0 39
        %7076 = vperm.xlu0 %7075, %v909
        %v7077 = vpop.permute.xlu0 %7076
        %7079 = vset.pattern.permute.xlu0 39
        %7080 = vperm.xlu0 %7079, %v910
        %v7081 = vpop.permute.xlu0 %7080
        %v7083 = vmul.f32 %v6353, %v7077
        %v7084 = vmul.f32 %v6354, %v7077
        %v7085 = vmul.f32 %v6355, %v7081
        %v7086 = vmul.f32 %v6356, %v7081
        %v7087 = vadd.f32 %v7071, %v7083
        %v7088 = vadd.f32 %v7072, %v7084
        %v7089 = vadd.f32 %v7073, %v7085
        %v7090 = vadd.f32 %v7074, %v7086
        %7091 = vset.pattern.permute.xlu0 40
        %7092 = vperm.xlu0 %7091, %v909
        %v7093 = vpop.permute.xlu0 %7092
        %7095 = vset.pattern.permute.xlu0 40
        %7096 = vperm.xlu0 %7095, %v910
        %v7097 = vpop.permute.xlu0 %7096
        %v7099 = vmul.f32 %v6369, %v7093
        %v7100 = vmul.f32 %v6370, %v7093
        %v7101 = vmul.f32 %v6371, %v7097
        %v7102 = vmul.f32 %v6372, %v7097
        %v7103 = vadd.f32 %v7087, %v7099
        %v7104 = vadd.f32 %v7088, %v7100
        %v7105 = vadd.f32 %v7089, %v7101
        %v7106 = vadd.f32 %v7090, %v7102
        %7107 = vset.pattern.permute.xlu0 41
        %7108 = vperm.xlu0 %7107, %v909
        %v7109 = vpop.permute.xlu0 %7108
        %7111 = vset.pattern.permute.xlu0 41
        %7112 = vperm.xlu0 %7111, %v910
        %v7113 = vpop.permute.xlu0 %7112
        %v7115 = vmul.f32 %v6385, %v7109
        %v7116 = vmul.f32 %v6386, %v7109
        %v7117 = vmul.f32 %v6387, %v7113
        %v7118 = vmul.f32 %v6388, %v7113
        %v7119 = vadd.f32 %v7103, %v7115
        %v7120 = vadd.f32 %v7104, %v7116
        %v7121 = vadd.f32 %v7105, %v7117
        %v7122 = vadd.f32 %v7106, %v7118
        %7123 = vrot.lane.b32.xlu0 %v7119, 32
        %v7124 = vpop.permute.xlu0 %7123
        %7125 = vrot.lane.b32.xlu0 %v7121, 32
        %v7126 = vpop.permute.xlu0 %7125
        %7127 = vrot.lane.b32.xlu0 %v7120, 32
        %v7128 = vpop.permute.xlu0 %7127
        %7129 = vrot.lane.b32.xlu0 %v7122, 32
        %v7130 = vpop.permute.xlu0 %7129
        %v7131 = vsel %vm1121, %v7124, %v7128
        %v7132 = vsel %vm1121, %v7126, %v7130
        %v7133 = vsel %vm1121, %v7128, %v7124
        %v7134 = vsel %vm1121, %v7130, %v7126
        %v7135 = vmul.f32 %v7131, %v2492
        %v7136 = vmul.f32 %v7133, %v2493
        %v7137 = vmul.f32 %v7132, %v2492
        %v7138 = vmul.f32 %v7134, %v2493
        %v7139 = vadd.f32 %v7011, %v7135
        %v7140 = vadd.f32 %v7012, %v7136
        %v7141 = vadd.f32 %v7013, %v7137
        %v7142 = vadd.f32 %v7014, %v7138
        %7143 = vset.pattern.permute.xlu0 42
        %7144 = vperm.xlu0 %7143, %v909
        %v7145 = vpop.permute.xlu0 %7144
        %7147 = vset.pattern.permute.xlu0 42
        %7148 = vperm.xlu0 %7147, %v910
        %v7149 = vpop.permute.xlu0 %7148
        %v7151 = vmul.f32 %v6301, %v7145
        %v7152 = vmul.f32 %v6302, %v7145
        %v7153 = vmul.f32 %v6303, %v7149
        %v7154 = vmul.f32 %v6304, %v7149
        %7155 = vset.pattern.permute.xlu0 43
        %7156 = vperm.xlu0 %7155, %v909
        %v7157 = vpop.permute.xlu0 %7156
        %7159 = vset.pattern.permute.xlu0 43
        %7160 = vperm.xlu0 %7159, %v910
        %v7161 = vpop.permute.xlu0 %7160
        %v7163 = vmul.f32 %v6317, %v7157
        %v7164 = vmul.f32 %v6318, %v7157
        %v7165 = vmul.f32 %v6319, %v7161
        %v7166 = vmul.f32 %v6320, %v7161
        %v7167 = vadd.f32 %v7151, %v7163
        %v7168 = vadd.f32 %v7152, %v7164
        %v7169 = vadd.f32 %v7153, %v7165
        %v7170 = vadd.f32 %v7154, %v7166
        %7171 = vset.pattern.permute.xlu0 44
        %7172 = vperm.xlu0 %7171, %v909
        %v7173 = vpop.permute.xlu0 %7172
        %7175 = vset.pattern.permute.xlu0 44
        %7176 = vperm.xlu0 %7175, %v910
        %v7177 = vpop.permute.xlu0 %7176
        %v7179 = vmul.f32 %v6333, %v7173
        %v7180 = vmul.f32 %v6334, %v7173
        %v7181 = vmul.f32 %v6335, %v7177
        %v7182 = vmul.f32 %v6336, %v7177
        %v7183 = vadd.f32 %v7167, %v7179
        %v7184 = vadd.f32 %v7168, %v7180
        %v7185 = vadd.f32 %v7169, %v7181
        %v7186 = vadd.f32 %v7170, %v7182
        %7187 = vset.pattern.permute.xlu0 45
        %7188 = vperm.xlu0 %7187, %v909
        %v7189 = vpop.permute.xlu0 %7188
        %7191 = vset.pattern.permute.xlu0 45
        %7192 = vperm.xlu0 %7191, %v910
        %v7193 = vpop.permute.xlu0 %7192
        %v7195 = vmul.f32 %v6337, %v7189
        %v7196 = vmul.f32 %v6338, %v7189
        %v7197 = vmul.f32 %v6339, %v7193
        %v7198 = vmul.f32 %v6340, %v7193
        %v7199 = vadd.f32 %v7183, %v7195
        %v7200 = vadd.f32 %v7184, %v7196
        %v7201 = vadd.f32 %v7185, %v7197
        %v7202 = vadd.f32 %v7186, %v7198
        %7203 = vset.pattern.permute.xlu0 46
        %7204 = vperm.xlu0 %7203, %v909
        %v7205 = vpop.permute.xlu0 %7204
        %7207 = vset.pattern.permute.xlu0 46
        %7208 = vperm.xlu0 %7207, %v910
        %v7209 = vpop.permute.xlu0 %7208
        %v7211 = vmul.f32 %v6353, %v7205
        %v7212 = vmul.f32 %v6354, %v7205
        %v7213 = vmul.f32 %v6355, %v7209
        %v7214 = vmul.f32 %v6356, %v7209
        %v7215 = vadd.f32 %v7199, %v7211
        %v7216 = vadd.f32 %v7200, %v7212
        %v7217 = vadd.f32 %v7201, %v7213
        %v7218 = vadd.f32 %v7202, %v7214
        %7219 = vset.pattern.permute.xlu0 47
        %7220 = vperm.xlu0 %7219, %v909
        %v7221 = vpop.permute.xlu0 %7220
        %7223 = vset.pattern.permute.xlu0 47
        %7224 = vperm.xlu0 %7223, %v910
        %v7225 = vpop.permute.xlu0 %7224
        %v7227 = vmul.f32 %v6369, %v7221
        %v7228 = vmul.f32 %v6370, %v7221
        %v7229 = vmul.f32 %v6371, %v7225
        %v7230 = vmul.f32 %v6372, %v7225
        %v7231 = vadd.f32 %v7215, %v7227
        %v7232 = vadd.f32 %v7216, %v7228
        %v7233 = vadd.f32 %v7217, %v7229
        %v7234 = vadd.f32 %v7218, %v7230
        %7235 = vset.pattern.permute.xlu0 48
        %7236 = vperm.xlu0 %7235, %v909
        %v7237 = vpop.permute.xlu0 %7236
        %7239 = vset.pattern.permute.xlu0 48
        %7240 = vperm.xlu0 %7239, %v910
        %v7241 = vpop.permute.xlu0 %7240
        %v7243 = vmul.f32 %v6385, %v7237
        %v7244 = vmul.f32 %v6386, %v7237
        %v7245 = vmul.f32 %v6387, %v7241
        %v7246 = vmul.f32 %v6388, %v7241
        %v7247 = vadd.f32 %v7231, %v7243
        %v7248 = vadd.f32 %v7232, %v7244
        %v7249 = vadd.f32 %v7233, %v7245
        %v7250 = vadd.f32 %v7234, %v7246
        %7251 = vrot.lane.b32.xlu0 %v7247, 112
        %v7252 = vpop.permute.xlu0 %7251
        %7253 = vrot.lane.b32.xlu0 %v7249, 112
        %v7254 = vpop.permute.xlu0 %7253
        %7255 = vrot.lane.b32.xlu0 %v7248, 112
        %v7256 = vpop.permute.xlu0 %7255
        %7257 = vrot.lane.b32.xlu0 %v7250, 112
        %v7258 = vpop.permute.xlu0 %7257
        %v7259 = vsel %vm1415, %v7252, %v7256
        %v7260 = vsel %vm1415, %v7254, %v7258
        %v7261 = vsel %vm1415, %v7256, %v7252
        %v7262 = vsel %vm1415, %v7258, %v7254
        %v7263 = vmul.f32 %v7261, %v2627
        %v7264 = vmul.f32 %v7259, %v2628
        %v7265 = vmul.f32 %v7262, %v2627
        %v7266 = vmul.f32 %v7260, %v2628
        %v7267 = vadd.f32 %v7139, %v7263
        %v7268 = vadd.f32 %v7140, %v7264
        %v7269 = vadd.f32 %v7141, %v7265
        %v7270 = vadd.f32 %v7142, %v7266
        %7272 = vset.pattern.permute.xlu0 0
        %7273 = vperm.xlu0 %7272, %v925
        %v7274 = vpop.permute.xlu0 %7273
        %7277 = vset.pattern.permute.xlu0 0
        %7278 = vperm.xlu0 %7277, %v926
        %v7279 = vpop.permute.xlu0 %7278
        %v7281 = vadd.f32 %v7267, %v7274
        %v7282 = vadd.f32 %v7268, %v7274
        %v7283 = vadd.f32 %v7269, %v7279
        %v7284 = vadd.f32 %v7270, %v7279
        %v7285 = vld [vmem:[%s11] sm:$0xff]
        %v7286 = vld [vmem:[%s11 + $0x8] sm:$0xff]
        %v7287 = vld [vmem:[%s11 + $0x10] sm:$0xff]
        %v7288 = vld [vmem:[%s11 + $0x18] sm:$0xff]
        %v7289 = vld [vmem:[%s11 + $0x20] sm:$0xff]
        %v7290 = vld [vmem:[%s11 + $0x28] sm:$0xff]
        %v7291 = vld [vmem:[%s11 + $0x30] sm:$0xff]
        %v7292 = vld [vmem:[%s11 + $0x38] sm:$0xff]
        %v7293 = vld [vmem:[%s12] sm:$0xff]
        %v7294 = vld [vmem:[%s12 + $0x8] sm:$0xff]
        %v7295 = vld [vmem:[%s12 + $0x10] sm:$0xff]
        %v7296 = vld [vmem:[%s12 + $0x18] sm:$0xff]
        %v7297 = vld [vmem:[%s12 + $0x20] sm:$0xff]
        %v7298 = vld [vmem:[%s12 + $0x28] sm:$0xff]
        %v7299 = vld [vmem:[%s12 + $0x30] sm:$0xff]
        %v7300 = vld [vmem:[%s12 + $0x38] sm:$0xff]
        %7302 = vset.pattern.permute.xlu0 0
        %7303 = vperm.xlu0 %7302, %v7293
        %v7304 = vpop.permute.xlu0 %7303
        %7307 = vset.pattern.permute.xlu0 0
        %7308 = vperm.xlu0 %7307, %v7294
        %v7309 = vpop.permute.xlu0 %7308
        %7312 = vset.pattern.permute.xlu0 0
        %7313 = vperm.xlu0 %7312, %v7295
        %v7314 = vpop.permute.xlu0 %7313
        %7317 = vset.pattern.permute.xlu0 0
        %7318 = vperm.xlu0 %7317, %v7296
        %v7319 = vpop.permute.xlu0 %7318
        %7322 = vset.pattern.permute.xlu0 0
        %7323 = vperm.xlu0 %7322, %v7297
        %v7324 = vpop.permute.xlu0 %7323
        %7327 = vset.pattern.permute.xlu0 0
        %7328 = vperm.xlu0 %7327, %v7298
        %v7329 = vpop.permute.xlu0 %7328
        %7332 = vset.pattern.permute.xlu0 0
        %7333 = vperm.xlu0 %7332, %v7299
        %v7334 = vpop.permute.xlu0 %7333
        %7337 = vset.pattern.permute.xlu0 0
        %7338 = vperm.xlu0 %7337, %v7300
        %v7339 = vpop.permute.xlu0 %7338
        %v7342 = vsel %vm644, %v7285, 0
        %v7345 = vsel %vm644, %v7286, 0
        %v7348 = vsel %vm644, %v7287, 0
        %v7351 = vsel %vm644, %v7288, 0
        %v7354 = vsel %vm644, %v7289, 0
        %v7357 = vsel %vm644, %v7290, 0
        %v7360 = vsel %vm644, %v7291, 0
        %v7363 = vsel %vm644, %v7292, 0
        %7365 = vmatpush.msra.mxu0 0.0
        %7366 = vmatpush.msra.mxu0 0.0
        %7367 = vmatpush.msra.mxu0 0.0
        %7368 = vmatpush.msra.mxu0 0.0
        %7369 = vmatpush.msra.mxu0 0.0
        %7370 = vmatpush.msra.mxu0 0.0
        %7371 = vmatpush.msra.mxu0 0.0
        %7372 = vmatpush.msra.mxu0 0.0
        %7373 = vmatpush.msra.mxu0 %v7283
        %7374 = vmatpush.msra.mxu0 %v7281
        %7375 = vmatpush.msra.mxu0 %v5739
        %7376 = vmatpush.msra.mxu0 %v5737
        %7377 = vmatpush.msra.mxu0 %v4195
        %7378 = vmatpush.msra.mxu0 %v4193
        %7379 = vmatpush.msra.mxu0 %v2651
        %7380 = vmatpush.msra.mxu0 %v2649
        %7381 = vmatmul.f32.gmra.mxu0 %v7342
        %v7382 = vpop.f32.mrf.mxu0
        %v7383 = vadd.f32 %v7304, %v7382
        %7384 = vmatmul.f32.gmra.mxu0 %v7345
        %v7385 = vpop.f32.mrf.mxu0
        %v7386 = vadd.f32 %v7309, %v7385
        %7387 = vmatmul.f32.gmra.mxu0 %v7348
        %v7388 = vpop.f32.mrf.mxu0
        %v7389 = vadd.f32 %v7314, %v7388
        %7390 = vmatmul.f32.gmra.mxu0 %v7351
        %v7391 = vpop.f32.mrf.mxu0
        %v7392 = vadd.f32 %v7319, %v7391
        %7393 = vmatmul.f32.gmra.mxu0 %v7354
        %v7394 = vpop.f32.mrf.mxu0
        %v7395 = vadd.f32 %v7324, %v7394
        %7396 = vmatmul.f32.gmra.mxu0 %v7357
        %v7397 = vpop.f32.mrf.mxu0
        %v7398 = vadd.f32 %v7329, %v7397
        %7399 = vmatmul.f32.gmra.mxu0 %v7360
        %v7400 = vpop.f32.mrf.mxu0
        %v7401 = vadd.f32 %v7334, %v7400
        %7402 = vmatmul.f32.gmra.mxu0 %v7363
        %v7403 = vpop.f32.mrf.mxu0
        %v7404 = vadd.f32 %v7339, %v7403
        %7405 = vdwg.mxu0
        %7406 = vmatpush.msra.mxu0 0.0
        %7407 = vmatpush.msra.mxu0 0.0
        %7408 = vmatpush.msra.mxu0 0.0
        %7409 = vmatpush.msra.mxu0 0.0
        %7410 = vmatpush.msra.mxu0 0.0
        %7411 = vmatpush.msra.mxu0 0.0
        %7412 = vmatpush.msra.mxu0 0.0
        %7413 = vmatpush.msra.mxu0 0.0
        %7414 = vmatpush.msra.mxu0 %v7284
        %7415 = vmatpush.msra.mxu0 %v7282
        %7416 = vmatpush.msra.mxu0 %v5740
        %7417 = vmatpush.msra.mxu0 %v5738
        %7418 = vmatpush.msra.mxu0 %v4196
        %7419 = vmatpush.msra.mxu0 %v4194
        %7420 = vmatpush.msra.mxu0 %v2652
        %7421 = vmatpush.msra.mxu0 %v2650
        %7422 = vmatmul.f32.gmra.mxu0 %v7342
        %v7423 = vpop.f32.mrf.mxu0
        %v7424 = vadd.f32 %v7304, %v7423
        %7425 = vmatmul.f32.gmra.mxu0 %v7345
        %v7426 = vpop.f32.mrf.mxu0
        %v7427 = vadd.f32 %v7309, %v7426
        %7428 = vmatmul.f32.gmra.mxu0 %v7348
        %v7429 = vpop.f32.mrf.mxu0
        %v7430 = vadd.f32 %v7314, %v7429
        %7431 = vmatmul.f32.gmra.mxu0 %v7351
        %v7432 = vpop.f32.mrf.mxu0
        %v7433 = vadd.f32 %v7319, %v7432
        %7434 = vmatmul.f32.gmra.mxu0 %v7354
        %v7435 = vpop.f32.mrf.mxu0
        %v7436 = vadd.f32 %v7324, %v7435
        %7437 = vmatmul.f32.gmra.mxu0 %v7357
        %v7438 = vpop.f32.mrf.mxu0
        %v7439 = vadd.f32 %v7329, %v7438
        %7440 = vmatmul.f32.gmra.mxu0 %v7360
        %v7441 = vpop.f32.mrf.mxu0
        %v7442 = vadd.f32 %v7334, %v7441
        %7443 = vmatmul.f32.gmra.mxu0 %v7363
        %v7444 = vpop.f32.mrf.mxu0
        %v7445 = vadd.f32 %v7339, %v7444
        %7446 = vdwg.mxu0
        %v7447 = vadd.f32 %v879, %v880
        %7448 = vadd.xlane.f32.xlu0 %v7447
        %v7449 = vpop.xlane.xlu0 %7448
        %v7450 = vadd.f32 %v881, %v882
        %7451 = vadd.xlane.f32.xlu0 %v7450
        %v7452 = vpop.xlane.xlu0 %7451
        %v7453 = vadd.f32 %v883, %v884
        %7454 = vadd.xlane.f32.xlu0 %v7453
        %v7455 = vpop.xlane.xlu0 %7454
        %v7456 = vadd.f32 %v885, %v886
        %7457 = vadd.xlane.f32.xlu0 %v7456
        %v7458 = vpop.xlane.xlu0 %7457
        %v7459 = vadd.f32 %v887, %v888
        %7460 = vadd.xlane.f32.xlu0 %v7459
        %v7461 = vpop.xlane.xlu0 %7460
        %v7462 = vadd.f32 %v889, %v890
        %7463 = vadd.xlane.f32.xlu0 %v7462
        %v7464 = vpop.xlane.xlu0 %7463
        %v7465 = vadd.f32 %v891, %v892
        %7466 = vadd.xlane.f32.xlu0 %v7465
        %v7467 = vpop.xlane.xlu0 %7466
        %v7468 = vadd.f32 %v893, %v894
        %7469 = vadd.xlane.f32.xlu0 %v7468
        %v7470 = vpop.xlane.xlu0 %7469
        %v7471 = vmul.f32 %v7449, 0.00390625
        %v7472 = vmul.f32 %v7452, 0.00390625
        %v7473 = vmul.f32 %v7455, 0.00390625
        %v7474 = vmul.f32 %v7458, 0.00390625
        %v7475 = vmul.f32 %v7461, 0.00390625
        %v7476 = vmul.f32 %v7464, 0.00390625
        %v7477 = vmul.f32 %v7467, 0.00390625
        %v7478 = vmul.f32 %v7470, 0.00390625
        %v7479 = vld [vmem:[%s13] sm:$0xff]
        %v7480 = vld [vmem:[%s13 + $0x8] sm:$0xff]
        %v7481 = vld [vmem:[%s13 + $0x10] sm:$0xff]
        %v7482 = vld [vmem:[%s13 + $0x18] sm:$0xff]
        %v7483 = vld [vmem:[%s13 + $0x20] sm:$0xff]
        %v7484 = vld [vmem:[%s13 + $0x28] sm:$0xff]
        %v7485 = vld [vmem:[%s13 + $0x30] sm:$0xff]
        %v7486 = vld [vmem:[%s13 + $0x38] sm:$0xff]
        %v7487 = vmul.f32 %v7479, %v7471
        %v7488 = vmul.f32 %v7480, %v7472
        %v7489 = vmul.f32 %v7481, %v7473
        %v7490 = vmul.f32 %v7482, %v7474
        %v7491 = vmul.f32 %v7483, %v7475
        %v7492 = vmul.f32 %v7484, %v7476
        %v7493 = vmul.f32 %v7485, %v7477
        %v7494 = vmul.f32 %v7486, %v7478
        %vm7495 = vcmask 130048
        %v7496 = vsel %vm7495, %v7487, 0.0
        %v7497 = vsel %vm7495, %v7488, 0.0
        %v7498 = vadd.f32 %v7496, %v7497
        %v7499 = vsel %vm7495, %v7489, 0.0
        %v7500 = vadd.f32 %v7498, %v7499
        %v7501 = vsel %vm7495, %v7490, 0.0
        %v7502 = vadd.f32 %v7500, %v7501
        %v7503 = vsel %vm7495, %v7491, 0.0
        %v7504 = vadd.f32 %v7502, %v7503
        %v7505 = vsel %vm7495, %v7492, 0.0
        %v7506 = vadd.f32 %v7504, %v7505
        %v7507 = vsel %vm7495, %v7493, 0.0
        %v7508 = vadd.f32 %v7506, %v7507
        %v7509 = vsel %vm7495, %v7494, 0.0
        %v7510 = vadd.f32 %v7508, %v7509
        %v7511 = vrot.slane %v7510, 4
        %v7512 = vadd.f32 %v7510, %v7511
        %v7513 = vrot.slane %v7512, 2
        %v7514 = vadd.f32 %v7512, %v7513
        %v7515 = vrot.slane %v7514, 1
        %v7516 = vadd.f32 %v7514, %v7515
        %v7517 = vmax.f32 %v7516, 0.0
        %v7518 = vld [vmem:[%s14] sm:$0xff]
        %v7519 = vld [vmem:[%s14 + $0x8] sm:$0xff]
        %v7520 = vld [vmem:[%s14 + $0x10] sm:$0xff]
        %v7521 = vld [vmem:[%s14 + $0x18] sm:$0xff]
        %v7522 = vld [vmem:[%s14 + $0x20] sm:$0xff]
        %v7523 = vld [vmem:[%s14 + $0x28] sm:$0xff]
        %v7524 = vld [vmem:[%s14 + $0x30] sm:$0xff]
        %v7525 = vld [vmem:[%s14 + $0x38] sm:$0xff]
        %v7526 = vmul.f32 %v7518, %v7517
        %v7527 = vmul.f32 %v7519, %v7517
        %v7528 = vmul.f32 %v7520, %v7517
        %v7529 = vmul.f32 %v7521, %v7517
        %v7530 = vmul.f32 %v7522, %v7517
        %v7531 = vmul.f32 %v7523, %v7517
        %v7532 = vmul.f32 %v7524, %v7517
        %v7533 = vmul.f32 %v7525, %v7517
        %v7534 = vsel %vm7495, %v7526, 0.0
        %7535 = vadd.xlane.f32.xlu0 %v7534
        %v7536 = vpop.xlane.xlu0 %7535
        %v7537 = vsel %vm7495, %v7527, 0.0
        %7538 = vadd.xlane.f32.xlu0 %v7537
        %v7539 = vpop.xlane.xlu0 %7538
        %v7540 = vsel %vm7495, %v7528, 0.0
        %7541 = vadd.xlane.f32.xlu0 %v7540
        %v7542 = vpop.xlane.xlu0 %7541
        %v7543 = vsel %vm7495, %v7529, 0.0
        %7544 = vadd.xlane.f32.xlu0 %v7543
        %v7545 = vpop.xlane.xlu0 %7544
        %v7546 = vsel %vm7495, %v7530, 0.0
        %7547 = vadd.xlane.f32.xlu0 %v7546
        %v7548 = vpop.xlane.xlu0 %7547
        %v7549 = vsel %vm7495, %v7531, 0.0
        %7550 = vadd.xlane.f32.xlu0 %v7549
        %v7551 = vpop.xlane.xlu0 %7550
        %v7552 = vsel %vm7495, %v7532, 0.0
        %7553 = vadd.xlane.f32.xlu0 %v7552
        %v7554 = vpop.xlane.xlu0 %7553
        %v7555 = vsel %vm7495, %v7533, 0.0
        %7556 = vadd.xlane.f32.xlu0 %v7555
        %v7557 = vpop.xlane.xlu0 %7556
        %v7558 = vxor.u32 %v7536, 2147483648
        %v7559 = vxor.u32 %v7539, 2147483648
        %v7560 = vxor.u32 %v7542, 2147483648
        %v7561 = vxor.u32 %v7545, 2147483648
        %v7562 = vxor.u32 %v7548, 2147483648
        %v7563 = vxor.u32 %v7551, 2147483648
        %v7564 = vxor.u32 %v7554, 2147483648
        %v7565 = vxor.u32 %v7557, 2147483648
        %v7566 = vmul.f32 %v7558, 1.442695
        %v7567 = vpow.pop %v7566
        %v7568 = vmul.f32 %v7559, 1.442695
        %v7569 = vpow.pop %v7568
        %v7570 = vmul.f32 %v7560, 1.442695
        %v7571 = vpow.pop %v7570
        %v7572 = vmul.f32 %v7561, 1.442695
        %v7573 = vpow.pop %v7572
        %v7574 = vmul.f32 %v7562, 1.442695
        %v7575 = vpow.pop %v7574
        %v7576 = vmul.f32 %v7563, 1.442695
        %v7577 = vpow.pop %v7576
        %v7578 = vmul.f32 %v7564, 1.442695
        %v7579 = vpow.pop %v7578
        %v7580 = vmul.f32 %v7565, 1.442695
        %v7581 = vpow.pop %v7580
        %v7582 = vadd.f32 %v7567, 1.0
        %v7583 = vadd.f32 %v7569, 1.0
        %v7584 = vadd.f32 %v7571, 1.0
        %v7585 = vadd.f32 %v7573, 1.0
        %v7586 = vadd.f32 %v7575, 1.0
        %v7587 = vadd.f32 %v7577, 1.0
        %v7588 = vadd.f32 %v7579, 1.0
        %v7589 = vadd.f32 %v7581, 1.0
        %v7590 = vrcp.pop %v7582
        %v7591 = vmul.f32 %v7582, %v7590
        %v7592 = vsub.f32 1.0, %v7591
        %v7593 = vmul.f32 %v7590, %v7592
        %v7594 = vadd.f32 %v7590, %v7593
        %vm7595 = vweird.f32 %v7582
        %vm7596 = vweird.f32 %v7590
        %vm7597 = vmor %vm7595, %vm7596
        %v7598 = vsel %vm7597, %v7590, %v7594
        %v7599 = vand.u32 2147483647, %v7582
        %vm7600 = vcmp.eq.f32.partialorder %v7599, 8.507059e+37
        %v7601 = vand.u32 %v7582, 2147483648
        %v7602 = vor.u32 1.1754944e-38, %v7601
        %v7603 = vsel %vm7600, %v7602, %v7598
        %v7604 = vmul.f32 1.0, %v7603
        %v7605 = vrcp.pop %v7583
        %v7606 = vmul.f32 %v7583, %v7605
        %v7607 = vsub.f32 1.0, %v7606
        %v7608 = vmul.f32 %v7605, %v7607
        %v7609 = vadd.f32 %v7605, %v7608
        %vm7610 = vweird.f32 %v7583
        %vm7611 = vweird.f32 %v7605
        %vm7612 = vmor %vm7610, %vm7611
        %v7613 = vsel %vm7612, %v7605, %v7609
        %v7614 = vand.u32 2147483647, %v7583
        %vm7615 = vcmp.eq.f32.partialorder %v7614, 8.507059e+37
        %v7616 = vand.u32 %v7583, 2147483648
        %v7617 = vor.u32 1.1754944e-38, %v7616
        %v7618 = vsel %vm7615, %v7617, %v7613
        %v7619 = vmul.f32 1.0, %v7618
        %v7620 = vrcp.pop %v7584
        %v7621 = vmul.f32 %v7584, %v7620
        %v7622 = vsub.f32 1.0, %v7621
        %v7623 = vmul.f32 %v7620, %v7622
        %v7624 = vadd.f32 %v7620, %v7623
        %vm7625 = vweird.f32 %v7584
        %vm7626 = vweird.f32 %v7620
        %vm7627 = vmor %vm7625, %vm7626
        %v7628 = vsel %vm7627, %v7620, %v7624
        %v7629 = vand.u32 2147483647, %v7584
        %vm7630 = vcmp.eq.f32.partialorder %v7629, 8.507059e+37
        %v7631 = vand.u32 %v7584, 2147483648
        %v7632 = vor.u32 1.1754944e-38, %v7631
        %v7633 = vsel %vm7630, %v7632, %v7628
        %v7634 = vmul.f32 1.0, %v7633
        %v7635 = vrcp.pop %v7585
        %v7636 = vmul.f32 %v7585, %v7635
        %v7637 = vsub.f32 1.0, %v7636
        %v7638 = vmul.f32 %v7635, %v7637
        %v7639 = vadd.f32 %v7635, %v7638
        %vm7640 = vweird.f32 %v7585
        %vm7641 = vweird.f32 %v7635
        %vm7642 = vmor %vm7640, %vm7641
        %v7643 = vsel %vm7642, %v7635, %v7639
        %v7644 = vand.u32 2147483647, %v7585
        %vm7645 = vcmp.eq.f32.partialorder %v7644, 8.507059e+37
        %v7646 = vand.u32 %v7585, 2147483648
        %v7647 = vor.u32 1.1754944e-38, %v7646
        %v7648 = vsel %vm7645, %v7647, %v7643
        %v7649 = vmul.f32 1.0, %v7648
        %v7650 = vrcp.pop %v7586
        %v7651 = vmul.f32 %v7586, %v7650
        %v7652 = vsub.f32 1.0, %v7651
        %v7653 = vmul.f32 %v7650, %v7652
        %v7654 = vadd.f32 %v7650, %v7653
        %vm7655 = vweird.f32 %v7586
        %vm7656 = vweird.f32 %v7650
        %vm7657 = vmor %vm7655, %vm7656
        %v7658 = vsel %vm7657, %v7650, %v7654
        %v7659 = vand.u32 2147483647, %v7586
        %vm7660 = vcmp.eq.f32.partialorder %v7659, 8.507059e+37
        %v7661 = vand.u32 %v7586, 2147483648
        %v7662 = vor.u32 1.1754944e-38, %v7661
        %v7663 = vsel %vm7660, %v7662, %v7658
        %v7664 = vmul.f32 1.0, %v7663
        %v7665 = vrcp.pop %v7587
        %v7666 = vmul.f32 %v7587, %v7665
        %v7667 = vsub.f32 1.0, %v7666
        %v7668 = vmul.f32 %v7665, %v7667
        %v7669 = vadd.f32 %v7665, %v7668
        %vm7670 = vweird.f32 %v7587
        %vm7671 = vweird.f32 %v7665
        %vm7672 = vmor %vm7670, %vm7671
        %v7673 = vsel %vm7672, %v7665, %v7669
        %v7674 = vand.u32 2147483647, %v7587
        %vm7675 = vcmp.eq.f32.partialorder %v7674, 8.507059e+37
        %v7676 = vand.u32 %v7587, 2147483648
        %v7677 = vor.u32 1.1754944e-38, %v7676
        %v7678 = vsel %vm7675, %v7677, %v7673
        %v7679 = vmul.f32 1.0, %v7678
        %v7680 = vrcp.pop %v7588
        %v7681 = vmul.f32 %v7588, %v7680
        %v7682 = vsub.f32 1.0, %v7681
        %v7683 = vmul.f32 %v7680, %v7682
        %v7684 = vadd.f32 %v7680, %v7683
        %vm7685 = vweird.f32 %v7588
        %vm7686 = vweird.f32 %v7680
        %vm7687 = vmor %vm7685, %vm7686
        %v7688 = vsel %vm7687, %v7680, %v7684
        %v7689 = vand.u32 2147483647, %v7588
        %vm7690 = vcmp.eq.f32.partialorder %v7689, 8.507059e+37
        %v7691 = vand.u32 %v7588, 2147483648
        %v7692 = vor.u32 1.1754944e-38, %v7691
        %v7693 = vsel %vm7690, %v7692, %v7688
        %v7694 = vmul.f32 1.0, %v7693
        %v7695 = vrcp.pop %v7589
        %v7696 = vmul.f32 %v7589, %v7695
        %v7697 = vsub.f32 1.0, %v7696
        %v7698 = vmul.f32 %v7695, %v7697
        %v7699 = vadd.f32 %v7695, %v7698
        %vm7700 = vweird.f32 %v7589
        %vm7701 = vweird.f32 %v7695
        %vm7702 = vmor %vm7700, %vm7701
        %v7703 = vsel %vm7702, %v7695, %v7699
        %v7704 = vand.u32 2147483647, %v7589
        %vm7705 = vcmp.eq.f32.partialorder %v7704, 8.507059e+37
        %v7706 = vand.u32 %v7589, 2147483648
        %v7707 = vor.u32 1.1754944e-38, %v7706
        %v7708 = vsel %vm7705, %v7707, %v7703
        %v7709 = vmul.f32 1.0, %v7708
        %v7710 = vmul.f32 %v7604, %v7383
        %v7711 = vmul.f32 %v7604, %v7424
        %v7712 = vmul.f32 %v7619, %v7386
        %v7713 = vmul.f32 %v7619, %v7427
        %v7714 = vmul.f32 %v7634, %v7389
        %v7715 = vmul.f32 %v7634, %v7430
        %v7716 = vmul.f32 %v7649, %v7392
        %v7717 = vmul.f32 %v7649, %v7433
        %v7718 = vmul.f32 %v7664, %v7395
        %v7719 = vmul.f32 %v7664, %v7436
        %v7720 = vmul.f32 %v7679, %v7398
        %v7721 = vmul.f32 %v7679, %v7439
        %v7722 = vmul.f32 %v7694, %v7401
        %v7723 = vmul.f32 %v7694, %v7442
        %v7724 = vmul.f32 %v7709, %v7404
        %v7725 = vmul.f32 %v7709, %v7445
        %v7726 = vmul.f32 %v7710, %v879
        %v7727 = vmul.f32 %v7711, %v880
        %v7728 = vmul.f32 %v7712, %v881
        %v7729 = vmul.f32 %v7713, %v882
        %v7730 = vmul.f32 %v7714, %v883
        %v7731 = vmul.f32 %v7715, %v884
        %v7732 = vmul.f32 %v7716, %v885
        %v7733 = vmul.f32 %v7717, %v886
        %v7734 = vmul.f32 %v7718, %v887
        %v7735 = vmul.f32 %v7719, %v888
        %v7736 = vmul.f32 %v7720, %v889
        %v7737 = vmul.f32 %v7721, %v890
        %v7738 = vmul.f32 %v7722, %v891
        %v7739 = vmul.f32 %v7723, %v892
        %v7740 = vmul.f32 %v7724, %v893
        %v7741 = vmul.f32 %v7725, %v894
        %v7742 = vld [vmem:[%s15] sm:$0xff]
        %v7743 = vld [vmem:[%s15 + $0x8] sm:$0xff]
        %v7744 = vld [vmem:[%s15 + $0x10] sm:$0xff]
        %v7745 = vld [vmem:[%s15 + $0x18] sm:$0xff]
        %v7746 = vld [vmem:[%s15 + $0x20] sm:$0xff]
        %v7747 = vld [vmem:[%s15 + $0x28] sm:$0xff]
        %v7748 = vld [vmem:[%s15 + $0x30] sm:$0xff]
        %v7749 = vld [vmem:[%s15 + $0x38] sm:$0xff]
        %v7750 = vld [vmem:[%s16] sm:$0xff]
        %v7751 = vld [vmem:[%s16 + $0x8] sm:$0xff]
        %v7752 = vld [vmem:[%s16 + $0x10] sm:$0xff]
        %v7753 = vld [vmem:[%s16 + $0x18] sm:$0xff]
        %v7754 = vld [vmem:[%s16 + $0x20] sm:$0xff]
        %v7755 = vld [vmem:[%s16 + $0x28] sm:$0xff]
        %v7756 = vld [vmem:[%s16 + $0x30] sm:$0xff]
        %v7757 = vld [vmem:[%s16 + $0x38] sm:$0xff]
        %7759 = vset.pattern.permute.xlu0 0
        %7760 = vperm.xlu0 %7759, %v7750
        %v7761 = vpop.permute.xlu0 %7760
        %7764 = vset.pattern.permute.xlu0 0
        %7765 = vperm.xlu0 %7764, %v7751
        %v7766 = vpop.permute.xlu0 %7765
        %7769 = vset.pattern.permute.xlu0 0
        %7770 = vperm.xlu0 %7769, %v7752
        %v7771 = vpop.permute.xlu0 %7770
        %7774 = vset.pattern.permute.xlu0 0
        %7775 = vperm.xlu0 %7774, %v7753
        %v7776 = vpop.permute.xlu0 %7775
        %7779 = vset.pattern.permute.xlu0 0
        %7780 = vperm.xlu0 %7779, %v7754
        %v7781 = vpop.permute.xlu0 %7780
        %7784 = vset.pattern.permute.xlu0 0
        %7785 = vperm.xlu0 %7784, %v7755
        %v7786 = vpop.permute.xlu0 %7785
        %7789 = vset.pattern.permute.xlu0 0
        %7790 = vperm.xlu0 %7789, %v7756
        %v7791 = vpop.permute.xlu0 %7790
        %7794 = vset.pattern.permute.xlu0 0
        %7795 = vperm.xlu0 %7794, %v7757
        %v7796 = vpop.permute.xlu0 %7795
        %v7799 = vsel %vm644, %v7742, 0
        %v7802 = vsel %vm644, %v7743, 0
        %v7805 = vsel %vm644, %v7744, 0
        %v7808 = vsel %vm644, %v7745, 0
        %v7811 = vsel %vm644, %v7746, 0
        %v7814 = vsel %vm644, %v7747, 0
        %v7817 = vsel %vm644, %v7748, 0
        %v7820 = vsel %vm644, %v7749, 0
        %7822 = vmatpush.msra.mxu0 0.0
        %7823 = vmatpush.msra.mxu0 0.0
        %7824 = vmatpush.msra.mxu0 0.0
        %7825 = vmatpush.msra.mxu0 0.0
        %7826 = vmatpush.msra.mxu0 0.0
        %7827 = vmatpush.msra.mxu0 0.0
        %7828 = vmatpush.msra.mxu0 0.0
        %7829 = vmatpush.msra.mxu0 0.0
        %7830 = vmatpush.msra.mxu0 %v7740
        %7831 = vmatpush.msra.mxu0 %v7738
        %7832 = vmatpush.msra.mxu0 %v7736
        %7833 = vmatpush.msra.mxu0 %v7734
        %7834 = vmatpush.msra.mxu0 %v7732
        %7835 = vmatpush.msra.mxu0 %v7730
        %7836 = vmatpush.msra.mxu0 %v7728
        %7837 = vmatpush.msra.mxu0 %v7726
        %7838 = vmatmul.f32.gmra.mxu0 %v7799
        %v7839 = vpop.f32.mrf.mxu0
        %v7840 = vadd.f32 %v7761, %v7839
        %7841 = vmatmul.f32.gmra.mxu0 %v7802
        %v7842 = vpop.f32.mrf.mxu0
        %v7843 = vadd.f32 %v7766, %v7842
        %7844 = vmatmul.f32.gmra.mxu0 %v7805
        %v7845 = vpop.f32.mrf.mxu0
        %v7846 = vadd.f32 %v7771, %v7845
        %7847 = vmatmul.f32.gmra.mxu0 %v7808
        %v7848 = vpop.f32.mrf.mxu0
        %v7849 = vadd.f32 %v7776, %v7848
        %7850 = vmatmul.f32.gmra.mxu0 %v7811
        %v7851 = vpop.f32.mrf.mxu0
        %v7852 = vadd.f32 %v7781, %v7851
        %7853 = vmatmul.f32.gmra.mxu0 %v7814
        %v7854 = vpop.f32.mrf.mxu0
        %v7855 = vadd.f32 %v7786, %v7854
        %7856 = vmatmul.f32.gmra.mxu0 %v7817
        %v7857 = vpop.f32.mrf.mxu0
        %v7858 = vadd.f32 %v7791, %v7857
        %7859 = vmatmul.f32.gmra.mxu0 %v7820
        %v7860 = vpop.f32.mrf.mxu0
        %v7861 = vadd.f32 %v7796, %v7860
        %7862 = vdwg.mxu0
        %7863 = vmatpush.msra.mxu0 0.0
        %7864 = vmatpush.msra.mxu0 0.0
        %7865 = vmatpush.msra.mxu0 0.0
        %7866 = vmatpush.msra.mxu0 0.0
        %7867 = vmatpush.msra.mxu0 0.0
        %7868 = vmatpush.msra.mxu0 0.0
        %7869 = vmatpush.msra.mxu0 0.0
        %7870 = vmatpush.msra.mxu0 0.0
        %7871 = vmatpush.msra.mxu0 %v7741
        %7872 = vmatpush.msra.mxu0 %v7739
        %7873 = vmatpush.msra.mxu0 %v7737
        %7874 = vmatpush.msra.mxu0 %v7735
        %7875 = vmatpush.msra.mxu0 %v7733
        %7876 = vmatpush.msra.mxu0 %v7731
        %7877 = vmatpush.msra.mxu0 %v7729
        %7878 = vmatpush.msra.mxu0 %v7727
        %7879 = vmatmul.f32.gmra.mxu0 %v7799
        %v7880 = vpop.f32.mrf.mxu0
        %v7881 = vadd.f32 %v7761, %v7880
        %7882 = vmatmul.f32.gmra.mxu0 %v7802
        %v7883 = vpop.f32.mrf.mxu0
        %v7884 = vadd.f32 %v7766, %v7883
        %7885 = vmatmul.f32.gmra.mxu0 %v7805
        %v7886 = vpop.f32.mrf.mxu0
        %v7887 = vadd.f32 %v7771, %v7886
        %7888 = vmatmul.f32.gmra.mxu0 %v7808
        %v7889 = vpop.f32.mrf.mxu0
        %v7890 = vadd.f32 %v7776, %v7889
        %7891 = vmatmul.f32.gmra.mxu0 %v7811
        %v7892 = vpop.f32.mrf.mxu0
        %v7893 = vadd.f32 %v7781, %v7892
        %7894 = vmatmul.f32.gmra.mxu0 %v7814
        %v7895 = vpop.f32.mrf.mxu0
        %v7896 = vadd.f32 %v7786, %v7895
        %7897 = vmatmul.f32.gmra.mxu0 %v7817
        %v7898 = vpop.f32.mrf.mxu0
        %v7899 = vadd.f32 %v7791, %v7898
        %7900 = vmatmul.f32.gmra.mxu0 %v7820
        %v7901 = vpop.f32.mrf.mxu0
        %v7902 = vadd.f32 %v7796, %v7901
        %7903 = vdwg.mxu0
        %v7904 = vadd.f32 %v7840, %v572
        %v7905 = vadd.f32 %v7881, %v573
        %v7906 = vadd.f32 %v7843, %v574
        %v7907 = vadd.f32 %v7884, %v575
        %v7908 = vadd.f32 %v7846, %v576
        %v7909 = vadd.f32 %v7887, %v577
        %v7910 = vadd.f32 %v7849, %v578
        %v7911 = vadd.f32 %v7890, %v579
        %v7912 = vadd.f32 %v7852, %v580
        %v7913 = vadd.f32 %v7893, %v581
        %v7914 = vadd.f32 %v7855, %v582
        %v7915 = vadd.f32 %v7896, %v583
        %v7916 = vadd.f32 %v7858, %v584
        %v7917 = vadd.f32 %v7899, %v585
        %v7918 = vadd.f32 %v7861, %v586
        %v7919 = vadd.f32 %v7902, %v587
        %7920 = vst [vmem:[%s569] sm:$0xff] %v7904
        %7921 = vst [vmem:[%s569 + $0x8] sm:$0xff] %v7905
        %7922 = vst [vmem:[%s569 + $0x10] sm:$0xff] %v7906
        %7923 = vst [vmem:[%s569 + $0x18] sm:$0xff] %v7907
        %7924 = vst [vmem:[%s569 + $0x20] sm:$0xff] %v7908
        %7925 = vst [vmem:[%s569 + $0x28] sm:$0xff] %v7909
        %7926 = vst [vmem:[%s569 + $0x30] sm:$0xff] %v7910
        %7927 = vst [vmem:[%s569 + $0x38] sm:$0xff] %v7911
        %7928 = vst [vmem:[%s569 + $0x40] sm:$0xff] %v7912
        %7929 = vst [vmem:[%s569 + $0x48] sm:$0xff] %v7913
        %7930 = vst [vmem:[%s569 + $0x50] sm:$0xff] %v7914
        %7931 = vst [vmem:[%s569 + $0x58] sm:$0xff] %v7915
        %7932 = vst [vmem:[%s569 + $0x60] sm:$0xff] %v7916
        %7933 = vst [vmem:[%s569 + $0x68] sm:$0xff] %v7917
        %7934 = vst [vmem:[%s569 + $0x70] sm:$0xff] %v7918
        %7935 = vst [vmem:[%s569 + $0x78] sm:$0xff] %v7919
        %s7936 = sand.u32 %s404, 1
        %s7937 = scalar_lea.sflag [#allocation4], %s7936
        %s7938 = sand.u32 %s404, 1
        %s7939 = smul.addr %s7938, 128
        %s7940 = scalar_lea.vmem [#allocation5], %s7939
        // Predicated region
        $region93: #{tpu_custom_call.1} parent=87 // pred_check
          %p7941 = pneg %p414
        $region94: #{tpu_custom_call.1} parent=87 // pred_check_branch
          %7943 = sbr.rel (%p7941) target = $region96
        $region95: #{tpu_custom_call.1} parent=87 // pred_region
          %s7944 = smul.u32 8, %s34
          %7946 = vsyncadd %s7937, 0
          %s7947 = smul.addr %s7944, 2
          %s7948 = smul.addr %s7947, 8
          %s7949 = scalar_lea.hbm %s17, %s7948
          %s7950 = sshll.u32 %s7940, 4
          %s7951 = int_to_ptr.vmem [resolvable:$true] %s7950
          %s7952 = sshll.u32 %s7949, 4
          %s7953 = int_to_ptr.hbm [resolvable:$true] %s7952
          %7958 = dma.vmem_to_hbm [thread:$0]  %s7951, 2048, %s7953, %s7937, 256, 256, 16
        $region96: #{tpu_custom_call.1} parent=87 // pred_fallthru
          _
      $region88: #{tpu_custom_call.1} parent=5 // pred_fallthru
        _
      %p7959 = scmp.le.s32.totalorder 2, %s29
      // Predicated region
      $region97: #{tpu_custom_call.1} parent=5 // pred_check
        %p7960 = pneg %p7959
      $region98: #{tpu_custom_call.1} parent=5 // pred_check_branch
        %7962 = sbr.rel (%p7960) target = $region100
      $region99: #{tpu_custom_call.1} parent=5 // pred_region
        %s7963 = ssub.s32 %s29, 2
        // Predicated region
        $region101: #{tpu_custom_call.1} parent=99 // pred_check
          %p7964 = pneg %p420
        $region102: #{tpu_custom_call.1} parent=99 // pred_check_branch
          %7966 = sbr.rel (%p7964) target = $region104
        $region103: #{tpu_custom_call.1} parent=99 // pred_region
          %s7967 = sand.u32 %s405, 1
          %s7968 = scalar_lea.sflag [#allocation4], %s7967
          %s7969 = sand.u32 %s405, 1
          %s7970 = smul.addr %s7969, 128
          %s7971 = scalar_lea.vmem [#allocation5], %s7970
          %7973 = dma.done %s7968, 2048
        $region104: #{tpu_custom_call.1} parent=99 // pred_fallthru
          _
      $region100: #{tpu_custom_call.1} parent=5 // pred_fallthru
        _
    $region6: #{tpu_custom_call.1} parent=1 // loop_footer
      %s33 = sadd.s32 1, %s29
    $region7: #{tpu_custom_call.1} parent=1 // loop_footer_branch
      %28 = sbr.rel target = $region3
    $region8: #{tpu_custom_call.1} parent=1 // loop_exit
      _
    %7974 = vsyncpa [#allocation3], 1
    %s7975 = scalar_lea.sflag [#allocation3], 1
    %7976 = vsyncpa %s7975, 1
    %7977 = vsyncpa [#allocation4], 1
    %s7978 = scalar_lea.sflag [#allocation4], 1
    %7979 = vsyncpa %s7978, 1

</llo_original>
